<compile_context>
chip_gen: v7x
topology: tpu7x:2x2x1
jax: 0.10.0
libtpu: 0.0.40
codegen_flags: <defaults>
</compile_context>

<pallas_src>
import math
import functools

import jax
import jax.numpy as jnp
from jax.experimental import pallas as pl
from jax.experimental.pallas import tpu as pltpu


# --------------------------------------------------------------------------
# Model-wide constants
# --------------------------------------------------------------------------
NCLASS = 2                      # vit_params['nclass']
EMB_CHANS = 64                  # vit_params['emb_chans']
MLP_RATIO = 3.0                 # vit_params['mlp_ratio']
STAGE_DIMS = (16, 32, 64, 128)  # c1..c4 channel dims (synthetic backbone)
STAGE_PATCH = (4, 2, 2, 2)      # overall strides 4, 8, 16, 32
PAD = 128                       # lane width used for in-kernel compute
MAX_TILE = 2048                 # row-tile cap; ~<12 MiB VMEM, safe on v7x too
VMEM_LIMIT = 32 * 1024 * 1024   # safe on v5e/v6e/v7x, far above actual use


def _round_up(n, m):
    return ((n + m - 1) // m) * m


def _row_tiling(n):
    """Row tile (multiple of 8, <= MAX_TILE) and padded row count.

    Single grid step unless N > MAX_TILE; when splitting, each step gets
    >= MAX_TILE/2 rows, so the MXU stays filled and a v7x megacore split is
    only taken when there is enough M per core."""
    n8 = _round_up(max(n, 8), 8)
    if n8 <= MAX_TILE:
        return n8, n8
    steps = -(-n8 // MAX_TILE)                 # cdiv
    tile = _round_up(-(-n8 // steps), 8)
    return tile, tile * steps


# --------------------------------------------------------------------------
# Pallas kernels
# --------------------------------------------------------------------------
def _stage_kernel(xp_ref, pw_ref, pb_ref, w1_ref, b1_ref, w2_ref, b2_ref,
                  ew_ref, eb_ref, feat_ref, emb_ref):
    """Fused backbone stage: patch-proj -> GELU -> MLP -> residual -> embed."""
    # patch-embed projection (bf16 MXU, f32 accumulate + epilogue)
    h0 = jnp.dot(xp_ref[...], pw_ref[...], preferred_element_type=jnp.float32)
    h0 = jax.nn.gelu(h0 + pb_ref[...], approximate=True)       # tanh -> EUP
    # channel-MLP hidden
    h1 = jnp.dot(h0.astype(jnp.bfloat16), w1_ref[...],
                 preferred_element_type=jnp.float32)
    h1 = jax.nn.gelu(h1 + b1_ref[...], approximate=True)
    # channel-MLP out + residual, all kept on-chip
    h2 = jnp.dot(h1.astype(jnp.bfloat16), w2_ref[...],
                 preferred_element_type=jnp.float32) + b2_ref[...]
    out = h0 + h2
    # store only the real channels (padded lanes are exactly zero by weight
    # construction); cuts the inter-stage HBM round trip 2-8x.
    feat_ref[...] = out[:, :feat_ref.shape[1]].astype(feat_ref.dtype)
    # decoder embedding projection fused into the stage (saves a launch + RT);
    # written 64-wide so only real channels ever hit HBM.
    emb = jnp.dot(out.astype(jnp.bfloat16), ew_ref[...],
                  preferred_element_type=jnp.float32) + eb_ref[...]
    emb_ref[...] = emb.astype(emb_ref.dtype)


def _decoder_kernel(e_ref, fw_ref, fb_ref, hw_ref, hb_ref, out_ref):
    """Fused DMLPv2 tail: concat-fuse matmul (full K=256) -> GELU -> head."""
    acc = jnp.dot(e_ref[...], fw_ref[...], preferred_element_type=jnp.float32)
    fused = jax.nn.gelu(acc + fb_ref[...], approximate=True)
    logits = jnp.dot(fused.astype(jnp.bfloat16), hw_ref[...],
                     preferred_element_type=jnp.float32) + hb_ref[...]
    out_ref[...] = logits.astype(out_ref.dtype)


# --------------------------------------------------------------------------
# pallas_call wrappers
# --------------------------------------------------------------------------
def pallas_stage(xp, st):
    """xp: (N, Kp) bf16 -> (feat (N, dim) bf16, emb (N, 64) bf16)."""
    n, kp = xp.shape
    c_real = st["dim"]
    hid_pad = st["w1"].shape[1]
    tile, n_pad = _row_tiling(n)
    if n_pad != n:
        xp = jnp.pad(xp, ((0, n_pad - n), (0, 0)))

    row_in = pl.BlockSpec((tile, kp), lambda i: (i, 0))
    const = lambda shape: pl.BlockSpec(shape, lambda i: (0, 0))

    wkeys = ("pw", "pb", "w1", "b1", "w2", "b2", "ew", "eb")
    weight_bytes = sum(int(st[k].size) * st[k].dtype.itemsize for k in wkeys)
    cost = pl.CostEstimate(
        flops=2 * n_pad * (kp * PAD + PAD * hid_pad + hid_pad * PAD
                           + PAD * EMB_CHANS),
        transcendentals=n_pad * (PAD + hid_pad),
        bytes_accessed=n_pad * kp * 2 + n_pad * (c_real + EMB_CHANS) * 2
                       + weight_bytes,
    )

    feat, emb = pl.pallas_call(
        _stage_kernel,
        out_shape=(jax.ShapeDtypeStruct((n_pad, c_real), jnp.bfloat16),
                   jax.ShapeDtypeStruct((n_pad, EMB_CHANS), jnp.bfloat16)),
        grid=(n_pad // tile,),
        in_specs=[
            row_in,
            const((kp, PAD)), const((1, PAD)),
            const((PAD, hid_pad)), const((1, hid_pad)),
            const((hid_pad, PAD)), const((1, PAD)),
            const((PAD, EMB_CHANS)), const((1, EMB_CHANS)),
        ],
        out_specs=(pl.BlockSpec((tile, c_real), lambda i: (i, 0)),
                   pl.BlockSpec((tile, EMB_CHANS), lambda i: (i, 0))),
        compiler_params=pltpu.CompilerParams(
            dimension_semantics=("parallel",),
            vmem_limit_bytes=VMEM_LIMIT),
        cost_estimate=cost,
    )(xp, st["pw"], st["pb"], st["w1"], st["b1"], st["w2"], st["b2"],
      st["ew"], st["eb"])
    if n_pad != n:
        feat, emb = feat[:n], emb[:n]
    return feat, emb


def pallas_decoder(e_cat, dp):
    """e_cat: (N, 256) bf16 -> logits (N, 128) bf16 (first NCLASS lanes valid)."""
    n, kcat = e_cat.shape
    tile, n_pad = _row_tiling(n)
    if n_pad != n:
        e_cat = jnp.pad(e_cat, ((0, n_pad - n), (0, 0)))

    weight_bytes = (int(dp["fw"].size) * 2 + int(dp["hw"].size) * 2
                    + int(dp["fb"].size) * 4 + int(dp["hb"].size) * 4)
    cost = pl.CostEstimate(
        flops=2 * n_pad * (kcat * PAD + PAD * PAD),
        transcendentals=n_pad * PAD,
        bytes_accessed=n_pad * kcat * 2 + n_pad * PAD * 2 + weight_bytes,
    )

    out = pl.pallas_call(
        _decoder_kernel,
        out_shape=jax.ShapeDtypeStruct((n_pad, PAD), jnp.bfloat16),
        grid=(n_pad // tile,),
        in_specs=[
            pl.BlockSpec((tile, kcat), lambda i: (i, 0)),
            pl.BlockSpec((kcat, PAD), lambda i: (0, 0)),
            pl.BlockSpec((1, PAD), lambda i: (0, 0)),
            pl.BlockSpec((PAD, PAD), lambda i: (0, 0)),
            pl.BlockSpec((1, PAD), lambda i: (0, 0)),
        ],
        out_specs=pl.BlockSpec((tile, PAD), lambda i: (i, 0)),
        compiler_params=pltpu.CompilerParams(
            dimension_semantics=("parallel",),
            vmem_limit_bytes=VMEM_LIMIT),
        cost_estimate=cost,
    )(e_cat, dp["fw"], dp["fb"], dp["hw"], dp["hb"])
    return out[:n] if n_pad != n else out


# --------------------------------------------------------------------------
# Plain-JAX glue: bilinear resize, align_corners=True (matches F.interpolate)
# --------------------------------------------------------------------------
def _resize_bilinear_ac(x, out_h, out_w, compute_dtype=jnp.float32):
    """x: (B, H, W, C) -> (B, out_h, out_w, C), align_corners=True."""
    x = x.astype(compute_dtype)
    B, H, W, C = x.shape
    if H == out_h and W == out_w:
        return x
    ys = jnp.linspace(0.0, H - 1.0, out_h) if out_h > 1 else jnp.zeros((out_h,), jnp.float32)
    xs = jnp.linspace(0.0, W - 1.0, out_w) if out_w > 1 else jnp.zeros((out_w,), jnp.float32)
    y0 = jnp.clip(jnp.floor(ys).astype(jnp.int32), 0, H - 1)
    y1 = jnp.clip(y0 + 1, 0, H - 1)
    x0 = jnp.clip(jnp.floor(xs).astype(jnp.int32), 0, W - 1)
    x1 = jnp.clip(x0 + 1, 0, W - 1)
    wy = (ys - y0.astype(jnp.float32)).astype(compute_dtype)[None, :, None, None]
    wx = (xs - x0.astype(jnp.float32)).astype(compute_dtype)[None, None, :, None]
    r0 = x[:, y0, :, :]
    r1 = x[:, y1, :, :]
    top = r0[:, :, x0, :] * (1 - wx) + r0[:, :, x1, :] * wx
    bot = r1[:, :, x0, :] * (1 - wx) + r1[:, :, x1, :] * wx
    return top * (1 - wy) + bot * wy


# --------------------------------------------------------------------------
# Parameter construction (deterministic, in-script, padded where needed)
# --------------------------------------------------------------------------
def _dense(key, k_in, k_out):
    kw, _ = jax.random.split(key)
    w = jax.random.normal(kw, (k_in, k_out), jnp.float32) * (1.0 / math.sqrt(k_in))
    b = jnp.zeros((k_out,), jnp.float32)
    return w, b


def _pad_rc(w, rows, cols):
    return jnp.pad(w, ((0, rows - w.shape[0]), (0, cols - w.shape[1])))


def build_params(seed=42):
    key = jax.random.PRNGKey(seed)
    backbone = []
    in_ch = 3                          # stage-1 input is the RGB image
    for dim, patch in zip(STAGE_DIMS, STAGE_PATCH):
        key, k1, k2, k3, k4 = jax.random.split(key, 5)
        hid = int(MLP_RATIO * dim)
        hid_pad = _round_up(hid, PAD)
        kp = patch * patch * in_ch
        pw, pb = _dense(k1, kp, dim)
        w1, b1 = _dense(k2, dim, hid)
        w2, b2 = _dense(k3, hid, dim)
        ew, eb = _dense(k4, dim, EMB_CHANS)
        backbone.append(dict(
            patch=patch, dim=dim,
            pw=_pad_rc(pw, kp, PAD).astype(jnp.bfloat16),
            pb=jnp.pad(pb, (0, PAD - dim)).reshape(1, PAD),
            w1=_pad_rc(w1, PAD, hid_pad).astype(jnp.bfloat16),
            b1=jnp.pad(b1, (0, hid_pad - hid)).reshape(1, hid_pad),
            w2=_pad_rc(w2, hid_pad, PAD).astype(jnp.bfloat16),
            b2=jnp.pad(b2, (0, PAD - dim)).reshape(1, PAD),
            ew=_pad_rc(ew, PAD, EMB_CHANS).astype(jnp.bfloat16),
            eb=eb.reshape(1, EMB_CHANS),
        ))
        in_ch = dim

    key, kf, kh = jax.random.split(key, 3)
    fuse_w, fuse_b = _dense(kf, 4 * EMB_CHANS, EMB_CHANS)
    head_w, head_b = _dense(kh, EMB_CHANS, NCLASS)
    dede = dict(
        fw=_pad_rc(fuse_w, 4 * EMB_CHANS, PAD).astype(jnp.bfloat16),
        fb=jnp.pad(fuse_b, (0, PAD - EMB_CHANS)).reshape(1, PAD),
        hw=_pad_rc(head_w, PAD, PAD).astype(jnp.bfloat16),
        hb=jnp.pad(head_b, (0, PAD - NCLASS)).reshape(1, PAD),
    )
    return {"backbone": backbone, "dede_head": dede}


# --------------------------------------------------------------------------
# Model forward
# --------------------------------------------------------------------------
def trans4pass_forward(params, x_nchw):
    B, _, H, W = x_nchw.shape
    cur = jnp.transpose(x_nchw, (0, 2, 3, 1)).astype(jnp.float32)  # NHWC

    # ---- encoder (synthetic tans_backbone stand-in), embeds fused in-stage --
    embs, shapes = [], []
    for st in params["backbone"]:
        patch = st["patch"]
        Bc, Hc, Wc, Cc = cur.shape
        ph, pw_ = Hc // patch, Wc // patch
        xp = cur.reshape(Bc, ph, patch, pw_, patch, Cc)
        xp = jnp.transpose(xp, (0, 1, 3, 2, 4, 5))
        xp = xp.reshape(Bc * ph * pw_, patch * patch * Cc).astype(jnp.bfloat16)
        feat, emb = pallas_stage(xp, st)
        cur = feat.reshape(Bc, ph, pw_, st["dim"])     # real channels only
        embs.append(emb.reshape(Bc, ph, pw_, EMB_CHANS))
        shapes.append((ph, pw_))
    H1, W1 = shapes[0]

    # ---- DMLPv2 decoder head (one fused fuse+head kernel) ------------------
    dp = params["dede_head"]
    N1 = B * H1 * W1
    e_cat = jnp.concatenate(
        [_resize_bilinear_ac(e, H1, W1, compute_dtype=jnp.bfloat16)
         for e in embs], axis=-1).reshape(N1, 4 * EMB_CHANS)
    logits = pallas_decoder(e_cat, dp)                  # (N1, 128) bf16
    logits = logits[:, :NCLASS].reshape(B, H1, W1, NCLASS)

    # ---- F.interpolate(x, size, mode='bilinear', align_corners=True) -------
    out = _resize_bilinear_ac(logits, H, W, compute_dtype=jnp.float32)
    return jnp.transpose(out, (0, 3, 1, 2))             # NCHW, f32


# --------------------------------------------------------------------------
if __name__ == "__main__":
    params = build_params(seed=42)
    key = jax.random.PRNGKey(0)
    x = jax.random.normal(key, (2, 3, 64, 64), jnp.float32)   # NCHW, c==3

    fwd = jax.jit(functools.partial(trans4pass_forward, params))
    out = fwd(x)
    out = jax.block_until_ready(out)

    assert out.shape == (2, NCLASS, 64, 64), out.shape
    assert out.dtype == jnp.float32
    assert bool(jnp.all(jnp.isfinite(out)))
    print("KERNEL_OK")
</pallas_src>

<mosaic_0001>
module attributes {stable_mosaic.version = 11 : i64} {
  func.func @_stage_kernel(%arg0: i32, %arg1: memref<512x48xbf16, #tpu.memory_space<vmem>>, %arg2: memref<48x128xbf16, #tpu.memory_space<vmem>>, %arg3: memref<1x128xf32, #tpu.memory_space<vmem>>, %arg4: memref<128x128xbf16, #tpu.memory_space<vmem>>, %arg5: memref<1x128xf32, #tpu.memory_space<vmem>>, %arg6: memref<128x128xbf16, #tpu.memory_space<vmem>>, %arg7: memref<1x128xf32, #tpu.memory_space<vmem>>, %arg8: memref<128x64xbf16, #tpu.memory_space<vmem>>, %arg9: memref<1x64xf32, #tpu.memory_space<vmem>>, %arg10: memref<512x16xbf16, #tpu.memory_space<vmem>>, %arg11: memref<512x64xbf16, #tpu.memory_space<vmem>>) attributes {dimension_semantics = [#tpu.dimension_semantics<parallel>], iteration_bounds = array<i64: 1>, scalar_prefetch = 0 : i64, scratch_operands = 0 : i64, tpu.core_type = #tpu.core_type<tc>, window_params = [{transform_indices = @transform_0, window_bounds = array<i64: 512, 48>}, {pipeline_mode = #tpu.pipeline_mode<synchronous>, transform_indices = @transform_1, window_bounds = array<i64: 48, 128>}, {pipeline_mode = #tpu.pipeline_mode<synchronous>, transform_indices = @transform_2, window_bounds = array<i64: 1, 128>}, {pipeline_mode = #tpu.pipeline_mode<synchronous>, transform_indices = @transform_3, window_bounds = array<i64: 128, 128>}, {pipeline_mode = #tpu.pipeline_mode<synchronous>, transform_indices = @transform_4, window_bounds = array<i64: 1, 128>}, {pipeline_mode = #tpu.pipeline_mode<synchronous>, transform_indices = @transform_5, window_bounds = array<i64: 128, 128>}, {pipeline_mode = #tpu.pipeline_mode<synchronous>, transform_indices = @transform_6, window_bounds = array<i64: 1, 128>}, {pipeline_mode = #tpu.pipeline_mode<synchronous>, transform_indices = @transform_7, window_bounds = array<i64: 128, 64>}, {pipeline_mode = #tpu.pipeline_mode<synchronous>, transform_indices = @transform_8, window_bounds = array<i64: 1, 64>}, {transform_indices = @transform_9, window_bounds = array<i64: 512, 16>}, {transform_indices = @transform_10, window_bounds = array<i64: 512, 64>}]} {
    %c0 = arith.constant 0 : index
    %c0_0 = arith.constant 0 : index
    %0 = vector.load %arg1[%c0, %c0_0] : memref<512x48xbf16, #tpu.memory_space<vmem>>, vector<512x48xbf16>
    %c0_1 = arith.constant 0 : index
    %c0_2 = arith.constant 0 : index
    %1 = vector.load %arg2[%c0_1, %c0_2] : memref<48x128xbf16, #tpu.memory_space<vmem>>, vector<48x128xbf16>
    %cst = arith.constant dense<0.000000e+00> : vector<512x128xf32>
    %2 = tpu.matmul %0, %1, %cst {dimension_numbers = #tpu.dot_dimension_numbers<[1], [0], [0], [1], [0, 0, 1, 1], [], []>} : vector<512x48xbf16>, vector<48x128xbf16>, vector<512x128xf32> -> vector<512x128xf32>
    %c0_3 = arith.constant 0 : index
    %c0_4 = arith.constant 0 : index
    %3 = vector.load %arg3[%c0_3, %c0_4] : memref<1x128xf32, #tpu.memory_space<vmem>>, vector<1x128xf32>
    %4 = vector.broadcast %3 : vector<1x128xf32> to vector<512x128xf32>
    %5 = arith.addf %2, %4 : vector<512x128xf32>
    %6 = arith.mulf %5, %5 : vector<512x128xf32>
    %7 = arith.mulf %5, %6 : vector<512x128xf32>
    %cst_5 = arith.constant 4.471500e-02 : f32
    %8 = vector.broadcast %cst_5 : f32 to vector<512x128xf32>
    %9 = arith.mulf %8, %7 : vector<512x128xf32>
    %10 = arith.addf %5, %9 : vector<512x128xf32>
    %cst_6 = arith.constant 0.797884583 : f32
    %11 = vector.broadcast %cst_6 : f32 to vector<512x128xf32>
    %12 = arith.mulf %11, %10 : vector<512x128xf32>
    %13 = math.tanh %12 : vector<512x128xf32>
    %cst_7 = arith.constant 1.000000e+00 : f32
    %14 = vector.broadcast %cst_7 : f32 to vector<512x128xf32>
    %15 = arith.addf %14, %13 : vector<512x128xf32>
    %cst_8 = arith.constant 5.000000e-01 : f32
    %16 = vector.broadcast %cst_8 : f32 to vector<512x128xf32>
    %17 = arith.mulf %16, %15 : vector<512x128xf32>
    %18 = arith.mulf %5, %17 : vector<512x128xf32>
    %19 = arith.truncf %18 : vector<512x128xf32> to vector<512x128xbf16>
    %c0_9 = arith.constant 0 : index
    %c0_10 = arith.constant 0 : index
    %20 = vector.load %arg4[%c0_9, %c0_10] : memref<128x128xbf16, #tpu.memory_space<vmem>>, vector<128x128xbf16>
    %cst_11 = arith.constant dense<0.000000e+00> : vector<512x128xf32>
    %21 = tpu.matmul %19, %20, %cst_11 {dimension_numbers = #tpu.dot_dimension_numbers<[1], [0], [0], [1], [0, 0, 1, 1], [], []>} : vector<512x128xbf16>, vector<128x128xbf16>, vector<512x128xf32> -> vector<512x128xf32>
    %c0_12 = arith.constant 0 : index
    %c0_13 = arith.constant 0 : index
    %22 = vector.load %arg5[%c0_12, %c0_13] : memref<1x128xf32, #tpu.memory_space<vmem>>, vector<1x128xf32>
    %23 = vector.broadcast %22 : vector<1x128xf32> to vector<512x128xf32>
    %24 = arith.addf %21, %23 : vector<512x128xf32>
    %25 = arith.mulf %24, %24 : vector<512x128xf32>
    %26 = arith.mulf %24, %25 : vector<512x128xf32>
    %cst_14 = arith.constant 4.471500e-02 : f32
    %27 = vector.broadcast %cst_14 : f32 to vector<512x128xf32>
    %28 = arith.mulf %27, %26 : vector<512x128xf32>
    %29 = arith.addf %24, %28 : vector<512x128xf32>
    %cst_15 = arith.constant 0.797884583 : f32
    %30 = vector.broadcast %cst_15 : f32 to vector<512x128xf32>
    %31 = arith.mulf %30, %29 : vector<512x128xf32>
    %32 = math.tanh %31 : vector<512x128xf32>
    %cst_16 = arith.constant 1.000000e+00 : f32
    %33 = vector.broadcast %cst_16 : f32 to vector<512x128xf32>
    %34 = arith.addf %33, %32 : vector<512x128xf32>
    %cst_17 = arith.constant 5.000000e-01 : f32
    %35 = vector.broadcast %cst_17 : f32 to vector<512x128xf32>
    %36 = arith.mulf %35, %34 : vector<512x128xf32>
    %37 = arith.mulf %24, %36 : vector<512x128xf32>
    %38 = arith.truncf %37 : vector<512x128xf32> to vector<512x128xbf16>
    %c0_18 = arith.constant 0 : index
    %c0_19 = arith.constant 0 : index
    %39 = vector.load %arg6[%c0_18, %c0_19] : memref<128x128xbf16, #tpu.memory_space<vmem>>, vector<128x128xbf16>
    %cst_20 = arith.constant dense<0.000000e+00> : vector<512x128xf32>
    %40 = tpu.matmul %38, %39, %cst_20 {dimension_numbers = #tpu.dot_dimension_numbers<[1], [0], [0], [1], [0, 0, 1, 1], [], []>} : vector<512x128xbf16>, vector<128x128xbf16>, vector<512x128xf32> -> vector<512x128xf32>
    %c0_21 = arith.constant 0 : index
    %c0_22 = arith.constant 0 : index
    %41 = vector.load %arg7[%c0_21, %c0_22] : memref<1x128xf32, #tpu.memory_space<vmem>>, vector<1x128xf32>
    %42 = vector.broadcast %41 : vector<1x128xf32> to vector<512x128xf32>
    %43 = arith.addf %40, %42 : vector<512x128xf32>
    %44 = arith.addf %18, %43 : vector<512x128xf32>
    %45 = vector.extract_strided_slice %44 {offsets = [0, 0], sizes = [512, 16], strides = [1, 1]} : vector<512x128xf32> to vector<512x16xf32>
    %46 = arith.truncf %45 : vector<512x16xf32> to vector<512x16xbf16>
    %c0_23 = arith.constant 0 : index
    %c0_24 = arith.constant 0 : index
    %47 = vector.load %arg10[%c0_23, %c0_24] : memref<512x16xbf16, #tpu.memory_space<vmem>>, vector<512x16xbf16>
    tpu.vector_store %arg10[%c0_23, %c0_24], %46 {strides = array<i32>} : memref<512x16xbf16, #tpu.memory_space<vmem>>, vector<512x16xbf16>,
    %48 = arith.truncf %44 : vector<512x128xf32> to vector<512x128xbf16>
    %c0_25 = arith.constant 0 : index
    %c0_26 = arith.constant 0 : index
    %49 = vector.load %arg8[%c0_25, %c0_26] : memref<128x64xbf16, #tpu.memory_space<vmem>>, vector<128x64xbf16>
    %cst_27 = arith.constant dense<0.000000e+00> : vector<512x64xf32>
    %50 = tpu.matmul %48, %49, %cst_27 {dimension_numbers = #tpu.dot_dimension_numbers<[1], [0], [0], [1], [0, 0, 1, 1], [], []>} : vector<512x128xbf16>, vector<128x64xbf16>, vector<512x64xf32> -> vector<512x64xf32>
    %c0_28 = arith.constant 0 : index
    %c0_29 = arith.constant 0 : index
    %51 = vector.load %arg9[%c0_28, %c0_29] : memref<1x64xf32, #tpu.memory_space<vmem>>, vector<1x64xf32>
    %52 = vector.broadcast %51 : vector<1x64xf32> to vector<512x64xf32>
    %53 = arith.addf %50, %52 : vector<512x64xf32>
    %54 = arith.truncf %53 : vector<512x64xf32> to vector<512x64xbf16>
    %c0_30 = arith.constant 0 : index
    %c0_31 = arith.constant 0 : index
    %55 = vector.load %arg11[%c0_30, %c0_31] : memref<512x64xbf16, #tpu.memory_space<vmem>>, vector<512x64xbf16>
    tpu.vector_store %arg11[%c0_30, %c0_31], %54 {strides = array<i32>} : memref<512x64xbf16, #tpu.memory_space<vmem>>, vector<512x64xbf16>,
    return
  }
  func.func @transform_0(%arg0: i32) -> (i32, i32) {
    %c0_i32 = arith.constant 0 : i32
    %c0_i32_0 = arith.constant 0 : i32
    return %arg0, %c0_i32 : i32, i32
  }
  func.func @transform_1(%arg0: i32) -> (i32, i32) {
    %c0_i32 = arith.constant 0 : i32
    %c0_i32_0 = arith.constant 0 : i32
    %c0_i32_1 = arith.constant 0 : i32
    return %c0_i32, %c0_i32_0 : i32, i32
  }
  func.func @transform_2(%arg0: i32) -> (i32, i32) {
    %c0_i32 = arith.constant 0 : i32
    %c0_i32_0 = arith.constant 0 : i32
    %c0_i32_1 = arith.constant 0 : i32
    return %c0_i32, %c0_i32_0 : i32, i32
  }
  func.func @transform_3(%arg0: i32) -> (i32, i32) {
    %c0_i32 = arith.constant 0 : i32
    %c0_i32_0 = arith.constant 0 : i32
    %c0_i32_1 = arith.constant 0 : i32
    return %c0_i32, %c0_i32_0 : i32, i32
  }
  func.func @transform_4(%arg0: i32) -> (i32, i32) {
    %c0_i32 = arith.constant 0 : i32
    %c0_i32_0 = arith.constant 0 : i32
    %c0_i32_1 = arith.constant 0 : i32
    return %c0_i32, %c0_i32_0 : i32, i32
  }
  func.func @transform_5(%arg0: i32) -> (i32, i32) {
    %c0_i32 = arith.constant 0 : i32
    %c0_i32_0 = arith.constant 0 : i32
    %c0_i32_1 = arith.constant 0 : i32
    return %c0_i32, %c0_i32_0 : i32, i32
  }
  func.func @transform_6(%arg0: i32) -> (i32, i32) {
    %c0_i32 = arith.constant 0 : i32
    %c0_i32_0 = arith.constant 0 : i32
    %c0_i32_1 = arith.constant 0 : i32
    return %c0_i32, %c0_i32_0 : i32, i32
  }
  func.func @transform_7(%arg0: i32) -> (i32, i32) {
    %c0_i32 = arith.constant 0 : i32
    %c0_i32_0 = arith.constant 0 : i32
    %c0_i32_1 = arith.constant 0 : i32
    return %c0_i32, %c0_i32_0 : i32, i32
  }
  func.func @transform_8(%arg0: i32) -> (i32, i32) {
    %c0_i32 = arith.constant 0 : i32
    %c0_i32_0 = arith.constant 0 : i32
    %c0_i32_1 = arith.constant 0 : i32
    return %c0_i32, %c0_i32_0 : i32, i32
  }
  func.func @transform_9(%arg0: i32) -> (i32, i32) {
    %c0_i32 = arith.constant 0 : i32
    %c0_i32_0 = arith.constant 0 : i32
    return %arg0, %c0_i32 : i32, i32
  }
  func.func @transform_10(%arg0: i32) -> (i32, i32) {
    %c0_i32 = arith.constant 0 : i32
    %c0_i32_0 = arith.constant 0 : i32
    return %arg0, %c0_i32 : i32, i32
  }
}

module attributes {stable_mosaic.version = 11 : i64} {
  func.func @_stage_kernel(%arg0: i32, %arg1: memref<128x64xbf16, #tpu.memory_space<vmem>>, %arg2: memref<64x128xbf16, #tpu.memory_space<vmem>>, %arg3: memref<1x128xf32, #tpu.memory_space<vmem>>, %arg4: memref<128x128xbf16, #tpu.memory_space<vmem>>, %arg5: memref<1x128xf32, #tpu.memory_space<vmem>>, %arg6: memref<128x128xbf16, #tpu.memory_space<vmem>>, %arg7: memref<1x128xf32, #tpu.memory_space<vmem>>, %arg8: memref<128x64xbf16, #tpu.memory_space<vmem>>, %arg9: memref<1x64xf32, #tpu.memory_space<vmem>>, %arg10: memref<128x32xbf16, #tpu.memory_space<vmem>>, %arg11: memref<128x64xbf16, #tpu.memory_space<vmem>>) attributes {dimension_semantics = [#tpu.dimension_semantics<parallel>], iteration_bounds = array<i64: 1>, scalar_prefetch = 0 : i64, scratch_operands = 0 : i64, tpu.core_type = #tpu.core_type<tc>, window_params = [{transform_indices = @transform_0, window_bounds = array<i64: 128, 64>}, {pipeline_mode = #tpu.pipeline_mode<synchronous>, transform_indices = @transform_1, window_bounds = array<i64: 64, 128>}, {pipeline_mode = #tpu.pipeline_mode<synchronous>, transform_indices = @transform_2, window_bounds = array<i64: 1, 128>}, {pipeline_mode = #tpu.pipeline_mode<synchronous>, transform_indices = @transform_3, window_bounds = array<i64: 128, 128>}, {pipeline_mode = #tpu.pipeline_mode<synchronous>, transform_indices = @transform_4, window_bounds = array<i64: 1, 128>}, {pipeline_mode = #tpu.pipeline_mode<synchronous>, transform_indices = @transform_5, window_bounds = array<i64: 128, 128>}, {pipeline_mode = #tpu.pipeline_mode<synchronous>, transform_indices = @transform_6, window_bounds = array<i64: 1, 128>}, {pipeline_mode = #tpu.pipeline_mode<synchronous>, transform_indices = @transform_7, window_bounds = array<i64: 128, 64>}, {pipeline_mode = #tpu.pipeline_mode<synchronous>, transform_indices = @transform_8, window_bounds = array<i64: 1, 64>}, {transform_indices = @transform_9, window_bounds = array<i64: 128, 32>}, {transform_indices = @transform_10, window_bounds = array<i64: 128, 64>}]} {
    %c0 = arith.constant 0 : index
    %c0_0 = arith.constant 0 : index
    %0 = vector.load %arg1[%c0, %c0_0] : memref<128x64xbf16, #tpu.memory_space<vmem>>, vector<128x64xbf16>
    %c0_1 = arith.constant 0 : index
    %c0_2 = arith.constant 0 : index
    %1 = vector.load %arg2[%c0_1, %c0_2] : memref<64x128xbf16, #tpu.memory_space<vmem>>, vector<64x128xbf16>
    %cst = arith.constant dense<0.000000e+00> : vector<128x128xf32>
    %2 = tpu.matmul %0, %1, %cst {dimension_numbers = #tpu.dot_dimension_numbers<[1], [0], [0], [1], [0, 0, 1, 1], [], []>} : vector<128x64xbf16>, vector<64x128xbf16>, vector<128x128xf32> -> vector<128x128xf32>
    %c0_3 = arith.constant 0 : index
    %c0_4 = arith.constant 0 : index
    %3 = vector.load %arg3[%c0_3, %c0_4] : memref<1x128xf32, #tpu.memory_space<vmem>>, vector<1x128xf32>
    %4 = vector.broadcast %3 : vector<1x128xf32> to vector<128x128xf32>
    %5 = arith.addf %2, %4 : vector<128x128xf32>
    %6 = arith.mulf %5, %5 : vector<128x128xf32>
    %7 = arith.mulf %5, %6 : vector<128x128xf32>
    %cst_5 = arith.constant 4.471500e-02 : f32
    %8 = vector.broadcast %cst_5 : f32 to vector<128x128xf32>
    %9 = arith.mulf %8, %7 : vector<128x128xf32>
    %10 = arith.addf %5, %9 : vector<128x128xf32>
    %cst_6 = arith.constant 0.797884583 : f32
    %11 = vector.broadcast %cst_6 : f32 to vector<128x128xf32>
    %12 = arith.mulf %11, %10 : vector<128x128xf32>
    %13 = math.tanh %12 : vector<128x128xf32>
    %cst_7 = arith.constant 1.000000e+00 : f32
    %14 = vector.broadcast %cst_7 : f32 to vector<128x128xf32>
    %15 = arith.addf %14, %13 : vector<128x128xf32>
    %cst_8 = arith.constant 5.000000e-01 : f32
    %16 = vector.broadcast %cst_8 : f32 to vector<128x128xf32>
    %17 = arith.mulf %16, %15 : vector<128x128xf32>
    %18 = arith.mulf %5, %17 : vector<128x128xf32>
    %19 = arith.truncf %18 : vector<128x128xf32> to vector<128x128xbf16>
    %c0_9 = arith.constant 0 : index
    %c0_10 = arith.constant 0 : index
    %20 = vector.load %arg4[%c0_9, %c0_10] : memref<128x128xbf16, #tpu.memory_space<vmem>>, vector<128x128xbf16>
    %cst_11 = arith.constant dense<0.000000e+00> : vector<128x128xf32>
    %21 = tpu.matmul %19, %20, %cst_11 {dimension_numbers = #tpu.dot_dimension_numbers<[1], [0], [0], [1], [0, 0, 1, 1], [], []>} : vector<128x128xbf16>, vector<128x128xbf16>, vector<128x128xf32> -> vector<128x128xf32>
    %c0_12 = arith.constant 0 : index
    %c0_13 = arith.constant 0 : index
    %22 = vector.load %arg5[%c0_12, %c0_13] : memref<1x128xf32, #tpu.memory_space<vmem>>, vector<1x128xf32>
    %23 = vector.broadcast %22 : vector<1x128xf32> to vector<128x128xf32>
    %24 = arith.addf %21, %23 : vector<128x128xf32>
    %25 = arith.mulf %24, %24 : vector<128x128xf32>
    %26 = arith.mulf %24, %25 : vector<128x128xf32>
    %cst_14 = arith.constant 4.471500e-02 : f32
    %27 = vector.broadcast %cst_14 : f32 to vector<128x128xf32>
    %28 = arith.mulf %27, %26 : vector<128x128xf32>
    %29 = arith.addf %24, %28 : vector<128x128xf32>
    %cst_15 = arith.constant 0.797884583 : f32
    %30 = vector.broadcast %cst_15 : f32 to vector<128x128xf32>
    %31 = arith.mulf %30, %29 : vector<128x128xf32>
    %32 = math.tanh %31 : vector<128x128xf32>
    %cst_16 = arith.constant 1.000000e+00 : f32
    %33 = vector.broadcast %cst_16 : f32 to vector<128x128xf32>
    %34 = arith.addf %33, %32 : vector<128x128xf32>
    %cst_17 = arith.constant 5.000000e-01 : f32
    %35 = vector.broadcast %cst_17 : f32 to vector<128x128xf32>
    %36 = arith.mulf %35, %34 : vector<128x128xf32>
    %37 = arith.mulf %24, %36 : vector<128x128xf32>
    %38 = arith.truncf %37 : vector<128x128xf32> to vector<128x128xbf16>
    %c0_18 = arith.constant 0 : index
    %c0_19 = arith.constant 0 : index
    %39 = vector.load %arg6[%c0_18, %c0_19] : memref<128x128xbf16, #tpu.memory_space<vmem>>, vector<128x128xbf16>
    %cst_20 = arith.constant dense<0.000000e+00> : vector<128x128xf32>
    %40 = tpu.matmul %38, %39, %cst_20 {dimension_numbers = #tpu.dot_dimension_numbers<[1], [0], [0], [1], [0, 0, 1, 1], [], []>} : vector<128x128xbf16>, vector<128x128xbf16>, vector<128x128xf32> -> vector<128x128xf32>
    %c0_21 = arith.constant 0 : index
    %c0_22 = arith.constant 0 : index
    %41 = vector.load %arg7[%c0_21, %c0_22] : memref<1x128xf32, #tpu.memory_space<vmem>>, vector<1x128xf32>
    %42 = vector.broadcast %41 : vector<1x128xf32> to vector<128x128xf32>
    %43 = arith.addf %40, %42 : vector<128x128xf32>
    %44 = arith.addf %18, %43 : vector<128x128xf32>
    %45 = vector.extract_strided_slice %44 {offsets = [0, 0], sizes = [128, 32], strides = [1, 1]} : vector<128x128xf32> to vector<128x32xf32>
    %46 = arith.truncf %45 : vector<128x32xf32> to vector<128x32xbf16>
    %c0_23 = arith.constant 0 : index
    %c0_24 = arith.constant 0 : index
    %47 = vector.load %arg10[%c0_23, %c0_24] : memref<128x32xbf16, #tpu.memory_space<vmem>>, vector<128x32xbf16>
    tpu.vector_store %arg10[%c0_23, %c0_24], %46 {strides = array<i32>} : memref<128x32xbf16, #tpu.memory_space<vmem>>, vector<128x32xbf16>,
    %48 = arith.truncf %44 : vector<128x128xf32> to vector<128x128xbf16>
    %c0_25 = arith.constant 0 : index
    %c0_26 = arith.constant 0 : index
    %49 = vector.load %arg8[%c0_25, %c0_26] : memref<128x64xbf16, #tpu.memory_space<vmem>>, vector<128x64xbf16>
    %cst_27 = arith.constant dense<0.000000e+00> : vector<128x64xf32>
    %50 = tpu.matmul %48, %49, %cst_27 {dimension_numbers = #tpu.dot_dimension_numbers<[1], [0], [0], [1], [0, 0, 1, 1], [], []>} : vector<128x128xbf16>, vector<128x64xbf16>, vector<128x64xf32> -> vector<128x64xf32>
    %c0_28 = arith.constant 0 : index
    %c0_29 = arith.constant 0 : index
    %51 = vector.load %arg9[%c0_28, %c0_29] : memref<1x64xf32, #tpu.memory_space<vmem>>, vector<1x64xf32>
    %52 = vector.broadcast %51 : vector<1x64xf32> to vector<128x64xf32>
    %53 = arith.addf %50, %52 : vector<128x64xf32>
    %54 = arith.truncf %53 : vector<128x64xf32> to vector<128x64xbf16>
    %c0_30 = arith.constant 0 : index
    %c0_31 = arith.constant 0 : index
    %55 = vector.load %arg11[%c0_30, %c0_31] : memref<128x64xbf16, #tpu.memory_space<vmem>>, vector<128x64xbf16>
    tpu.vector_store %arg11[%c0_30, %c0_31], %54 {strides = array<i32>} : memref<128x64xbf16, #tpu.memory_space<vmem>>, vector<128x64xbf16>,
    return
  }
  func.func @transform_0(%arg0: i32) -> (i32, i32) {
    %c0_i32 = arith.constant 0 : i32
    %c0_i32_0 = arith.constant 0 : i32
    return %arg0, %c0_i32 : i32, i32
  }
  func.func @transform_1(%arg0: i32) -> (i32, i32) {
    %c0_i32 = arith.constant 0 : i32
    %c0_i32_0 = arith.constant 0 : i32
    %c0_i32_1 = arith.constant 0 : i32
    return %c0_i32, %c0_i32_0 : i32, i32
  }
  func.func @transform_2(%arg0: i32) -> (i32, i32) {
    %c0_i32 = arith.constant 0 : i32
    %c0_i32_0 = arith.constant 0 : i32
    %c0_i32_1 = arith.constant 0 : i32
    return %c0_i32, %c0_i32_0 : i32, i32
  }
  func.func @transform_3(%arg0: i32) -> (i32, i32) {
    %c0_i32 = arith.constant 0 : i32
    %c0_i32_0 = arith.constant 0 : i32
    %c0_i32_1 = arith.constant 0 : i32
    return %c0_i32, %c0_i32_0 : i32, i32
  }
  func.func @transform_4(%arg0: i32) -> (i32, i32) {
    %c0_i32 = arith.constant 0 : i32
    %c0_i32_0 = arith.constant 0 : i32
    %c0_i32_1 = arith.constant 0 : i32
    return %c0_i32, %c0_i32_0 : i32, i32
  }
  func.func @transform_5(%arg0: i32) -> (i32, i32) {
    %c0_i32 = arith.constant 0 : i32
    %c0_i32_0 = arith.constant 0 : i32
    %c0_i32_1 = arith.constant 0 : i32
    return %c0_i32, %c0_i32_0 : i32, i32
  }
  func.func @transform_6(%arg0: i32) -> (i32, i32) {
    %c0_i32 = arith.constant 0 : i32
    %c0_i32_0 = arith.constant 0 : i32
    %c0_i32_1 = arith.constant 0 : i32
    return %c0_i32, %c0_i32_0 : i32, i32
  }
  func.func @transform_7(%arg0: i32) -> (i32, i32) {
    %c0_i32 = arith.constant 0 : i32
    %c0_i32_0 = arith.constant 0 : i32
    %c0_i32_1 = arith.constant 0 : i32
    return %c0_i32, %c0_i32_0 : i32, i32
  }
  func.func @transform_8(%arg0: i32) -> (i32, i32) {
    %c0_i32 = arith.constant 0 : i32
    %c0_i32_0 = arith.constant 0 : i32
    %c0_i32_1 = arith.constant 0 : i32
    return %c0_i32, %c0_i32_0 : i32, i32
  }
  func.func @transform_9(%arg0: i32) -> (i32, i32) {
    %c0_i32 = arith.constant 0 : i32
    %c0_i32_0 = arith.constant 0 : i32
    return %arg0, %c0_i32 : i32, i32
  }
  func.func @transform_10(%arg0: i32) -> (i32, i32) {
    %c0_i32 = arith.constant 0 : i32
    %c0_i32_0 = arith.constant 0 : i32
    return %arg0, %c0_i32 : i32, i32
  }
}

module attributes {stable_mosaic.version = 11 : i64} {
  func.func @_stage_kernel(%arg0: i32, %arg1: memref<32x128xbf16, #tpu.memory_space<vmem>>, %arg2: memref<128x128xbf16, #tpu.memory_space<vmem>>, %arg3: memref<1x128xf32, #tpu.memory_space<vmem>>, %arg4: memref<128x256xbf16, #tpu.memory_space<vmem>>, %arg5: memref<1x256xf32, #tpu.memory_space<vmem>>, %arg6: memref<256x128xbf16, #tpu.memory_space<vmem>>, %arg7: memref<1x128xf32, #tpu.memory_space<vmem>>, %arg8: memref<128x64xbf16, #tpu.memory_space<vmem>>, %arg9: memref<1x64xf32, #tpu.memory_space<vmem>>, %arg10: memref<32x64xbf16, #tpu.memory_space<vmem>>, %arg11: memref<32x64xbf16, #tpu.memory_space<vmem>>) attributes {dimension_semantics = [#tpu.dimension_semantics<parallel>], iteration_bounds = array<i64: 1>, scalar_prefetch = 0 : i64, scratch_operands = 0 : i64, tpu.core_type = #tpu.core_type<tc>, window_params = [{transform_indices = @transform_0, window_bounds = array<i64: 32, 128>}, {pipeline_mode = #tpu.pipeline_mode<synchronous>, transform_indices = @transform_1, window_bounds = array<i64: 128, 128>}, {pipeline_mode = #tpu.pipeline_mode<synchronous>, transform_indices = @transform_2, window_bounds = array<i64: 1, 128>}, {pipeline_mode = #tpu.pipeline_mode<synchronous>, transform_indices = @transform_3, window_bounds = array<i64: 128, 256>}, {pipeline_mode = #tpu.pipeline_mode<synchronous>, transform_indices = @transform_4, window_bounds = array<i64: 1, 256>}, {pipeline_mode = #tpu.pipeline_mode<synchronous>, transform_indices = @transform_5, window_bounds = array<i64: 256, 128>}, {pipeline_mode = #tpu.pipeline_mode<synchronous>, transform_indices = @transform_6, window_bounds = array<i64: 1, 128>}, {pipeline_mode = #tpu.pipeline_mode<synchronous>, transform_indices = @transform_7, window_bounds = array<i64: 128, 64>}, {pipeline_mode = #tpu.pipeline_mode<synchronous>, transform_indices = @transform_8, window_bounds = array<i64: 1, 64>}, {transform_indices = @transform_9, window_bounds = array<i64: 32, 64>}, {transform_indices = @transform_10, window_bounds = array<i64: 32, 64>}]} {
    %c0 = arith.constant 0 : index
    %c0_0 = arith.constant 0 : index
    %0 = vector.load %arg1[%c0, %c0_0] : memref<32x128xbf16, #tpu.memory_space<vmem>>, vector<32x128xbf16>
    %c0_1 = arith.constant 0 : index
    %c0_2 = arith.constant 0 : index
    %1 = vector.load %arg2[%c0_1, %c0_2] : memref<128x128xbf16, #tpu.memory_space<vmem>>, vector<128x128xbf16>
    %cst = arith.constant dense<0.000000e+00> : vector<32x128xf32>
    %2 = tpu.matmul %0, %1, %cst {dimension_numbers = #tpu.dot_dimension_numbers<[1], [0], [0], [1], [0, 0, 1, 1], [], []>} : vector<32x128xbf16>, vector<128x128xbf16>, vector<32x128xf32> -> vector<32x128xf32>
    %c0_3 = arith.constant 0 : index
    %c0_4 = arith.constant 0 : index
    %3 = vector.load %arg3[%c0_3, %c0_4] : memref<1x128xf32, #tpu.memory_space<vmem>>, vector<1x128xf32>
    %4 = vector.broadcast %3 : vector<1x128xf32> to vector<32x128xf32>
    %5 = arith.addf %2, %4 : vector<32x128xf32>
    %6 = arith.mulf %5, %5 : vector<32x128xf32>
    %7 = arith.mulf %5, %6 : vector<32x128xf32>
    %cst_5 = arith.constant 4.471500e-02 : f32
    %8 = vector.broadcast %cst_5 : f32 to vector<32x128xf32>
    %9 = arith.mulf %8, %7 : vector<32x128xf32>
    %10 = arith.addf %5, %9 : vector<32x128xf32>
    %cst_6 = arith.constant 0.797884583 : f32
    %11 = vector.broadcast %cst_6 : f32 to vector<32x128xf32>
    %12 = arith.mulf %11, %10 : vector<32x128xf32>
    %13 = math.tanh %12 : vector<32x128xf32>
    %cst_7 = arith.constant 1.000000e+00 : f32
    %14 = vector.broadcast %cst_7 : f32 to vector<32x128xf32>
    %15 = arith.addf %14, %13 : vector<32x128xf32>
    %cst_8 = arith.constant 5.000000e-01 : f32
    %16 = vector.broadcast %cst_8 : f32 to vector<32x128xf32>
    %17 = arith.mulf %16, %15 : vector<32x128xf32>
    %18 = arith.mulf %5, %17 : vector<32x128xf32>
    %19 = arith.truncf %18 : vector<32x128xf32> to vector<32x128xbf16>
    %c0_9 = arith.constant 0 : index
    %c0_10 = arith.constant 0 : index
    %20 = vector.load %arg4[%c0_9, %c0_10] : memref<128x256xbf16, #tpu.memory_space<vmem>>, vector<128x256xbf16>
    %cst_11 = arith.constant dense<0.000000e+00> : vector<32x256xf32>
    %21 = tpu.matmul %19, %20, %cst_11 {dimension_numbers = #tpu.dot_dimension_numbers<[1], [0], [0], [1], [0, 0, 1, 1], [], []>} : vector<32x128xbf16>, vector<128x256xbf16>, vector<32x256xf32> -> vector<32x256xf32>
    %c0_12 = arith.constant 0 : index
    %c0_13 = arith.constant 0 : index
    %22 = vector.load %arg5[%c0_12, %c0_13] : memref<1x256xf32, #tpu.memory_space<vmem>>, vector<1x256xf32>
    %23 = vector.broadcast %22 : vector<1x256xf32> to vector<32x256xf32>
    %24 = arith.addf %21, %23 : vector<32x256xf32>
    %25 = arith.mulf %24, %24 : vector<32x256xf32>
    %26 = arith.mulf %24, %25 : vector<32x256xf32>
    %cst_14 = arith.constant 4.471500e-02 : f32
    %27 = vector.broadcast %cst_14 : f32 to vector<32x256xf32>
    %28 = arith.mulf %27, %26 : vector<32x256xf32>
    %29 = arith.addf %24, %28 : vector<32x256xf32>
    %cst_15 = arith.constant 0.797884583 : f32
    %30 = vector.broadcast %cst_15 : f32 to vector<32x256xf32>
    %31 = arith.mulf %30, %29 : vector<32x256xf32>
    %32 = math.tanh %31 : vector<32x256xf32>
    %cst_16 = arith.constant 1.000000e+00 : f32
    %33 = vector.broadcast %cst_16 : f32 to vector<32x256xf32>
    %34 = arith.addf %33, %32 : vector<32x256xf32>
    %cst_17 = arith.constant 5.000000e-01 : f32
    %35 = vector.broadcast %cst_17 : f32 to vector<32x256xf32>
    %36 = arith.mulf %35, %34 : vector<32x256xf32>
    %37 = arith.mulf %24, %36 : vector<32x256xf32>
    %38 = arith.truncf %37 : vector<32x256xf32> to vector<32x256xbf16>
    %c0_18 = arith.constant 0 : index
    %c0_19 = arith.constant 0 : index
    %39 = vector.load %arg6[%c0_18, %c0_19] : memref<256x128xbf16, #tpu.memory_space<vmem>>, vector<256x128xbf16>
    %cst_20 = arith.constant dense<0.000000e+00> : vector<32x128xf32>
    %40 = tpu.matmul %38, %39, %cst_20 {dimension_numbers = #tpu.dot_dimension_numbers<[1], [0], [0], [1], [0, 0, 1, 1], [], []>} : vector<32x256xbf16>, vector<256x128xbf16>, vector<32x128xf32> -> vector<32x128xf32>
    %c0_21 = arith.constant 0 : index
    %c0_22 = arith.constant 0 : index
    %41 = vector.load %arg7[%c0_21, %c0_22] : memref<1x128xf32, #tpu.memory_space<vmem>>, vector<1x128xf32>
    %42 = vector.broadcast %41 : vector<1x128xf32> to vector<32x128xf32>
    %43 = arith.addf %40, %42 : vector<32x128xf32>
    %44 = arith.addf %18, %43 : vector<32x128xf32>
    %45 = vector.extract_strided_slice %44 {offsets = [0, 0], sizes = [32, 64], strides = [1, 1]} : vector<32x128xf32> to vector<32x64xf32>
    %46 = arith.truncf %45 : vector<32x64xf32> to vector<32x64xbf16>
    %c0_23 = arith.constant 0 : index
    %c0_24 = arith.constant 0 : index
    %47 = vector.load %arg10[%c0_23, %c0_24] : memref<32x64xbf16, #tpu.memory_space<vmem>>, vector<32x64xbf16>
    tpu.vector_store %arg10[%c0_23, %c0_24], %46 {strides = array<i32>} : memref<32x64xbf16, #tpu.memory_space<vmem>>, vector<32x64xbf16>,
    %48 = arith.truncf %44 : vector<32x128xf32> to vector<32x128xbf16>
    %c0_25 = arith.constant 0 : index
    %c0_26 = arith.constant 0 : index
    %49 = vector.load %arg8[%c0_25, %c0_26] : memref<128x64xbf16, #tpu.memory_space<vmem>>, vector<128x64xbf16>
    %cst_27 = arith.constant dense<0.000000e+00> : vector<32x64xf32>
    %50 = tpu.matmul %48, %49, %cst_27 {dimension_numbers = #tpu.dot_dimension_numbers<[1], [0], [0], [1], [0, 0, 1, 1], [], []>} : vector<32x128xbf16>, vector<128x64xbf16>, vector<32x64xf32> -> vector<32x64xf32>
    %c0_28 = arith.constant 0 : index
    %c0_29 = arith.constant 0 : index
    %51 = vector.load %arg9[%c0_28, %c0_29] : memref<1x64xf32, #tpu.memory_space<vmem>>, vector<1x64xf32>
    %52 = vector.broadcast %51 : vector<1x64xf32> to vector<32x64xf32>
    %53 = arith.addf %50, %52 : vector<32x64xf32>
    %54 = arith.truncf %53 : vector<32x64xf32> to vector<32x64xbf16>
    %c0_30 = arith.constant 0 : index
    %c0_31 = arith.constant 0 : index
    %55 = vector.load %arg11[%c0_30, %c0_31] : memref<32x64xbf16, #tpu.memory_space<vmem>>, vector<32x64xbf16>
    tpu.vector_store %arg11[%c0_30, %c0_31], %54 {strides = array<i32>} : memref<32x64xbf16, #tpu.memory_space<vmem>>, vector<32x64xbf16>,
    return
  }
  func.func @transform_0(%arg0: i32) -> (i32, i32) {
    %c0_i32 = arith.constant 0 : i32
    %c0_i32_0 = arith.constant 0 : i32
    return %arg0, %c0_i32 : i32, i32
  }
  func.func @transform_1(%arg0: i32) -> (i32, i32) {
    %c0_i32 = arith.constant 0 : i32
    %c0_i32_0 = arith.constant 0 : i32
    %c0_i32_1 = arith.constant 0 : i32
    return %c0_i32, %c0_i32_0 : i32, i32
  }
  func.func @transform_2(%arg0: i32) -> (i32, i32) {
    %c0_i32 = arith.constant 0 : i32
    %c0_i32_0 = arith.constant 0 : i32
    %c0_i32_1 = arith.constant 0 : i32
    return %c0_i32, %c0_i32_0 : i32, i32
  }
  func.func @transform_3(%arg0: i32) -> (i32, i32) {
    %c0_i32 = arith.constant 0 : i32
    %c0_i32_0 = arith.constant 0 : i32
    %c0_i32_1 = arith.constant 0 : i32
    return %c0_i32, %c0_i32_0 : i32, i32
  }
  func.func @transform_4(%arg0: i32) -> (i32, i32) {
    %c0_i32 = arith.constant 0 : i32
    %c0_i32_0 = arith.constant 0 : i32
    %c0_i32_1 = arith.constant 0 : i32
    return %c0_i32, %c0_i32_0 : i32, i32
  }
  func.func @transform_5(%arg0: i32) -> (i32, i32) {
    %c0_i32 = arith.constant 0 : i32
    %c0_i32_0 = arith.constant 0 : i32
    %c0_i32_1 = arith.constant 0 : i32
    return %c0_i32, %c0_i32_0 : i32, i32
  }
  func.func @transform_6(%arg0: i32) -> (i32, i32) {
    %c0_i32 = arith.constant 0 : i32
    %c0_i32_0 = arith.constant 0 : i32
    %c0_i32_1 = arith.constant 0 : i32
    return %c0_i32, %c0_i32_0 : i32, i32
  }
  func.func @transform_7(%arg0: i32) -> (i32, i32) {
    %c0_i32 = arith.constant 0 : i32
    %c0_i32_0 = arith.constant 0 : i32
    %c0_i32_1 = arith.constant 0 : i32
    return %c0_i32, %c0_i32_0 : i32, i32
  }
  func.func @transform_8(%arg0: i32) -> (i32, i32) {
    %c0_i32 = arith.constant 0 : i32
    %c0_i32_0 = arith.constant 0 : i32
    %c0_i32_1 = arith.constant 0 : i32
    return %c0_i32, %c0_i32_0 : i32, i32
  }
  func.func @transform_9(%arg0: i32) -> (i32, i32) {
    %c0_i32 = arith.constant 0 : i32
    %c0_i32_0 = arith.constant 0 : i32
    return %arg0, %c0_i32 : i32, i32
  }
  func.func @transform_10(%arg0: i32) -> (i32, i32) {
    %c0_i32 = arith.constant 0 : i32
    %c0_i32_0 = arith.constant 0 : i32
    return %arg0, %c0_i32 : i32, i32
  }
}

module attributes {stable_mosaic.version = 11 : i64} {
  func.func @_stage_kernel(%arg0: i32, %arg1: memref<8x256xbf16, #tpu.memory_space<vmem>>, %arg2: memref<256x128xbf16, #tpu.memory_space<vmem>>, %arg3: memref<1x128xf32, #tpu.memory_space<vmem>>, %arg4: memref<128x384xbf16, #tpu.memory_space<vmem>>, %arg5: memref<1x384xf32, #tpu.memory_space<vmem>>, %arg6: memref<384x128xbf16, #tpu.memory_space<vmem>>, %arg7: memref<1x128xf32, #tpu.memory_space<vmem>>, %arg8: memref<128x64xbf16, #tpu.memory_space<vmem>>, %arg9: memref<1x64xf32, #tpu.memory_space<vmem>>, %arg10: memref<8x128xbf16, #tpu.memory_space<vmem>>, %arg11: memref<8x64xbf16, #tpu.memory_space<vmem>>) attributes {dimension_semantics = [#tpu.dimension_semantics<parallel>], iteration_bounds = array<i64: 1>, scalar_prefetch = 0 : i64, scratch_operands = 0 : i64, tpu.core_type = #tpu.core_type<tc>, window_params = [{transform_indices = @transform_0, window_bounds = array<i64: 8, 256>}, {pipeline_mode = #tpu.pipeline_mode<synchronous>, transform_indices = @transform_1, window_bounds = array<i64: 256, 128>}, {pipeline_mode = #tpu.pipeline_mode<synchronous>, transform_indices = @transform_2, window_bounds = array<i64: 1, 128>}, {pipeline_mode = #tpu.pipeline_mode<synchronous>, transform_indices = @transform_3, window_bounds = array<i64: 128, 384>}, {pipeline_mode = #tpu.pipeline_mode<synchronous>, transform_indices = @transform_4, window_bounds = array<i64: 1, 384>}, {pipeline_mode = #tpu.pipeline_mode<synchronous>, transform_indices = @transform_5, window_bounds = array<i64: 384, 128>}, {pipeline_mode = #tpu.pipeline_mode<synchronous>, transform_indices = @transform_6, window_bounds = array<i64: 1, 128>}, {pipeline_mode = #tpu.pipeline_mode<synchronous>, transform_indices = @transform_7, window_bounds = array<i64: 128, 64>}, {pipeline_mode = #tpu.pipeline_mode<synchronous>, transform_indices = @transform_8, window_bounds = array<i64: 1, 64>}, {transform_indices = @transform_9, window_bounds = array<i64: 8, 128>}, {transform_indices = @transform_10, window_bounds = array<i64: 8, 64>}]} {
    %c0 = arith.constant 0 : index
    %c0_0 = arith.constant 0 : index
    %0 = vector.load %arg1[%c0, %c0_0] : memref<8x256xbf16, #tpu.memory_space<vmem>>, vector<8x256xbf16>
    %c0_1 = arith.constant 0 : index
    %c0_2 = arith.constant 0 : index
    %1 = vector.load %arg2[%c0_1, %c0_2] : memref<256x128xbf16, #tpu.memory_space<vmem>>, vector<256x128xbf16>
    %cst = arith.constant dense<0.000000e+00> : vector<8x128xf32>
    %2 = tpu.matmul %0, %1, %cst {dimension_numbers = #tpu.dot_dimension_numbers<[1], [0], [0], [1], [0, 0, 1, 1], [], []>} : vector<8x256xbf16>, vector<256x128xbf16>, vector<8x128xf32> -> vector<8x128xf32>
    %c0_3 = arith.constant 0 : index
    %c0_4 = arith.constant 0 : index
    %3 = vector.load %arg3[%c0_3, %c0_4] : memref<1x128xf32, #tpu.memory_space<vmem>>, vector<1x128xf32>
    %4 = vector.broadcast %3 : vector<1x128xf32> to vector<8x128xf32>
    %5 = arith.addf %2, %4 : vector<8x128xf32>
    %6 = arith.mulf %5, %5 : vector<8x128xf32>
    %7 = arith.mulf %5, %6 : vector<8x128xf32>
    %cst_5 = arith.constant 4.471500e-02 : f32
    %8 = vector.broadcast %cst_5 : f32 to vector<8x128xf32>
    %9 = arith.mulf %8, %7 : vector<8x128xf32>
    %10 = arith.addf %5, %9 : vector<8x128xf32>
    %cst_6 = arith.constant 0.797884583 : f32
    %11 = vector.broadcast %cst_6 : f32 to vector<8x128xf32>
    %12 = arith.mulf %11, %10 : vector<8x128xf32>
    %13 = math.tanh %12 : vector<8x128xf32>
    %cst_7 = arith.constant 1.000000e+00 : f32
    %14 = vector.broadcast %cst_7 : f32 to vector<8x128xf32>
    %15 = arith.addf %14, %13 : vector<8x128xf32>
    %cst_8 = arith.constant 5.000000e-01 : f32
    %16 = vector.broadcast %cst_8 : f32 to vector<8x128xf32>
    %17 = arith.mulf %16, %15 : vector<8x128xf32>
    %18 = arith.mulf %5, %17 : vector<8x128xf32>
    %19 = arith.truncf %18 : vector<8x128xf32> to vector<8x128xbf16>
    %c0_9 = arith.constant 0 : index
    %c0_10 = arith.constant 0 : index
    %20 = vector.load %arg4[%c0_9, %c0_10] : memref<128x384xbf16, #tpu.memory_space<vmem>>, vector<128x384xbf16>
    %cst_11 = arith.constant dense<0.000000e+00> : vector<8x384xf32>
    %21 = tpu.matmul %19, %20, %cst_11 {dimension_numbers = #tpu.dot_dimension_numbers<[1], [0], [0], [1], [0, 0, 1, 1], [], []>} : vector<8x128xbf16>, vector<128x384xbf16>, vector<8x384xf32> -> vector<8x384xf32>
    %c0_12 = arith.constant 0 : index
    %c0_13 = arith.constant 0 : index
    %22 = vector.load %arg5[%c0_12, %c0_13] : memref<1x384xf32, #tpu.memory_space<vmem>>, vector<1x384xf32>
    %23 = vector.broadcast %22 : vector<1x384xf32> to vector<8x384xf32>
    %24 = arith.addf %21, %23 : vector<8x384xf32>
    %25 = arith.mulf %24, %24 : vector<8x384xf32>
    %26 = arith.mulf %24, %25 : vector<8x384xf32>
    %cst_14 = arith.constant 4.471500e-02 : f32
    %27 = vector.broadcast %cst_14 : f32 to vector<8x384xf32>
    %28 = arith.mulf %27, %26 : vector<8x384xf32>
    %29 = arith.addf %24, %28 : vector<8x384xf32>
    %cst_15 = arith.constant 0.797884583 : f32
    %30 = vector.broadcast %cst_15 : f32 to vector<8x384xf32>
    %31 = arith.mulf %30, %29 : vector<8x384xf32>
    %32 = math.tanh %31 : vector<8x384xf32>
    %cst_16 = arith.constant 1.000000e+00 : f32
    %33 = vector.broadcast %cst_16 : f32 to vector<8x384xf32>
    %34 = arith.addf %33, %32 : vector<8x384xf32>
    %cst_17 = arith.constant 5.000000e-01 : f32
    %35 = vector.broadcast %cst_17 : f32 to vector<8x384xf32>
    %36 = arith.mulf %35, %34 : vector<8x384xf32>
    %37 = arith.mulf %24, %36 : vector<8x384xf32>
    %38 = arith.truncf %37 : vector<8x384xf32> to vector<8x384xbf16>
    %c0_18 = arith.constant 0 : index
    %c0_19 = arith.constant 0 : index
    %39 = vector.load %arg6[%c0_18, %c0_19] : memref<384x128xbf16, #tpu.memory_space<vmem>>, vector<384x128xbf16>
    %cst_20 = arith.constant dense<0.000000e+00> : vector<8x128xf32>
    %40 = tpu.matmul %38, %39, %cst_20 {dimension_numbers = #tpu.dot_dimension_numbers<[1], [0], [0], [1], [0, 0, 1, 1], [], []>} : vector<8x384xbf16>, vector<384x128xbf16>, vector<8x128xf32> -> vector<8x128xf32>
    %c0_21 = arith.constant 0 : index
    %c0_22 = arith.constant 0 : index
    %41 = vector.load %arg7[%c0_21, %c0_22] : memref<1x128xf32, #tpu.memory_space<vmem>>, vector<1x128xf32>
    %42 = vector.broadcast %41 : vector<1x128xf32> to vector<8x128xf32>
    %43 = arith.addf %40, %42 : vector<8x128xf32>
    %44 = arith.addf %18, %43 : vector<8x128xf32>
    %45 = arith.truncf %44 : vector<8x128xf32> to vector<8x128xbf16>
    %c0_23 = arith.constant 0 : index
    %c0_24 = arith.constant 0 : index
    %46 = vector.load %arg10[%c0_23, %c0_24] : memref<8x128xbf16, #tpu.memory_space<vmem>>, vector<8x128xbf16>
    tpu.vector_store %arg10[%c0_23, %c0_24], %45 {strides = array<i32>} : memref<8x128xbf16, #tpu.memory_space<vmem>>, vector<8x128xbf16>,
    %47 = arith.truncf %44 : vector<8x128xf32> to vector<8x128xbf16>
    %c0_25 = arith.constant 0 : index
    %c0_26 = arith.constant 0 : index
    %48 = vector.load %arg8[%c0_25, %c0_26] : memref<128x64xbf16, #tpu.memory_space<vmem>>, vector<128x64xbf16>
    %cst_27 = arith.constant dense<0.000000e+00> : vector<8x64xf32>
    %49 = tpu.matmul %47, %48, %cst_27 {dimension_numbers = #tpu.dot_dimension_numbers<[1], [0], [0], [1], [0, 0, 1, 1], [], []>} : vector<8x128xbf16>, vector<128x64xbf16>, vector<8x64xf32> -> vector<8x64xf32>
    %c0_28 = arith.constant 0 : index
    %c0_29 = arith.constant 0 : index
    %50 = vector.load %arg9[%c0_28, %c0_29] : memref<1x64xf32, #tpu.memory_space<vmem>>, vector<1x64xf32>
    %51 = vector.broadcast %50 : vector<1x64xf32> to vector<8x64xf32>
    %52 = arith.addf %49, %51 : vector<8x64xf32>
    %53 = arith.truncf %52 : vector<8x64xf32> to vector<8x64xbf16>
    %c0_30 = arith.constant 0 : index
    %c0_31 = arith.constant 0 : index
    %54 = vector.load %arg11[%c0_30, %c0_31] : memref<8x64xbf16, #tpu.memory_space<vmem>>, vector<8x64xbf16>
    tpu.vector_store %arg11[%c0_30, %c0_31], %53 {strides = array<i32>} : memref<8x64xbf16, #tpu.memory_space<vmem>>, vector<8x64xbf16>,
    return
  }
  func.func @transform_0(%arg0: i32) -> (i32, i32) {
    %c0_i32 = arith.constant 0 : i32
    %c0_i32_0 = arith.constant 0 : i32
    return %arg0, %c0_i32 : i32, i32
  }
  func.func @transform_1(%arg0: i32) -> (i32, i32) {
    %c0_i32 = arith.constant 0 : i32
    %c0_i32_0 = arith.constant 0 : i32
    %c0_i32_1 = arith.constant 0 : i32
    return %c0_i32, %c0_i32_0 : i32, i32
  }
  func.func @transform_2(%arg0: i32) -> (i32, i32) {
    %c0_i32 = arith.constant 0 : i32
    %c0_i32_0 = arith.constant 0 : i32
    %c0_i32_1 = arith.constant 0 : i32
    return %c0_i32, %c0_i32_0 : i32, i32
  }
  func.func @transform_3(%arg0: i32) -> (i32, i32) {
    %c0_i32 = arith.constant 0 : i32
    %c0_i32_0 = arith.constant 0 : i32
    %c0_i32_1 = arith.constant 0 : i32
    return %c0_i32, %c0_i32_0 : i32, i32
  }
  func.func @transform_4(%arg0: i32) -> (i32, i32) {
    %c0_i32 = arith.constant 0 : i32
    %c0_i32_0 = arith.constant 0 : i32
    %c0_i32_1 = arith.constant 0 : i32
    return %c0_i32, %c0_i32_0 : i32, i32
  }
  func.func @transform_5(%arg0: i32) -> (i32, i32) {
    %c0_i32 = arith.constant 0 : i32
    %c0_i32_0 = arith.constant 0 : i32
    %c0_i32_1 = arith.constant 0 : i32
    return %c0_i32, %c0_i32_0 : i32, i32
  }
  func.func @transform_6(%arg0: i32) -> (i32, i32) {
    %c0_i32 = arith.constant 0 : i32
    %c0_i32_0 = arith.constant 0 : i32
    %c0_i32_1 = arith.constant 0 : i32
    return %c0_i32, %c0_i32_0 : i32, i32
  }
  func.func @transform_7(%arg0: i32) -> (i32, i32) {
    %c0_i32 = arith.constant 0 : i32
    %c0_i32_0 = arith.constant 0 : i32
    %c0_i32_1 = arith.constant 0 : i32
    return %c0_i32, %c0_i32_0 : i32, i32
  }
  func.func @transform_8(%arg0: i32) -> (i32, i32) {
    %c0_i32 = arith.constant 0 : i32
    %c0_i32_0 = arith.constant 0 : i32
    %c0_i32_1 = arith.constant 0 : i32
    return %c0_i32, %c0_i32_0 : i32, i32
  }
  func.func @transform_9(%arg0: i32) -> (i32, i32) {
    %c0_i32 = arith.constant 0 : i32
    %c0_i32_0 = arith.constant 0 : i32
    return %arg0, %c0_i32 : i32, i32
  }
  func.func @transform_10(%arg0: i32) -> (i32, i32) {
    %c0_i32 = arith.constant 0 : i32
    %c0_i32_0 = arith.constant 0 : i32
    return %arg0, %c0_i32 : i32, i32
  }
}

module attributes {stable_mosaic.version = 11 : i64} {
  func.func @_decoder_kernel(%arg0: i32, %arg1: memref<512x256xbf16, #tpu.memory_space<vmem>>, %arg2: memref<256x128xbf16, #tpu.memory_space<vmem>>, %arg3: memref<1x128xf32, #tpu.memory_space<vmem>>, %arg4: memref<128x128xbf16, #tpu.memory_space<vmem>>, %arg5: memref<1x128xf32, #tpu.memory_space<vmem>>, %arg6: memref<512x128xbf16, #tpu.memory_space<vmem>>) attributes {dimension_semantics = [#tpu.dimension_semantics<parallel>], iteration_bounds = array<i64: 1>, scalar_prefetch = 0 : i64, scratch_operands = 0 : i64, tpu.core_type = #tpu.core_type<tc>, window_params = [{transform_indices = @transform_0, window_bounds = array<i64: 512, 256>}, {pipeline_mode = #tpu.pipeline_mode<synchronous>, transform_indices = @transform_1, window_bounds = array<i64: 256, 128>}, {pipeline_mode = #tpu.pipeline_mode<synchronous>, transform_indices = @transform_2, window_bounds = array<i64: 1, 128>}, {pipeline_mode = #tpu.pipeline_mode<synchronous>, transform_indices = @transform_3, window_bounds = array<i64: 128, 128>}, {pipeline_mode = #tpu.pipeline_mode<synchronous>, transform_indices = @transform_4, window_bounds = array<i64: 1, 128>}, {transform_indices = @transform_5, window_bounds = array<i64: 512, 128>}]} {
    %c0 = arith.constant 0 : index
    %c0_0 = arith.constant 0 : index
    %0 = vector.load %arg1[%c0, %c0_0] : memref<512x256xbf16, #tpu.memory_space<vmem>>, vector<512x256xbf16>
    %c0_1 = arith.constant 0 : index
    %c0_2 = arith.constant 0 : index
    %1 = vector.load %arg2[%c0_1, %c0_2] : memref<256x128xbf16, #tpu.memory_space<vmem>>, vector<256x128xbf16>
    %cst = arith.constant dense<0.000000e+00> : vector<512x128xf32>
    %2 = tpu.matmul %0, %1, %cst {dimension_numbers = #tpu.dot_dimension_numbers<[1], [0], [0], [1], [0, 0, 1, 1], [], []>} : vector<512x256xbf16>, vector<256x128xbf16>, vector<512x128xf32> -> vector<512x128xf32>
    %c0_3 = arith.constant 0 : index
    %c0_4 = arith.constant 0 : index
    %3 = vector.load %arg3[%c0_3, %c0_4] : memref<1x128xf32, #tpu.memory_space<vmem>>, vector<1x128xf32>
    %4 = vector.broadcast %3 : vector<1x128xf32> to vector<512x128xf32>
    %5 = arith.addf %2, %4 : vector<512x128xf32>
    %6 = arith.mulf %5, %5 : vector<512x128xf32>
    %7 = arith.mulf %5, %6 : vector<512x128xf32>
    %cst_5 = arith.constant 4.471500e-02 : f32
    %8 = vector.broadcast %cst_5 : f32 to vector<512x128xf32>
    %9 = arith.mulf %8, %7 : vector<512x128xf32>
    %10 = arith.addf %5, %9 : vector<512x128xf32>
    %cst_6 = arith.constant 0.797884583 : f32
    %11 = vector.broadcast %cst_6 : f32 to vector<512x128xf32>
    %12 = arith.mulf %11, %10 : vector<512x128xf32>
    %13 = math.tanh %12 : vector<512x128xf32>
    %cst_7 = arith.constant 1.000000e+00 : f32
    %14 = vector.broadcast %cst_7 : f32 to vector<512x128xf32>
    %15 = arith.addf %14, %13 : vector<512x128xf32>
    %cst_8 = arith.constant 5.000000e-01 : f32
    %16 = vector.broadcast %cst_8 : f32 to vector<512x128xf32>
    %17 = arith.mulf %16, %15 : vector<512x128xf32>
    %18 = arith.mulf %5, %17 : vector<512x128xf32>
    %19 = arith.truncf %18 : vector<512x128xf32> to vector<512x128xbf16>
    %c0_9 = arith.constant 0 : index
    %c0_10 = arith.constant 0 : index
    %20 = vector.load %arg4[%c0_9, %c0_10] : memref<128x128xbf16, #tpu.memory_space<vmem>>, vector<128x128xbf16>
    %cst_11 = arith.constant dense<0.000000e+00> : vector<512x128xf32>
    %21 = tpu.matmul %19, %20, %cst_11 {dimension_numbers = #tpu.dot_dimension_numbers<[1], [0], [0], [1], [0, 0, 1, 1], [], []>} : vector<512x128xbf16>, vector<128x128xbf16>, vector<512x128xf32> -> vector<512x128xf32>
    %c0_12 = arith.constant 0 : index
    %c0_13 = arith.constant 0 : index
    %22 = vector.load %arg5[%c0_12, %c0_13] : memref<1x128xf32, #tpu.memory_space<vmem>>, vector<1x128xf32>
    %23 = vector.broadcast %22 : vector<1x128xf32> to vector<512x128xf32>
    %24 = arith.addf %21, %23 : vector<512x128xf32>
    %25 = arith.truncf %24 : vector<512x128xf32> to vector<512x128xbf16>
    %c0_14 = arith.constant 0 : index
    %c0_15 = arith.constant 0 : index
    %26 = vector.load %arg6[%c0_14, %c0_15] : memref<512x128xbf16, #tpu.memory_space<vmem>>, vector<512x128xbf16>
    tpu.vector_store %arg6[%c0_14, %c0_15], %25 {strides = array<i32>} : memref<512x128xbf16, #tpu.memory_space<vmem>>, vector<512x128xbf16>,
    return
  }
  func.func @transform_0(%arg0: i32) -> (i32, i32) {
    %c0_i32 = arith.constant 0 : i32
    %c0_i32_0 = arith.constant 0 : i32
    return %arg0, %c0_i32 : i32, i32
  }
  func.func @transform_1(%arg0: i32) -> (i32, i32) {
    %c0_i32 = arith.constant 0 : i32
    %c0_i32_0 = arith.constant 0 : i32
    %c0_i32_1 = arith.constant 0 : i32
    return %c0_i32, %c0_i32_0 : i32, i32
  }
  func.func @transform_2(%arg0: i32) -> (i32, i32) {
    %c0_i32 = arith.constant 0 : i32
    %c0_i32_0 = arith.constant 0 : i32
    %c0_i32_1 = arith.constant 0 : i32
    return %c0_i32, %c0_i32_0 : i32, i32
  }
  func.func @transform_3(%arg0: i32) -> (i32, i32) {
    %c0_i32 = arith.constant 0 : i32
    %c0_i32_0 = arith.constant 0 : i32
    %c0_i32_1 = arith.constant 0 : i32
    return %c0_i32, %c0_i32_0 : i32, i32
  }
  func.func @transform_4(%arg0: i32) -> (i32, i32) {
    %c0_i32 = arith.constant 0 : i32
    %c0_i32_0 = arith.constant 0 : i32
    %c0_i32_1 = arith.constant 0 : i32
    return %c0_i32, %c0_i32_0 : i32, i32
  }
  func.func @transform_5(%arg0: i32) -> (i32, i32) {
    %c0_i32 = arith.constant 0 : i32
    %c0_i32_0 = arith.constant 0 : i32
    return %arg0, %c0_i32 : i32, i32
  }
}

</mosaic_0001>

<llo_original>
// kernel: trans4pass_forward.5
$region0: #{trans4pass_forward.5}
  #allocation0 [shape = 'u32[]', space=smem, size = 0x4, offset = 0x4, fixed_abs, tag = 'smem constant byte address 0x4 - core index']
  #allocation1 [shape = 'u32[144,128]{1,0:T(1,128)}', space=vmem, size = 0x12000, scoped, tag = 'internal scratch']
  %s0 = inlined_call_operand.vmem [shape: bf16[512,48], index: 0, kind: input, shape index: {}]
  %s1 = inlined_call_operand.vmem [shape: bf16[48,128], index: 1, kind: input, shape index: {}]
  %s2 = inlined_call_operand.vmem [shape: f32[1,128], index: 2, kind: input, shape index: {}, may-alias: {2,4,6}]
  %s3 = inlined_call_operand.vmem [shape: bf16[128,128], index: 3, kind: input, shape index: {}]
  %s4 = inlined_call_operand.vmem [shape: f32[1,128], index: 4, kind: input, shape index: {}, may-alias: {2,4,6}]
  %s5 = inlined_call_operand.vmem [shape: bf16[128,128], index: 5, kind: input, shape index: {}]
  %s6 = inlined_call_operand.vmem [shape: f32[1,128], index: 6, kind: input, shape index: {}, may-alias: {2,4,6}]
  %s7 = inlined_call_operand.vmem [shape: bf16[128,64], index: 7, kind: input, shape index: {}]
  %s8 = inlined_call_operand.vmem [shape: f32[1,64], index: 8, kind: input, shape index: {}]
  %s9 = inlined_call_operand.vmem [shape: bf16[512,16], index: 9, kind: output, shape index: {0}]
  %s10 = inlined_call_operand.vmem [shape: bf16[512,64], index: 10, kind: output, shape index: {1}]
  %11 = xla_tuple %s9, %s10
  %s12 = sld [smem:[#allocation0]]
  $region54: #{trans4pass_forward.5} parent=0
    _
  %s14 = ssub.s32 1, %s12
  %s15 = scalar_select 0, %s14, %s12
  // Predicated region
  $region2: #{trans4pass_forward.5} parent=0 // pred_check
    _
  $region3: #{trans4pass_forward.5} parent=0 // pred_check_branch
    %17 = sbr.rel (0) target = $region5
  $region4: #{trans4pass_forward.5} parent=0 // pred_region
    _
  $region5: #{trans4pass_forward.5} parent=0 // pred_fallthru
    _
  // Predicated region
  $region6: #{trans4pass_forward.5} parent=0 // pred_check
    _
  $region7: #{trans4pass_forward.5} parent=0 // pred_check_branch
    %19 = sbr.rel (0) target = $region9
  $region8: #{trans4pass_forward.5} parent=0 // pred_region
    _
  $region9: #{trans4pass_forward.5} parent=0 // pred_fallthru
    _
  // Predicated region
  $region10: #{trans4pass_forward.5} parent=0 // pred_check
    _
  $region11: #{trans4pass_forward.5} parent=0 // pred_check_branch
    %21 = sbr.rel (0) target = $region13
  $region12: #{trans4pass_forward.5} parent=0 // pred_region
    _
  $region13: #{trans4pass_forward.5} parent=0 // pred_fallthru
    _
  // Predicated region
  $region14: #{trans4pass_forward.5} parent=0 // pred_check
    _
  $region15: #{trans4pass_forward.5} parent=0 // pred_check_branch
    %23 = sbr.rel (0) target = $region17
  $region16: #{trans4pass_forward.5} parent=0 // pred_region
    _
  $region17: #{trans4pass_forward.5} parent=0 // pred_fallthru
    _
  // Predicated region
  $region18: #{trans4pass_forward.5} parent=0 // pred_check
    _
  $region19: #{trans4pass_forward.5} parent=0 // pred_check_branch
    %25 = sbr.rel (0) target = $region21
  $region20: #{trans4pass_forward.5} parent=0 // pred_region
    _
  $region21: #{trans4pass_forward.5} parent=0 // pred_fallthru
    _
  // Predicated region
  $region22: #{trans4pass_forward.5} parent=0 // pred_check
    _
  $region23: #{trans4pass_forward.5} parent=0 // pred_check_branch
    %27 = sbr.rel (0) target = $region25
  $region24: #{trans4pass_forward.5} parent=0 // pred_region
    _
  $region25: #{trans4pass_forward.5} parent=0 // pred_fallthru
    _
  // Predicated region
  $region26: #{trans4pass_forward.5} parent=0 // pred_check
    _
  $region27: #{trans4pass_forward.5} parent=0 // pred_check_branch
    %29 = sbr.rel (0) target = $region29
  $region28: #{trans4pass_forward.5} parent=0 // pred_region
    _
  $region29: #{trans4pass_forward.5} parent=0 // pred_fallthru
    _
  // Predicated region
  $region30: #{trans4pass_forward.5} parent=0 // pred_check
    _
  $region31: #{trans4pass_forward.5} parent=0 // pred_check_branch
    %31 = sbr.rel (0) target = $region33
  $region32: #{trans4pass_forward.5} parent=0 // pred_region
    _
  $region33: #{trans4pass_forward.5} parent=0 // pred_fallthru
    _
  // Predicated region
  $region34: #{trans4pass_forward.5} parent=0 // pred_check
    _
  $region35: #{trans4pass_forward.5} parent=0 // pred_check_branch
    %33 = sbr.rel (0) target = $region37
  $region36: #{trans4pass_forward.5} parent=0 // pred_region
    _
  $region37: #{trans4pass_forward.5} parent=0 // pred_fallthru
    _
  %v35 = vld [vmem:[%s0] sm:$0xf]
  %v36 = vld [vmem:[%s0 + $0x4] sm:$0xf]
  %v37 = vld [vmem:[%s0 + $0x8] sm:$0xf]
  %v38 = vld [vmem:[%s0 + $0xc] sm:$0xf]
  %v39 = vld [vmem:[%s0 + $0x10] sm:$0xf]
  %v40 = vld [vmem:[%s0 + $0x14] sm:$0xf]
  %v41 = vld [vmem:[%s0 + $0x18] sm:$0xf]
  %v42 = vld [vmem:[%s0 + $0x1c] sm:$0xf]
  %v43 = vld [vmem:[%s0 + $0x20] sm:$0xf]
  %v44 = vld [vmem:[%s0 + $0x24] sm:$0xf]
  %v45 = vld [vmem:[%s0 + $0x28] sm:$0xf]
  %v46 = vld [vmem:[%s0 + $0x2c] sm:$0xf]
  %v47 = vld [vmem:[%s0 + $0x30] sm:$0xf]
  %v48 = vld [vmem:[%s0 + $0x34] sm:$0xf]
  %v49 = vld [vmem:[%s0 + $0x38] sm:$0xf]
  %v50 = vld [vmem:[%s0 + $0x3c] sm:$0xf]
  %v51 = vld [vmem:[%s0 + $0x40] sm:$0xf]
  %v52 = vld [vmem:[%s0 + $0x44] sm:$0xf]
  %v53 = vld [vmem:[%s0 + $0x48] sm:$0xf]
  %v54 = vld [vmem:[%s0 + $0x4c] sm:$0xf]
  %v55 = vld [vmem:[%s0 + $0x50] sm:$0xf]
  %v56 = vld [vmem:[%s0 + $0x54] sm:$0xf]
  %v57 = vld [vmem:[%s0 + $0x58] sm:$0xf]
  %v58 = vld [vmem:[%s0 + $0x5c] sm:$0xf]
  %v59 = vld [vmem:[%s0 + $0x60] sm:$0xf]
  %v60 = vld [vmem:[%s0 + $0x64] sm:$0xf]
  %v61 = vld [vmem:[%s0 + $0x68] sm:$0xf]
  %v62 = vld [vmem:[%s0 + $0x6c] sm:$0xf]
  %v63 = vld [vmem:[%s0 + $0x70] sm:$0xf]
  %v64 = vld [vmem:[%s0 + $0x74] sm:$0xf]
  %v65 = vld [vmem:[%s0 + $0x78] sm:$0xf]
  %v66 = vld [vmem:[%s0 + $0x7c] sm:$0xf]
  %v67 = vld [vmem:[%s0 + $0x80] sm:$0xf]
  %v68 = vld [vmem:[%s0 + $0x84] sm:$0xf]
  %v69 = vld [vmem:[%s0 + $0x88] sm:$0xf]
  %v70 = vld [vmem:[%s0 + $0x8c] sm:$0xf]
  %v71 = vld [vmem:[%s0 + $0x90] sm:$0xf]
  %v72 = vld [vmem:[%s0 + $0x94] sm:$0xf]
  %v73 = vld [vmem:[%s0 + $0x98] sm:$0xf]
  %v74 = vld [vmem:[%s0 + $0x9c] sm:$0xf]
  %v75 = vld [vmem:[%s0 + $0xa0] sm:$0xf]
  %v76 = vld [vmem:[%s0 + $0xa4] sm:$0xf]
  %v77 = vld [vmem:[%s0 + $0xa8] sm:$0xf]
  %v78 = vld [vmem:[%s0 + $0xac] sm:$0xf]
  %v79 = vld [vmem:[%s0 + $0xb0] sm:$0xf]
  %v80 = vld [vmem:[%s0 + $0xb4] sm:$0xf]
  %v81 = vld [vmem:[%s0 + $0xb8] sm:$0xf]
  %v82 = vld [vmem:[%s0 + $0xbc] sm:$0xf]
  %v83 = vld [vmem:[%s0 + $0xc0] sm:$0xf]
  %v84 = vld [vmem:[%s0 + $0xc4] sm:$0xf]
  %v85 = vld [vmem:[%s0 + $0xc8] sm:$0xf]
  %v86 = vld [vmem:[%s0 + $0xcc] sm:$0xf]
  %v87 = vld [vmem:[%s0 + $0xd0] sm:$0xf]
  %v88 = vld [vmem:[%s0 + $0xd4] sm:$0xf]
  %v89 = vld [vmem:[%s0 + $0xd8] sm:$0xf]
  %v90 = vld [vmem:[%s0 + $0xdc] sm:$0xf]
  %v91 = vld [vmem:[%s0 + $0xe0] sm:$0xf]
  %v92 = vld [vmem:[%s0 + $0xe4] sm:$0xf]
  %v93 = vld [vmem:[%s0 + $0xe8] sm:$0xf]
  %v94 = vld [vmem:[%s0 + $0xec] sm:$0xf]
  %v95 = vld [vmem:[%s0 + $0xf0] sm:$0xf]
  %v96 = vld [vmem:[%s0 + $0xf4] sm:$0xf]
  %v97 = vld [vmem:[%s0 + $0xf8] sm:$0xf]
  %v98 = vld [vmem:[%s0 + $0xfc] sm:$0xf]
  %v99 = vld [vmem:[%s1] sm:$0xf]
  %v100 = vld [vmem:[%s1 + $0x4] sm:$0xf]
  %v101 = vld [vmem:[%s1 + $0x8] sm:$0xf]
  %v102 = vld [vmem:[%s1 + $0xc] sm:$0xf]
  %v103 = vld [vmem:[%s1 + $0x10] sm:$0xf]
  %v104 = vld [vmem:[%s1 + $0x14] sm:$0xf]
  %v105 = vld [vmem:[%s2] sm:$0x1]
  %v107 = vlaneseq
  %v108 = vshrl.u32 %v107, 7
  %v109 = vsub.s32 0, %v108
  %v110 = vrot.slane %v105, %v109
  %v176 = vunpack.c.l.b16 %v35
  %v177 = vunpack.c.l.b16 %v36
  %v178 = vunpack.c.l.b16 %v37
  %v179 = vunpack.c.l.b16 %v38
  %v180 = vunpack.c.l.b16 %v39
  %v181 = vunpack.c.l.b16 %v40
  %v182 = vunpack.c.l.b16 %v41
  %v183 = vunpack.c.l.b16 %v42
  %v184 = vunpack.c.l.b16 %v43
  %v185 = vunpack.c.l.b16 %v44
  %v186 = vunpack.c.l.b16 %v45
  %v187 = vunpack.c.l.b16 %v46
  %v188 = vunpack.c.l.b16 %v47
  %v189 = vunpack.c.l.b16 %v48
  %v190 = vunpack.c.l.b16 %v49
  %v191 = vunpack.c.l.b16 %v50
  %v192 = vunpack.c.l.b16 %v51
  %v193 = vunpack.c.l.b16 %v52
  %v194 = vunpack.c.l.b16 %v53
  %v195 = vunpack.c.l.b16 %v54
  %v196 = vunpack.c.l.b16 %v55
  %v197 = vunpack.c.l.b16 %v56
  %v198 = vunpack.c.l.b16 %v57
  %v199 = vunpack.c.l.b16 %v58
  %v200 = vunpack.c.l.b16 %v59
  %v201 = vunpack.c.l.b16 %v60
  %v202 = vunpack.c.l.b16 %v61
  %v203 = vunpack.c.l.b16 %v62
  %v204 = vunpack.c.l.b16 %v63
  %v205 = vunpack.c.l.b16 %v64
  %v206 = vunpack.c.l.b16 %v65
  %v207 = vunpack.c.l.b16 %v66
  %v208 = vunpack.c.l.b16 %v67
  %v209 = vunpack.c.l.b16 %v68
  %v210 = vunpack.c.l.b16 %v69
  %v211 = vunpack.c.l.b16 %v70
  %v212 = vunpack.c.l.b16 %v71
  %v213 = vunpack.c.l.b16 %v72
  %v214 = vunpack.c.l.b16 %v73
  %v215 = vunpack.c.l.b16 %v74
  %v216 = vunpack.c.l.b16 %v75
  %v217 = vunpack.c.l.b16 %v76
  %v218 = vunpack.c.l.b16 %v77
  %v219 = vunpack.c.l.b16 %v78
  %v220 = vunpack.c.l.b16 %v79
  %v221 = vunpack.c.l.b16 %v80
  %v222 = vunpack.c.l.b16 %v81
  %v223 = vunpack.c.l.b16 %v82
  %v224 = vunpack.c.l.b16 %v83
  %v225 = vunpack.c.l.b16 %v84
  %v226 = vunpack.c.l.b16 %v85
  %v227 = vunpack.c.l.b16 %v86
  %v228 = vunpack.c.l.b16 %v87
  %v229 = vunpack.c.l.b16 %v88
  %v230 = vunpack.c.l.b16 %v89
  %v231 = vunpack.c.l.b16 %v90
  %v232 = vunpack.c.l.b16 %v91
  %v233 = vunpack.c.l.b16 %v92
  %v234 = vunpack.c.l.b16 %v93
  %v235 = vunpack.c.l.b16 %v94
  %v236 = vunpack.c.l.b16 %v95
  %v237 = vunpack.c.l.b16 %v96
  %v238 = vunpack.c.l.b16 %v97
  %v239 = vunpack.c.l.b16 %v98
  %v240 = vpack.c.b16 %v177, %v176
  %v241 = vpack.c.b16 %v179, %v178
  %v242 = vpack.c.b16 %v181, %v180
  %v243 = vpack.c.b16 %v183, %v182
  %v244 = vpack.c.b16 %v185, %v184
  %v245 = vpack.c.b16 %v187, %v186
  %v246 = vpack.c.b16 %v189, %v188
  %v247 = vpack.c.b16 %v191, %v190
  %v248 = vpack.c.b16 %v193, %v192
  %v249 = vpack.c.b16 %v195, %v194
  %v250 = vpack.c.b16 %v197, %v196
  %v251 = vpack.c.b16 %v199, %v198
  %v252 = vpack.c.b16 %v201, %v200
  %v253 = vpack.c.b16 %v203, %v202
  %v254 = vpack.c.b16 %v205, %v204
  %v255 = vpack.c.b16 %v207, %v206
  %v256 = vpack.c.b16 %v209, %v208
  %v257 = vpack.c.b16 %v211, %v210
  %v258 = vpack.c.b16 %v213, %v212
  %v259 = vpack.c.b16 %v215, %v214
  %v260 = vpack.c.b16 %v217, %v216
  %v261 = vpack.c.b16 %v219, %v218
  %v262 = vpack.c.b16 %v221, %v220
  %v263 = vpack.c.b16 %v223, %v222
  %v264 = vpack.c.b16 %v225, %v224
  %v265 = vpack.c.b16 %v227, %v226
  %v266 = vpack.c.b16 %v229, %v228
  %v267 = vpack.c.b16 %v231, %v230
  %v268 = vpack.c.b16 %v233, %v232
  %v269 = vpack.c.b16 %v235, %v234
  %v270 = vpack.c.b16 %v237, %v236
  %v271 = vpack.c.b16 %v239, %v238
  %v278 = vunpack.c.l.b16 %v99
  %v279 = vunpack.c.l.b16 %v100
  %v280 = vunpack.c.l.b16 %v101
  %v281 = vunpack.c.l.b16 %v102
  %v282 = vunpack.c.l.b16 %v103
  %v283 = vunpack.c.l.b16 %v104
  %v284 = vpack.c.b16 %v279, %v278
  %v285 = vpack.c.b16 %v281, %v280
  %v286 = vpack.c.b16 %v283, %v282
  %vm290 = vcmask 392192
  %v292 = vsel %vm290, %v240, 0
  %v295 = vsel %vm290, %v241, 0
  %v298 = vsel %vm290, %v242, 0
  %v301 = vsel %vm290, %v243, 0
  %v304 = vsel %vm290, %v244, 0
  %v307 = vsel %vm290, %v245, 0
  %v310 = vsel %vm290, %v246, 0
  %v313 = vsel %vm290, %v247, 0
  %v316 = vsel %vm290, %v248, 0
  %v319 = vsel %vm290, %v249, 0
  %v322 = vsel %vm290, %v250, 0
  %v325 = vsel %vm290, %v251, 0
  %v328 = vsel %vm290, %v252, 0
  %v331 = vsel %vm290, %v253, 0
  %v334 = vsel %vm290, %v254, 0
  %v337 = vsel %vm290, %v255, 0
  %v340 = vsel %vm290, %v256, 0
  %v343 = vsel %vm290, %v257, 0
  %v346 = vsel %vm290, %v258, 0
  %v349 = vsel %vm290, %v259, 0
  %v352 = vsel %vm290, %v260, 0
  %v355 = vsel %vm290, %v261, 0
  %v358 = vsel %vm290, %v262, 0
  %v361 = vsel %vm290, %v263, 0
  %v364 = vsel %vm290, %v264, 0
  %v367 = vsel %vm290, %v265, 0
  %v370 = vsel %vm290, %v266, 0
  %v373 = vsel %vm290, %v267, 0
  %v376 = vsel %vm290, %v268, 0
  %v379 = vsel %vm290, %v269, 0
  %v382 = vsel %vm290, %v270, 0
  %v385 = vsel %vm290, %v271, 0
  %387 = vmatprep.subr.bf16.mxu0 0
  %388 = vmatpush1.bf16.msra.mxu0 %v284
  %389 = vmatprep.subr.bf16.mxu0 0
  %390 = vmatpush1.bf16.msra.mxu0 %v285
  %391 = vmatprep.subr.bf16.mxu0 0
  %392 = vmatpush1.bf16.msra.mxu0 %v286
  %393 = vmatprep.subr.bf16.mxu0 0
  %394 = vmatpush1.bf16.msra.mxu0 0
  %395 = vmatprep.subr.bf16.mxu0 0
  %396 = vmatpush1.bf16.msra.mxu0 0
  %397 = vmatprep.subr.bf16.mxu0 0
  %398 = vmatpush1.bf16.msra.mxu0 0
  %399 = vmatprep.subr.bf16.mxu0 0
  %400 = vmatpush1.bf16.msra.mxu0 0
  %401 = vmatprep.subr.bf16.mxu0 0
  %402 = vmatpush1.bf16.msra.mxu0 0
  %403 = vmatprep.subr.bf16.mxu0 0
  %404 = vmatpush1.bf16.msra.mxu0 0
  %405 = vmatprep.subr.bf16.mxu0 0
  %406 = vmatpush1.bf16.msra.mxu0 0
  %407 = vmatprep.subr.bf16.mxu0 0
  %408 = vmatpush1.bf16.msra.mxu0 0
  %409 = vmatprep.subr.bf16.mxu0 0
  %410 = vmatpush1.bf16.msra.mxu0 0
  %411 = vmatprep.subr.bf16.mxu0 0
  %412 = vmatpush1.bf16.msra.mxu0 0
  %413 = vmatprep.subr.bf16.mxu0 0
  %414 = vmatpush1.bf16.msra.mxu0 0
  %415 = vmatprep.subr.bf16.mxu0 0
  %416 = vmatpush1.bf16.msra.mxu0 0
  %417 = vmatprep.subr.bf16.mxu0 0
  %418 = vmatpush1.bf16.msra.mxu0 0
  %419 = vmatprep.mubr.bf16.mxu0 0
  %420 = vmatmul.mubr.bf16.gmra.mrb[0].mxu0 %v292
  %v421 = vpop.f32.mrb[0].mxu0
  %v422 = vadd.f32 %v110, %v421
  %v423 = vpop.f32.mrb[0].mxu0
  %v424 = vpop.f32.mrb[0].mxu0
  %v425 = vadd.f32 %v110, %v424
  %v426 = vpop.f32.mrb[0].mxu0
  %427 = vmatprep.mubr.bf16.mxu0 0
  %428 = vmatmul.mubr.bf16.gmra.mrb[0].mxu0 %v295
  %v429 = vpop.f32.mrb[0].mxu0
  %v430 = vadd.f32 %v110, %v429
  %v431 = vpop.f32.mrb[0].mxu0
  %v432 = vpop.f32.mrb[0].mxu0
  %v433 = vadd.f32 %v110, %v432
  %v434 = vpop.f32.mrb[0].mxu0
  %435 = vmatprep.mubr.bf16.mxu0 0
  %436 = vmatmul.mubr.bf16.gmra.mrb[0].mxu0 %v298
  %v437 = vpop.f32.mrb[0].mxu0
  %v438 = vadd.f32 %v110, %v437
  %v439 = vpop.f32.mrb[0].mxu0
  %v440 = vpop.f32.mrb[0].mxu0
  %v441 = vadd.f32 %v110, %v440
  %v442 = vpop.f32.mrb[0].mxu0
  %443 = vmatprep.mubr.bf16.mxu0 0
  %444 = vmatmul.mubr.bf16.gmra.mrb[0].mxu0 %v301
  %v445 = vpop.f32.mrb[0].mxu0
  %v446 = vadd.f32 %v110, %v445
  %v447 = vpop.f32.mrb[0].mxu0
  %v448 = vpop.f32.mrb[0].mxu0
  %v449 = vadd.f32 %v110, %v448
  %v450 = vpop.f32.mrb[0].mxu0
  %451 = vmatprep.mubr.bf16.mxu0 0
  %452 = vmatmul.mubr.bf16.gmra.mrb[0].mxu0 %v304
  %v453 = vpop.f32.mrb[0].mxu0
  %v454 = vadd.f32 %v110, %v453
  %v455 = vpop.f32.mrb[0].mxu0
  %v456 = vpop.f32.mrb[0].mxu0
  %v457 = vadd.f32 %v110, %v456
  %v458 = vpop.f32.mrb[0].mxu0
  %459 = vmatprep.mubr.bf16.mxu0 0
  %460 = vmatmul.mubr.bf16.gmra.mrb[0].mxu0 %v307
  %v461 = vpop.f32.mrb[0].mxu0
  %v462 = vadd.f32 %v110, %v461
  %v463 = vpop.f32.mrb[0].mxu0
  %v464 = vpop.f32.mrb[0].mxu0
  %v465 = vadd.f32 %v110, %v464
  %v466 = vpop.f32.mrb[0].mxu0
  %467 = vmatprep.mubr.bf16.mxu0 0
  %468 = vmatmul.mubr.bf16.gmra.mrb[0].mxu0 %v310
  %v469 = vpop.f32.mrb[0].mxu0
  %v470 = vadd.f32 %v110, %v469
  %v471 = vpop.f32.mrb[0].mxu0
  %v472 = vpop.f32.mrb[0].mxu0
  %v473 = vadd.f32 %v110, %v472
  %v474 = vpop.f32.mrb[0].mxu0
  %475 = vmatprep.mubr.bf16.mxu0 0
  %476 = vmatmul.mubr.bf16.gmra.mrb[0].mxu0 %v313
  %v477 = vpop.f32.mrb[0].mxu0
  %v478 = vadd.f32 %v110, %v477
  %v479 = vpop.f32.mrb[0].mxu0
  %v480 = vpop.f32.mrb[0].mxu0
  %v481 = vadd.f32 %v110, %v480
  %v482 = vpop.f32.mrb[0].mxu0
  %483 = vmatprep.mubr.bf16.mxu0 0
  %484 = vmatmul.mubr.bf16.gmra.mrb[0].mxu0 %v316
  %v485 = vpop.f32.mrb[0].mxu0
  %v486 = vadd.f32 %v110, %v485
  %v487 = vpop.f32.mrb[0].mxu0
  %v488 = vpop.f32.mrb[0].mxu0
  %v489 = vadd.f32 %v110, %v488
  %v490 = vpop.f32.mrb[0].mxu0
  %491 = vmatprep.mubr.bf16.mxu0 0
  %492 = vmatmul.mubr.bf16.gmra.mrb[0].mxu0 %v319
  %v493 = vpop.f32.mrb[0].mxu0
  %v494 = vadd.f32 %v110, %v493
  %v495 = vpop.f32.mrb[0].mxu0
  %v496 = vpop.f32.mrb[0].mxu0
  %v497 = vadd.f32 %v110, %v496
  %v498 = vpop.f32.mrb[0].mxu0
  %499 = vmatprep.mubr.bf16.mxu0 0
  %500 = vmatmul.mubr.bf16.gmra.mrb[0].mxu0 %v322
  %v501 = vpop.f32.mrb[0].mxu0
  %v502 = vadd.f32 %v110, %v501
  %v503 = vpop.f32.mrb[0].mxu0
  %v504 = vpop.f32.mrb[0].mxu0
  %v505 = vadd.f32 %v110, %v504
  %v506 = vpop.f32.mrb[0].mxu0
  %507 = vmatprep.mubr.bf16.mxu0 0
  %508 = vmatmul.mubr.bf16.gmra.mrb[0].mxu0 %v325
  %v509 = vpop.f32.mrb[0].mxu0
  %v510 = vadd.f32 %v110, %v509
  %v511 = vpop.f32.mrb[0].mxu0
  %v512 = vpop.f32.mrb[0].mxu0
  %v513 = vadd.f32 %v110, %v512
  %v514 = vpop.f32.mrb[0].mxu0
  %515 = vmatprep.mubr.bf16.mxu0 0
  %516 = vmatmul.mubr.bf16.gmra.mrb[0].mxu0 %v328
  %v517 = vpop.f32.mrb[0].mxu0
  %v518 = vadd.f32 %v110, %v517
  %v519 = vpop.f32.mrb[0].mxu0
  %v520 = vpop.f32.mrb[0].mxu0
  %v521 = vadd.f32 %v110, %v520
  %v522 = vpop.f32.mrb[0].mxu0
  %523 = vmatprep.mubr.bf16.mxu0 0
  %524 = vmatmul.mubr.bf16.gmra.mrb[0].mxu0 %v331
  %v525 = vpop.f32.mrb[0].mxu0
  %v526 = vadd.f32 %v110, %v525
  %v527 = vpop.f32.mrb[0].mxu0
  %v528 = vpop.f32.mrb[0].mxu0
  %v529 = vadd.f32 %v110, %v528
  %v530 = vpop.f32.mrb[0].mxu0
  %531 = vmatprep.mubr.bf16.mxu0 0
  %532 = vmatmul.mubr.bf16.gmra.mrb[0].mxu0 %v334
  %v533 = vpop.f32.mrb[0].mxu0
  %v534 = vadd.f32 %v110, %v533
  %v535 = vpop.f32.mrb[0].mxu0
  %v536 = vpop.f32.mrb[0].mxu0
  %v537 = vadd.f32 %v110, %v536
  %v538 = vpop.f32.mrb[0].mxu0
  %539 = vmatprep.mubr.bf16.mxu0 0
  %540 = vmatmul.mubr.bf16.gmra.mrb[0].mxu0 %v337
  %v541 = vpop.f32.mrb[0].mxu0
  %v542 = vadd.f32 %v110, %v541
  %v543 = vpop.f32.mrb[0].mxu0
  %v544 = vpop.f32.mrb[0].mxu0
  %v545 = vadd.f32 %v110, %v544
  %v546 = vpop.f32.mrb[0].mxu0
  %547 = vmatprep.mubr.bf16.mxu0 0
  %548 = vmatmul.mubr.bf16.gmra.mrb[0].mxu0 %v340
  %v549 = vpop.f32.mrb[0].mxu0
  %v550 = vadd.f32 %v110, %v549
  %v551 = vpop.f32.mrb[0].mxu0
  %v552 = vpop.f32.mrb[0].mxu0
  %v553 = vadd.f32 %v110, %v552
  %v554 = vpop.f32.mrb[0].mxu0
  %555 = vmatprep.mubr.bf16.mxu0 0
  %556 = vmatmul.mubr.bf16.gmra.mrb[0].mxu0 %v343
  %v557 = vpop.f32.mrb[0].mxu0
  %v558 = vadd.f32 %v110, %v557
  %v559 = vpop.f32.mrb[0].mxu0
  %v560 = vpop.f32.mrb[0].mxu0
  %v561 = vadd.f32 %v110, %v560
  %v562 = vpop.f32.mrb[0].mxu0
  %563 = vmatprep.mubr.bf16.mxu0 0
  %564 = vmatmul.mubr.bf16.gmra.mrb[0].mxu0 %v346
  %v565 = vpop.f32.mrb[0].mxu0
  %v566 = vadd.f32 %v110, %v565
  %v567 = vpop.f32.mrb[0].mxu0
  %v568 = vpop.f32.mrb[0].mxu0
  %v569 = vadd.f32 %v110, %v568
  %v570 = vpop.f32.mrb[0].mxu0
  %571 = vmatprep.mubr.bf16.mxu0 0
  %572 = vmatmul.mubr.bf16.gmra.mrb[0].mxu0 %v349
  %v573 = vpop.f32.mrb[0].mxu0
  %v574 = vadd.f32 %v110, %v573
  %v575 = vpop.f32.mrb[0].mxu0
  %v576 = vpop.f32.mrb[0].mxu0
  %v577 = vadd.f32 %v110, %v576
  %v578 = vpop.f32.mrb[0].mxu0
  %579 = vmatprep.mubr.bf16.mxu0 0
  %580 = vmatmul.mubr.bf16.gmra.mrb[0].mxu0 %v352
  %v581 = vpop.f32.mrb[0].mxu0
  %v582 = vadd.f32 %v110, %v581
  %v583 = vpop.f32.mrb[0].mxu0
  %v584 = vpop.f32.mrb[0].mxu0
  %v585 = vadd.f32 %v110, %v584
  %v586 = vpop.f32.mrb[0].mxu0
  %587 = vmatprep.mubr.bf16.mxu0 0
  %588 = vmatmul.mubr.bf16.gmra.mrb[0].mxu0 %v355
  %v589 = vpop.f32.mrb[0].mxu0
  %v590 = vadd.f32 %v110, %v589
  %v591 = vpop.f32.mrb[0].mxu0
  %v592 = vpop.f32.mrb[0].mxu0
  %v593 = vadd.f32 %v110, %v592
  %v594 = vpop.f32.mrb[0].mxu0
  %595 = vmatprep.mubr.bf16.mxu0 0
  %596 = vmatmul.mubr.bf16.gmra.mrb[0].mxu0 %v358
  %v597 = vpop.f32.mrb[0].mxu0
  %v598 = vadd.f32 %v110, %v597
  %v599 = vpop.f32.mrb[0].mxu0
  %v600 = vpop.f32.mrb[0].mxu0
  %v601 = vadd.f32 %v110, %v600
  %v602 = vpop.f32.mrb[0].mxu0
  %603 = vmatprep.mubr.bf16.mxu0 0
  %604 = vmatmul.mubr.bf16.gmra.mrb[0].mxu0 %v361
  %v605 = vpop.f32.mrb[0].mxu0
  %v606 = vadd.f32 %v110, %v605
  %v607 = vpop.f32.mrb[0].mxu0
  %v608 = vpop.f32.mrb[0].mxu0
  %v609 = vadd.f32 %v110, %v608
  %v610 = vpop.f32.mrb[0].mxu0
  %611 = vmatprep.mubr.bf16.mxu0 0
  %612 = vmatmul.mubr.bf16.gmra.mrb[0].mxu0 %v364
  %v613 = vpop.f32.mrb[0].mxu0
  %v614 = vadd.f32 %v110, %v613
  %v615 = vpop.f32.mrb[0].mxu0
  %v616 = vpop.f32.mrb[0].mxu0
  %v617 = vadd.f32 %v110, %v616
  %v618 = vpop.f32.mrb[0].mxu0
  %619 = vmatprep.mubr.bf16.mxu0 0
  %620 = vmatmul.mubr.bf16.gmra.mrb[0].mxu0 %v367
  %v621 = vpop.f32.mrb[0].mxu0
  %v622 = vadd.f32 %v110, %v621
  %v623 = vpop.f32.mrb[0].mxu0
  %v624 = vpop.f32.mrb[0].mxu0
  %v625 = vadd.f32 %v110, %v624
  %v626 = vpop.f32.mrb[0].mxu0
  %627 = vmatprep.mubr.bf16.mxu0 0
  %628 = vmatmul.mubr.bf16.gmra.mrb[0].mxu0 %v370
  %v629 = vpop.f32.mrb[0].mxu0
  %v630 = vadd.f32 %v110, %v629
  %v631 = vpop.f32.mrb[0].mxu0
  %v632 = vpop.f32.mrb[0].mxu0
  %v633 = vadd.f32 %v110, %v632
  %v634 = vpop.f32.mrb[0].mxu0
  %635 = vmatprep.mubr.bf16.mxu0 0
  %636 = vmatmul.mubr.bf16.gmra.mrb[0].mxu0 %v373
  %v637 = vpop.f32.mrb[0].mxu0
  %v638 = vadd.f32 %v110, %v637
  %v639 = vpop.f32.mrb[0].mxu0
  %v640 = vpop.f32.mrb[0].mxu0
  %v641 = vadd.f32 %v110, %v640
  %v642 = vpop.f32.mrb[0].mxu0
  %643 = vmatprep.mubr.bf16.mxu0 0
  %644 = vmatmul.mubr.bf16.gmra.mrb[0].mxu0 %v376
  %v645 = vpop.f32.mrb[0].mxu0
  %v646 = vadd.f32 %v110, %v645
  %v647 = vpop.f32.mrb[0].mxu0
  %v648 = vpop.f32.mrb[0].mxu0
  %v649 = vadd.f32 %v110, %v648
  %v650 = vpop.f32.mrb[0].mxu0
  %651 = vmatprep.mubr.bf16.mxu0 0
  %652 = vmatmul.mubr.bf16.gmra.mrb[0].mxu0 %v379
  %v653 = vpop.f32.mrb[0].mxu0
  %v654 = vadd.f32 %v110, %v653
  %v655 = vpop.f32.mrb[0].mxu0
  %v656 = vpop.f32.mrb[0].mxu0
  %v657 = vadd.f32 %v110, %v656
  %v658 = vpop.f32.mrb[0].mxu0
  %659 = vmatprep.mubr.bf16.mxu0 0
  %660 = vmatmul.mubr.bf16.gmra.mrb[0].mxu0 %v382
  %v661 = vpop.f32.mrb[0].mxu0
  %v662 = vadd.f32 %v110, %v661
  %v663 = vpop.f32.mrb[0].mxu0
  %v664 = vpop.f32.mrb[0].mxu0
  %v665 = vadd.f32 %v110, %v664
  %v666 = vpop.f32.mrb[0].mxu0
  %667 = vmatprep.mubr.bf16.mxu0 0
  %668 = vmatmul.mubr.bf16.gmra.mrb[0].mxu0 %v385
  %v669 = vpop.f32.mrb[0].mxu0
  %v670 = vadd.f32 %v110, %v669
  %v671 = vpop.f32.mrb[0].mxu0
  %v672 = vpop.f32.mrb[0].mxu0
  %v673 = vadd.f32 %v110, %v672
  %v674 = vpop.f32.mrb[0].mxu0
  %675 = vdwg.mxu0
  %v676 = vmul.f32 %v422, %v422
  %v677 = vmul.f32 %v425, %v425
  %v678 = vmul.f32 %v430, %v430
  %v679 = vmul.f32 %v433, %v433
  %v680 = vmul.f32 %v438, %v438
  %v681 = vmul.f32 %v441, %v441
  %v682 = vmul.f32 %v446, %v446
  %v683 = vmul.f32 %v449, %v449
  %v684 = vmul.f32 %v454, %v454
  %v685 = vmul.f32 %v457, %v457
  %v686 = vmul.f32 %v462, %v462
  %v687 = vmul.f32 %v465, %v465
  %v688 = vmul.f32 %v470, %v470
  %v689 = vmul.f32 %v473, %v473
  %v690 = vmul.f32 %v478, %v478
  %v691 = vmul.f32 %v481, %v481
  %v692 = vmul.f32 %v486, %v486
  %v693 = vmul.f32 %v489, %v489
  %v694 = vmul.f32 %v494, %v494
  %v695 = vmul.f32 %v497, %v497
  %v696 = vmul.f32 %v502, %v502
  %v697 = vmul.f32 %v505, %v505
  %v698 = vmul.f32 %v510, %v510
  %v699 = vmul.f32 %v513, %v513
  %v700 = vmul.f32 %v518, %v518
  %v701 = vmul.f32 %v521, %v521
  %v702 = vmul.f32 %v526, %v526
  %v703 = vmul.f32 %v529, %v529
  %v704 = vmul.f32 %v534, %v534
  %v705 = vmul.f32 %v537, %v537
  %v706 = vmul.f32 %v542, %v542
  %v707 = vmul.f32 %v545, %v545
  %v708 = vmul.f32 %v550, %v550
  %v709 = vmul.f32 %v553, %v553
  %v710 = vmul.f32 %v558, %v558
  %v711 = vmul.f32 %v561, %v561
  %v712 = vmul.f32 %v566, %v566
  %v713 = vmul.f32 %v569, %v569
  %v714 = vmul.f32 %v574, %v574
  %v715 = vmul.f32 %v577, %v577
  %v716 = vmul.f32 %v582, %v582
  %v717 = vmul.f32 %v585, %v585
  %v718 = vmul.f32 %v590, %v590
  %v719 = vmul.f32 %v593, %v593
  %v720 = vmul.f32 %v598, %v598
  %v721 = vmul.f32 %v601, %v601
  %v722 = vmul.f32 %v606, %v606
  %v723 = vmul.f32 %v609, %v609
  %v724 = vmul.f32 %v614, %v614
  %v725 = vmul.f32 %v617, %v617
  %v726 = vmul.f32 %v622, %v622
  %v727 = vmul.f32 %v625, %v625
  %v728 = vmul.f32 %v630, %v630
  %v729 = vmul.f32 %v633, %v633
  %v730 = vmul.f32 %v638, %v638
  %v731 = vmul.f32 %v641, %v641
  %v732 = vmul.f32 %v646, %v646
  %v733 = vmul.f32 %v649, %v649
  %v734 = vmul.f32 %v654, %v654
  %v735 = vmul.f32 %v657, %v657
  %v736 = vmul.f32 %v662, %v662
  %v737 = vmul.f32 %v665, %v665
  %v738 = vmul.f32 %v670, %v670
  %v739 = vmul.f32 %v673, %v673
  %v740 = vmul.f32 %v422, %v676
  %v741 = vmul.f32 %v425, %v677
  %v742 = vmul.f32 %v430, %v678
  %v743 = vmul.f32 %v433, %v679
  %v744 = vmul.f32 %v438, %v680
  %v745 = vmul.f32 %v441, %v681
  %v746 = vmul.f32 %v446, %v682
  %v747 = vmul.f32 %v449, %v683
  %v748 = vmul.f32 %v454, %v684
  %v749 = vmul.f32 %v457, %v685
  %v750 = vmul.f32 %v462, %v686
  %v751 = vmul.f32 %v465, %v687
  %v752 = vmul.f32 %v470, %v688
  %v753 = vmul.f32 %v473, %v689
  %v754 = vmul.f32 %v478, %v690
  %v755 = vmul.f32 %v481, %v691
  %v756 = vmul.f32 %v486, %v692
  %v757 = vmul.f32 %v489, %v693
  %v758 = vmul.f32 %v494, %v694
  %v759 = vmul.f32 %v497, %v695
  %v760 = vmul.f32 %v502, %v696
  %v761 = vmul.f32 %v505, %v697
  %v762 = vmul.f32 %v510, %v698
  %v763 = vmul.f32 %v513, %v699
  %v764 = vmul.f32 %v518, %v700
  %v765 = vmul.f32 %v521, %v701
  %v766 = vmul.f32 %v526, %v702
  %v767 = vmul.f32 %v529, %v703
  %v768 = vmul.f32 %v534, %v704
  %v769 = vmul.f32 %v537, %v705
  %v770 = vmul.f32 %v542, %v706
  %v771 = vmul.f32 %v545, %v707
  %v772 = vmul.f32 %v550, %v708
  %v773 = vmul.f32 %v553, %v709
  %v774 = vmul.f32 %v558, %v710
  %v775 = vmul.f32 %v561, %v711
  %v776 = vmul.f32 %v566, %v712
  %v777 = vmul.f32 %v569, %v713
  %v778 = vmul.f32 %v574, %v714
  %v779 = vmul.f32 %v577, %v715
  %v780 = vmul.f32 %v582, %v716
  %v781 = vmul.f32 %v585, %v717
  %v782 = vmul.f32 %v590, %v718
  %v783 = vmul.f32 %v593, %v719
  %v784 = vmul.f32 %v598, %v720
  %v785 = vmul.f32 %v601, %v721
  %v786 = vmul.f32 %v606, %v722
  %v787 = vmul.f32 %v609, %v723
  %v788 = vmul.f32 %v614, %v724
  %v789 = vmul.f32 %v617, %v725
  %v790 = vmul.f32 %v622, %v726
  %v791 = vmul.f32 %v625, %v727
  %v792 = vmul.f32 %v630, %v728
  %v793 = vmul.f32 %v633, %v729
  %v794 = vmul.f32 %v638, %v730
  %v795 = vmul.f32 %v641, %v731
  %v796 = vmul.f32 %v646, %v732
  %v797 = vmul.f32 %v649, %v733
  %v798 = vmul.f32 %v654, %v734
  %v799 = vmul.f32 %v657, %v735
  %v800 = vmul.f32 %v662, %v736
  %v801 = vmul.f32 %v665, %v737
  %v802 = vmul.f32 %v670, %v738
  %v803 = vmul.f32 %v673, %v739
  %v804 = vmul.f32 %v740, 0.044715
  %v805 = vmul.f32 %v741, 0.044715
  %v806 = vmul.f32 %v742, 0.044715
  %v807 = vmul.f32 %v743, 0.044715
  %v808 = vmul.f32 %v744, 0.044715
  %v809 = vmul.f32 %v745, 0.044715
  %v810 = vmul.f32 %v746, 0.044715
  %v811 = vmul.f32 %v747, 0.044715
  %v812 = vmul.f32 %v748, 0.044715
  %v813 = vmul.f32 %v749, 0.044715
  %v814 = vmul.f32 %v750, 0.044715
  %v815 = vmul.f32 %v751, 0.044715
  %v816 = vmul.f32 %v752, 0.044715
  %v817 = vmul.f32 %v753, 0.044715
  %v818 = vmul.f32 %v754, 0.044715
  %v819 = vmul.f32 %v755, 0.044715
  %v820 = vmul.f32 %v756, 0.044715
  %v821 = vmul.f32 %v757, 0.044715
  %v822 = vmul.f32 %v758, 0.044715
  %v823 = vmul.f32 %v759, 0.044715
  %v824 = vmul.f32 %v760, 0.044715
  %v825 = vmul.f32 %v761, 0.044715
  %v826 = vmul.f32 %v762, 0.044715
  %v827 = vmul.f32 %v763, 0.044715
  %v828 = vmul.f32 %v764, 0.044715
  %v829 = vmul.f32 %v765, 0.044715
  %v830 = vmul.f32 %v766, 0.044715
  %v831 = vmul.f32 %v767, 0.044715
  %v832 = vmul.f32 %v768, 0.044715
  %v833 = vmul.f32 %v769, 0.044715
  %v834 = vmul.f32 %v770, 0.044715
  %v835 = vmul.f32 %v771, 0.044715
  %v836 = vmul.f32 %v772, 0.044715
  %v837 = vmul.f32 %v773, 0.044715
  %v838 = vmul.f32 %v774, 0.044715
  %v839 = vmul.f32 %v775, 0.044715
  %v840 = vmul.f32 %v776, 0.044715
  %v841 = vmul.f32 %v777, 0.044715
  %v842 = vmul.f32 %v778, 0.044715
  %v843 = vmul.f32 %v779, 0.044715
  %v844 = vmul.f32 %v780, 0.044715
  %v845 = vmul.f32 %v781, 0.044715
  %v846 = vmul.f32 %v782, 0.044715
  %v847 = vmul.f32 %v783, 0.044715
  %v848 = vmul.f32 %v784, 0.044715
  %v849 = vmul.f32 %v785, 0.044715
  %v850 = vmul.f32 %v786, 0.044715
  %v851 = vmul.f32 %v787, 0.044715
  %v852 = vmul.f32 %v788, 0.044715
  %v853 = vmul.f32 %v789, 0.044715
  %v854 = vmul.f32 %v790, 0.044715
  %v855 = vmul.f32 %v791, 0.044715
  %v856 = vmul.f32 %v792, 0.044715
  %v857 = vmul.f32 %v793, 0.044715
  %v858 = vmul.f32 %v794, 0.044715
  %v859 = vmul.f32 %v795, 0.044715
  %v860 = vmul.f32 %v796, 0.044715
  %v861 = vmul.f32 %v797, 0.044715
  %v862 = vmul.f32 %v798, 0.044715
  %v863 = vmul.f32 %v799, 0.044715
  %v864 = vmul.f32 %v800, 0.044715
  %v865 = vmul.f32 %v801, 0.044715
  %v866 = vmul.f32 %v802, 0.044715
  %v867 = vmul.f32 %v803, 0.044715
  %v868 = vadd.f32 %v422, %v804
  %v869 = vadd.f32 %v425, %v805
  %v870 = vadd.f32 %v430, %v806
  %v871 = vadd.f32 %v433, %v807
  %v872 = vadd.f32 %v438, %v808
  %v873 = vadd.f32 %v441, %v809
  %v874 = vadd.f32 %v446, %v810
  %v875 = vadd.f32 %v449, %v811
  %v876 = vadd.f32 %v454, %v812
  %v877 = vadd.f32 %v457, %v813
  %v878 = vadd.f32 %v462, %v814
  %v879 = vadd.f32 %v465, %v815
  %v880 = vadd.f32 %v470, %v816
  %v881 = vadd.f32 %v473, %v817
  %v882 = vadd.f32 %v478, %v818
  %v883 = vadd.f32 %v481, %v819
  %v884 = vadd.f32 %v486, %v820
  %v885 = vadd.f32 %v489, %v821
  %v886 = vadd.f32 %v494, %v822
  %v887 = vadd.f32 %v497, %v823
  %v888 = vadd.f32 %v502, %v824
  %v889 = vadd.f32 %v505, %v825
  %v890 = vadd.f32 %v510, %v826
  %v891 = vadd.f32 %v513, %v827
  %v892 = vadd.f32 %v518, %v828
  %v893 = vadd.f32 %v521, %v829
  %v894 = vadd.f32 %v526, %v830
  %v895 = vadd.f32 %v529, %v831
  %v896 = vadd.f32 %v534, %v832
  %v897 = vadd.f32 %v537, %v833
  %v898 = vadd.f32 %v542, %v834
  %v899 = vadd.f32 %v545, %v835
  %v900 = vadd.f32 %v550, %v836
  %v901 = vadd.f32 %v553, %v837
  %v902 = vadd.f32 %v558, %v838
  %v903 = vadd.f32 %v561, %v839
  %v904 = vadd.f32 %v566, %v840
  %v905 = vadd.f32 %v569, %v841
  %v906 = vadd.f32 %v574, %v842
  %v907 = vadd.f32 %v577, %v843
  %v908 = vadd.f32 %v582, %v844
  %v909 = vadd.f32 %v585, %v845
  %v910 = vadd.f32 %v590, %v846
  %v911 = vadd.f32 %v593, %v847
  %v912 = vadd.f32 %v598, %v848
  %v913 = vadd.f32 %v601, %v849
  %v914 = vadd.f32 %v606, %v850
  %v915 = vadd.f32 %v609, %v851
  %v916 = vadd.f32 %v614, %v852
  %v917 = vadd.f32 %v617, %v853
  %v918 = vadd.f32 %v622, %v854
  %v919 = vadd.f32 %v625, %v855
  %v920 = vadd.f32 %v630, %v856
  %v921 = vadd.f32 %v633, %v857
  %v922 = vadd.f32 %v638, %v858
  %v923 = vadd.f32 %v641, %v859
  %v924 = vadd.f32 %v646, %v860
  %v925 = vadd.f32 %v649, %v861
  %v926 = vadd.f32 %v654, %v862
  %v927 = vadd.f32 %v657, %v863
  %v928 = vadd.f32 %v662, %v864
  %v929 = vadd.f32 %v665, %v865
  %v930 = vadd.f32 %v670, %v866
  %v931 = vadd.f32 %v673, %v867
  %v932 = vmul.f32 %v868, 0.7978846
  %v933 = vmul.f32 %v869, 0.7978846
  %v934 = vmul.f32 %v870, 0.7978846
  %v935 = vmul.f32 %v871, 0.7978846
  %v936 = vmul.f32 %v872, 0.7978846
  %v937 = vmul.f32 %v873, 0.7978846
  %v938 = vmul.f32 %v874, 0.7978846
  %v939 = vmul.f32 %v875, 0.7978846
  %v940 = vmul.f32 %v876, 0.7978846
  %v941 = vmul.f32 %v877, 0.7978846
  %v942 = vmul.f32 %v878, 0.7978846
  %v943 = vmul.f32 %v879, 0.7978846
  %v944 = vmul.f32 %v880, 0.7978846
  %v945 = vmul.f32 %v881, 0.7978846
  %v946 = vmul.f32 %v882, 0.7978846
  %v947 = vmul.f32 %v883, 0.7978846
  %v948 = vmul.f32 %v884, 0.7978846
  %v949 = vmul.f32 %v885, 0.7978846
  %v950 = vmul.f32 %v886, 0.7978846
  %v951 = vmul.f32 %v887, 0.7978846
  %v952 = vmul.f32 %v888, 0.7978846
  %v953 = vmul.f32 %v889, 0.7978846
  %v954 = vmul.f32 %v890, 0.7978846
  %v955 = vmul.f32 %v891, 0.7978846
  %v956 = vmul.f32 %v892, 0.7978846
  %v957 = vmul.f32 %v893, 0.7978846
  %v958 = vmul.f32 %v894, 0.7978846
  %v959 = vmul.f32 %v895, 0.7978846
  %v960 = vmul.f32 %v896, 0.7978846
  %v961 = vmul.f32 %v897, 0.7978846
  %v962 = vmul.f32 %v898, 0.7978846
  %v963 = vmul.f32 %v899, 0.7978846
  %v964 = vmul.f32 %v900, 0.7978846
  %v965 = vmul.f32 %v901, 0.7978846
  %v966 = vmul.f32 %v902, 0.7978846
  %v967 = vmul.f32 %v903, 0.7978846
  %v968 = vmul.f32 %v904, 0.7978846
  %v969 = vmul.f32 %v905, 0.7978846
  %v970 = vmul.f32 %v906, 0.7978846
  %v971 = vmul.f32 %v907, 0.7978846
  %v972 = vmul.f32 %v908, 0.7978846
  %v973 = vmul.f32 %v909, 0.7978846
  %v974 = vmul.f32 %v910, 0.7978846
  %v975 = vmul.f32 %v911, 0.7978846
  %v976 = vmul.f32 %v912, 0.7978846
  %v977 = vmul.f32 %v913, 0.7978846
  %v978 = vmul.f32 %v914, 0.7978846
  %v979 = vmul.f32 %v915, 0.7978846
  %v980 = vmul.f32 %v916, 0.7978846
  %v981 = vmul.f32 %v917, 0.7978846
  %v982 = vmul.f32 %v918, 0.7978846
  %v983 = vmul.f32 %v919, 0.7978846
  %v984 = vmul.f32 %v920, 0.7978846
  %v985 = vmul.f32 %v921, 0.7978846
  %v986 = vmul.f32 %v922, 0.7978846
  %v987 = vmul.f32 %v923, 0.7978846
  %v988 = vmul.f32 %v924, 0.7978846
  %v989 = vmul.f32 %v925, 0.7978846
  %v990 = vmul.f32 %v926, 0.7978846
  %v991 = vmul.f32 %v927, 0.7978846
  %v992 = vmul.f32 %v928, 0.7978846
  %v993 = vmul.f32 %v929, 0.7978846
  %v994 = vmul.f32 %v930, 0.7978846
  %v995 = vmul.f32 %v931, 0.7978846
  %v996 = vtanh.pop %v932
  %v997 = vtanh.pop %v933
  %v998 = vtanh.pop %v934
  %v999 = vtanh.pop %v935
  %v1000 = vtanh.pop %v936
  %v1001 = vtanh.pop %v937
  %v1002 = vtanh.pop %v938
  %v1003 = vtanh.pop %v939
  %v1004 = vtanh.pop %v940
  %v1005 = vtanh.pop %v941
  %v1006 = vtanh.pop %v942
  %v1007 = vtanh.pop %v943
  %v1008 = vtanh.pop %v944
  %v1009 = vtanh.pop %v945
  %v1010 = vtanh.pop %v946
  %v1011 = vtanh.pop %v947
  %v1012 = vtanh.pop %v948
  %v1013 = vtanh.pop %v949
  %v1014 = vtanh.pop %v950
  %v1015 = vtanh.pop %v951
  %v1016 = vtanh.pop %v952
  %v1017 = vtanh.pop %v953
  %v1018 = vtanh.pop %v954
  %v1019 = vtanh.pop %v955
  %v1020 = vtanh.pop %v956
  %v1021 = vtanh.pop %v957
  %v1022 = vtanh.pop %v958
  %v1023 = vtanh.pop %v959
  %v1024 = vtanh.pop %v960
  %v1025 = vtanh.pop %v961
  %v1026 = vtanh.pop %v962
  %v1027 = vtanh.pop %v963
  %v1028 = vtanh.pop %v964
  %v1029 = vtanh.pop %v965
  %v1030 = vtanh.pop %v966
  %v1031 = vtanh.pop %v967
  %v1032 = vtanh.pop %v968
  %v1033 = vtanh.pop %v969
  %v1034 = vtanh.pop %v970
  %v1035 = vtanh.pop %v971
  %v1036 = vtanh.pop %v972
  %v1037 = vtanh.pop %v973
  %v1038 = vtanh.pop %v974
  %v1039 = vtanh.pop %v975
  %v1040 = vtanh.pop %v976
  %v1041 = vtanh.pop %v977
  %v1042 = vtanh.pop %v978
  %v1043 = vtanh.pop %v979
  %v1044 = vtanh.pop %v980
  %v1045 = vtanh.pop %v981
  %v1046 = vtanh.pop %v982
  %v1047 = vtanh.pop %v983
  %v1048 = vtanh.pop %v984
  %v1049 = vtanh.pop %v985
  %v1050 = vtanh.pop %v986
  %v1051 = vtanh.pop %v987
  %v1052 = vtanh.pop %v988
  %v1053 = vtanh.pop %v989
  %v1054 = vtanh.pop %v990
  %v1055 = vtanh.pop %v991
  %v1056 = vtanh.pop %v992
  %v1057 = vtanh.pop %v993
  %v1058 = vtanh.pop %v994
  %v1059 = vtanh.pop %v995
  %v1060 = vadd.f32 %v996, 1.0
  %v1061 = vadd.f32 %v997, 1.0
  %v1062 = vadd.f32 %v998, 1.0
  %v1063 = vadd.f32 %v999, 1.0
  %v1064 = vadd.f32 %v1000, 1.0
  %v1065 = vadd.f32 %v1001, 1.0
  %v1066 = vadd.f32 %v1002, 1.0
  %v1067 = vadd.f32 %v1003, 1.0
  %v1068 = vadd.f32 %v1004, 1.0
  %v1069 = vadd.f32 %v1005, 1.0
  %v1070 = vadd.f32 %v1006, 1.0
  %v1071 = vadd.f32 %v1007, 1.0
  %v1072 = vadd.f32 %v1008, 1.0
  %v1073 = vadd.f32 %v1009, 1.0
  %v1074 = vadd.f32 %v1010, 1.0
  %v1075 = vadd.f32 %v1011, 1.0
  %v1076 = vadd.f32 %v1012, 1.0
  %v1077 = vadd.f32 %v1013, 1.0
  %v1078 = vadd.f32 %v1014, 1.0
  %v1079 = vadd.f32 %v1015, 1.0
  %v1080 = vadd.f32 %v1016, 1.0
  %v1081 = vadd.f32 %v1017, 1.0
  %v1082 = vadd.f32 %v1018, 1.0
  %v1083 = vadd.f32 %v1019, 1.0
  %v1084 = vadd.f32 %v1020, 1.0
  %v1085 = vadd.f32 %v1021, 1.0
  %v1086 = vadd.f32 %v1022, 1.0
  %v1087 = vadd.f32 %v1023, 1.0
  %v1088 = vadd.f32 %v1024, 1.0
  %v1089 = vadd.f32 %v1025, 1.0
  %v1090 = vadd.f32 %v1026, 1.0
  %v1091 = vadd.f32 %v1027, 1.0
  %v1092 = vadd.f32 %v1028, 1.0
  %v1093 = vadd.f32 %v1029, 1.0
  %v1094 = vadd.f32 %v1030, 1.0
  %v1095 = vadd.f32 %v1031, 1.0
  %v1096 = vadd.f32 %v1032, 1.0
  %v1097 = vadd.f32 %v1033, 1.0
  %v1098 = vadd.f32 %v1034, 1.0
  %v1099 = vadd.f32 %v1035, 1.0
  %v1100 = vadd.f32 %v1036, 1.0
  %v1101 = vadd.f32 %v1037, 1.0
  %v1102 = vadd.f32 %v1038, 1.0
  %v1103 = vadd.f32 %v1039, 1.0
  %v1104 = vadd.f32 %v1040, 1.0
  %v1105 = vadd.f32 %v1041, 1.0
  %v1106 = vadd.f32 %v1042, 1.0
  %v1107 = vadd.f32 %v1043, 1.0
  %v1108 = vadd.f32 %v1044, 1.0
  %v1109 = vadd.f32 %v1045, 1.0
  %v1110 = vadd.f32 %v1046, 1.0
  %v1111 = vadd.f32 %v1047, 1.0
  %v1112 = vadd.f32 %v1048, 1.0
  %v1113 = vadd.f32 %v1049, 1.0
  %v1114 = vadd.f32 %v1050, 1.0
  %v1115 = vadd.f32 %v1051, 1.0
  %v1116 = vadd.f32 %v1052, 1.0
  %v1117 = vadd.f32 %v1053, 1.0
  %v1118 = vadd.f32 %v1054, 1.0
  %v1119 = vadd.f32 %v1055, 1.0
  %v1120 = vadd.f32 %v1056, 1.0
  %v1121 = vadd.f32 %v1057, 1.0
  %v1122 = vadd.f32 %v1058, 1.0
  %v1123 = vadd.f32 %v1059, 1.0
  %v1124 = vmul.f32 %v1060, 0.5
  %v1125 = vmul.f32 %v1061, 0.5
  %v1126 = vmul.f32 %v1062, 0.5
  %v1127 = vmul.f32 %v1063, 0.5
  %v1128 = vmul.f32 %v1064, 0.5
  %v1129 = vmul.f32 %v1065, 0.5
  %v1130 = vmul.f32 %v1066, 0.5
  %v1131 = vmul.f32 %v1067, 0.5
  %v1132 = vmul.f32 %v1068, 0.5
  %v1133 = vmul.f32 %v1069, 0.5
  %v1134 = vmul.f32 %v1070, 0.5
  %v1135 = vmul.f32 %v1071, 0.5
  %v1136 = vmul.f32 %v1072, 0.5
  %v1137 = vmul.f32 %v1073, 0.5
  %v1138 = vmul.f32 %v1074, 0.5
  %v1139 = vmul.f32 %v1075, 0.5
  %v1140 = vmul.f32 %v1076, 0.5
  %v1141 = vmul.f32 %v1077, 0.5
  %v1142 = vmul.f32 %v1078, 0.5
  %v1143 = vmul.f32 %v1079, 0.5
  %v1144 = vmul.f32 %v1080, 0.5
  %v1145 = vmul.f32 %v1081, 0.5
  %v1146 = vmul.f32 %v1082, 0.5
  %v1147 = vmul.f32 %v1083, 0.5
  %v1148 = vmul.f32 %v1084, 0.5
  %v1149 = vmul.f32 %v1085, 0.5
  %v1150 = vmul.f32 %v1086, 0.5
  %v1151 = vmul.f32 %v1087, 0.5
  %v1152 = vmul.f32 %v1088, 0.5
  %v1153 = vmul.f32 %v1089, 0.5
  %v1154 = vmul.f32 %v1090, 0.5
  %v1155 = vmul.f32 %v1091, 0.5
  %v1156 = vmul.f32 %v1092, 0.5
  %v1157 = vmul.f32 %v1093, 0.5
  %v1158 = vmul.f32 %v1094, 0.5
  %v1159 = vmul.f32 %v1095, 0.5
  %v1160 = vmul.f32 %v1096, 0.5
  %v1161 = vmul.f32 %v1097, 0.5
  %v1162 = vmul.f32 %v1098, 0.5
  %v1163 = vmul.f32 %v1099, 0.5
  %v1164 = vmul.f32 %v1100, 0.5
  %v1165 = vmul.f32 %v1101, 0.5
  %v1166 = vmul.f32 %v1102, 0.5
  %v1167 = vmul.f32 %v1103, 0.5
  %v1168 = vmul.f32 %v1104, 0.5
  %v1169 = vmul.f32 %v1105, 0.5
  %v1170 = vmul.f32 %v1106, 0.5
  %v1171 = vmul.f32 %v1107, 0.5
  %v1172 = vmul.f32 %v1108, 0.5
  %v1173 = vmul.f32 %v1109, 0.5
  %v1174 = vmul.f32 %v1110, 0.5
  %v1175 = vmul.f32 %v1111, 0.5
  %v1176 = vmul.f32 %v1112, 0.5
  %v1177 = vmul.f32 %v1113, 0.5
  %v1178 = vmul.f32 %v1114, 0.5
  %v1179 = vmul.f32 %v1115, 0.5
  %v1180 = vmul.f32 %v1116, 0.5
  %v1181 = vmul.f32 %v1117, 0.5
  %v1182 = vmul.f32 %v1118, 0.5
  %v1183 = vmul.f32 %v1119, 0.5
  %v1184 = vmul.f32 %v1120, 0.5
  %v1185 = vmul.f32 %v1121, 0.5
  %v1186 = vmul.f32 %v1122, 0.5
  %v1187 = vmul.f32 %v1123, 0.5
  %v1188 = vmul.f32 %v422, %v1124
  %v1189 = vmul.f32 %v425, %v1125
  %v1190 = vmul.f32 %v430, %v1126
  %v1191 = vmul.f32 %v433, %v1127
  %v1192 = vmul.f32 %v438, %v1128
  %v1193 = vmul.f32 %v441, %v1129
  %v1194 = vmul.f32 %v446, %v1130
  %v1195 = vmul.f32 %v449, %v1131
  %v1196 = vmul.f32 %v454, %v1132
  %v1197 = vmul.f32 %v457, %v1133
  %v1198 = vmul.f32 %v462, %v1134
  %v1199 = vmul.f32 %v465, %v1135
  %v1200 = vmul.f32 %v470, %v1136
  %v1201 = vmul.f32 %v473, %v1137
  %v1202 = vmul.f32 %v478, %v1138
  %v1203 = vmul.f32 %v481, %v1139
  %v1204 = vmul.f32 %v486, %v1140
  %v1205 = vmul.f32 %v489, %v1141
  %v1206 = vmul.f32 %v494, %v1142
  %v1207 = vmul.f32 %v497, %v1143
  %v1208 = vmul.f32 %v502, %v1144
  %v1209 = vmul.f32 %v505, %v1145
  %v1210 = vmul.f32 %v510, %v1146
  %v1211 = vmul.f32 %v513, %v1147
  %v1212 = vmul.f32 %v518, %v1148
  %v1213 = vmul.f32 %v521, %v1149
  %v1214 = vmul.f32 %v526, %v1150
  %v1215 = vmul.f32 %v529, %v1151
  %v1216 = vmul.f32 %v534, %v1152
  %v1217 = vmul.f32 %v537, %v1153
  %v1218 = vmul.f32 %v542, %v1154
  %v1219 = vmul.f32 %v545, %v1155
  %v1220 = vmul.f32 %v550, %v1156
  %v1221 = vmul.f32 %v553, %v1157
  %v1222 = vmul.f32 %v558, %v1158
  %v1223 = vmul.f32 %v561, %v1159
  %v1224 = vmul.f32 %v566, %v1160
  %v1225 = vmul.f32 %v569, %v1161
  %v1226 = vmul.f32 %v574, %v1162
  %v1227 = vmul.f32 %v577, %v1163
  %v1228 = vmul.f32 %v582, %v1164
  %v1229 = vmul.f32 %v585, %v1165
  %v1230 = vmul.f32 %v590, %v1166
  %v1231 = vmul.f32 %v593, %v1167
  %v1232 = vmul.f32 %v598, %v1168
  %v1233 = vmul.f32 %v601, %v1169
  %v1234 = vmul.f32 %v606, %v1170
  %v1235 = vmul.f32 %v609, %v1171
  %v1236 = vmul.f32 %v614, %v1172
  %v1237 = vmul.f32 %v617, %v1173
  %v1238 = vmul.f32 %v622, %v1174
  %v1239 = vmul.f32 %v625, %v1175
  %v1240 = vmul.f32 %v630, %v1176
  %v1241 = vmul.f32 %v633, %v1177
  %v1242 = vmul.f32 %v638, %v1178
  %v1243 = vmul.f32 %v641, %v1179
  %v1244 = vmul.f32 %v646, %v1180
  %v1245 = vmul.f32 %v649, %v1181
  %v1246 = vmul.f32 %v654, %v1182
  %v1247 = vmul.f32 %v657, %v1183
  %v1248 = vmul.f32 %v662, %v1184
  %v1249 = vmul.f32 %v665, %v1185
  %v1250 = vmul.f32 %v670, %v1186
  %v1251 = vmul.f32 %v673, %v1187
  %v1252 = vpack.c.bf16 %v1189, %v1188
  %v1253 = vpack.c.bf16 %v1191, %v1190
  %v1254 = vpack.c.bf16 %v1193, %v1192
  %v1255 = vpack.c.bf16 %v1195, %v1194
  %v1256 = vpack.c.bf16 %v1197, %v1196
  %v1257 = vpack.c.bf16 %v1199, %v1198
  %v1258 = vpack.c.bf16 %v1201, %v1200
  %v1259 = vpack.c.bf16 %v1203, %v1202
  %v1260 = vpack.c.bf16 %v1205, %v1204
  %v1261 = vpack.c.bf16 %v1207, %v1206
  %v1262 = vpack.c.bf16 %v1209, %v1208
  %v1263 = vpack.c.bf16 %v1211, %v1210
  %v1264 = vpack.c.bf16 %v1213, %v1212
  %v1265 = vpack.c.bf16 %v1215, %v1214
  %v1266 = vpack.c.bf16 %v1217, %v1216
  %v1267 = vpack.c.bf16 %v1219, %v1218
  %v1268 = vpack.c.bf16 %v1221, %v1220
  %v1269 = vpack.c.bf16 %v1223, %v1222
  %v1270 = vpack.c.bf16 %v1225, %v1224
  %v1271 = vpack.c.bf16 %v1227, %v1226
  %v1272 = vpack.c.bf16 %v1229, %v1228
  %v1273 = vpack.c.bf16 %v1231, %v1230
  %v1274 = vpack.c.bf16 %v1233, %v1232
  %v1275 = vpack.c.bf16 %v1235, %v1234
  %v1276 = vpack.c.bf16 %v1237, %v1236
  %v1277 = vpack.c.bf16 %v1239, %v1238
  %v1278 = vpack.c.bf16 %v1241, %v1240
  %v1279 = vpack.c.bf16 %v1243, %v1242
  %v1280 = vpack.c.bf16 %v1245, %v1244
  %v1281 = vpack.c.bf16 %v1247, %v1246
  %v1282 = vpack.c.bf16 %v1249, %v1248
  %v1283 = vpack.c.bf16 %v1251, %v1250
  %v1284 = vld [vmem:[%s3] sm:$0xf]
  %v1285 = vld [vmem:[%s3 + $0x4] sm:$0xf]
  %v1286 = vld [vmem:[%s3 + $0x8] sm:$0xf]
  %v1287 = vld [vmem:[%s3 + $0xc] sm:$0xf]
  %v1288 = vld [vmem:[%s3 + $0x10] sm:$0xf]
  %v1289 = vld [vmem:[%s3 + $0x14] sm:$0xf]
  %v1290 = vld [vmem:[%s3 + $0x18] sm:$0xf]
  %v1291 = vld [vmem:[%s3 + $0x1c] sm:$0xf]
  %v1292 = vld [vmem:[%s3 + $0x20] sm:$0xf]
  %v1293 = vld [vmem:[%s3 + $0x24] sm:$0xf]
  %v1294 = vld [vmem:[%s3 + $0x28] sm:$0xf]
  %v1295 = vld [vmem:[%s3 + $0x2c] sm:$0xf]
  %v1296 = vld [vmem:[%s3 + $0x30] sm:$0xf]
  %v1297 = vld [vmem:[%s3 + $0x34] sm:$0xf]
  %v1298 = vld [vmem:[%s3 + $0x38] sm:$0xf]
  %v1299 = vld [vmem:[%s3 + $0x3c] sm:$0xf]
  %v1300 = vld [vmem:[%s4] sm:$0x1]
  %v1302 = vlaneseq
  %v1303 = vshrl.u32 %v1302, 7
  %v1304 = vsub.s32 0, %v1303
  %v1305 = vrot.slane %v1300, %v1304
  %v1323 = vunpack.c.l.b16 %v1284
  %v1324 = vunpack.c.l.b16 %v1285
  %v1325 = vunpack.c.l.b16 %v1286
  %v1326 = vunpack.c.l.b16 %v1287
  %v1327 = vunpack.c.l.b16 %v1288
  %v1328 = vunpack.c.l.b16 %v1289
  %v1329 = vunpack.c.l.b16 %v1290
  %v1330 = vunpack.c.l.b16 %v1291
  %v1331 = vunpack.c.l.b16 %v1292
  %v1332 = vunpack.c.l.b16 %v1293
  %v1333 = vunpack.c.l.b16 %v1294
  %v1334 = vunpack.c.l.b16 %v1295
  %v1335 = vunpack.c.l.b16 %v1296
  %v1336 = vunpack.c.l.b16 %v1297
  %v1337 = vunpack.c.l.b16 %v1298
  %v1338 = vunpack.c.l.b16 %v1299
  %v1339 = vpack.c.b16 %v1324, %v1323
  %v1340 = vpack.c.b16 %v1326, %v1325
  %v1341 = vpack.c.b16 %v1328, %v1327
  %v1342 = vpack.c.b16 %v1330, %v1329
  %v1343 = vpack.c.b16 %v1332, %v1331
  %v1344 = vpack.c.b16 %v1334, %v1333
  %v1345 = vpack.c.b16 %v1336, %v1335
  %v1346 = vpack.c.b16 %v1338, %v1337
  %1355 = vmatprep.subr.bf16.mxu0 0
  %1356 = vmatpush1.bf16.msra.mxu0 %v1339
  %1357 = vmatprep.subr.bf16.mxu0 0
  %1358 = vmatpush1.bf16.msra.mxu0 %v1340
  %1359 = vmatprep.subr.bf16.mxu0 0
  %1360 = vmatpush1.bf16.msra.mxu0 %v1341
  %1361 = vmatprep.subr.bf16.mxu0 0
  %1362 = vmatpush1.bf16.msra.mxu0 %v1342
  %1363 = vmatprep.subr.bf16.mxu0 0
  %1364 = vmatpush1.bf16.msra.mxu0 %v1343
  %1365 = vmatprep.subr.bf16.mxu0 0
  %1366 = vmatpush1.bf16.msra.mxu0 %v1344
  %1367 = vmatprep.subr.bf16.mxu0 0
  %1368 = vmatpush1.bf16.msra.mxu0 %v1345
  %1369 = vmatprep.subr.bf16.mxu0 0
  %1370 = vmatpush1.bf16.msra.mxu0 %v1346
  %1371 = vmatprep.subr.bf16.mxu0 0
  %1372 = vmatpush1.bf16.msra.mxu0 0
  %1373 = vmatprep.subr.bf16.mxu0 0
  %1374 = vmatpush1.bf16.msra.mxu0 0
  %1375 = vmatprep.subr.bf16.mxu0 0
  %1376 = vmatpush1.bf16.msra.mxu0 0
  %1377 = vmatprep.subr.bf16.mxu0 0
  %1378 = vmatpush1.bf16.msra.mxu0 0
  %1379 = vmatprep.subr.bf16.mxu0 0
  %1380 = vmatpush1.bf16.msra.mxu0 0
  %1381 = vmatprep.subr.bf16.mxu0 0
  %1382 = vmatpush1.bf16.msra.mxu0 0
  %1383 = vmatprep.subr.bf16.mxu0 0
  %1384 = vmatpush1.bf16.msra.mxu0 0
  %1385 = vmatprep.subr.bf16.mxu0 0
  %1386 = vmatpush1.bf16.msra.mxu0 0
  %1387 = vmatprep.mubr.bf16.mxu0 0
  %1388 = vmatmul.mubr.bf16.gmra.mrb[0].mxu0 %v1252
  %v1389 = vpop.f32.mrb[0].mxu0
  %v1390 = vadd.f32 %v1305, %v1389
  %v1391 = vpop.f32.mrb[0].mxu0
  %v1392 = vpop.f32.mrb[0].mxu0
  %v1393 = vadd.f32 %v1305, %v1392
  %v1394 = vpop.f32.mrb[0].mxu0
  %1395 = vmatprep.mubr.bf16.mxu0 0
  %1396 = vmatmul.mubr.bf16.gmra.mrb[0].mxu0 %v1253
  %v1397 = vpop.f32.mrb[0].mxu0
  %v1398 = vadd.f32 %v1305, %v1397
  %v1399 = vpop.f32.mrb[0].mxu0
  %v1400 = vpop.f32.mrb[0].mxu0
  %v1401 = vadd.f32 %v1305, %v1400
  %v1402 = vpop.f32.mrb[0].mxu0
  %1403 = vmatprep.mubr.bf16.mxu0 0
  %1404 = vmatmul.mubr.bf16.gmra.mrb[0].mxu0 %v1254
  %v1405 = vpop.f32.mrb[0].mxu0
  %v1406 = vadd.f32 %v1305, %v1405
  %v1407 = vpop.f32.mrb[0].mxu0
  %v1408 = vpop.f32.mrb[0].mxu0
  %v1409 = vadd.f32 %v1305, %v1408
  %v1410 = vpop.f32.mrb[0].mxu0
  %1411 = vmatprep.mubr.bf16.mxu0 0
  %1412 = vmatmul.mubr.bf16.gmra.mrb[0].mxu0 %v1255
  %v1413 = vpop.f32.mrb[0].mxu0
  %v1414 = vadd.f32 %v1305, %v1413
  %v1415 = vpop.f32.mrb[0].mxu0
  %v1416 = vpop.f32.mrb[0].mxu0
  %v1417 = vadd.f32 %v1305, %v1416
  %v1418 = vpop.f32.mrb[0].mxu0
  %1419 = vmatprep.mubr.bf16.mxu0 0
  %1420 = vmatmul.mubr.bf16.gmra.mrb[0].mxu0 %v1256
  %v1421 = vpop.f32.mrb[0].mxu0
  %v1422 = vadd.f32 %v1305, %v1421
  %v1423 = vpop.f32.mrb[0].mxu0
  %v1424 = vpop.f32.mrb[0].mxu0
  %v1425 = vadd.f32 %v1305, %v1424
  %v1426 = vpop.f32.mrb[0].mxu0
  %1427 = vmatprep.mubr.bf16.mxu0 0
  %1428 = vmatmul.mubr.bf16.gmra.mrb[0].mxu0 %v1257
  %v1429 = vpop.f32.mrb[0].mxu0
  %v1430 = vadd.f32 %v1305, %v1429
  %v1431 = vpop.f32.mrb[0].mxu0
  %v1432 = vpop.f32.mrb[0].mxu0
  %v1433 = vadd.f32 %v1305, %v1432
  %v1434 = vpop.f32.mrb[0].mxu0
  %1435 = vmatprep.mubr.bf16.mxu0 0
  %1436 = vmatmul.mubr.bf16.gmra.mrb[0].mxu0 %v1258
  %v1437 = vpop.f32.mrb[0].mxu0
  %v1438 = vadd.f32 %v1305, %v1437
  %v1439 = vpop.f32.mrb[0].mxu0
  %v1440 = vpop.f32.mrb[0].mxu0
  %v1441 = vadd.f32 %v1305, %v1440
  %v1442 = vpop.f32.mrb[0].mxu0
  %1443 = vmatprep.mubr.bf16.mxu0 0
  %1444 = vmatmul.mubr.bf16.gmra.mrb[0].mxu0 %v1259
  %v1445 = vpop.f32.mrb[0].mxu0
  %v1446 = vadd.f32 %v1305, %v1445
  %v1447 = vpop.f32.mrb[0].mxu0
  %v1448 = vpop.f32.mrb[0].mxu0
  %v1449 = vadd.f32 %v1305, %v1448
  %v1450 = vpop.f32.mrb[0].mxu0
  %1451 = vmatprep.mubr.bf16.mxu0 0
  %1452 = vmatmul.mubr.bf16.gmra.mrb[0].mxu0 %v1260
  %v1453 = vpop.f32.mrb[0].mxu0
  %v1454 = vadd.f32 %v1305, %v1453
  %v1455 = vpop.f32.mrb[0].mxu0
  %v1456 = vpop.f32.mrb[0].mxu0
  %v1457 = vadd.f32 %v1305, %v1456
  %v1458 = vpop.f32.mrb[0].mxu0
  %1459 = vmatprep.mubr.bf16.mxu0 0
  %1460 = vmatmul.mubr.bf16.gmra.mrb[0].mxu0 %v1261
  %v1461 = vpop.f32.mrb[0].mxu0
  %v1462 = vadd.f32 %v1305, %v1461
  %v1463 = vpop.f32.mrb[0].mxu0
  %v1464 = vpop.f32.mrb[0].mxu0
  %v1465 = vadd.f32 %v1305, %v1464
  %v1466 = vpop.f32.mrb[0].mxu0
  %1467 = vmatprep.mubr.bf16.mxu0 0
  %1468 = vmatmul.mubr.bf16.gmra.mrb[0].mxu0 %v1262
  %v1469 = vpop.f32.mrb[0].mxu0
  %v1470 = vadd.f32 %v1305, %v1469
  %v1471 = vpop.f32.mrb[0].mxu0
  %v1472 = vpop.f32.mrb[0].mxu0
  %v1473 = vadd.f32 %v1305, %v1472
  %v1474 = vpop.f32.mrb[0].mxu0
  %1475 = vmatprep.mubr.bf16.mxu0 0
  %1476 = vmatmul.mubr.bf16.gmra.mrb[0].mxu0 %v1263
  %v1477 = vpop.f32.mrb[0].mxu0
  %v1478 = vadd.f32 %v1305, %v1477
  %v1479 = vpop.f32.mrb[0].mxu0
  %v1480 = vpop.f32.mrb[0].mxu0
  %v1481 = vadd.f32 %v1305, %v1480
  %v1482 = vpop.f32.mrb[0].mxu0
  %1483 = vmatprep.mubr.bf16.mxu0 0
  %1484 = vmatmul.mubr.bf16.gmra.mrb[0].mxu0 %v1264
  %v1485 = vpop.f32.mrb[0].mxu0
  %v1486 = vadd.f32 %v1305, %v1485
  %v1487 = vpop.f32.mrb[0].mxu0
  %v1488 = vpop.f32.mrb[0].mxu0
  %v1489 = vadd.f32 %v1305, %v1488
  %v1490 = vpop.f32.mrb[0].mxu0
  %1491 = vmatprep.mubr.bf16.mxu0 0
  %1492 = vmatmul.mubr.bf16.gmra.mrb[0].mxu0 %v1265
  %v1493 = vpop.f32.mrb[0].mxu0
  %v1494 = vadd.f32 %v1305, %v1493
  %v1495 = vpop.f32.mrb[0].mxu0
  %v1496 = vpop.f32.mrb[0].mxu0
  %v1497 = vadd.f32 %v1305, %v1496
  %v1498 = vpop.f32.mrb[0].mxu0
  %1499 = vmatprep.mubr.bf16.mxu0 0
  %1500 = vmatmul.mubr.bf16.gmra.mrb[0].mxu0 %v1266
  %v1501 = vpop.f32.mrb[0].mxu0
  %v1502 = vadd.f32 %v1305, %v1501
  %v1503 = vpop.f32.mrb[0].mxu0
  %v1504 = vpop.f32.mrb[0].mxu0
  %v1505 = vadd.f32 %v1305, %v1504
  %v1506 = vpop.f32.mrb[0].mxu0
  %1507 = vmatprep.mubr.bf16.mxu0 0
  %1508 = vmatmul.mubr.bf16.gmra.mrb[0].mxu0 %v1267
  %v1509 = vpop.f32.mrb[0].mxu0
  %v1510 = vadd.f32 %v1305, %v1509
  %v1511 = vpop.f32.mrb[0].mxu0
  %v1512 = vpop.f32.mrb[0].mxu0
  %v1513 = vadd.f32 %v1305, %v1512
  %v1514 = vpop.f32.mrb[0].mxu0
  %1515 = vmatprep.mubr.bf16.mxu0 0
  %1516 = vmatmul.mubr.bf16.gmra.mrb[0].mxu0 %v1268
  %v1517 = vpop.f32.mrb[0].mxu0
  %v1518 = vadd.f32 %v1305, %v1517
  %v1519 = vpop.f32.mrb[0].mxu0
  %v1520 = vpop.f32.mrb[0].mxu0
  %v1521 = vadd.f32 %v1305, %v1520
  %v1522 = vpop.f32.mrb[0].mxu0
  %1523 = vmatprep.mubr.bf16.mxu0 0
  %1524 = vmatmul.mubr.bf16.gmra.mrb[0].mxu0 %v1269
  %v1525 = vpop.f32.mrb[0].mxu0
  %v1526 = vadd.f32 %v1305, %v1525
  %v1527 = vpop.f32.mrb[0].mxu0
  %v1528 = vpop.f32.mrb[0].mxu0
  %v1529 = vadd.f32 %v1305, %v1528
  %v1530 = vpop.f32.mrb[0].mxu0
  %1531 = vmatprep.mubr.bf16.mxu0 0
  %1532 = vmatmul.mubr.bf16.gmra.mrb[0].mxu0 %v1270
  %v1533 = vpop.f32.mrb[0].mxu0
  %v1534 = vadd.f32 %v1305, %v1533
  %v1535 = vpop.f32.mrb[0].mxu0
  %v1536 = vpop.f32.mrb[0].mxu0
  %v1537 = vadd.f32 %v1305, %v1536
  %v1538 = vpop.f32.mrb[0].mxu0
  %1539 = vmatprep.mubr.bf16.mxu0 0
  %1540 = vmatmul.mubr.bf16.gmra.mrb[0].mxu0 %v1271
  %v1541 = vpop.f32.mrb[0].mxu0
  %v1542 = vadd.f32 %v1305, %v1541
  %v1543 = vpop.f32.mrb[0].mxu0
  %v1544 = vpop.f32.mrb[0].mxu0
  %v1545 = vadd.f32 %v1305, %v1544
  %v1546 = vpop.f32.mrb[0].mxu0
  %1547 = vmatprep.mubr.bf16.mxu0 0
  %1548 = vmatmul.mubr.bf16.gmra.mrb[0].mxu0 %v1272
  %v1549 = vpop.f32.mrb[0].mxu0
  %v1550 = vadd.f32 %v1305, %v1549
  %v1551 = vpop.f32.mrb[0].mxu0
  %v1552 = vpop.f32.mrb[0].mxu0
  %v1553 = vadd.f32 %v1305, %v1552
  %v1554 = vpop.f32.mrb[0].mxu0
  %1555 = vmatprep.mubr.bf16.mxu0 0
  %1556 = vmatmul.mubr.bf16.gmra.mrb[0].mxu0 %v1273
  %v1557 = vpop.f32.mrb[0].mxu0
  %v1558 = vadd.f32 %v1305, %v1557
  %v1559 = vpop.f32.mrb[0].mxu0
  %v1560 = vpop.f32.mrb[0].mxu0
  %v1561 = vadd.f32 %v1305, %v1560
  %v1562 = vpop.f32.mrb[0].mxu0
  %1563 = vmatprep.mubr.bf16.mxu0 0
  %1564 = vmatmul.mubr.bf16.gmra.mrb[0].mxu0 %v1274
  %v1565 = vpop.f32.mrb[0].mxu0
  %v1566 = vadd.f32 %v1305, %v1565
  %v1567 = vpop.f32.mrb[0].mxu0
  %v1568 = vpop.f32.mrb[0].mxu0
  %v1569 = vadd.f32 %v1305, %v1568
  %v1570 = vpop.f32.mrb[0].mxu0
  %1571 = vmatprep.mubr.bf16.mxu0 0
  %1572 = vmatmul.mubr.bf16.gmra.mrb[0].mxu0 %v1275
  %v1573 = vpop.f32.mrb[0].mxu0
  %v1574 = vadd.f32 %v1305, %v1573
  %v1575 = vpop.f32.mrb[0].mxu0
  %v1576 = vpop.f32.mrb[0].mxu0
  %v1577 = vadd.f32 %v1305, %v1576
  %v1578 = vpop.f32.mrb[0].mxu0
  %1579 = vmatprep.mubr.bf16.mxu0 0
  %1580 = vmatmul.mubr.bf16.gmra.mrb[0].mxu0 %v1276
  %v1581 = vpop.f32.mrb[0].mxu0
  %v1582 = vadd.f32 %v1305, %v1581
  %v1583 = vpop.f32.mrb[0].mxu0
  %v1584 = vpop.f32.mrb[0].mxu0
  %v1585 = vadd.f32 %v1305, %v1584
  %v1586 = vpop.f32.mrb[0].mxu0
  %1587 = vmatprep.mubr.bf16.mxu0 0
  %1588 = vmatmul.mubr.bf16.gmra.mrb[0].mxu0 %v1277
  %v1589 = vpop.f32.mrb[0].mxu0
  %v1590 = vadd.f32 %v1305, %v1589
  %v1591 = vpop.f32.mrb[0].mxu0
  %v1592 = vpop.f32.mrb[0].mxu0
  %v1593 = vadd.f32 %v1305, %v1592
  %v1594 = vpop.f32.mrb[0].mxu0
  %1595 = vmatprep.mubr.bf16.mxu0 0
  %1596 = vmatmul.mubr.bf16.gmra.mrb[0].mxu0 %v1278
  %v1597 = vpop.f32.mrb[0].mxu0
  %v1598 = vadd.f32 %v1305, %v1597
  %v1599 = vpop.f32.mrb[0].mxu0
  %v1600 = vpop.f32.mrb[0].mxu0
  %v1601 = vadd.f32 %v1305, %v1600
  %v1602 = vpop.f32.mrb[0].mxu0
  %1603 = vmatprep.mubr.bf16.mxu0 0
  %1604 = vmatmul.mubr.bf16.gmra.mrb[0].mxu0 %v1279
  %v1605 = vpop.f32.mrb[0].mxu0
  %v1606 = vadd.f32 %v1305, %v1605
  %v1607 = vpop.f32.mrb[0].mxu0
  %v1608 = vpop.f32.mrb[0].mxu0
  %v1609 = vadd.f32 %v1305, %v1608
  %v1610 = vpop.f32.mrb[0].mxu0
  %1611 = vmatprep.mubr.bf16.mxu0 0
  %1612 = vmatmul.mubr.bf16.gmra.mrb[0].mxu0 %v1280
  %v1613 = vpop.f32.mrb[0].mxu0
  %v1614 = vadd.f32 %v1305, %v1613
  %v1615 = vpop.f32.mrb[0].mxu0
  %v1616 = vpop.f32.mrb[0].mxu0
  %v1617 = vadd.f32 %v1305, %v1616
  %v1618 = vpop.f32.mrb[0].mxu0
  %1619 = vmatprep.mubr.bf16.mxu0 0
  %1620 = vmatmul.mubr.bf16.gmra.mrb[0].mxu0 %v1281
  %v1621 = vpop.f32.mrb[0].mxu0
  %v1622 = vadd.f32 %v1305, %v1621
  %v1623 = vpop.f32.mrb[0].mxu0
  %v1624 = vpop.f32.mrb[0].mxu0
  %v1625 = vadd.f32 %v1305, %v1624
  %v1626 = vpop.f32.mrb[0].mxu0
  %1627 = vmatprep.mubr.bf16.mxu0 0
  %1628 = vmatmul.mubr.bf16.gmra.mrb[0].mxu0 %v1282
  %v1629 = vpop.f32.mrb[0].mxu0
  %v1630 = vadd.f32 %v1305, %v1629
  %v1631 = vpop.f32.mrb[0].mxu0
  %v1632 = vpop.f32.mrb[0].mxu0
  %v1633 = vadd.f32 %v1305, %v1632
  %v1634 = vpop.f32.mrb[0].mxu0
  %1635 = vmatprep.mubr.bf16.mxu0 0
  %1636 = vmatmul.mubr.bf16.gmra.mrb[0].mxu0 %v1283
  %v1637 = vpop.f32.mrb[0].mxu0
  %v1638 = vadd.f32 %v1305, %v1637
  %v1639 = vpop.f32.mrb[0].mxu0
  %v1640 = vpop.f32.mrb[0].mxu0
  %v1641 = vadd.f32 %v1305, %v1640
  %v1642 = vpop.f32.mrb[0].mxu0
  %1643 = vdwg.mxu0
  %v1644 = vmul.f32 %v1390, %v1390
  %v1645 = vmul.f32 %v1393, %v1393
  %v1646 = vmul.f32 %v1398, %v1398
  %v1647 = vmul.f32 %v1401, %v1401
  %v1648 = vmul.f32 %v1406, %v1406
  %v1649 = vmul.f32 %v1409, %v1409
  %v1650 = vmul.f32 %v1414, %v1414
  %v1651 = vmul.f32 %v1417, %v1417
  %v1652 = vmul.f32 %v1422, %v1422
  %v1653 = vmul.f32 %v1425, %v1425
  %v1654 = vmul.f32 %v1430, %v1430
  %v1655 = vmul.f32 %v1433, %v1433
  %v1656 = vmul.f32 %v1438, %v1438
  %v1657 = vmul.f32 %v1441, %v1441
  %v1658 = vmul.f32 %v1446, %v1446
  %v1659 = vmul.f32 %v1449, %v1449
  %v1660 = vmul.f32 %v1454, %v1454
  %v1661 = vmul.f32 %v1457, %v1457
  %v1662 = vmul.f32 %v1462, %v1462
  %v1663 = vmul.f32 %v1465, %v1465
  %v1664 = vmul.f32 %v1470, %v1470
  %v1665 = vmul.f32 %v1473, %v1473
  %v1666 = vmul.f32 %v1478, %v1478
  %v1667 = vmul.f32 %v1481, %v1481
  %v1668 = vmul.f32 %v1486, %v1486
  %v1669 = vmul.f32 %v1489, %v1489
  %v1670 = vmul.f32 %v1494, %v1494
  %v1671 = vmul.f32 %v1497, %v1497
  %v1672 = vmul.f32 %v1502, %v1502
  %v1673 = vmul.f32 %v1505, %v1505
  %v1674 = vmul.f32 %v1510, %v1510
  %v1675 = vmul.f32 %v1513, %v1513
  %v1676 = vmul.f32 %v1518, %v1518
  %v1677 = vmul.f32 %v1521, %v1521
  %v1678 = vmul.f32 %v1526, %v1526
  %v1679 = vmul.f32 %v1529, %v1529
  %v1680 = vmul.f32 %v1534, %v1534
  %v1681 = vmul.f32 %v1537, %v1537
  %v1682 = vmul.f32 %v1542, %v1542
  %v1683 = vmul.f32 %v1545, %v1545
  %v1684 = vmul.f32 %v1550, %v1550
  %v1685 = vmul.f32 %v1553, %v1553
  %v1686 = vmul.f32 %v1558, %v1558
  %v1687 = vmul.f32 %v1561, %v1561
  %v1688 = vmul.f32 %v1566, %v1566
  %v1689 = vmul.f32 %v1569, %v1569
  %v1690 = vmul.f32 %v1574, %v1574
  %v1691 = vmul.f32 %v1577, %v1577
  %v1692 = vmul.f32 %v1582, %v1582
  %v1693 = vmul.f32 %v1585, %v1585
  %v1694 = vmul.f32 %v1590, %v1590
  %v1695 = vmul.f32 %v1593, %v1593
  %v1696 = vmul.f32 %v1598, %v1598
  %v1697 = vmul.f32 %v1601, %v1601
  %v1698 = vmul.f32 %v1606, %v1606
  %v1699 = vmul.f32 %v1609, %v1609
  %v1700 = vmul.f32 %v1614, %v1614
  %v1701 = vmul.f32 %v1617, %v1617
  %v1702 = vmul.f32 %v1622, %v1622
  %v1703 = vmul.f32 %v1625, %v1625
  %v1704 = vmul.f32 %v1630, %v1630
  %v1705 = vmul.f32 %v1633, %v1633
  %v1706 = vmul.f32 %v1638, %v1638
  %v1707 = vmul.f32 %v1641, %v1641
  %v1708 = vmul.f32 %v1390, %v1644
  %v1709 = vmul.f32 %v1393, %v1645
  %v1710 = vmul.f32 %v1398, %v1646
  %v1711 = vmul.f32 %v1401, %v1647
  %v1712 = vmul.f32 %v1406, %v1648
  %v1713 = vmul.f32 %v1409, %v1649
  %v1714 = vmul.f32 %v1414, %v1650
  %v1715 = vmul.f32 %v1417, %v1651
  %v1716 = vmul.f32 %v1422, %v1652
  %v1717 = vmul.f32 %v1425, %v1653
  %v1718 = vmul.f32 %v1430, %v1654
  %v1719 = vmul.f32 %v1433, %v1655
  %v1720 = vmul.f32 %v1438, %v1656
  %v1721 = vmul.f32 %v1441, %v1657
  %v1722 = vmul.f32 %v1446, %v1658
  %v1723 = vmul.f32 %v1449, %v1659
  %v1724 = vmul.f32 %v1454, %v1660
  %v1725 = vmul.f32 %v1457, %v1661
  %v1726 = vmul.f32 %v1462, %v1662
  %v1727 = vmul.f32 %v1465, %v1663
  %v1728 = vmul.f32 %v1470, %v1664
  %v1729 = vmul.f32 %v1473, %v1665
  %v1730 = vmul.f32 %v1478, %v1666
  %v1731 = vmul.f32 %v1481, %v1667
  %v1732 = vmul.f32 %v1486, %v1668
  %v1733 = vmul.f32 %v1489, %v1669
  %v1734 = vmul.f32 %v1494, %v1670
  %v1735 = vmul.f32 %v1497, %v1671
  %v1736 = vmul.f32 %v1502, %v1672
  %v1737 = vmul.f32 %v1505, %v1673
  %v1738 = vmul.f32 %v1510, %v1674
  %v1739 = vmul.f32 %v1513, %v1675
  %v1740 = vmul.f32 %v1518, %v1676
  %v1741 = vmul.f32 %v1521, %v1677
  %v1742 = vmul.f32 %v1526, %v1678
  %v1743 = vmul.f32 %v1529, %v1679
  %v1744 = vmul.f32 %v1534, %v1680
  %v1745 = vmul.f32 %v1537, %v1681
  %v1746 = vmul.f32 %v1542, %v1682
  %v1747 = vmul.f32 %v1545, %v1683
  %v1748 = vmul.f32 %v1550, %v1684
  %v1749 = vmul.f32 %v1553, %v1685
  %v1750 = vmul.f32 %v1558, %v1686
  %v1751 = vmul.f32 %v1561, %v1687
  %v1752 = vmul.f32 %v1566, %v1688
  %v1753 = vmul.f32 %v1569, %v1689
  %v1754 = vmul.f32 %v1574, %v1690
  %v1755 = vmul.f32 %v1577, %v1691
  %v1756 = vmul.f32 %v1582, %v1692
  %v1757 = vmul.f32 %v1585, %v1693
  %v1758 = vmul.f32 %v1590, %v1694
  %v1759 = vmul.f32 %v1593, %v1695
  %v1760 = vmul.f32 %v1598, %v1696
  %v1761 = vmul.f32 %v1601, %v1697
  %v1762 = vmul.f32 %v1606, %v1698
  %v1763 = vmul.f32 %v1609, %v1699
  %v1764 = vmul.f32 %v1614, %v1700
  %v1765 = vmul.f32 %v1617, %v1701
  %v1766 = vmul.f32 %v1622, %v1702
  %v1767 = vmul.f32 %v1625, %v1703
  %v1768 = vmul.f32 %v1630, %v1704
  %v1769 = vmul.f32 %v1633, %v1705
  %v1770 = vmul.f32 %v1638, %v1706
  %v1771 = vmul.f32 %v1641, %v1707
  %v1772 = vmul.f32 %v1708, 0.044715
  %v1773 = vmul.f32 %v1709, 0.044715
  %v1774 = vmul.f32 %v1710, 0.044715
  %v1775 = vmul.f32 %v1711, 0.044715
  %v1776 = vmul.f32 %v1712, 0.044715
  %v1777 = vmul.f32 %v1713, 0.044715
  %v1778 = vmul.f32 %v1714, 0.044715
  %v1779 = vmul.f32 %v1715, 0.044715
  %v1780 = vmul.f32 %v1716, 0.044715
  %v1781 = vmul.f32 %v1717, 0.044715
  %v1782 = vmul.f32 %v1718, 0.044715
  %v1783 = vmul.f32 %v1719, 0.044715
  %v1784 = vmul.f32 %v1720, 0.044715
  %v1785 = vmul.f32 %v1721, 0.044715
  %v1786 = vmul.f32 %v1722, 0.044715
  %v1787 = vmul.f32 %v1723, 0.044715
  %v1788 = vmul.f32 %v1724, 0.044715
  %v1789 = vmul.f32 %v1725, 0.044715
  %v1790 = vmul.f32 %v1726, 0.044715
  %v1791 = vmul.f32 %v1727, 0.044715
  %v1792 = vmul.f32 %v1728, 0.044715
  %v1793 = vmul.f32 %v1729, 0.044715
  %v1794 = vmul.f32 %v1730, 0.044715
  %v1795 = vmul.f32 %v1731, 0.044715
  %v1796 = vmul.f32 %v1732, 0.044715
  %v1797 = vmul.f32 %v1733, 0.044715
  %v1798 = vmul.f32 %v1734, 0.044715
  %v1799 = vmul.f32 %v1735, 0.044715
  %v1800 = vmul.f32 %v1736, 0.044715
  %v1801 = vmul.f32 %v1737, 0.044715
  %v1802 = vmul.f32 %v1738, 0.044715
  %v1803 = vmul.f32 %v1739, 0.044715
  %v1804 = vmul.f32 %v1740, 0.044715
  %v1805 = vmul.f32 %v1741, 0.044715
  %v1806 = vmul.f32 %v1742, 0.044715
  %v1807 = vmul.f32 %v1743, 0.044715
  %v1808 = vmul.f32 %v1744, 0.044715
  %v1809 = vmul.f32 %v1745, 0.044715
  %v1810 = vmul.f32 %v1746, 0.044715
  %v1811 = vmul.f32 %v1747, 0.044715
  %v1812 = vmul.f32 %v1748, 0.044715
  %v1813 = vmul.f32 %v1749, 0.044715
  %v1814 = vmul.f32 %v1750, 0.044715
  %v1815 = vmul.f32 %v1751, 0.044715
  %v1816 = vmul.f32 %v1752, 0.044715
  %v1817 = vmul.f32 %v1753, 0.044715
  %v1818 = vmul.f32 %v1754, 0.044715
  %v1819 = vmul.f32 %v1755, 0.044715
  %v1820 = vmul.f32 %v1756, 0.044715
  %v1821 = vmul.f32 %v1757, 0.044715
  %v1822 = vmul.f32 %v1758, 0.044715
  %v1823 = vmul.f32 %v1759, 0.044715
  %v1824 = vmul.f32 %v1760, 0.044715
  %v1825 = vmul.f32 %v1761, 0.044715
  %v1826 = vmul.f32 %v1762, 0.044715
  %v1827 = vmul.f32 %v1763, 0.044715
  %v1828 = vmul.f32 %v1764, 0.044715
  %v1829 = vmul.f32 %v1765, 0.044715
  %v1830 = vmul.f32 %v1766, 0.044715
  %v1831 = vmul.f32 %v1767, 0.044715
  %v1832 = vmul.f32 %v1768, 0.044715
  %v1833 = vmul.f32 %v1769, 0.044715
  %v1834 = vmul.f32 %v1770, 0.044715
  %v1835 = vmul.f32 %v1771, 0.044715
  %v1836 = vadd.f32 %v1390, %v1772
  %v1837 = vadd.f32 %v1393, %v1773
  %v1838 = vadd.f32 %v1398, %v1774
  %v1839 = vadd.f32 %v1401, %v1775
  %v1840 = vadd.f32 %v1406, %v1776
  %v1841 = vadd.f32 %v1409, %v1777
  %v1842 = vadd.f32 %v1414, %v1778
  %v1843 = vadd.f32 %v1417, %v1779
  %v1844 = vadd.f32 %v1422, %v1780
  %v1845 = vadd.f32 %v1425, %v1781
  %v1846 = vadd.f32 %v1430, %v1782
  %v1847 = vadd.f32 %v1433, %v1783
  %v1848 = vadd.f32 %v1438, %v1784
  %v1849 = vadd.f32 %v1441, %v1785
  %v1850 = vadd.f32 %v1446, %v1786
  %v1851 = vadd.f32 %v1449, %v1787
  %v1852 = vadd.f32 %v1454, %v1788
  %v1853 = vadd.f32 %v1457, %v1789
  %v1854 = vadd.f32 %v1462, %v1790
  %v1855 = vadd.f32 %v1465, %v1791
  %v1856 = vadd.f32 %v1470, %v1792
  %v1857 = vadd.f32 %v1473, %v1793
  %v1858 = vadd.f32 %v1478, %v1794
  %v1859 = vadd.f32 %v1481, %v1795
  %v1860 = vadd.f32 %v1486, %v1796
  %v1861 = vadd.f32 %v1489, %v1797
  %v1862 = vadd.f32 %v1494, %v1798
  %v1863 = vadd.f32 %v1497, %v1799
  %v1864 = vadd.f32 %v1502, %v1800
  %v1865 = vadd.f32 %v1505, %v1801
  %v1866 = vadd.f32 %v1510, %v1802
  %v1867 = vadd.f32 %v1513, %v1803
  %v1868 = vadd.f32 %v1518, %v1804
  %v1869 = vadd.f32 %v1521, %v1805
  %v1870 = vadd.f32 %v1526, %v1806
  %v1871 = vadd.f32 %v1529, %v1807
  %v1872 = vadd.f32 %v1534, %v1808
  %v1873 = vadd.f32 %v1537, %v1809
  %v1874 = vadd.f32 %v1542, %v1810
  %v1875 = vadd.f32 %v1545, %v1811
  %v1876 = vadd.f32 %v1550, %v1812
  %v1877 = vadd.f32 %v1553, %v1813
  %v1878 = vadd.f32 %v1558, %v1814
  %v1879 = vadd.f32 %v1561, %v1815
  %v1880 = vadd.f32 %v1566, %v1816
  %v1881 = vadd.f32 %v1569, %v1817
  %v1882 = vadd.f32 %v1574, %v1818
  %v1883 = vadd.f32 %v1577, %v1819
  %v1884 = vadd.f32 %v1582, %v1820
  %v1885 = vadd.f32 %v1585, %v1821
  %v1886 = vadd.f32 %v1590, %v1822
  %v1887 = vadd.f32 %v1593, %v1823
  %v1888 = vadd.f32 %v1598, %v1824
  %v1889 = vadd.f32 %v1601, %v1825
  %v1890 = vadd.f32 %v1606, %v1826
  %v1891 = vadd.f32 %v1609, %v1827
  %v1892 = vadd.f32 %v1614, %v1828
  %v1893 = vadd.f32 %v1617, %v1829
  %v1894 = vadd.f32 %v1622, %v1830
  %v1895 = vadd.f32 %v1625, %v1831
  %v1896 = vadd.f32 %v1630, %v1832
  %v1897 = vadd.f32 %v1633, %v1833
  %v1898 = vadd.f32 %v1638, %v1834
  %v1899 = vadd.f32 %v1641, %v1835
  %v1900 = vmul.f32 %v1836, 0.7978846
  %v1901 = vmul.f32 %v1837, 0.7978846
  %v1902 = vmul.f32 %v1838, 0.7978846
  %v1903 = vmul.f32 %v1839, 0.7978846
  %v1904 = vmul.f32 %v1840, 0.7978846
  %v1905 = vmul.f32 %v1841, 0.7978846
  %v1906 = vmul.f32 %v1842, 0.7978846
  %v1907 = vmul.f32 %v1843, 0.7978846
  %v1908 = vmul.f32 %v1844, 0.7978846
  %v1909 = vmul.f32 %v1845, 0.7978846
  %v1910 = vmul.f32 %v1846, 0.7978846
  %v1911 = vmul.f32 %v1847, 0.7978846
  %v1912 = vmul.f32 %v1848, 0.7978846
  %v1913 = vmul.f32 %v1849, 0.7978846
  %v1914 = vmul.f32 %v1850, 0.7978846
  %v1915 = vmul.f32 %v1851, 0.7978846
  %v1916 = vmul.f32 %v1852, 0.7978846
  %v1917 = vmul.f32 %v1853, 0.7978846
  %v1918 = vmul.f32 %v1854, 0.7978846
  %v1919 = vmul.f32 %v1855, 0.7978846
  %v1920 = vmul.f32 %v1856, 0.7978846
  %v1921 = vmul.f32 %v1857, 0.7978846
  %v1922 = vmul.f32 %v1858, 0.7978846
  %v1923 = vmul.f32 %v1859, 0.7978846
  %v1924 = vmul.f32 %v1860, 0.7978846
  %v1925 = vmul.f32 %v1861, 0.7978846
  %v1926 = vmul.f32 %v1862, 0.7978846
  %v1927 = vmul.f32 %v1863, 0.7978846
  %v1928 = vmul.f32 %v1864, 0.7978846
  %v1929 = vmul.f32 %v1865, 0.7978846
  %v1930 = vmul.f32 %v1866, 0.7978846
  %v1931 = vmul.f32 %v1867, 0.7978846
  %v1932 = vmul.f32 %v1868, 0.7978846
  %v1933 = vmul.f32 %v1869, 0.7978846
  %v1934 = vmul.f32 %v1870, 0.7978846
  %v1935 = vmul.f32 %v1871, 0.7978846
  %v1936 = vmul.f32 %v1872, 0.7978846
  %v1937 = vmul.f32 %v1873, 0.7978846
  %v1938 = vmul.f32 %v1874, 0.7978846
  %v1939 = vmul.f32 %v1875, 0.7978846
  %v1940 = vmul.f32 %v1876, 0.7978846
  %v1941 = vmul.f32 %v1877, 0.7978846
  %v1942 = vmul.f32 %v1878, 0.7978846
  %v1943 = vmul.f32 %v1879, 0.7978846
  %v1944 = vmul.f32 %v1880, 0.7978846
  %v1945 = vmul.f32 %v1881, 0.7978846
  %v1946 = vmul.f32 %v1882, 0.7978846
  %v1947 = vmul.f32 %v1883, 0.7978846
  %v1948 = vmul.f32 %v1884, 0.7978846
  %v1949 = vmul.f32 %v1885, 0.7978846
  %v1950 = vmul.f32 %v1886, 0.7978846
  %v1951 = vmul.f32 %v1887, 0.7978846
  %v1952 = vmul.f32 %v1888, 0.7978846
  %v1953 = vmul.f32 %v1889, 0.7978846
  %v1954 = vmul.f32 %v1890, 0.7978846
  %v1955 = vmul.f32 %v1891, 0.7978846
  %v1956 = vmul.f32 %v1892, 0.7978846
  %v1957 = vmul.f32 %v1893, 0.7978846
  %v1958 = vmul.f32 %v1894, 0.7978846
  %v1959 = vmul.f32 %v1895, 0.7978846
  %v1960 = vmul.f32 %v1896, 0.7978846
  %v1961 = vmul.f32 %v1897, 0.7978846
  %v1962 = vmul.f32 %v1898, 0.7978846
  %v1963 = vmul.f32 %v1899, 0.7978846
  %v1964 = vtanh.pop %v1900
  %v1965 = vtanh.pop %v1901
  %v1966 = vtanh.pop %v1902
  %v1967 = vtanh.pop %v1903
  %v1968 = vtanh.pop %v1904
  %v1969 = vtanh.pop %v1905
  %v1970 = vtanh.pop %v1906
  %v1971 = vtanh.pop %v1907
  %v1972 = vtanh.pop %v1908
  %v1973 = vtanh.pop %v1909
  %v1974 = vtanh.pop %v1910
  %v1975 = vtanh.pop %v1911
  %v1976 = vtanh.pop %v1912
  %v1977 = vtanh.pop %v1913
  %v1978 = vtanh.pop %v1914
  %v1979 = vtanh.pop %v1915
  %v1980 = vtanh.pop %v1916
  %v1981 = vtanh.pop %v1917
  %v1982 = vtanh.pop %v1918
  %v1983 = vtanh.pop %v1919
  %v1984 = vtanh.pop %v1920
  %v1985 = vtanh.pop %v1921
  %v1986 = vtanh.pop %v1922
  %v1987 = vtanh.pop %v1923
  %v1988 = vtanh.pop %v1924
  %v1989 = vtanh.pop %v1925
  %v1990 = vtanh.pop %v1926
  %v1991 = vtanh.pop %v1927
  %v1992 = vtanh.pop %v1928
  %v1993 = vtanh.pop %v1929
  %v1994 = vtanh.pop %v1930
  %v1995 = vtanh.pop %v1931
  %v1996 = vtanh.pop %v1932
  %v1997 = vtanh.pop %v1933
  %v1998 = vtanh.pop %v1934
  %v1999 = vtanh.pop %v1935
  %v2000 = vtanh.pop %v1936
  %v2001 = vtanh.pop %v1937
  %v2002 = vtanh.pop %v1938
  %v2003 = vtanh.pop %v1939
  %v2004 = vtanh.pop %v1940
  %v2005 = vtanh.pop %v1941
  %v2006 = vtanh.pop %v1942
  %v2007 = vtanh.pop %v1943
  %v2008 = vtanh.pop %v1944
  %v2009 = vtanh.pop %v1945
  %v2010 = vtanh.pop %v1946
  %v2011 = vtanh.pop %v1947
  %v2012 = vtanh.pop %v1948
  %v2013 = vtanh.pop %v1949
  %v2014 = vtanh.pop %v1950
  %v2015 = vtanh.pop %v1951
  %v2016 = vtanh.pop %v1952
  %v2017 = vtanh.pop %v1953
  %v2018 = vtanh.pop %v1954
  %v2019 = vtanh.pop %v1955
  %v2020 = vtanh.pop %v1956
  %v2021 = vtanh.pop %v1957
  %v2022 = vtanh.pop %v1958
  %v2023 = vtanh.pop %v1959
  %v2024 = vtanh.pop %v1960
  %v2025 = vtanh.pop %v1961
  %v2026 = vtanh.pop %v1962
  %v2027 = vtanh.pop %v1963
  %v2028 = vadd.f32 %v1964, 1.0
  %v2029 = vadd.f32 %v1965, 1.0
  %v2030 = vadd.f32 %v1966, 1.0
  %v2031 = vadd.f32 %v1967, 1.0
  %v2032 = vadd.f32 %v1968, 1.0
  %v2033 = vadd.f32 %v1969, 1.0
  %v2034 = vadd.f32 %v1970, 1.0
  %v2035 = vadd.f32 %v1971, 1.0
  %v2036 = vadd.f32 %v1972, 1.0
  %v2037 = vadd.f32 %v1973, 1.0
  %v2038 = vadd.f32 %v1974, 1.0
  %v2039 = vadd.f32 %v1975, 1.0
  %v2040 = vadd.f32 %v1976, 1.0
  %v2041 = vadd.f32 %v1977, 1.0
  %v2042 = vadd.f32 %v1978, 1.0
  %v2043 = vadd.f32 %v1979, 1.0
  %v2044 = vadd.f32 %v1980, 1.0
  %v2045 = vadd.f32 %v1981, 1.0
  %v2046 = vadd.f32 %v1982, 1.0
  %v2047 = vadd.f32 %v1983, 1.0
  %v2048 = vadd.f32 %v1984, 1.0
  %v2049 = vadd.f32 %v1985, 1.0
  %v2050 = vadd.f32 %v1986, 1.0
  %v2051 = vadd.f32 %v1987, 1.0
  %v2052 = vadd.f32 %v1988, 1.0
  %v2053 = vadd.f32 %v1989, 1.0
  %v2054 = vadd.f32 %v1990, 1.0
  %v2055 = vadd.f32 %v1991, 1.0
  %v2056 = vadd.f32 %v1992, 1.0
  %v2057 = vadd.f32 %v1993, 1.0
  %v2058 = vadd.f32 %v1994, 1.0
  %v2059 = vadd.f32 %v1995, 1.0
  %v2060 = vadd.f32 %v1996, 1.0
  %v2061 = vadd.f32 %v1997, 1.0
  %v2062 = vadd.f32 %v1998, 1.0
  %v2063 = vadd.f32 %v1999, 1.0
  %v2064 = vadd.f32 %v2000, 1.0
  %v2065 = vadd.f32 %v2001, 1.0
  %v2066 = vadd.f32 %v2002, 1.0
  %v2067 = vadd.f32 %v2003, 1.0
  %v2068 = vadd.f32 %v2004, 1.0
  %v2069 = vadd.f32 %v2005, 1.0
  %v2070 = vadd.f32 %v2006, 1.0
  %v2071 = vadd.f32 %v2007, 1.0
  %v2072 = vadd.f32 %v2008, 1.0
  %v2073 = vadd.f32 %v2009, 1.0
  %v2074 = vadd.f32 %v2010, 1.0
  %v2075 = vadd.f32 %v2011, 1.0
  %v2076 = vadd.f32 %v2012, 1.0
  %v2077 = vadd.f32 %v2013, 1.0
  %v2078 = vadd.f32 %v2014, 1.0
  %v2079 = vadd.f32 %v2015, 1.0
  %v2080 = vadd.f32 %v2016, 1.0
  %v2081 = vadd.f32 %v2017, 1.0
  %v2082 = vadd.f32 %v2018, 1.0
  %v2083 = vadd.f32 %v2019, 1.0
  %v2084 = vadd.f32 %v2020, 1.0
  %v2085 = vadd.f32 %v2021, 1.0
  %v2086 = vadd.f32 %v2022, 1.0
  %v2087 = vadd.f32 %v2023, 1.0
  %v2088 = vadd.f32 %v2024, 1.0
  %v2089 = vadd.f32 %v2025, 1.0
  %v2090 = vadd.f32 %v2026, 1.0
  %v2091 = vadd.f32 %v2027, 1.0
  %v2092 = vmul.f32 %v2028, 0.5
  %v2093 = vmul.f32 %v2029, 0.5
  %v2094 = vmul.f32 %v2030, 0.5
  %v2095 = vmul.f32 %v2031, 0.5
  %v2096 = vmul.f32 %v2032, 0.5
  %v2097 = vmul.f32 %v2033, 0.5
  %v2098 = vmul.f32 %v2034, 0.5
  %v2099 = vmul.f32 %v2035, 0.5
  %v2100 = vmul.f32 %v2036, 0.5
  %v2101 = vmul.f32 %v2037, 0.5
  %v2102 = vmul.f32 %v2038, 0.5
  %v2103 = vmul.f32 %v2039, 0.5
  %v2104 = vmul.f32 %v2040, 0.5
  %v2105 = vmul.f32 %v2041, 0.5
  %v2106 = vmul.f32 %v2042, 0.5
  %v2107 = vmul.f32 %v2043, 0.5
  %v2108 = vmul.f32 %v2044, 0.5
  %v2109 = vmul.f32 %v2045, 0.5
  %v2110 = vmul.f32 %v2046, 0.5
  %v2111 = vmul.f32 %v2047, 0.5
  %v2112 = vmul.f32 %v2048, 0.5
  %v2113 = vmul.f32 %v2049, 0.5
  %v2114 = vmul.f32 %v2050, 0.5
  %v2115 = vmul.f32 %v2051, 0.5
  %v2116 = vmul.f32 %v2052, 0.5
  %v2117 = vmul.f32 %v2053, 0.5
  %v2118 = vmul.f32 %v2054, 0.5
  %v2119 = vmul.f32 %v2055, 0.5
  %v2120 = vmul.f32 %v2056, 0.5
  %v2121 = vmul.f32 %v2057, 0.5
  %v2122 = vmul.f32 %v2058, 0.5
  %v2123 = vmul.f32 %v2059, 0.5
  %v2124 = vmul.f32 %v2060, 0.5
  %v2125 = vmul.f32 %v2061, 0.5
  %v2126 = vmul.f32 %v2062, 0.5
  %v2127 = vmul.f32 %v2063, 0.5
  %v2128 = vmul.f32 %v2064, 0.5
  %v2129 = vmul.f32 %v2065, 0.5
  %v2130 = vmul.f32 %v2066, 0.5
  %v2131 = vmul.f32 %v2067, 0.5
  %v2132 = vmul.f32 %v2068, 0.5
  %v2133 = vmul.f32 %v2069, 0.5
  %v2134 = vmul.f32 %v2070, 0.5
  %v2135 = vmul.f32 %v2071, 0.5
  %v2136 = vmul.f32 %v2072, 0.5
  %v2137 = vmul.f32 %v2073, 0.5
  %v2138 = vmul.f32 %v2074, 0.5
  %v2139 = vmul.f32 %v2075, 0.5
  %v2140 = vmul.f32 %v2076, 0.5
  %v2141 = vmul.f32 %v2077, 0.5
  %v2142 = vmul.f32 %v2078, 0.5
  %v2143 = vmul.f32 %v2079, 0.5
  %v2144 = vmul.f32 %v2080, 0.5
  %v2145 = vmul.f32 %v2081, 0.5
  %v2146 = vmul.f32 %v2082, 0.5
  %v2147 = vmul.f32 %v2083, 0.5
  %v2148 = vmul.f32 %v2084, 0.5
  %v2149 = vmul.f32 %v2085, 0.5
  %v2150 = vmul.f32 %v2086, 0.5
  %v2151 = vmul.f32 %v2087, 0.5
  %v2152 = vmul.f32 %v2088, 0.5
  %v2153 = vmul.f32 %v2089, 0.5
  %v2154 = vmul.f32 %v2090, 0.5
  %v2155 = vmul.f32 %v2091, 0.5
  %v2156 = vmul.f32 %v1390, %v2092
  %v2157 = vmul.f32 %v1393, %v2093
  %v2158 = vmul.f32 %v1398, %v2094
  %v2159 = vmul.f32 %v1401, %v2095
  %v2160 = vmul.f32 %v1406, %v2096
  %v2161 = vmul.f32 %v1409, %v2097
  %v2162 = vmul.f32 %v1414, %v2098
  %v2163 = vmul.f32 %v1417, %v2099
  %v2164 = vmul.f32 %v1422, %v2100
  %v2165 = vmul.f32 %v1425, %v2101
  %v2166 = vmul.f32 %v1430, %v2102
  %v2167 = vmul.f32 %v1433, %v2103
  %v2168 = vmul.f32 %v1438, %v2104
  %v2169 = vmul.f32 %v1441, %v2105
  %v2170 = vmul.f32 %v1446, %v2106
  %v2171 = vmul.f32 %v1449, %v2107
  %v2172 = vmul.f32 %v1454, %v2108
  %v2173 = vmul.f32 %v1457, %v2109
  %v2174 = vmul.f32 %v1462, %v2110
  %v2175 = vmul.f32 %v1465, %v2111
  %v2176 = vmul.f32 %v1470, %v2112
  %v2177 = vmul.f32 %v1473, %v2113
  %v2178 = vmul.f32 %v1478, %v2114
  %v2179 = vmul.f32 %v1481, %v2115
  %v2180 = vmul.f32 %v1486, %v2116
  %v2181 = vmul.f32 %v1489, %v2117
  %v2182 = vmul.f32 %v1494, %v2118
  %v2183 = vmul.f32 %v1497, %v2119
  %v2184 = vmul.f32 %v1502, %v2120
  %v2185 = vmul.f32 %v1505, %v2121
  %v2186 = vmul.f32 %v1510, %v2122
  %v2187 = vmul.f32 %v1513, %v2123
  %v2188 = vmul.f32 %v1518, %v2124
  %v2189 = vmul.f32 %v1521, %v2125
  %v2190 = vmul.f32 %v1526, %v2126
  %v2191 = vmul.f32 %v1529, %v2127
  %v2192 = vmul.f32 %v1534, %v2128
  %v2193 = vmul.f32 %v1537, %v2129
  %v2194 = vmul.f32 %v1542, %v2130
  %v2195 = vmul.f32 %v1545, %v2131
  %v2196 = vmul.f32 %v1550, %v2132
  %v2197 = vmul.f32 %v1553, %v2133
  %v2198 = vmul.f32 %v1558, %v2134
  %v2199 = vmul.f32 %v1561, %v2135
  %v2200 = vmul.f32 %v1566, %v2136
  %v2201 = vmul.f32 %v1569, %v2137
  %v2202 = vmul.f32 %v1574, %v2138
  %v2203 = vmul.f32 %v1577, %v2139
  %v2204 = vmul.f32 %v1582, %v2140
  %v2205 = vmul.f32 %v1585, %v2141
  %v2206 = vmul.f32 %v1590, %v2142
  %v2207 = vmul.f32 %v1593, %v2143
  %v2208 = vmul.f32 %v1598, %v2144
  %v2209 = vmul.f32 %v1601, %v2145
  %v2210 = vmul.f32 %v1606, %v2146
  %v2211 = vmul.f32 %v1609, %v2147
  %v2212 = vmul.f32 %v1614, %v2148
  %v2213 = vmul.f32 %v1617, %v2149
  %v2214 = vmul.f32 %v1622, %v2150
  %v2215 = vmul.f32 %v1625, %v2151
  %v2216 = vmul.f32 %v1630, %v2152
  %v2217 = vmul.f32 %v1633, %v2153
  %v2218 = vmul.f32 %v1638, %v2154
  %v2219 = vmul.f32 %v1641, %v2155
  %v2220 = vpack.c.bf16 %v2157, %v2156
  %v2221 = vpack.c.bf16 %v2159, %v2158
  %v2222 = vpack.c.bf16 %v2161, %v2160
  %v2223 = vpack.c.bf16 %v2163, %v2162
  %v2224 = vpack.c.bf16 %v2165, %v2164
  %v2225 = vpack.c.bf16 %v2167, %v2166
  %v2226 = vpack.c.bf16 %v2169, %v2168
  %v2227 = vpack.c.bf16 %v2171, %v2170
  %v2228 = vpack.c.bf16 %v2173, %v2172
  %v2229 = vpack.c.bf16 %v2175, %v2174
  %v2230 = vpack.c.bf16 %v2177, %v2176
  %v2231 = vpack.c.bf16 %v2179, %v2178
  %v2232 = vpack.c.bf16 %v2181, %v2180
  %v2233 = vpack.c.bf16 %v2183, %v2182
  %v2234 = vpack.c.bf16 %v2185, %v2184
  %v2235 = vpack.c.bf16 %v2187, %v2186
  %v2236 = vpack.c.bf16 %v2189, %v2188
  %v2237 = vpack.c.bf16 %v2191, %v2190
  %v2238 = vpack.c.bf16 %v2193, %v2192
  %v2239 = vpack.c.bf16 %v2195, %v2194
  %v2240 = vpack.c.bf16 %v2197, %v2196
  %v2241 = vpack.c.bf16 %v2199, %v2198
  %v2242 = vpack.c.bf16 %v2201, %v2200
  %v2243 = vpack.c.bf16 %v2203, %v2202
  %v2244 = vpack.c.bf16 %v2205, %v2204
  %v2245 = vpack.c.bf16 %v2207, %v2206
  %v2246 = vpack.c.bf16 %v2209, %v2208
  %v2247 = vpack.c.bf16 %v2211, %v2210
  %v2248 = vpack.c.bf16 %v2213, %v2212
  %v2249 = vpack.c.bf16 %v2215, %v2214
  %v2250 = vpack.c.bf16 %v2217, %v2216
  %v2251 = vpack.c.bf16 %v2219, %v2218
  %v2252 = vld [vmem:[%s5] sm:$0xf]
  %v2253 = vld [vmem:[%s5 + $0x4] sm:$0xf]
  %v2254 = vld [vmem:[%s5 + $0x8] sm:$0xf]
  %v2255 = vld [vmem:[%s5 + $0xc] sm:$0xf]
  %v2256 = vld [vmem:[%s5 + $0x10] sm:$0xf]
  %v2257 = vld [vmem:[%s5 + $0x14] sm:$0xf]
  %v2258 = vld [vmem:[%s5 + $0x18] sm:$0xf]
  %v2259 = vld [vmem:[%s5 + $0x1c] sm:$0xf]
  %v2260 = vld [vmem:[%s5 + $0x20] sm:$0xf]
  %v2261 = vld [vmem:[%s5 + $0x24] sm:$0xf]
  %v2262 = vld [vmem:[%s5 + $0x28] sm:$0xf]
  %v2263 = vld [vmem:[%s5 + $0x2c] sm:$0xf]
  %v2264 = vld [vmem:[%s5 + $0x30] sm:$0xf]
  %v2265 = vld [vmem:[%s5 + $0x34] sm:$0xf]
  %v2266 = vld [vmem:[%s5 + $0x38] sm:$0xf]
  %v2267 = vld [vmem:[%s5 + $0x3c] sm:$0xf]
  %v2268 = vld [vmem:[%s6] sm:$0x1]
  %v2270 = vlaneseq
  %v2271 = vshrl.u32 %v2270, 7
  %v2272 = vsub.s32 0, %v2271
  %v2273 = vrot.slane %v2268, %v2272
  %v2291 = vunpack.c.l.b16 %v2252
  %v2292 = vunpack.c.l.b16 %v2253
  %v2293 = vunpack.c.l.b16 %v2254
  %v2294 = vunpack.c.l.b16 %v2255
  %v2295 = vunpack.c.l.b16 %v2256
  %v2296 = vunpack.c.l.b16 %v2257
  %v2297 = vunpack.c.l.b16 %v2258
  %v2298 = vunpack.c.l.b16 %v2259
  %v2299 = vunpack.c.l.b16 %v2260
  %v2300 = vunpack.c.l.b16 %v2261
  %v2301 = vunpack.c.l.b16 %v2262
  %v2302 = vunpack.c.l.b16 %v2263
  %v2303 = vunpack.c.l.b16 %v2264
  %v2304 = vunpack.c.l.b16 %v2265
  %v2305 = vunpack.c.l.b16 %v2266
  %v2306 = vunpack.c.l.b16 %v2267
  %v2307 = vpack.c.b16 %v2292, %v2291
  %v2308 = vpack.c.b16 %v2294, %v2293
  %v2309 = vpack.c.b16 %v2296, %v2295
  %v2310 = vpack.c.b16 %v2298, %v2297
  %v2311 = vpack.c.b16 %v2300, %v2299
  %v2312 = vpack.c.b16 %v2302, %v2301
  %v2313 = vpack.c.b16 %v2304, %v2303
  %v2314 = vpack.c.b16 %v2306, %v2305
  %2323 = vmatprep.subr.bf16.mxu0 0
  %2324 = vmatpush1.bf16.msra.mxu0 %v2307
  %2325 = vmatprep.subr.bf16.mxu0 0
  %2326 = vmatpush1.bf16.msra.mxu0 %v2308
  %2327 = vmatprep.subr.bf16.mxu0 0
  %2328 = vmatpush1.bf16.msra.mxu0 %v2309
  %2329 = vmatprep.subr.bf16.mxu0 0
  %2330 = vmatpush1.bf16.msra.mxu0 %v2310
  %2331 = vmatprep.subr.bf16.mxu0 0
  %2332 = vmatpush1.bf16.msra.mxu0 %v2311
  %2333 = vmatprep.subr.bf16.mxu0 0
  %2334 = vmatpush1.bf16.msra.mxu0 %v2312
  %2335 = vmatprep.subr.bf16.mxu0 0
  %2336 = vmatpush1.bf16.msra.mxu0 %v2313
  %2337 = vmatprep.subr.bf16.mxu0 0
  %2338 = vmatpush1.bf16.msra.mxu0 %v2314
  %2339 = vmatprep.subr.bf16.mxu0 0
  %2340 = vmatpush1.bf16.msra.mxu0 0
  %2341 = vmatprep.subr.bf16.mxu0 0
  %2342 = vmatpush1.bf16.msra.mxu0 0
  %2343 = vmatprep.subr.bf16.mxu0 0
  %2344 = vmatpush1.bf16.msra.mxu0 0
  %2345 = vmatprep.subr.bf16.mxu0 0
  %2346 = vmatpush1.bf16.msra.mxu0 0
  %2347 = vmatprep.subr.bf16.mxu0 0
  %2348 = vmatpush1.bf16.msra.mxu0 0
  %2349 = vmatprep.subr.bf16.mxu0 0
  %2350 = vmatpush1.bf16.msra.mxu0 0
  %2351 = vmatprep.subr.bf16.mxu0 0
  %2352 = vmatpush1.bf16.msra.mxu0 0
  %2353 = vmatprep.subr.bf16.mxu0 0
  %2354 = vmatpush1.bf16.msra.mxu0 0
  %2355 = vmatprep.mubr.bf16.mxu0 0
  %2356 = vmatmul.mubr.bf16.gmra.mrb[0].mxu0 %v2220
  %v2357 = vpop.f32.mrb[0].mxu0
  %v2358 = vadd.f32 %v2273, %v2357
  %v2359 = vpop.f32.mrb[0].mxu0
  %v2360 = vpop.f32.mrb[0].mxu0
  %v2361 = vadd.f32 %v2273, %v2360
  %v2362 = vpop.f32.mrb[0].mxu0
  %2363 = vmatprep.mubr.bf16.mxu0 0
  %2364 = vmatmul.mubr.bf16.gmra.mrb[0].mxu0 %v2221
  %v2365 = vpop.f32.mrb[0].mxu0
  %v2366 = vadd.f32 %v2273, %v2365
  %v2367 = vpop.f32.mrb[0].mxu0
  %v2368 = vpop.f32.mrb[0].mxu0
  %v2369 = vadd.f32 %v2273, %v2368
  %v2370 = vpop.f32.mrb[0].mxu0
  %2371 = vmatprep.mubr.bf16.mxu0 0
  %2372 = vmatmul.mubr.bf16.gmra.mrb[0].mxu0 %v2222
  %v2373 = vpop.f32.mrb[0].mxu0
  %v2374 = vadd.f32 %v2273, %v2373
  %v2375 = vpop.f32.mrb[0].mxu0
  %v2376 = vpop.f32.mrb[0].mxu0
  %v2377 = vadd.f32 %v2273, %v2376
  %v2378 = vpop.f32.mrb[0].mxu0
  %2379 = vmatprep.mubr.bf16.mxu0 0
  %2380 = vmatmul.mubr.bf16.gmra.mrb[0].mxu0 %v2223
  %v2381 = vpop.f32.mrb[0].mxu0
  %v2382 = vadd.f32 %v2273, %v2381
  %v2383 = vpop.f32.mrb[0].mxu0
  %v2384 = vpop.f32.mrb[0].mxu0
  %v2385 = vadd.f32 %v2273, %v2384
  %v2386 = vpop.f32.mrb[0].mxu0
  %2387 = vmatprep.mubr.bf16.mxu0 0
  %2388 = vmatmul.mubr.bf16.gmra.mrb[0].mxu0 %v2224
  %v2389 = vpop.f32.mrb[0].mxu0
  %v2390 = vadd.f32 %v2273, %v2389
  %v2391 = vpop.f32.mrb[0].mxu0
  %v2392 = vpop.f32.mrb[0].mxu0
  %v2393 = vadd.f32 %v2273, %v2392
  %v2394 = vpop.f32.mrb[0].mxu0
  %2395 = vmatprep.mubr.bf16.mxu0 0
  %2396 = vmatmul.mubr.bf16.gmra.mrb[0].mxu0 %v2225
  %v2397 = vpop.f32.mrb[0].mxu0
  %v2398 = vadd.f32 %v2273, %v2397
  %v2399 = vpop.f32.mrb[0].mxu0
  %v2400 = vpop.f32.mrb[0].mxu0
  %v2401 = vadd.f32 %v2273, %v2400
  %v2402 = vpop.f32.mrb[0].mxu0
  %2403 = vmatprep.mubr.bf16.mxu0 0
  %2404 = vmatmul.mubr.bf16.gmra.mrb[0].mxu0 %v2226
  %v2405 = vpop.f32.mrb[0].mxu0
  %v2406 = vadd.f32 %v2273, %v2405
  %v2407 = vpop.f32.mrb[0].mxu0
  %v2408 = vpop.f32.mrb[0].mxu0
  %v2409 = vadd.f32 %v2273, %v2408
  %v2410 = vpop.f32.mrb[0].mxu0
  %2411 = vmatprep.mubr.bf16.mxu0 0
  %2412 = vmatmul.mubr.bf16.gmra.mrb[0].mxu0 %v2227
  %v2413 = vpop.f32.mrb[0].mxu0
  %v2414 = vadd.f32 %v2273, %v2413
  %v2415 = vpop.f32.mrb[0].mxu0
  %v2416 = vpop.f32.mrb[0].mxu0
  %v2417 = vadd.f32 %v2273, %v2416
  %v2418 = vpop.f32.mrb[0].mxu0
  %2419 = vmatprep.mubr.bf16.mxu0 0
  %2420 = vmatmul.mubr.bf16.gmra.mrb[0].mxu0 %v2228
  %v2421 = vpop.f32.mrb[0].mxu0
  %v2422 = vadd.f32 %v2273, %v2421
  %v2423 = vpop.f32.mrb[0].mxu0
  %v2424 = vpop.f32.mrb[0].mxu0
  %v2425 = vadd.f32 %v2273, %v2424
  %v2426 = vpop.f32.mrb[0].mxu0
  %2427 = vmatprep.mubr.bf16.mxu0 0
  %2428 = vmatmul.mubr.bf16.gmra.mrb[0].mxu0 %v2229
  %v2429 = vpop.f32.mrb[0].mxu0
  %v2430 = vadd.f32 %v2273, %v2429
  %v2431 = vpop.f32.mrb[0].mxu0
  %v2432 = vpop.f32.mrb[0].mxu0
  %v2433 = vadd.f32 %v2273, %v2432
  %v2434 = vpop.f32.mrb[0].mxu0
  %2435 = vmatprep.mubr.bf16.mxu0 0
  %2436 = vmatmul.mubr.bf16.gmra.mrb[0].mxu0 %v2230
  %v2437 = vpop.f32.mrb[0].mxu0
  %v2438 = vadd.f32 %v2273, %v2437
  %v2439 = vpop.f32.mrb[0].mxu0
  %v2440 = vpop.f32.mrb[0].mxu0
  %v2441 = vadd.f32 %v2273, %v2440
  %v2442 = vpop.f32.mrb[0].mxu0
  %2443 = vmatprep.mubr.bf16.mxu0 0
  %2444 = vmatmul.mubr.bf16.gmra.mrb[0].mxu0 %v2231
  %v2445 = vpop.f32.mrb[0].mxu0
  %v2446 = vadd.f32 %v2273, %v2445
  %v2447 = vpop.f32.mrb[0].mxu0
  %v2448 = vpop.f32.mrb[0].mxu0
  %v2449 = vadd.f32 %v2273, %v2448
  %v2450 = vpop.f32.mrb[0].mxu0
  %2451 = vmatprep.mubr.bf16.mxu0 0
  %2452 = vmatmul.mubr.bf16.gmra.mrb[0].mxu0 %v2232
  %v2453 = vpop.f32.mrb[0].mxu0
  %v2454 = vadd.f32 %v2273, %v2453
  %v2455 = vpop.f32.mrb[0].mxu0
  %v2456 = vpop.f32.mrb[0].mxu0
  %v2457 = vadd.f32 %v2273, %v2456
  %v2458 = vpop.f32.mrb[0].mxu0
  %2459 = vmatprep.mubr.bf16.mxu0 0
  %2460 = vmatmul.mubr.bf16.gmra.mrb[0].mxu0 %v2233
  %v2461 = vpop.f32.mrb[0].mxu0
  %v2462 = vadd.f32 %v2273, %v2461
  %v2463 = vpop.f32.mrb[0].mxu0
  %v2464 = vpop.f32.mrb[0].mxu0
  %v2465 = vadd.f32 %v2273, %v2464
  %v2466 = vpop.f32.mrb[0].mxu0
  %2467 = vmatprep.mubr.bf16.mxu0 0
  %2468 = vmatmul.mubr.bf16.gmra.mrb[0].mxu0 %v2234
  %v2469 = vpop.f32.mrb[0].mxu0
  %v2470 = vadd.f32 %v2273, %v2469
  %v2471 = vpop.f32.mrb[0].mxu0
  %v2472 = vpop.f32.mrb[0].mxu0
  %v2473 = vadd.f32 %v2273, %v2472
  %v2474 = vpop.f32.mrb[0].mxu0
  %2475 = vmatprep.mubr.bf16.mxu0 0
  %2476 = vmatmul.mubr.bf16.gmra.mrb[0].mxu0 %v2235
  %v2477 = vpop.f32.mrb[0].mxu0
  %v2478 = vadd.f32 %v2273, %v2477
  %v2479 = vpop.f32.mrb[0].mxu0
  %v2480 = vpop.f32.mrb[0].mxu0
  %v2481 = vadd.f32 %v2273, %v2480
  %v2482 = vpop.f32.mrb[0].mxu0
  %2483 = vmatprep.mubr.bf16.mxu0 0
  %2484 = vmatmul.mubr.bf16.gmra.mrb[0].mxu0 %v2236
  %v2485 = vpop.f32.mrb[0].mxu0
  %v2486 = vadd.f32 %v2273, %v2485
  %v2487 = vpop.f32.mrb[0].mxu0
  %v2488 = vpop.f32.mrb[0].mxu0
  %v2489 = vadd.f32 %v2273, %v2488
  %v2490 = vpop.f32.mrb[0].mxu0
  %2491 = vmatprep.mubr.bf16.mxu0 0
  %2492 = vmatmul.mubr.bf16.gmra.mrb[0].mxu0 %v2237
  %v2493 = vpop.f32.mrb[0].mxu0
  %v2494 = vadd.f32 %v2273, %v2493
  %v2495 = vpop.f32.mrb[0].mxu0
  %v2496 = vpop.f32.mrb[0].mxu0
  %v2497 = vadd.f32 %v2273, %v2496
  %v2498 = vpop.f32.mrb[0].mxu0
  %2499 = vmatprep.mubr.bf16.mxu0 0
  %2500 = vmatmul.mubr.bf16.gmra.mrb[0].mxu0 %v2238
  %v2501 = vpop.f32.mrb[0].mxu0
  %v2502 = vadd.f32 %v2273, %v2501
  %v2503 = vpop.f32.mrb[0].mxu0
  %v2504 = vpop.f32.mrb[0].mxu0
  %v2505 = vadd.f32 %v2273, %v2504
  %v2506 = vpop.f32.mrb[0].mxu0
  %2507 = vmatprep.mubr.bf16.mxu0 0
  %2508 = vmatmul.mubr.bf16.gmra.mrb[0].mxu0 %v2239
  %v2509 = vpop.f32.mrb[0].mxu0
  %v2510 = vadd.f32 %v2273, %v2509
  %v2511 = vpop.f32.mrb[0].mxu0
  %v2512 = vpop.f32.mrb[0].mxu0
  %v2513 = vadd.f32 %v2273, %v2512
  %v2514 = vpop.f32.mrb[0].mxu0
  %2515 = vmatprep.mubr.bf16.mxu0 0
  %2516 = vmatmul.mubr.bf16.gmra.mrb[0].mxu0 %v2240
  %v2517 = vpop.f32.mrb[0].mxu0
  %v2518 = vadd.f32 %v2273, %v2517
  %v2519 = vpop.f32.mrb[0].mxu0
  %v2520 = vpop.f32.mrb[0].mxu0
  %v2521 = vadd.f32 %v2273, %v2520
  %v2522 = vpop.f32.mrb[0].mxu0
  %2523 = vmatprep.mubr.bf16.mxu0 0
  %2524 = vmatmul.mubr.bf16.gmra.mrb[0].mxu0 %v2241
  %v2525 = vpop.f32.mrb[0].mxu0
  %v2526 = vadd.f32 %v2273, %v2525
  %v2527 = vpop.f32.mrb[0].mxu0
  %v2528 = vpop.f32.mrb[0].mxu0
  %v2529 = vadd.f32 %v2273, %v2528
  %v2530 = vpop.f32.mrb[0].mxu0
  %2531 = vmatprep.mubr.bf16.mxu0 0
  %2532 = vmatmul.mubr.bf16.gmra.mrb[0].mxu0 %v2242
  %v2533 = vpop.f32.mrb[0].mxu0
  %v2534 = vadd.f32 %v2273, %v2533
  %v2535 = vpop.f32.mrb[0].mxu0
  %v2536 = vpop.f32.mrb[0].mxu0
  %v2537 = vadd.f32 %v2273, %v2536
  %v2538 = vpop.f32.mrb[0].mxu0
  %2539 = vmatprep.mubr.bf16.mxu0 0
  %2540 = vmatmul.mubr.bf16.gmra.mrb[0].mxu0 %v2243
  %v2541 = vpop.f32.mrb[0].mxu0
  %v2542 = vadd.f32 %v2273, %v2541
  %v2543 = vpop.f32.mrb[0].mxu0
  %v2544 = vpop.f32.mrb[0].mxu0
  %v2545 = vadd.f32 %v2273, %v2544
  %v2546 = vpop.f32.mrb[0].mxu0
  %2547 = vmatprep.mubr.bf16.mxu0 0
  %2548 = vmatmul.mubr.bf16.gmra.mrb[0].mxu0 %v2244
  %v2549 = vpop.f32.mrb[0].mxu0
  %v2550 = vadd.f32 %v2273, %v2549
  %v2551 = vpop.f32.mrb[0].mxu0
  %v2552 = vpop.f32.mrb[0].mxu0
  %v2553 = vadd.f32 %v2273, %v2552
  %v2554 = vpop.f32.mrb[0].mxu0
  %2555 = vmatprep.mubr.bf16.mxu0 0
  %2556 = vmatmul.mubr.bf16.gmra.mrb[0].mxu0 %v2245
  %v2557 = vpop.f32.mrb[0].mxu0
  %v2558 = vadd.f32 %v2273, %v2557
  %v2559 = vpop.f32.mrb[0].mxu0
  %v2560 = vpop.f32.mrb[0].mxu0
  %v2561 = vadd.f32 %v2273, %v2560
  %v2562 = vpop.f32.mrb[0].mxu0
  %2563 = vmatprep.mubr.bf16.mxu0 0
  %2564 = vmatmul.mubr.bf16.gmra.mrb[0].mxu0 %v2246
  %v2565 = vpop.f32.mrb[0].mxu0
  %v2566 = vadd.f32 %v2273, %v2565
  %v2567 = vpop.f32.mrb[0].mxu0
  %v2568 = vpop.f32.mrb[0].mxu0
  %v2569 = vadd.f32 %v2273, %v2568
  %v2570 = vpop.f32.mrb[0].mxu0
  %2571 = vmatprep.mubr.bf16.mxu0 0
  %2572 = vmatmul.mubr.bf16.gmra.mrb[0].mxu0 %v2247
  %v2573 = vpop.f32.mrb[0].mxu0
  %v2574 = vadd.f32 %v2273, %v2573
  %v2575 = vpop.f32.mrb[0].mxu0
  %v2576 = vpop.f32.mrb[0].mxu0
  %v2577 = vadd.f32 %v2273, %v2576
  %v2578 = vpop.f32.mrb[0].mxu0
  %2579 = vmatprep.mubr.bf16.mxu0 0
  %2580 = vmatmul.mubr.bf16.gmra.mrb[0].mxu0 %v2248
  %v2581 = vpop.f32.mrb[0].mxu0
  %v2582 = vadd.f32 %v2273, %v2581
  %v2583 = vpop.f32.mrb[0].mxu0
  %v2584 = vpop.f32.mrb[0].mxu0
  %v2585 = vadd.f32 %v2273, %v2584
  %v2586 = vpop.f32.mrb[0].mxu0
  %2587 = vmatprep.mubr.bf16.mxu0 0
  %2588 = vmatmul.mubr.bf16.gmra.mrb[0].mxu0 %v2249
  %v2589 = vpop.f32.mrb[0].mxu0
  %v2590 = vadd.f32 %v2273, %v2589
  %v2591 = vpop.f32.mrb[0].mxu0
  %v2592 = vpop.f32.mrb[0].mxu0
  %v2593 = vadd.f32 %v2273, %v2592
  %v2594 = vpop.f32.mrb[0].mxu0
  %2595 = vmatprep.mubr.bf16.mxu0 0
  %2596 = vmatmul.mubr.bf16.gmra.mrb[0].mxu0 %v2250
  %v2597 = vpop.f32.mrb[0].mxu0
  %v2598 = vadd.f32 %v2273, %v2597
  %v2599 = vpop.f32.mrb[0].mxu0
  %v2600 = vpop.f32.mrb[0].mxu0
  %v2601 = vadd.f32 %v2273, %v2600
  %v2602 = vpop.f32.mrb[0].mxu0
  %2603 = vmatprep.mubr.bf16.mxu0 0
  %2604 = vmatmul.mubr.bf16.gmra.mrb[0].mxu0 %v2251
  %v2605 = vpop.f32.mrb[0].mxu0
  %v2606 = vadd.f32 %v2273, %v2605
  %v2607 = vpop.f32.mrb[0].mxu0
  %v2608 = vpop.f32.mrb[0].mxu0
  %v2609 = vadd.f32 %v2273, %v2608
  %v2610 = vpop.f32.mrb[0].mxu0
  %2611 = vdwg.mxu0
  %v2612 = vadd.f32 %v1188, %v2358
  %v2613 = vadd.f32 %v1189, %v2361
  %v2614 = vadd.f32 %v1190, %v2366
  %v2615 = vadd.f32 %v1191, %v2369
  %v2616 = vadd.f32 %v1192, %v2374
  %v2617 = vadd.f32 %v1193, %v2377
  %v2618 = vadd.f32 %v1194, %v2382
  %v2619 = vadd.f32 %v1195, %v2385
  %v2620 = vadd.f32 %v1196, %v2390
  %v2621 = vadd.f32 %v1197, %v2393
  %v2622 = vadd.f32 %v1198, %v2398
  %v2623 = vadd.f32 %v1199, %v2401
  %v2624 = vadd.f32 %v1200, %v2406
  %v2625 = vadd.f32 %v1201, %v2409
  %v2626 = vadd.f32 %v1202, %v2414
  %v2627 = vadd.f32 %v1203, %v2417
  %v2628 = vadd.f32 %v1204, %v2422
  %v2629 = vadd.f32 %v1205, %v2425
  %v2630 = vadd.f32 %v1206, %v2430
  %v2631 = vadd.f32 %v1207, %v2433
  %v2632 = vadd.f32 %v1208, %v2438
  %v2633 = vadd.f32 %v1209, %v2441
  %v2634 = vadd.f32 %v1210, %v2446
  %v2635 = vadd.f32 %v1211, %v2449
  %v2636 = vadd.f32 %v1212, %v2454
  %v2637 = vadd.f32 %v1213, %v2457
  %v2638 = vadd.f32 %v1214, %v2462
  %v2639 = vadd.f32 %v1215, %v2465
  %v2640 = vadd.f32 %v1216, %v2470
  %v2641 = vadd.f32 %v1217, %v2473
  %v2642 = vadd.f32 %v1218, %v2478
  %v2643 = vadd.f32 %v1219, %v2481
  %v2644 = vadd.f32 %v1220, %v2486
  %v2645 = vadd.f32 %v1221, %v2489
  %v2646 = vadd.f32 %v1222, %v2494
  %v2647 = vadd.f32 %v1223, %v2497
  %v2648 = vadd.f32 %v1224, %v2502
  %v2649 = vadd.f32 %v1225, %v2505
  %v2650 = vadd.f32 %v1226, %v2510
  %v2651 = vadd.f32 %v1227, %v2513
  %v2652 = vadd.f32 %v1228, %v2518
  %v2653 = vadd.f32 %v1229, %v2521
  %v2654 = vadd.f32 %v1230, %v2526
  %v2655 = vadd.f32 %v1231, %v2529
  %v2656 = vadd.f32 %v1232, %v2534
  %v2657 = vadd.f32 %v1233, %v2537
  %v2658 = vadd.f32 %v1234, %v2542
  %v2659 = vadd.f32 %v1235, %v2545
  %v2660 = vadd.f32 %v1236, %v2550
  %v2661 = vadd.f32 %v1237, %v2553
  %v2662 = vadd.f32 %v1238, %v2558
  %v2663 = vadd.f32 %v1239, %v2561
  %v2664 = vadd.f32 %v1240, %v2566
  %v2665 = vadd.f32 %v1241, %v2569
  %v2666 = vadd.f32 %v1242, %v2574
  %v2667 = vadd.f32 %v1243, %v2577
  %v2668 = vadd.f32 %v1244, %v2582
  %v2669 = vadd.f32 %v1245, %v2585
  %v2670 = vadd.f32 %v1246, %v2590
  %v2671 = vadd.f32 %v1247, %v2593
  %v2672 = vadd.f32 %v1248, %v2598
  %v2673 = vadd.f32 %v1249, %v2601
  %v2674 = vadd.f32 %v1250, %v2606
  %v2675 = vadd.f32 %v1251, %v2609
  %v2676 = vpack.c.bf16 %v2613, %v2612
  %v2677 = vpack.c.bf16 %v2615, %v2614
  %v2678 = vpack.c.bf16 %v2617, %v2616
  %v2679 = vpack.c.bf16 %v2619, %v2618
  %v2680 = vpack.c.bf16 %v2621, %v2620
  %v2681 = vpack.c.bf16 %v2623, %v2622
  %v2682 = vpack.c.bf16 %v2625, %v2624
  %v2683 = vpack.c.bf16 %v2627, %v2626
  %v2684 = vpack.c.bf16 %v2629, %v2628
  %v2685 = vpack.c.bf16 %v2631, %v2630
  %v2686 = vpack.c.bf16 %v2633, %v2632
  %v2687 = vpack.c.bf16 %v2635, %v2634
  %v2688 = vpack.c.bf16 %v2637, %v2636
  %v2689 = vpack.c.bf16 %v2639, %v2638
  %v2690 = vpack.c.bf16 %v2641, %v2640
  %v2691 = vpack.c.bf16 %v2643, %v2642
  %v2692 = vpack.c.bf16 %v2645, %v2644
  %v2693 = vpack.c.bf16 %v2647, %v2646
  %v2694 = vpack.c.bf16 %v2649, %v2648
  %v2695 = vpack.c.bf16 %v2651, %v2650
  %v2696 = vpack.c.bf16 %v2653, %v2652
  %v2697 = vpack.c.bf16 %v2655, %v2654
  %v2698 = vpack.c.bf16 %v2657, %v2656
  %v2699 = vpack.c.bf16 %v2659, %v2658
  %v2700 = vpack.c.bf16 %v2661, %v2660
  %v2701 = vpack.c.bf16 %v2663, %v2662
  %v2702 = vpack.c.bf16 %v2665, %v2664
  %v2703 = vpack.c.bf16 %v2667, %v2666
  %v2704 = vpack.c.bf16 %v2669, %v2668
  %v2705 = vpack.c.bf16 %v2671, %v2670
  %v2706 = vpack.c.bf16 %v2673, %v2672
  %v2707 = vpack.c.bf16 %v2675, %v2674
  %v2740 = vunpack.c.l.b16 %v2676
  %v2741 = vunpack.c.h.b16 %v2676
  %v2742 = vunpack.c.l.b16 %v2677
  %v2743 = vunpack.c.h.b16 %v2677
  %v2744 = vunpack.c.l.b16 %v2678
  %v2745 = vunpack.c.h.b16 %v2678
  %v2746 = vunpack.c.l.b16 %v2679
  %v2747 = vunpack.c.h.b16 %v2679
  %v2748 = vunpack.c.l.b16 %v2680
  %v2749 = vunpack.c.h.b16 %v2680
  %v2750 = vunpack.c.l.b16 %v2681
  %v2751 = vunpack.c.h.b16 %v2681
  %v2752 = vunpack.c.l.b16 %v2682
  %v2753 = vunpack.c.h.b16 %v2682
  %v2754 = vunpack.c.l.b16 %v2683
  %v2755 = vunpack.c.h.b16 %v2683
  %v2756 = vunpack.c.l.b16 %v2684
  %v2757 = vunpack.c.h.b16 %v2684
  %v2758 = vunpack.c.l.b16 %v2685
  %v2759 = vunpack.c.h.b16 %v2685
  %v2760 = vunpack.c.l.b16 %v2686
  %v2761 = vunpack.c.h.b16 %v2686
  %v2762 = vunpack.c.l.b16 %v2687
  %v2763 = vunpack.c.h.b16 %v2687
  %v2764 = vunpack.c.l.b16 %v2688
  %v2765 = vunpack.c.h.b16 %v2688
  %v2766 = vunpack.c.l.b16 %v2689
  %v2767 = vunpack.c.h.b16 %v2689
  %v2768 = vunpack.c.l.b16 %v2690
  %v2769 = vunpack.c.h.b16 %v2690
  %v2770 = vunpack.c.l.b16 %v2691
  %v2771 = vunpack.c.h.b16 %v2691
  %v2772 = vunpack.c.l.b16 %v2692
  %v2773 = vunpack.c.h.b16 %v2692
  %v2774 = vunpack.c.l.b16 %v2693
  %v2775 = vunpack.c.h.b16 %v2693
  %v2776 = vunpack.c.l.b16 %v2694
  %v2777 = vunpack.c.h.b16 %v2694
  %v2778 = vunpack.c.l.b16 %v2695
  %v2779 = vunpack.c.h.b16 %v2695
  %v2780 = vunpack.c.l.b16 %v2696
  %v2781 = vunpack.c.h.b16 %v2696
  %v2782 = vunpack.c.l.b16 %v2697
  %v2783 = vunpack.c.h.b16 %v2697
  %v2784 = vunpack.c.l.b16 %v2698
  %v2785 = vunpack.c.h.b16 %v2698
  %v2786 = vunpack.c.l.b16 %v2699
  %v2787 = vunpack.c.h.b16 %v2699
  %v2788 = vunpack.c.l.b16 %v2700
  %v2789 = vunpack.c.h.b16 %v2700
  %v2790 = vunpack.c.l.b16 %v2701
  %v2791 = vunpack.c.h.b16 %v2701
  %v2792 = vunpack.c.l.b16 %v2702
  %v2793 = vunpack.c.h.b16 %v2702
  %v2794 = vunpack.c.l.b16 %v2703
  %v2795 = vunpack.c.h.b16 %v2703
  %v2796 = vunpack.c.l.b16 %v2704
  %v2797 = vunpack.c.h.b16 %v2704
  %v2798 = vunpack.c.l.b16 %v2705
  %v2799 = vunpack.c.h.b16 %v2705
  %v2800 = vunpack.c.l.b16 %v2706
  %v2801 = vunpack.c.h.b16 %v2706
  %v2802 = vunpack.c.l.b16 %v2707
  %v2803 = vunpack.c.h.b16 %v2707
  %v2804 = vpack.c.b16 %v2740, %v2740
  %v2805 = vpack.c.b16 %v2741, %v2741
  %v2806 = vpack.c.b16 %v2742, %v2742
  %v2807 = vpack.c.b16 %v2743, %v2743
  %v2808 = vpack.c.b16 %v2744, %v2744
  %v2809 = vpack.c.b16 %v2745, %v2745
  %v2810 = vpack.c.b16 %v2746, %v2746
  %v2811 = vpack.c.b16 %v2747, %v2747
  %v2812 = vpack.c.b16 %v2748, %v2748
  %v2813 = vpack.c.b16 %v2749, %v2749
  %v2814 = vpack.c.b16 %v2750, %v2750
  %v2815 = vpack.c.b16 %v2751, %v2751
  %v2816 = vpack.c.b16 %v2752, %v2752
  %v2817 = vpack.c.b16 %v2753, %v2753
  %v2818 = vpack.c.b16 %v2754, %v2754
  %v2819 = vpack.c.b16 %v2755, %v2755
  %v2820 = vpack.c.b16 %v2756, %v2756
  %v2821 = vpack.c.b16 %v2757, %v2757
  %v2822 = vpack.c.b16 %v2758, %v2758
  %v2823 = vpack.c.b16 %v2759, %v2759
  %v2824 = vpack.c.b16 %v2760, %v2760
  %v2825 = vpack.c.b16 %v2761, %v2761
  %v2826 = vpack.c.b16 %v2762, %v2762
  %v2827 = vpack.c.b16 %v2763, %v2763
  %v2828 = vpack.c.b16 %v2764, %v2764
  %v2829 = vpack.c.b16 %v2765, %v2765
  %v2830 = vpack.c.b16 %v2766, %v2766
  %v2831 = vpack.c.b16 %v2767, %v2767
  %v2832 = vpack.c.b16 %v2768, %v2768
  %v2833 = vpack.c.b16 %v2769, %v2769
  %v2834 = vpack.c.b16 %v2770, %v2770
  %v2835 = vpack.c.b16 %v2771, %v2771
  %v2836 = vpack.c.b16 %v2772, %v2772
  %v2837 = vpack.c.b16 %v2773, %v2773
  %v2838 = vpack.c.b16 %v2774, %v2774
  %v2839 = vpack.c.b16 %v2775, %v2775
  %v2840 = vpack.c.b16 %v2776, %v2776
  %v2841 = vpack.c.b16 %v2777, %v2777
  %v2842 = vpack.c.b16 %v2778, %v2778
  %v2843 = vpack.c.b16 %v2779, %v2779
  %v2844 = vpack.c.b16 %v2780, %v2780
  %v2845 = vpack.c.b16 %v2781, %v2781
  %v2846 = vpack.c.b16 %v2782, %v2782
  %v2847 = vpack.c.b16 %v2783, %v2783
  %v2848 = vpack.c.b16 %v2784, %v2784
  %v2849 = vpack.c.b16 %v2785, %v2785
  %v2850 = vpack.c.b16 %v2786, %v2786
  %v2851 = vpack.c.b16 %v2787, %v2787
  %v2852 = vpack.c.b16 %v2788, %v2788
  %v2853 = vpack.c.b16 %v2789, %v2789
  %v2854 = vpack.c.b16 %v2790, %v2790
  %v2855 = vpack.c.b16 %v2791, %v2791
  %v2856 = vpack.c.b16 %v2792, %v2792
  %v2857 = vpack.c.b16 %v2793, %v2793
  %v2858 = vpack.c.b16 %v2794, %v2794
  %v2859 = vpack.c.b16 %v2795, %v2795
  %v2860 = vpack.c.b16 %v2796, %v2796
  %v2861 = vpack.c.b16 %v2797, %v2797
  %v2862 = vpack.c.b16 %v2798, %v2798
  %v2863 = vpack.c.b16 %v2799, %v2799
  %v2864 = vpack.c.b16 %v2800, %v2800
  %v2865 = vpack.c.b16 %v2801, %v2801
  %v2866 = vpack.c.b16 %v2802, %v2802
  %v2867 = vpack.c.b16 %v2803, %v2803
  %vm2932 = vcmask 125952
  %2933 = vst.msk [vmem:[%s9] sm:$0xf] %vm2932, %v2804
  %2934 = vst.msk [vmem:[%s9 + $0x4] sm:$0xf] %vm2932, %v2805
  %2935 = vst.msk [vmem:[%s9 + $0x8] sm:$0xf] %vm2932, %v2806
  %2936 = vst.msk [vmem:[%s9 + $0xc] sm:$0xf] %vm2932, %v2807
  %2937 = vst.msk [vmem:[%s9 + $0x10] sm:$0xf] %vm2932, %v2808
  %2938 = vst.msk [vmem:[%s9 + $0x14] sm:$0xf] %vm2932, %v2809
  %2939 = vst.msk [vmem:[%s9 + $0x18] sm:$0xf] %vm2932, %v2810
  %2940 = vst.msk [vmem:[%s9 + $0x1c] sm:$0xf] %vm2932, %v2811
  %2941 = vst.msk [vmem:[%s9 + $0x20] sm:$0xf] %vm2932, %v2812
  %2942 = vst.msk [vmem:[%s9 + $0x24] sm:$0xf] %vm2932, %v2813
  %2943 = vst.msk [vmem:[%s9 + $0x28] sm:$0xf] %vm2932, %v2814
  %2944 = vst.msk [vmem:[%s9 + $0x2c] sm:$0xf] %vm2932, %v2815
  %2945 = vst.msk [vmem:[%s9 + $0x30] sm:$0xf] %vm2932, %v2816
  %2946 = vst.msk [vmem:[%s9 + $0x34] sm:$0xf] %vm2932, %v2817
  %2947 = vst.msk [vmem:[%s9 + $0x38] sm:$0xf] %vm2932, %v2818
  %2948 = vst.msk [vmem:[%s9 + $0x3c] sm:$0xf] %vm2932, %v2819
  %2949 = vst.msk [vmem:[%s9 + $0x40] sm:$0xf] %vm2932, %v2820
  %2950 = vst.msk [vmem:[%s9 + $0x44] sm:$0xf] %vm2932, %v2821
  %2951 = vst.msk [vmem:[%s9 + $0x48] sm:$0xf] %vm2932, %v2822
  %2952 = vst.msk [vmem:[%s9 + $0x4c] sm:$0xf] %vm2932, %v2823
  %2953 = vst.msk [vmem:[%s9 + $0x50] sm:$0xf] %vm2932, %v2824
  %2954 = vst.msk [vmem:[%s9 + $0x54] sm:$0xf] %vm2932, %v2825
  %2955 = vst.msk [vmem:[%s9 + $0x58] sm:$0xf] %vm2932, %v2826
  %2956 = vst.msk [vmem:[%s9 + $0x5c] sm:$0xf] %vm2932, %v2827
  %2957 = vst.msk [vmem:[%s9 + $0x60] sm:$0xf] %vm2932, %v2828
  %2958 = vst.msk [vmem:[%s9 + $0x64] sm:$0xf] %vm2932, %v2829
  %2959 = vst.msk [vmem:[%s9 + $0x68] sm:$0xf] %vm2932, %v2830
  %2960 = vst.msk [vmem:[%s9 + $0x6c] sm:$0xf] %vm2932, %v2831
  %2961 = vst.msk [vmem:[%s9 + $0x70] sm:$0xf] %vm2932, %v2832
  %2962 = vst.msk [vmem:[%s9 + $0x74] sm:$0xf] %vm2932, %v2833
  %2963 = vst.msk [vmem:[%s9 + $0x78] sm:$0xf] %vm2932, %v2834
  %2964 = vst.msk [vmem:[%s9 + $0x7c] sm:$0xf] %vm2932, %v2835
  %2965 = vst.msk [vmem:[%s9 + $0x80] sm:$0xf] %vm2932, %v2836
  %2966 = vst.msk [vmem:[%s9 + $0x84] sm:$0xf] %vm2932, %v2837
  %2967 = vst.msk [vmem:[%s9 + $0x88] sm:$0xf] %vm2932, %v2838
  %2968 = vst.msk [vmem:[%s9 + $0x8c] sm:$0xf] %vm2932, %v2839
  %2969 = vst.msk [vmem:[%s9 + $0x90] sm:$0xf] %vm2932, %v2840
  %2970 = vst.msk [vmem:[%s9 + $0x94] sm:$0xf] %vm2932, %v2841
  %2971 = vst.msk [vmem:[%s9 + $0x98] sm:$0xf] %vm2932, %v2842
  %2972 = vst.msk [vmem:[%s9 + $0x9c] sm:$0xf] %vm2932, %v2843
  %2973 = vst.msk [vmem:[%s9 + $0xa0] sm:$0xf] %vm2932, %v2844
  %2974 = vst.msk [vmem:[%s9 + $0xa4] sm:$0xf] %vm2932, %v2845
  %2975 = vst.msk [vmem:[%s9 + $0xa8] sm:$0xf] %vm2932, %v2846
  %2976 = vst.msk [vmem:[%s9 + $0xac] sm:$0xf] %vm2932, %v2847
  %2977 = vst.msk [vmem:[%s9 + $0xb0] sm:$0xf] %vm2932, %v2848
  %2978 = vst.msk [vmem:[%s9 + $0xb4] sm:$0xf] %vm2932, %v2849
  %2979 = vst.msk [vmem:[%s9 + $0xb8] sm:$0xf] %vm2932, %v2850
  %2980 = vst.msk [vmem:[%s9 + $0xbc] sm:$0xf] %vm2932, %v2851
  %2981 = vst.msk [vmem:[%s9 + $0xc0] sm:$0xf] %vm2932, %v2852
  %2982 = vst.msk [vmem:[%s9 + $0xc4] sm:$0xf] %vm2932, %v2853
  %2983 = vst.msk [vmem:[%s9 + $0xc8] sm:$0xf] %vm2932, %v2854
  %2984 = vst.msk [vmem:[%s9 + $0xcc] sm:$0xf] %vm2932, %v2855
  %2985 = vst.msk [vmem:[%s9 + $0xd0] sm:$0xf] %vm2932, %v2856
  %2986 = vst.msk [vmem:[%s9 + $0xd4] sm:$0xf] %vm2932, %v2857
  %2987 = vst.msk [vmem:[%s9 + $0xd8] sm:$0xf] %vm2932, %v2858
  %2988 = vst.msk [vmem:[%s9 + $0xdc] sm:$0xf] %vm2932, %v2859
  %2989 = vst.msk [vmem:[%s9 + $0xe0] sm:$0xf] %vm2932, %v2860
  %2990 = vst.msk [vmem:[%s9 + $0xe4] sm:$0xf] %vm2932, %v2861
  %2991 = vst.msk [vmem:[%s9 + $0xe8] sm:$0xf] %vm2932, %v2862
  %2992 = vst.msk [vmem:[%s9 + $0xec] sm:$0xf] %vm2932, %v2863
  %2993 = vst.msk [vmem:[%s9 + $0xf0] sm:$0xf] %vm2932, %v2864
  %2994 = vst.msk [vmem:[%s9 + $0xf4] sm:$0xf] %vm2932, %v2865
  %2995 = vst.msk [vmem:[%s9 + $0xf8] sm:$0xf] %vm2932, %v2866
  %2996 = vst.msk [vmem:[%s9 + $0xfc] sm:$0xf] %vm2932, %v2867
  %v2997 = vld [vmem:[%s7] sm:$0xf]
  %v2998 = vld [vmem:[%s7 + $0x4] sm:$0xf]
  %v2999 = vld [vmem:[%s7 + $0x8] sm:$0xf]
  %v3000 = vld [vmem:[%s7 + $0xc] sm:$0xf]
  %v3001 = vld [vmem:[%s7 + $0x10] sm:$0xf]
  %v3002 = vld [vmem:[%s7 + $0x14] sm:$0xf]
  %v3003 = vld [vmem:[%s7 + $0x18] sm:$0xf]
  %v3004 = vld [vmem:[%s7 + $0x1c] sm:$0xf]
  %v3005 = vld [vmem:[%s7 + $0x20] sm:$0xf]
  %v3006 = vld [vmem:[%s7 + $0x24] sm:$0xf]
  %v3007 = vld [vmem:[%s7 + $0x28] sm:$0xf]
  %v3008 = vld [vmem:[%s7 + $0x2c] sm:$0xf]
  %v3009 = vld [vmem:[%s7 + $0x30] sm:$0xf]
  %v3010 = vld [vmem:[%s7 + $0x34] sm:$0xf]
  %v3011 = vld [vmem:[%s7 + $0x38] sm:$0xf]
  %v3012 = vld [vmem:[%s7 + $0x3c] sm:$0xf]
  %v3013 = vld [vmem:[%s8] sm:$0x1]
  %v3015 = vlaneseq
  %v3016 = vshrl.u32 %v3015, 7
  %v3017 = vsub.s32 0, %v3016
  %v3018 = vrot.slane %v3013, %v3017
  %v3036 = vunpack.c.l.b16 %v2997
  %v3037 = vunpack.c.l.b16 %v2998
  %v3038 = vunpack.c.l.b16 %v2999
  %v3039 = vunpack.c.l.b16 %v3000
  %v3040 = vunpack.c.l.b16 %v3001
  %v3041 = vunpack.c.l.b16 %v3002
  %v3042 = vunpack.c.l.b16 %v3003
  %v3043 = vunpack.c.l.b16 %v3004
  %v3044 = vunpack.c.l.b16 %v3005
  %v3045 = vunpack.c.l.b16 %v3006
  %v3046 = vunpack.c.l.b16 %v3007
  %v3047 = vunpack.c.l.b16 %v3008
  %v3048 = vunpack.c.l.b16 %v3009
  %v3049 = vunpack.c.l.b16 %v3010
  %v3050 = vunpack.c.l.b16 %v3011
  %v3051 = vunpack.c.l.b16 %v3012
  %v3052 = vpack.c.b16 %v3037, %v3036
  %v3053 = vpack.c.b16 %v3039, %v3038
  %v3054 = vpack.c.b16 %v3041, %v3040
  %v3055 = vpack.c.b16 %v3043, %v3042
  %v3056 = vpack.c.b16 %v3045, %v3044
  %v3057 = vpack.c.b16 %v3047, %v3046
  %v3058 = vpack.c.b16 %v3049, %v3048
  %v3059 = vpack.c.b16 %v3051, %v3050
  %3068 = vmatprep.subr.bf16.mxu0 0
  %3069 = vmatpush1.bf16.msra.mxu0 %v3052
  %3070 = vmatprep.subr.bf16.mxu0 0
  %3071 = vmatpush1.bf16.msra.mxu0 %v3053
  %3072 = vmatprep.subr.bf16.mxu0 0
  %3073 = vmatpush1.bf16.msra.mxu0 %v3054
  %3074 = vmatprep.subr.bf16.mxu0 0
  %3075 = vmatpush1.bf16.msra.mxu0 %v3055
  %3076 = vmatprep.subr.bf16.mxu0 0
  %3077 = vmatpush1.bf16.msra.mxu0 %v3056
  %3078 = vmatprep.subr.bf16.mxu0 0
  %3079 = vmatpush1.bf16.msra.mxu0 %v3057
  %3080 = vmatprep.subr.bf16.mxu0 0
  %3081 = vmatpush1.bf16.msra.mxu0 %v3058
  %3082 = vmatprep.subr.bf16.mxu0 0
  %3083 = vmatpush1.bf16.msra.mxu0 %v3059
  %3084 = vmatprep.subr.bf16.mxu0 0
  %3085 = vmatpush1.bf16.msra.mxu0 0
  %3086 = vmatprep.subr.bf16.mxu0 0
  %3087 = vmatpush1.bf16.msra.mxu0 0
  %3088 = vmatprep.subr.bf16.mxu0 0
  %3089 = vmatpush1.bf16.msra.mxu0 0
  %3090 = vmatprep.subr.bf16.mxu0 0
  %3091 = vmatpush1.bf16.msra.mxu0 0
  %3092 = vmatprep.subr.bf16.mxu0 0
  %3093 = vmatpush1.bf16.msra.mxu0 0
  %3094 = vmatprep.subr.bf16.mxu0 0
  %3095 = vmatpush1.bf16.msra.mxu0 0
  %3096 = vmatprep.subr.bf16.mxu0 0
  %3097 = vmatpush1.bf16.msra.mxu0 0
  %3098 = vmatprep.subr.bf16.mxu0 0
  %3099 = vmatpush1.bf16.msra.mxu0 0
  %3100 = vmatprep.mubr.bf16.mxu0 0
  %3101 = vmatmul.mubr.bf16.gmra.mrb[0].mxu0 %v2676
  %v3102 = vpop.f32.mrb[0].mxu0
  %v3103 = vadd.f32 %v3018, %v3102
  %v3104 = vpop.f32.mrb[0].mxu0
  %v3105 = vpop.f32.mrb[0].mxu0
  %v3106 = vadd.f32 %v3018, %v3105
  %v3107 = vpop.f32.mrb[0].mxu0
  %3108 = vmatprep.mubr.bf16.mxu0 0
  %3109 = vmatmul.mubr.bf16.gmra.mrb[0].mxu0 %v2677
  %v3110 = vpop.f32.mrb[0].mxu0
  %v3111 = vadd.f32 %v3018, %v3110
  %v3112 = vpop.f32.mrb[0].mxu0
  %v3113 = vpop.f32.mrb[0].mxu0
  %v3114 = vadd.f32 %v3018, %v3113
  %v3115 = vpop.f32.mrb[0].mxu0
  %3116 = vmatprep.mubr.bf16.mxu0 0
  %3117 = vmatmul.mubr.bf16.gmra.mrb[0].mxu0 %v2678
  %v3118 = vpop.f32.mrb[0].mxu0
  %v3119 = vadd.f32 %v3018, %v3118
  %v3120 = vpop.f32.mrb[0].mxu0
  %v3121 = vpop.f32.mrb[0].mxu0
  %v3122 = vadd.f32 %v3018, %v3121
  %v3123 = vpop.f32.mrb[0].mxu0
  %3124 = vmatprep.mubr.bf16.mxu0 0
  %3125 = vmatmul.mubr.bf16.gmra.mrb[0].mxu0 %v2679
  %v3126 = vpop.f32.mrb[0].mxu0
  %v3127 = vadd.f32 %v3018, %v3126
  %v3128 = vpop.f32.mrb[0].mxu0
  %v3129 = vpop.f32.mrb[0].mxu0
  %v3130 = vadd.f32 %v3018, %v3129
  %v3131 = vpop.f32.mrb[0].mxu0
  %3132 = vmatprep.mubr.bf16.mxu0 0
  %3133 = vmatmul.mubr.bf16.gmra.mrb[0].mxu0 %v2680
  %v3134 = vpop.f32.mrb[0].mxu0
  %v3135 = vadd.f32 %v3018, %v3134
  %v3136 = vpop.f32.mrb[0].mxu0
  %v3137 = vpop.f32.mrb[0].mxu0
  %v3138 = vadd.f32 %v3018, %v3137
  %v3139 = vpop.f32.mrb[0].mxu0
  %3140 = vmatprep.mubr.bf16.mxu0 0
  %3141 = vmatmul.mubr.bf16.gmra.mrb[0].mxu0 %v2681
  %v3142 = vpop.f32.mrb[0].mxu0
  %v3143 = vadd.f32 %v3018, %v3142
  %v3144 = vpop.f32.mrb[0].mxu0
  %v3145 = vpop.f32.mrb[0].mxu0
  %v3146 = vadd.f32 %v3018, %v3145
  %v3147 = vpop.f32.mrb[0].mxu0
  %3148 = vmatprep.mubr.bf16.mxu0 0
  %3149 = vmatmul.mubr.bf16.gmra.mrb[0].mxu0 %v2682
  %v3150 = vpop.f32.mrb[0].mxu0
  %v3151 = vadd.f32 %v3018, %v3150
  %v3152 = vpop.f32.mrb[0].mxu0
  %v3153 = vpop.f32.mrb[0].mxu0
  %v3154 = vadd.f32 %v3018, %v3153
  %v3155 = vpop.f32.mrb[0].mxu0
  %3156 = vmatprep.mubr.bf16.mxu0 0
  %3157 = vmatmul.mubr.bf16.gmra.mrb[0].mxu0 %v2683
  %v3158 = vpop.f32.mrb[0].mxu0
  %v3159 = vadd.f32 %v3018, %v3158
  %v3160 = vpop.f32.mrb[0].mxu0
  %v3161 = vpop.f32.mrb[0].mxu0
  %v3162 = vadd.f32 %v3018, %v3161
  %v3163 = vpop.f32.mrb[0].mxu0
  %3164 = vmatprep.mubr.bf16.mxu0 0
  %3165 = vmatmul.mubr.bf16.gmra.mrb[0].mxu0 %v2684
  %v3166 = vpop.f32.mrb[0].mxu0
  %v3167 = vadd.f32 %v3018, %v3166
  %v3168 = vpop.f32.mrb[0].mxu0
  %v3169 = vpop.f32.mrb[0].mxu0
  %v3170 = vadd.f32 %v3018, %v3169
  %v3171 = vpop.f32.mrb[0].mxu0
  %3172 = vmatprep.mubr.bf16.mxu0 0
  %3173 = vmatmul.mubr.bf16.gmra.mrb[0].mxu0 %v2685
  %v3174 = vpop.f32.mrb[0].mxu0
  %v3175 = vadd.f32 %v3018, %v3174
  %v3176 = vpop.f32.mrb[0].mxu0
  %v3177 = vpop.f32.mrb[0].mxu0
  %v3178 = vadd.f32 %v3018, %v3177
  %v3179 = vpop.f32.mrb[0].mxu0
  %3180 = vmatprep.mubr.bf16.mxu0 0
  %3181 = vmatmul.mubr.bf16.gmra.mrb[0].mxu0 %v2686
  %v3182 = vpop.f32.mrb[0].mxu0
  %v3183 = vadd.f32 %v3018, %v3182
  %v3184 = vpop.f32.mrb[0].mxu0
  %v3185 = vpop.f32.mrb[0].mxu0
  %v3186 = vadd.f32 %v3018, %v3185
  %v3187 = vpop.f32.mrb[0].mxu0
  %3188 = vmatprep.mubr.bf16.mxu0 0
  %3189 = vmatmul.mubr.bf16.gmra.mrb[0].mxu0 %v2687
  %v3190 = vpop.f32.mrb[0].mxu0
  %v3191 = vadd.f32 %v3018, %v3190
  %v3192 = vpop.f32.mrb[0].mxu0
  %v3193 = vpop.f32.mrb[0].mxu0
  %v3194 = vadd.f32 %v3018, %v3193
  %v3195 = vpop.f32.mrb[0].mxu0
  %3196 = vmatprep.mubr.bf16.mxu0 0
  %3197 = vmatmul.mubr.bf16.gmra.mrb[0].mxu0 %v2688
  %v3198 = vpop.f32.mrb[0].mxu0
  %v3199 = vadd.f32 %v3018, %v3198
  %v3200 = vpop.f32.mrb[0].mxu0
  %v3201 = vpop.f32.mrb[0].mxu0
  %v3202 = vadd.f32 %v3018, %v3201
  %v3203 = vpop.f32.mrb[0].mxu0
  %3204 = vmatprep.mubr.bf16.mxu0 0
  %3205 = vmatmul.mubr.bf16.gmra.mrb[0].mxu0 %v2689
  %v3206 = vpop.f32.mrb[0].mxu0
  %v3207 = vadd.f32 %v3018, %v3206
  %v3208 = vpop.f32.mrb[0].mxu0
  %v3209 = vpop.f32.mrb[0].mxu0
  %v3210 = vadd.f32 %v3018, %v3209
  %v3211 = vpop.f32.mrb[0].mxu0
  %3212 = vmatprep.mubr.bf16.mxu0 0
  %3213 = vmatmul.mubr.bf16.gmra.mrb[0].mxu0 %v2690
  %v3214 = vpop.f32.mrb[0].mxu0
  %v3215 = vadd.f32 %v3018, %v3214
  %v3216 = vpop.f32.mrb[0].mxu0
  %v3217 = vpop.f32.mrb[0].mxu0
  %v3218 = vadd.f32 %v3018, %v3217
  %v3219 = vpop.f32.mrb[0].mxu0
  %3220 = vmatprep.mubr.bf16.mxu0 0
  %3221 = vmatmul.mubr.bf16.gmra.mrb[0].mxu0 %v2691
  %v3222 = vpop.f32.mrb[0].mxu0
  %v3223 = vadd.f32 %v3018, %v3222
  %v3224 = vpop.f32.mrb[0].mxu0
  %v3225 = vpop.f32.mrb[0].mxu0
  %v3226 = vadd.f32 %v3018, %v3225
  %v3227 = vpop.f32.mrb[0].mxu0
  %3228 = vmatprep.mubr.bf16.mxu0 0
  %3229 = vmatmul.mubr.bf16.gmra.mrb[0].mxu0 %v2692
  %v3230 = vpop.f32.mrb[0].mxu0
  %v3231 = vadd.f32 %v3018, %v3230
  %v3232 = vpop.f32.mrb[0].mxu0
  %v3233 = vpop.f32.mrb[0].mxu0
  %v3234 = vadd.f32 %v3018, %v3233
  %v3235 = vpop.f32.mrb[0].mxu0
  %3236 = vmatprep.mubr.bf16.mxu0 0
  %3237 = vmatmul.mubr.bf16.gmra.mrb[0].mxu0 %v2693
  %v3238 = vpop.f32.mrb[0].mxu0
  %v3239 = vadd.f32 %v3018, %v3238
  %v3240 = vpop.f32.mrb[0].mxu0
  %v3241 = vpop.f32.mrb[0].mxu0
  %v3242 = vadd.f32 %v3018, %v3241
  %v3243 = vpop.f32.mrb[0].mxu0
  %3244 = vmatprep.mubr.bf16.mxu0 0
  %3245 = vmatmul.mubr.bf16.gmra.mrb[0].mxu0 %v2694
  %v3246 = vpop.f32.mrb[0].mxu0
  %v3247 = vadd.f32 %v3018, %v3246
  %v3248 = vpop.f32.mrb[0].mxu0
  %v3249 = vpop.f32.mrb[0].mxu0
  %v3250 = vadd.f32 %v3018, %v3249
  %v3251 = vpop.f32.mrb[0].mxu0
  %3252 = vmatprep.mubr.bf16.mxu0 0
  %3253 = vmatmul.mubr.bf16.gmra.mrb[0].mxu0 %v2695
  %v3254 = vpop.f32.mrb[0].mxu0
  %v3255 = vadd.f32 %v3018, %v3254
  %v3256 = vpop.f32.mrb[0].mxu0
  %v3257 = vpop.f32.mrb[0].mxu0
  %v3258 = vadd.f32 %v3018, %v3257
  %v3259 = vpop.f32.mrb[0].mxu0
  %3260 = vmatprep.mubr.bf16.mxu0 0
  %3261 = vmatmul.mubr.bf16.gmra.mrb[0].mxu0 %v2696
  %v3262 = vpop.f32.mrb[0].mxu0
  %v3263 = vadd.f32 %v3018, %v3262
  %v3264 = vpop.f32.mrb[0].mxu0
  %v3265 = vpop.f32.mrb[0].mxu0
  %v3266 = vadd.f32 %v3018, %v3265
  %v3267 = vpop.f32.mrb[0].mxu0
  %3268 = vmatprep.mubr.bf16.mxu0 0
  %3269 = vmatmul.mubr.bf16.gmra.mrb[0].mxu0 %v2697
  %v3270 = vpop.f32.mrb[0].mxu0
  %v3271 = vadd.f32 %v3018, %v3270
  %v3272 = vpop.f32.mrb[0].mxu0
  %v3273 = vpop.f32.mrb[0].mxu0
  %v3274 = vadd.f32 %v3018, %v3273
  %v3275 = vpop.f32.mrb[0].mxu0
  %3276 = vmatprep.mubr.bf16.mxu0 0
  %3277 = vmatmul.mubr.bf16.gmra.mrb[0].mxu0 %v2698
  %v3278 = vpop.f32.mrb[0].mxu0
  %v3279 = vadd.f32 %v3018, %v3278
  %v3280 = vpop.f32.mrb[0].mxu0
  %v3281 = vpop.f32.mrb[0].mxu0
  %v3282 = vadd.f32 %v3018, %v3281
  %v3283 = vpop.f32.mrb[0].mxu0
  %3284 = vmatprep.mubr.bf16.mxu0 0
  %3285 = vmatmul.mubr.bf16.gmra.mrb[0].mxu0 %v2699
  %v3286 = vpop.f32.mrb[0].mxu0
  %v3287 = vadd.f32 %v3018, %v3286
  %v3288 = vpop.f32.mrb[0].mxu0
  %v3289 = vpop.f32.mrb[0].mxu0
  %v3290 = vadd.f32 %v3018, %v3289
  %v3291 = vpop.f32.mrb[0].mxu0
  %3292 = vmatprep.mubr.bf16.mxu0 0
  %3293 = vmatmul.mubr.bf16.gmra.mrb[0].mxu0 %v2700
  %v3294 = vpop.f32.mrb[0].mxu0
  %v3295 = vadd.f32 %v3018, %v3294
  %v3296 = vpop.f32.mrb[0].mxu0
  %v3297 = vpop.f32.mrb[0].mxu0
  %v3298 = vadd.f32 %v3018, %v3297
  %v3299 = vpop.f32.mrb[0].mxu0
  %3300 = vmatprep.mubr.bf16.mxu0 0
  %3301 = vmatmul.mubr.bf16.gmra.mrb[0].mxu0 %v2701
  %v3302 = vpop.f32.mrb[0].mxu0
  %v3303 = vadd.f32 %v3018, %v3302
  %v3304 = vpop.f32.mrb[0].mxu0
  %v3305 = vpop.f32.mrb[0].mxu0
  %v3306 = vadd.f32 %v3018, %v3305
  %v3307 = vpop.f32.mrb[0].mxu0
  %3308 = vmatprep.mubr.bf16.mxu0 0
  %3309 = vmatmul.mubr.bf16.gmra.mrb[0].mxu0 %v2702
  %v3310 = vpop.f32.mrb[0].mxu0
  %v3311 = vadd.f32 %v3018, %v3310
  %v3312 = vpop.f32.mrb[0].mxu0
  %v3313 = vpop.f32.mrb[0].mxu0
  %v3314 = vadd.f32 %v3018, %v3313
  %v3315 = vpop.f32.mrb[0].mxu0
  %3316 = vmatprep.mubr.bf16.mxu0 0
  %3317 = vmatmul.mubr.bf16.gmra.mrb[0].mxu0 %v2703
  %v3318 = vpop.f32.mrb[0].mxu0
  %v3319 = vadd.f32 %v3018, %v3318
  %v3320 = vpop.f32.mrb[0].mxu0
  %v3321 = vpop.f32.mrb[0].mxu0
  %v3322 = vadd.f32 %v3018, %v3321
  %v3323 = vpop.f32.mrb[0].mxu0
  %3324 = vmatprep.mubr.bf16.mxu0 0
  %3325 = vmatmul.mubr.bf16.gmra.mrb[0].mxu0 %v2704
  %v3326 = vpop.f32.mrb[0].mxu0
  %v3327 = vadd.f32 %v3018, %v3326
  %v3328 = vpop.f32.mrb[0].mxu0
  %v3329 = vpop.f32.mrb[0].mxu0
  %v3330 = vadd.f32 %v3018, %v3329
  %v3331 = vpop.f32.mrb[0].mxu0
  %3332 = vmatprep.mubr.bf16.mxu0 0
  %3333 = vmatmul.mubr.bf16.gmra.mrb[0].mxu0 %v2705
  %v3334 = vpop.f32.mrb[0].mxu0
  %v3335 = vadd.f32 %v3018, %v3334
  %v3336 = vpop.f32.mrb[0].mxu0
  %v3337 = vpop.f32.mrb[0].mxu0
  %v3338 = vadd.f32 %v3018, %v3337
  %v3339 = vpop.f32.mrb[0].mxu0
  %3340 = vmatprep.mubr.bf16.mxu0 0
  %3341 = vmatmul.mubr.bf16.gmra.mrb[0].mxu0 %v2706
  %v3342 = vpop.f32.mrb[0].mxu0
  %v3343 = vadd.f32 %v3018, %v3342
  %v3344 = vpop.f32.mrb[0].mxu0
  %v3345 = vpop.f32.mrb[0].mxu0
  %v3346 = vadd.f32 %v3018, %v3345
  %v3347 = vpop.f32.mrb[0].mxu0
  %3348 = vmatprep.mubr.bf16.mxu0 0
  %3349 = vmatmul.mubr.bf16.gmra.mrb[0].mxu0 %v2707
  %v3350 = vpop.f32.mrb[0].mxu0
  %v3351 = vadd.f32 %v3018, %v3350
  %v3352 = vpop.f32.mrb[0].mxu0
  %v3353 = vpop.f32.mrb[0].mxu0
  %v3354 = vadd.f32 %v3018, %v3353
  %v3355 = vpop.f32.mrb[0].mxu0
  %3356 = vdwg.mxu0
  %v3357 = vpack.c.bf16 %v3106, %v3103
  %v3358 = vpack.c.bf16 %v3114, %v3111
  %v3359 = vpack.c.bf16 %v3122, %v3119
  %v3360 = vpack.c.bf16 %v3130, %v3127
  %v3361 = vpack.c.bf16 %v3138, %v3135
  %v3362 = vpack.c.bf16 %v3146, %v3143
  %v3363 = vpack.c.bf16 %v3154, %v3151
  %v3364 = vpack.c.bf16 %v3162, %v3159
  %v3365 = vpack.c.bf16 %v3170, %v3167
  %v3366 = vpack.c.bf16 %v3178, %v3175
  %v3367 = vpack.c.bf16 %v3186, %v3183
  %v3368 = vpack.c.bf16 %v3194, %v3191
  %v3369 = vpack.c.bf16 %v3202, %v3199
  %v3370 = vpack.c.bf16 %v3210, %v3207
  %v3371 = vpack.c.bf16 %v3218, %v3215
  %v3372 = vpack.c.bf16 %v3226, %v3223
  %v3373 = vpack.c.bf16 %v3234, %v3231
  %v3374 = vpack.c.bf16 %v3242, %v3239
  %v3375 = vpack.c.bf16 %v3250, %v3247
  %v3376 = vpack.c.bf16 %v3258, %v3255
  %v3377 = vpack.c.bf16 %v3266, %v3263
  %v3378 = vpack.c.bf16 %v3274, %v3271
  %v3379 = vpack.c.bf16 %v3282, %v3279
  %v3380 = vpack.c.bf16 %v3290, %v3287
  %v3381 = vpack.c.bf16 %v3298, %v3295
  %v3382 = vpack.c.bf16 %v3306, %v3303
  %v3383 = vpack.c.bf16 %v3314, %v3311
  %v3384 = vpack.c.bf16 %v3322, %v3319
  %v3385 = vpack.c.bf16 %v3330, %v3327
  %v3386 = vpack.c.bf16 %v3338, %v3335
  %v3387 = vpack.c.bf16 %v3346, %v3343
  %v3388 = vpack.c.bf16 %v3354, %v3351
  %v3421 = vunpack.c.l.b16 %v3357
  %v3422 = vunpack.c.h.b16 %v3357
  %v3423 = vunpack.c.l.b16 %v3358
  %v3424 = vunpack.c.h.b16 %v3358
  %v3425 = vunpack.c.l.b16 %v3359
  %v3426 = vunpack.c.h.b16 %v3359
  %v3427 = vunpack.c.l.b16 %v3360
  %v3428 = vunpack.c.h.b16 %v3360
  %v3429 = vunpack.c.l.b16 %v3361
  %v3430 = vunpack.c.h.b16 %v3361
  %v3431 = vunpack.c.l.b16 %v3362
  %v3432 = vunpack.c.h.b16 %v3362
  %v3433 = vunpack.c.l.b16 %v3363
  %v3434 = vunpack.c.h.b16 %v3363
  %v3435 = vunpack.c.l.b16 %v3364
  %v3436 = vunpack.c.h.b16 %v3364
  %v3437 = vunpack.c.l.b16 %v3365
  %v3438 = vunpack.c.h.b16 %v3365
  %v3439 = vunpack.c.l.b16 %v3366
  %v3440 = vunpack.c.h.b16 %v3366
  %v3441 = vunpack.c.l.b16 %v3367
  %v3442 = vunpack.c.h.b16 %v3367
  %v3443 = vunpack.c.l.b16 %v3368
  %v3444 = vunpack.c.h.b16 %v3368
  %v3445 = vunpack.c.l.b16 %v3369
  %v3446 = vunpack.c.h.b16 %v3369
  %v3447 = vunpack.c.l.b16 %v3370
  %v3448 = vunpack.c.h.b16 %v3370
  %v3449 = vunpack.c.l.b16 %v3371
  %v3450 = vunpack.c.h.b16 %v3371
  %v3451 = vunpack.c.l.b16 %v3372
  %v3452 = vunpack.c.h.b16 %v3372
  %v3453 = vunpack.c.l.b16 %v3373
  %v3454 = vunpack.c.h.b16 %v3373
  %v3455 = vunpack.c.l.b16 %v3374
  %v3456 = vunpack.c.h.b16 %v3374
  %v3457 = vunpack.c.l.b16 %v3375
  %v3458 = vunpack.c.h.b16 %v3375
  %v3459 = vunpack.c.l.b16 %v3376
  %v3460 = vunpack.c.h.b16 %v3376
  %v3461 = vunpack.c.l.b16 %v3377
  %v3462 = vunpack.c.h.b16 %v3377
  %v3463 = vunpack.c.l.b16 %v3378
  %v3464 = vunpack.c.h.b16 %v3378
  %v3465 = vunpack.c.l.b16 %v3379
  %v3466 = vunpack.c.h.b16 %v3379
  %v3467 = vunpack.c.l.b16 %v3380
  %v3468 = vunpack.c.h.b16 %v3380
  %v3469 = vunpack.c.l.b16 %v3381
  %v3470 = vunpack.c.h.b16 %v3381
  %v3471 = vunpack.c.l.b16 %v3382
  %v3472 = vunpack.c.h.b16 %v3382
  %v3473 = vunpack.c.l.b16 %v3383
  %v3474 = vunpack.c.h.b16 %v3383
  %v3475 = vunpack.c.l.b16 %v3384
  %v3476 = vunpack.c.h.b16 %v3384
  %v3477 = vunpack.c.l.b16 %v3385
  %v3478 = vunpack.c.h.b16 %v3385
  %v3479 = vunpack.c.l.b16 %v3386
  %v3480 = vunpack.c.h.b16 %v3386
  %v3481 = vunpack.c.l.b16 %v3387
  %v3482 = vunpack.c.h.b16 %v3387
  %v3483 = vunpack.c.l.b16 %v3388
  %v3484 = vunpack.c.h.b16 %v3388
  %v3485 = vpack.c.b16 %v3421, %v3421
  %v3486 = vpack.c.b16 %v3422, %v3422
  %v3487 = vpack.c.b16 %v3423, %v3423
  %v3488 = vpack.c.b16 %v3424, %v3424
  %v3489 = vpack.c.b16 %v3425, %v3425
  %v3490 = vpack.c.b16 %v3426, %v3426
  %v3491 = vpack.c.b16 %v3427, %v3427
  %v3492 = vpack.c.b16 %v3428, %v3428
  %v3493 = vpack.c.b16 %v3429, %v3429
  %v3494 = vpack.c.b16 %v3430, %v3430
  %v3495 = vpack.c.b16 %v3431, %v3431
  %v3496 = vpack.c.b16 %v3432, %v3432
  %v3497 = vpack.c.b16 %v3433, %v3433
  %v3498 = vpack.c.b16 %v3434, %v3434
  %v3499 = vpack.c.b16 %v3435, %v3435
  %v3500 = vpack.c.b16 %v3436, %v3436
  %v3501 = vpack.c.b16 %v3437, %v3437
  %v3502 = vpack.c.b16 %v3438, %v3438
  %v3503 = vpack.c.b16 %v3439, %v3439
  %v3504 = vpack.c.b16 %v3440, %v3440
  %v3505 = vpack.c.b16 %v3441, %v3441
  %v3506 = vpack.c.b16 %v3442, %v3442
  %v3507 = vpack.c.b16 %v3443, %v3443
  %v3508 = vpack.c.b16 %v3444, %v3444
  %v3509 = vpack.c.b16 %v3445, %v3445
  %v3510 = vpack.c.b16 %v3446, %v3446
  %v3511 = vpack.c.b16 %v3447, %v3447
  %v3512 = vpack.c.b16 %v3448, %v3448
  %v3513 = vpack.c.b16 %v3449, %v3449
  %v3514 = vpack.c.b16 %v3450, %v3450
  %v3515 = vpack.c.b16 %v3451, %v3451
  %v3516 = vpack.c.b16 %v3452, %v3452
  %v3517 = vpack.c.b16 %v3453, %v3453
  %v3518 = vpack.c.b16 %v3454, %v3454
  %v3519 = vpack.c.b16 %v3455, %v3455
  %v3520 = vpack.c.b16 %v3456, %v3456
  %v3521 = vpack.c.b16 %v3457, %v3457
  %v3522 = vpack.c.b16 %v3458, %v3458
  %v3523 = vpack.c.b16 %v3459, %v3459
  %v3524 = vpack.c.b16 %v3460, %v3460
  %v3525 = vpack.c.b16 %v3461, %v3461
  %v3526 = vpack.c.b16 %v3462, %v3462
  %v3527 = vpack.c.b16 %v3463, %v3463
  %v3528 = vpack.c.b16 %v3464, %v3464
  %v3529 = vpack.c.b16 %v3465, %v3465
  %v3530 = vpack.c.b16 %v3466, %v3466
  %v3531 = vpack.c.b16 %v3467, %v3467
  %v3532 = vpack.c.b16 %v3468, %v3468
  %v3533 = vpack.c.b16 %v3469, %v3469
  %v3534 = vpack.c.b16 %v3470, %v3470
  %v3535 = vpack.c.b16 %v3471, %v3471
  %v3536 = vpack.c.b16 %v3472, %v3472
  %v3537 = vpack.c.b16 %v3473, %v3473
  %v3538 = vpack.c.b16 %v3474, %v3474
  %v3539 = vpack.c.b16 %v3475, %v3475
  %v3540 = vpack.c.b16 %v3476, %v3476
  %v3541 = vpack.c.b16 %v3477, %v3477
  %v3542 = vpack.c.b16 %v3478, %v3478
  %v3543 = vpack.c.b16 %v3479, %v3479
  %v3544 = vpack.c.b16 %v3480, %v3480
  %v3545 = vpack.c.b16 %v3481, %v3481
  %v3546 = vpack.c.b16 %v3482, %v3482
  %v3547 = vpack.c.b16 %v3483, %v3483
  %v3548 = vpack.c.b16 %v3484, %v3484
  %vm3613 = vcmask 519168
  %3614 = vst.msk [vmem:[%s10] sm:$0xf] %vm3613, %v3485
  %3615 = vst.msk [vmem:[%s10 + $0x4] sm:$0xf] %vm3613, %v3486
  %3616 = vst.msk [vmem:[%s10 + $0x8] sm:$0xf] %vm3613, %v3487
  %3617 = vst.msk [vmem:[%s10 + $0xc] sm:$0xf] %vm3613, %v3488
  %3618 = vst.msk [vmem:[%s10 + $0x10] sm:$0xf] %vm3613, %v3489
  %3619 = vst.msk [vmem:[%s10 + $0x14] sm:$0xf] %vm3613, %v3490
  %3620 = vst.msk [vmem:[%s10 + $0x18] sm:$0xf] %vm3613, %v3491
  %3621 = vst.msk [vmem:[%s10 + $0x1c] sm:$0xf] %vm3613, %v3492
  %3622 = vst.msk [vmem:[%s10 + $0x20] sm:$0xf] %vm3613, %v3493
  %3623 = vst.msk [vmem:[%s10 + $0x24] sm:$0xf] %vm3613, %v3494
  %3624 = vst.msk [vmem:[%s10 + $0x28] sm:$0xf] %vm3613, %v3495
  %3625 = vst.msk [vmem:[%s10 + $0x2c] sm:$0xf] %vm3613, %v3496
  %3626 = vst.msk [vmem:[%s10 + $0x30] sm:$0xf] %vm3613, %v3497
  %3627 = vst.msk [vmem:[%s10 + $0x34] sm:$0xf] %vm3613, %v3498
  %3628 = vst.msk [vmem:[%s10 + $0x38] sm:$0xf] %vm3613, %v3499
  %3629 = vst.msk [vmem:[%s10 + $0x3c] sm:$0xf] %vm3613, %v3500
  %3630 = vst.msk [vmem:[%s10 + $0x40] sm:$0xf] %vm3613, %v3501
  %3631 = vst.msk [vmem:[%s10 + $0x44] sm:$0xf] %vm3613, %v3502
  %3632 = vst.msk [vmem:[%s10 + $0x48] sm:$0xf] %vm3613, %v3503
  %3633 = vst.msk [vmem:[%s10 + $0x4c] sm:$0xf] %vm3613, %v3504
  %3634 = vst.msk [vmem:[%s10 + $0x50] sm:$0xf] %vm3613, %v3505
  %3635 = vst.msk [vmem:[%s10 + $0x54] sm:$0xf] %vm3613, %v3506
  %3636 = vst.msk [vmem:[%s10 + $0x58] sm:$0xf] %vm3613, %v3507
  %3637 = vst.msk [vmem:[%s10 + $0x5c] sm:$0xf] %vm3613, %v3508
  %3638 = vst.msk [vmem:[%s10 + $0x60] sm:$0xf] %vm3613, %v3509
  %3639 = vst.msk [vmem:[%s10 + $0x64] sm:$0xf] %vm3613, %v3510
  %3640 = vst.msk [vmem:[%s10 + $0x68] sm:$0xf] %vm3613, %v3511
  %3641 = vst.msk [vmem:[%s10 + $0x6c] sm:$0xf] %vm3613, %v3512
  %3642 = vst.msk [vmem:[%s10 + $0x70] sm:$0xf] %vm3613, %v3513
  %3643 = vst.msk [vmem:[%s10 + $0x74] sm:$0xf] %vm3613, %v3514
  %3644 = vst.msk [vmem:[%s10 + $0x78] sm:$0xf] %vm3613, %v3515
  %3645 = vst.msk [vmem:[%s10 + $0x7c] sm:$0xf] %vm3613, %v3516
  %3646 = vst.msk [vmem:[%s10 + $0x80] sm:$0xf] %vm3613, %v3517
  %3647 = vst.msk [vmem:[%s10 + $0x84] sm:$0xf] %vm3613, %v3518
  %3648 = vst.msk [vmem:[%s10 + $0x88] sm:$0xf] %vm3613, %v3519
  %3649 = vst.msk [vmem:[%s10 + $0x8c] sm:$0xf] %vm3613, %v3520
  %3650 = vst.msk [vmem:[%s10 + $0x90] sm:$0xf] %vm3613, %v3521
  %3651 = vst.msk [vmem:[%s10 + $0x94] sm:$0xf] %vm3613, %v3522
  %3652 = vst.msk [vmem:[%s10 + $0x98] sm:$0xf] %vm3613, %v3523
  %3653 = vst.msk [vmem:[%s10 + $0x9c] sm:$0xf] %vm3613, %v3524
  %3654 = vst.msk [vmem:[%s10 + $0xa0] sm:$0xf] %vm3613, %v3525
  %3655 = vst.msk [vmem:[%s10 + $0xa4] sm:$0xf] %vm3613, %v3526
  %3656 = vst.msk [vmem:[%s10 + $0xa8] sm:$0xf] %vm3613, %v3527
  %3657 = vst.msk [vmem:[%s10 + $0xac] sm:$0xf] %vm3613, %v3528
  %3658 = vst.msk [vmem:[%s10 + $0xb0] sm:$0xf] %vm3613, %v3529
  %3659 = vst.msk [vmem:[%s10 + $0xb4] sm:$0xf] %vm3613, %v3530
  %3660 = vst.msk [vmem:[%s10 + $0xb8] sm:$0xf] %vm3613, %v3531
  %3661 = vst.msk [vmem:[%s10 + $0xbc] sm:$0xf] %vm3613, %v3532
  %3662 = vst.msk [vmem:[%s10 + $0xc0] sm:$0xf] %vm3613, %v3533
  %3663 = vst.msk [vmem:[%s10 + $0xc4] sm:$0xf] %vm3613, %v3534
  %3664 = vst.msk [vmem:[%s10 + $0xc8] sm:$0xf] %vm3613, %v3535
  %3665 = vst.msk [vmem:[%s10 + $0xcc] sm:$0xf] %vm3613, %v3536
  %3666 = vst.msk [vmem:[%s10 + $0xd0] sm:$0xf] %vm3613, %v3537
  %3667 = vst.msk [vmem:[%s10 + $0xd4] sm:$0xf] %vm3613, %v3538
  %3668 = vst.msk [vmem:[%s10 + $0xd8] sm:$0xf] %vm3613, %v3539
  %3669 = vst.msk [vmem:[%s10 + $0xdc] sm:$0xf] %vm3613, %v3540
  %3670 = vst.msk [vmem:[%s10 + $0xe0] sm:$0xf] %vm3613, %v3541
  %3671 = vst.msk [vmem:[%s10 + $0xe4] sm:$0xf] %vm3613, %v3542
  %3672 = vst.msk [vmem:[%s10 + $0xe8] sm:$0xf] %vm3613, %v3543
  %3673 = vst.msk [vmem:[%s10 + $0xec] sm:$0xf] %vm3613, %v3544
  %3674 = vst.msk [vmem:[%s10 + $0xf0] sm:$0xf] %vm3613, %v3545
  %3675 = vst.msk [vmem:[%s10 + $0xf4] sm:$0xf] %vm3613, %v3546
  %3676 = vst.msk [vmem:[%s10 + $0xf8] sm:$0xf] %vm3613, %v3547
  %3677 = vst.msk [vmem:[%s10 + $0xfc] sm:$0xf] %vm3613, %v3548
  // Predicated region
  $region38: #{trans4pass_forward.5} parent=0 // pred_check
    _
  $region39: #{trans4pass_forward.5} parent=0 // pred_check_branch
    %3679 = sbr.rel (0) target = $region41
  $region40: #{trans4pass_forward.5} parent=0 // pred_region
    _
  $region41: #{trans4pass_forward.5} parent=0 // pred_fallthru
    _
  // Predicated region
  $region42: #{trans4pass_forward.5} parent=0 // pred_check
    _
  $region43: #{trans4pass_forward.5} parent=0 // pred_check_branch
    %3681 = sbr.rel (0) target = $region45
  $region44: #{trans4pass_forward.5} parent=0 // pred_region
    _
  $region45: #{trans4pass_forward.5} parent=0 // pred_fallthru
    _
  // Predicated region
  $region46: #{trans4pass_forward.5} parent=0 // pred_check
    _
  $region47: #{trans4pass_forward.5} parent=0 // pred_check_branch
    %3683 = sbr.rel (0) target = $region49
  $region48: #{trans4pass_forward.5} parent=0 // pred_region
    _
  $region49: #{trans4pass_forward.5} parent=0 // pred_fallthru
    _
  // Predicated region
  $region50: #{trans4pass_forward.5} parent=0 // pred_check
    _
  $region51: #{trans4pass_forward.5} parent=0 // pred_check_branch
    %3685 = sbr.rel (0) target = $region53
  $region52: #{trans4pass_forward.5} parent=0 // pred_region
    _
  $region53: #{trans4pass_forward.5} parent=0 // pred_fallthru
    _

// kernel: trans4pass_forward.6
$region0: #{trans4pass_forward.6}
  #allocation0 [shape = 'u32[]', space=smem, size = 0x4, offset = 0x4, fixed_abs, tag = 'smem constant byte address 0x4 - core index']
  #allocation1 [shape = 'u32[144,128]{1,0:T(1,128)}', space=vmem, size = 0x12000, scoped, tag = 'internal scratch']
  %s0 = inlined_call_operand.vmem [shape: bf16[128,64], index: 0, kind: input, shape index: {}]
  %s1 = inlined_call_operand.vmem [shape: bf16[64,128], index: 1, kind: input, shape index: {}]
  %s2 = inlined_call_operand.vmem [shape: f32[1,128], index: 2, kind: input, shape index: {}, may-alias: {2,4,6}]
  %s3 = inlined_call_operand.vmem [shape: bf16[128,128], index: 3, kind: input, shape index: {}]
  %s4 = inlined_call_operand.vmem [shape: f32[1,128], index: 4, kind: input, shape index: {}, may-alias: {2,4,6}]
  %s5 = inlined_call_operand.vmem [shape: bf16[128,128], index: 5, kind: input, shape index: {}]
  %s6 = inlined_call_operand.vmem [shape: f32[1,128], index: 6, kind: input, shape index: {}, may-alias: {2,4,6}]
  %s7 = inlined_call_operand.vmem [shape: bf16[128,64], index: 7, kind: input, shape index: {}]
  %s8 = inlined_call_operand.vmem [shape: f32[1,64], index: 8, kind: input, shape index: {}]
  %s9 = inlined_call_operand.vmem [shape: bf16[128,32], index: 9, kind: output, shape index: {0}]
  %s10 = inlined_call_operand.vmem [shape: bf16[128,64], index: 10, kind: output, shape index: {1}]
  %11 = xla_tuple %s9, %s10
  %s12 = sld [smem:[#allocation0]]
  $region54: #{trans4pass_forward.6} parent=0
    _
  %s14 = ssub.s32 1, %s12
  %s15 = scalar_select 0, %s14, %s12
  // Predicated region
  $region2: #{trans4pass_forward.6} parent=0 // pred_check
    _
  $region3: #{trans4pass_forward.6} parent=0 // pred_check_branch
    %17 = sbr.rel (0) target = $region5
  $region4: #{trans4pass_forward.6} parent=0 // pred_region
    _
  $region5: #{trans4pass_forward.6} parent=0 // pred_fallthru
    _
  // Predicated region
  $region6: #{trans4pass_forward.6} parent=0 // pred_check
    _
  $region7: #{trans4pass_forward.6} parent=0 // pred_check_branch
    %19 = sbr.rel (0) target = $region9
  $region8: #{trans4pass_forward.6} parent=0 // pred_region
    _
  $region9: #{trans4pass_forward.6} parent=0 // pred_fallthru
    _
  // Predicated region
  $region10: #{trans4pass_forward.6} parent=0 // pred_check
    _
  $region11: #{trans4pass_forward.6} parent=0 // pred_check_branch
    %21 = sbr.rel (0) target = $region13
  $region12: #{trans4pass_forward.6} parent=0 // pred_region
    _
  $region13: #{trans4pass_forward.6} parent=0 // pred_fallthru
    _
  // Predicated region
  $region14: #{trans4pass_forward.6} parent=0 // pred_check
    _
  $region15: #{trans4pass_forward.6} parent=0 // pred_check_branch
    %23 = sbr.rel (0) target = $region17
  $region16: #{trans4pass_forward.6} parent=0 // pred_region
    _
  $region17: #{trans4pass_forward.6} parent=0 // pred_fallthru
    _
  // Predicated region
  $region18: #{trans4pass_forward.6} parent=0 // pred_check
    _
  $region19: #{trans4pass_forward.6} parent=0 // pred_check_branch
    %25 = sbr.rel (0) target = $region21
  $region20: #{trans4pass_forward.6} parent=0 // pred_region
    _
  $region21: #{trans4pass_forward.6} parent=0 // pred_fallthru
    _
  // Predicated region
  $region22: #{trans4pass_forward.6} parent=0 // pred_check
    _
  $region23: #{trans4pass_forward.6} parent=0 // pred_check_branch
    %27 = sbr.rel (0) target = $region25
  $region24: #{trans4pass_forward.6} parent=0 // pred_region
    _
  $region25: #{trans4pass_forward.6} parent=0 // pred_fallthru
    _
  // Predicated region
  $region26: #{trans4pass_forward.6} parent=0 // pred_check
    _
  $region27: #{trans4pass_forward.6} parent=0 // pred_check_branch
    %29 = sbr.rel (0) target = $region29
  $region28: #{trans4pass_forward.6} parent=0 // pred_region
    _
  $region29: #{trans4pass_forward.6} parent=0 // pred_fallthru
    _
  // Predicated region
  $region30: #{trans4pass_forward.6} parent=0 // pred_check
    _
  $region31: #{trans4pass_forward.6} parent=0 // pred_check_branch
    %31 = sbr.rel (0) target = $region33
  $region32: #{trans4pass_forward.6} parent=0 // pred_region
    _
  $region33: #{trans4pass_forward.6} parent=0 // pred_fallthru
    _
  // Predicated region
  $region34: #{trans4pass_forward.6} parent=0 // pred_check
    _
  $region35: #{trans4pass_forward.6} parent=0 // pred_check_branch
    %33 = sbr.rel (0) target = $region37
  $region36: #{trans4pass_forward.6} parent=0 // pred_region
    _
  $region37: #{trans4pass_forward.6} parent=0 // pred_fallthru
    _
  %v35 = vld [vmem:[%s0] sm:$0xf]
  %v36 = vld [vmem:[%s0 + $0x4] sm:$0xf]
  %v37 = vld [vmem:[%s0 + $0x8] sm:$0xf]
  %v38 = vld [vmem:[%s0 + $0xc] sm:$0xf]
  %v39 = vld [vmem:[%s0 + $0x10] sm:$0xf]
  %v40 = vld [vmem:[%s0 + $0x14] sm:$0xf]
  %v41 = vld [vmem:[%s0 + $0x18] sm:$0xf]
  %v42 = vld [vmem:[%s0 + $0x1c] sm:$0xf]
  %v43 = vld [vmem:[%s0 + $0x20] sm:$0xf]
  %v44 = vld [vmem:[%s0 + $0x24] sm:$0xf]
  %v45 = vld [vmem:[%s0 + $0x28] sm:$0xf]
  %v46 = vld [vmem:[%s0 + $0x2c] sm:$0xf]
  %v47 = vld [vmem:[%s0 + $0x30] sm:$0xf]
  %v48 = vld [vmem:[%s0 + $0x34] sm:$0xf]
  %v49 = vld [vmem:[%s0 + $0x38] sm:$0xf]
  %v50 = vld [vmem:[%s0 + $0x3c] sm:$0xf]
  %v51 = vld [vmem:[%s1] sm:$0xf]
  %v52 = vld [vmem:[%s1 + $0x4] sm:$0xf]
  %v53 = vld [vmem:[%s1 + $0x8] sm:$0xf]
  %v54 = vld [vmem:[%s1 + $0xc] sm:$0xf]
  %v55 = vld [vmem:[%s1 + $0x10] sm:$0xf]
  %v56 = vld [vmem:[%s1 + $0x14] sm:$0xf]
  %v57 = vld [vmem:[%s1 + $0x18] sm:$0xf]
  %v58 = vld [vmem:[%s1 + $0x1c] sm:$0xf]
  %v59 = vld [vmem:[%s2] sm:$0x1]
  %v61 = vlaneseq
  %v62 = vshrl.u32 %v61, 7
  %v63 = vsub.s32 0, %v62
  %v64 = vrot.slane %v59, %v63
  %v82 = vunpack.c.l.b16 %v35
  %v83 = vunpack.c.l.b16 %v36
  %v84 = vunpack.c.l.b16 %v37
  %v85 = vunpack.c.l.b16 %v38
  %v86 = vunpack.c.l.b16 %v39
  %v87 = vunpack.c.l.b16 %v40
  %v88 = vunpack.c.l.b16 %v41
  %v89 = vunpack.c.l.b16 %v42
  %v90 = vunpack.c.l.b16 %v43
  %v91 = vunpack.c.l.b16 %v44
  %v92 = vunpack.c.l.b16 %v45
  %v93 = vunpack.c.l.b16 %v46
  %v94 = vunpack.c.l.b16 %v47
  %v95 = vunpack.c.l.b16 %v48
  %v96 = vunpack.c.l.b16 %v49
  %v97 = vunpack.c.l.b16 %v50
  %v98 = vpack.c.b16 %v83, %v82
  %v99 = vpack.c.b16 %v85, %v84
  %v100 = vpack.c.b16 %v87, %v86
  %v101 = vpack.c.b16 %v89, %v88
  %v102 = vpack.c.b16 %v91, %v90
  %v103 = vpack.c.b16 %v93, %v92
  %v104 = vpack.c.b16 %v95, %v94
  %v105 = vpack.c.b16 %v97, %v96
  %v114 = vunpack.c.l.b16 %v51
  %v115 = vunpack.c.l.b16 %v52
  %v116 = vunpack.c.l.b16 %v53
  %v117 = vunpack.c.l.b16 %v54
  %v118 = vunpack.c.l.b16 %v55
  %v119 = vunpack.c.l.b16 %v56
  %v120 = vunpack.c.l.b16 %v57
  %v121 = vunpack.c.l.b16 %v58
  %v122 = vpack.c.b16 %v115, %v114
  %v123 = vpack.c.b16 %v117, %v116
  %v124 = vpack.c.b16 %v119, %v118
  %v125 = vpack.c.b16 %v121, %v120
  %vm130 = vcmask 523264
  %v132 = vsel %vm130, %v98, 0
  %v135 = vsel %vm130, %v99, 0
  %v138 = vsel %vm130, %v100, 0
  %v141 = vsel %vm130, %v101, 0
  %v144 = vsel %vm130, %v102, 0
  %v147 = vsel %vm130, %v103, 0
  %v150 = vsel %vm130, %v104, 0
  %v153 = vsel %vm130, %v105, 0
  %155 = vmatprep.subr.bf16.mxu0 0
  %156 = vmatpush1.bf16.msra.mxu0 %v122
  %157 = vmatprep.subr.bf16.mxu0 0
  %158 = vmatpush1.bf16.msra.mxu0 %v123
  %159 = vmatprep.subr.bf16.mxu0 0
  %160 = vmatpush1.bf16.msra.mxu0 %v124
  %161 = vmatprep.subr.bf16.mxu0 0
  %162 = vmatpush1.bf16.msra.mxu0 %v125
  %163 = vmatprep.subr.bf16.mxu0 0
  %164 = vmatpush1.bf16.msra.mxu0 0
  %165 = vmatprep.subr.bf16.mxu0 0
  %166 = vmatpush1.bf16.msra.mxu0 0
  %167 = vmatprep.subr.bf16.mxu0 0
  %168 = vmatpush1.bf16.msra.mxu0 0
  %169 = vmatprep.subr.bf16.mxu0 0
  %170 = vmatpush1.bf16.msra.mxu0 0
  %171 = vmatprep.subr.bf16.mxu0 0
  %172 = vmatpush1.bf16.msra.mxu0 0
  %173 = vmatprep.subr.bf16.mxu0 0
  %174 = vmatpush1.bf16.msra.mxu0 0
  %175 = vmatprep.subr.bf16.mxu0 0
  %176 = vmatpush1.bf16.msra.mxu0 0
  %177 = vmatprep.subr.bf16.mxu0 0
  %178 = vmatpush1.bf16.msra.mxu0 0
  %179 = vmatprep.subr.bf16.mxu0 0
  %180 = vmatpush1.bf16.msra.mxu0 0
  %181 = vmatprep.subr.bf16.mxu0 0
  %182 = vmatpush1.bf16.msra.mxu0 0
  %183 = vmatprep.subr.bf16.mxu0 0
  %184 = vmatpush1.bf16.msra.mxu0 0
  %185 = vmatprep.subr.bf16.mxu0 0
  %186 = vmatpush1.bf16.msra.mxu0 0
  %187 = vmatprep.mubr.bf16.mxu0 0
  %188 = vmatmul.mubr.bf16.gmra.mrb[0].mxu0 %v132
  %v189 = vpop.f32.mrb[0].mxu0
  %v190 = vadd.f32 %v64, %v189
  %v191 = vpop.f32.mrb[0].mxu0
  %v192 = vpop.f32.mrb[0].mxu0
  %v193 = vadd.f32 %v64, %v192
  %v194 = vpop.f32.mrb[0].mxu0
  %195 = vmatprep.mubr.bf16.mxu0 0
  %196 = vmatmul.mubr.bf16.gmra.mrb[0].mxu0 %v135
  %v197 = vpop.f32.mrb[0].mxu0
  %v198 = vadd.f32 %v64, %v197
  %v199 = vpop.f32.mrb[0].mxu0
  %v200 = vpop.f32.mrb[0].mxu0
  %v201 = vadd.f32 %v64, %v200
  %v202 = vpop.f32.mrb[0].mxu0
  %203 = vmatprep.mubr.bf16.mxu0 0
  %204 = vmatmul.mubr.bf16.gmra.mrb[0].mxu0 %v138
  %v205 = vpop.f32.mrb[0].mxu0
  %v206 = vadd.f32 %v64, %v205
  %v207 = vpop.f32.mrb[0].mxu0
  %v208 = vpop.f32.mrb[0].mxu0
  %v209 = vadd.f32 %v64, %v208
  %v210 = vpop.f32.mrb[0].mxu0
  %211 = vmatprep.mubr.bf16.mxu0 0
  %212 = vmatmul.mubr.bf16.gmra.mrb[0].mxu0 %v141
  %v213 = vpop.f32.mrb[0].mxu0
  %v214 = vadd.f32 %v64, %v213
  %v215 = vpop.f32.mrb[0].mxu0
  %v216 = vpop.f32.mrb[0].mxu0
  %v217 = vadd.f32 %v64, %v216
  %v218 = vpop.f32.mrb[0].mxu0
  %219 = vmatprep.mubr.bf16.mxu0 0
  %220 = vmatmul.mubr.bf16.gmra.mrb[0].mxu0 %v144
  %v221 = vpop.f32.mrb[0].mxu0
  %v222 = vadd.f32 %v64, %v221
  %v223 = vpop.f32.mrb[0].mxu0
  %v224 = vpop.f32.mrb[0].mxu0
  %v225 = vadd.f32 %v64, %v224
  %v226 = vpop.f32.mrb[0].mxu0
  %227 = vmatprep.mubr.bf16.mxu0 0
  %228 = vmatmul.mubr.bf16.gmra.mrb[0].mxu0 %v147
  %v229 = vpop.f32.mrb[0].mxu0
  %v230 = vadd.f32 %v64, %v229
  %v231 = vpop.f32.mrb[0].mxu0
  %v232 = vpop.f32.mrb[0].mxu0
  %v233 = vadd.f32 %v64, %v232
  %v234 = vpop.f32.mrb[0].mxu0
  %235 = vmatprep.mubr.bf16.mxu0 0
  %236 = vmatmul.mubr.bf16.gmra.mrb[0].mxu0 %v150
  %v237 = vpop.f32.mrb[0].mxu0
  %v238 = vadd.f32 %v64, %v237
  %v239 = vpop.f32.mrb[0].mxu0
  %v240 = vpop.f32.mrb[0].mxu0
  %v241 = vadd.f32 %v64, %v240
  %v242 = vpop.f32.mrb[0].mxu0
  %243 = vmatprep.mubr.bf16.mxu0 0
  %244 = vmatmul.mubr.bf16.gmra.mrb[0].mxu0 %v153
  %v245 = vpop.f32.mrb[0].mxu0
  %v246 = vadd.f32 %v64, %v245
  %v247 = vpop.f32.mrb[0].mxu0
  %v248 = vpop.f32.mrb[0].mxu0
  %v249 = vadd.f32 %v64, %v248
  %v250 = vpop.f32.mrb[0].mxu0
  %251 = vdwg.mxu0
  %v252 = vmul.f32 %v190, %v190
  %v253 = vmul.f32 %v193, %v193
  %v254 = vmul.f32 %v198, %v198
  %v255 = vmul.f32 %v201, %v201
  %v256 = vmul.f32 %v206, %v206
  %v257 = vmul.f32 %v209, %v209
  %v258 = vmul.f32 %v214, %v214
  %v259 = vmul.f32 %v217, %v217
  %v260 = vmul.f32 %v222, %v222
  %v261 = vmul.f32 %v225, %v225
  %v262 = vmul.f32 %v230, %v230
  %v263 = vmul.f32 %v233, %v233
  %v264 = vmul.f32 %v238, %v238
  %v265 = vmul.f32 %v241, %v241
  %v266 = vmul.f32 %v246, %v246
  %v267 = vmul.f32 %v249, %v249
  %v268 = vmul.f32 %v190, %v252
  %v269 = vmul.f32 %v193, %v253
  %v270 = vmul.f32 %v198, %v254
  %v271 = vmul.f32 %v201, %v255
  %v272 = vmul.f32 %v206, %v256
  %v273 = vmul.f32 %v209, %v257
  %v274 = vmul.f32 %v214, %v258
  %v275 = vmul.f32 %v217, %v259
  %v276 = vmul.f32 %v222, %v260
  %v277 = vmul.f32 %v225, %v261
  %v278 = vmul.f32 %v230, %v262
  %v279 = vmul.f32 %v233, %v263
  %v280 = vmul.f32 %v238, %v264
  %v281 = vmul.f32 %v241, %v265
  %v282 = vmul.f32 %v246, %v266
  %v283 = vmul.f32 %v249, %v267
  %v284 = vmul.f32 %v268, 0.044715
  %v285 = vmul.f32 %v269, 0.044715
  %v286 = vmul.f32 %v270, 0.044715
  %v287 = vmul.f32 %v271, 0.044715
  %v288 = vmul.f32 %v272, 0.044715
  %v289 = vmul.f32 %v273, 0.044715
  %v290 = vmul.f32 %v274, 0.044715
  %v291 = vmul.f32 %v275, 0.044715
  %v292 = vmul.f32 %v276, 0.044715
  %v293 = vmul.f32 %v277, 0.044715
  %v294 = vmul.f32 %v278, 0.044715
  %v295 = vmul.f32 %v279, 0.044715
  %v296 = vmul.f32 %v280, 0.044715
  %v297 = vmul.f32 %v281, 0.044715
  %v298 = vmul.f32 %v282, 0.044715
  %v299 = vmul.f32 %v283, 0.044715
  %v300 = vadd.f32 %v190, %v284
  %v301 = vadd.f32 %v193, %v285
  %v302 = vadd.f32 %v198, %v286
  %v303 = vadd.f32 %v201, %v287
  %v304 = vadd.f32 %v206, %v288
  %v305 = vadd.f32 %v209, %v289
  %v306 = vadd.f32 %v214, %v290
  %v307 = vadd.f32 %v217, %v291
  %v308 = vadd.f32 %v222, %v292
  %v309 = vadd.f32 %v225, %v293
  %v310 = vadd.f32 %v230, %v294
  %v311 = vadd.f32 %v233, %v295
  %v312 = vadd.f32 %v238, %v296
  %v313 = vadd.f32 %v241, %v297
  %v314 = vadd.f32 %v246, %v298
  %v315 = vadd.f32 %v249, %v299
  %v316 = vmul.f32 %v300, 0.7978846
  %v317 = vmul.f32 %v301, 0.7978846
  %v318 = vmul.f32 %v302, 0.7978846
  %v319 = vmul.f32 %v303, 0.7978846
  %v320 = vmul.f32 %v304, 0.7978846
  %v321 = vmul.f32 %v305, 0.7978846
  %v322 = vmul.f32 %v306, 0.7978846
  %v323 = vmul.f32 %v307, 0.7978846
  %v324 = vmul.f32 %v308, 0.7978846
  %v325 = vmul.f32 %v309, 0.7978846
  %v326 = vmul.f32 %v310, 0.7978846
  %v327 = vmul.f32 %v311, 0.7978846
  %v328 = vmul.f32 %v312, 0.7978846
  %v329 = vmul.f32 %v313, 0.7978846
  %v330 = vmul.f32 %v314, 0.7978846
  %v331 = vmul.f32 %v315, 0.7978846
  %v332 = vtanh.pop %v316
  %v333 = vtanh.pop %v317
  %v334 = vtanh.pop %v318
  %v335 = vtanh.pop %v319
  %v336 = vtanh.pop %v320
  %v337 = vtanh.pop %v321
  %v338 = vtanh.pop %v322
  %v339 = vtanh.pop %v323
  %v340 = vtanh.pop %v324
  %v341 = vtanh.pop %v325
  %v342 = vtanh.pop %v326
  %v343 = vtanh.pop %v327
  %v344 = vtanh.pop %v328
  %v345 = vtanh.pop %v329
  %v346 = vtanh.pop %v330
  %v347 = vtanh.pop %v331
  %v348 = vadd.f32 %v332, 1.0
  %v349 = vadd.f32 %v333, 1.0
  %v350 = vadd.f32 %v334, 1.0
  %v351 = vadd.f32 %v335, 1.0
  %v352 = vadd.f32 %v336, 1.0
  %v353 = vadd.f32 %v337, 1.0
  %v354 = vadd.f32 %v338, 1.0
  %v355 = vadd.f32 %v339, 1.0
  %v356 = vadd.f32 %v340, 1.0
  %v357 = vadd.f32 %v341, 1.0
  %v358 = vadd.f32 %v342, 1.0
  %v359 = vadd.f32 %v343, 1.0
  %v360 = vadd.f32 %v344, 1.0
  %v361 = vadd.f32 %v345, 1.0
  %v362 = vadd.f32 %v346, 1.0
  %v363 = vadd.f32 %v347, 1.0
  %v364 = vmul.f32 %v348, 0.5
  %v365 = vmul.f32 %v349, 0.5
  %v366 = vmul.f32 %v350, 0.5
  %v367 = vmul.f32 %v351, 0.5
  %v368 = vmul.f32 %v352, 0.5
  %v369 = vmul.f32 %v353, 0.5
  %v370 = vmul.f32 %v354, 0.5
  %v371 = vmul.f32 %v355, 0.5
  %v372 = vmul.f32 %v356, 0.5
  %v373 = vmul.f32 %v357, 0.5
  %v374 = vmul.f32 %v358, 0.5
  %v375 = vmul.f32 %v359, 0.5
  %v376 = vmul.f32 %v360, 0.5
  %v377 = vmul.f32 %v361, 0.5
  %v378 = vmul.f32 %v362, 0.5
  %v379 = vmul.f32 %v363, 0.5
  %v380 = vmul.f32 %v190, %v364
  %v381 = vmul.f32 %v193, %v365
  %v382 = vmul.f32 %v198, %v366
  %v383 = vmul.f32 %v201, %v367
  %v384 = vmul.f32 %v206, %v368
  %v385 = vmul.f32 %v209, %v369
  %v386 = vmul.f32 %v214, %v370
  %v387 = vmul.f32 %v217, %v371
  %v388 = vmul.f32 %v222, %v372
  %v389 = vmul.f32 %v225, %v373
  %v390 = vmul.f32 %v230, %v374
  %v391 = vmul.f32 %v233, %v375
  %v392 = vmul.f32 %v238, %v376
  %v393 = vmul.f32 %v241, %v377
  %v394 = vmul.f32 %v246, %v378
  %v395 = vmul.f32 %v249, %v379
  %v396 = vpack.c.bf16 %v381, %v380
  %v397 = vpack.c.bf16 %v383, %v382
  %v398 = vpack.c.bf16 %v385, %v384
  %v399 = vpack.c.bf16 %v387, %v386
  %v400 = vpack.c.bf16 %v389, %v388
  %v401 = vpack.c.bf16 %v391, %v390
  %v402 = vpack.c.bf16 %v393, %v392
  %v403 = vpack.c.bf16 %v395, %v394
  %v404 = vld [vmem:[%s3] sm:$0xf]
  %v405 = vld [vmem:[%s3 + $0x4] sm:$0xf]
  %v406 = vld [vmem:[%s3 + $0x8] sm:$0xf]
  %v407 = vld [vmem:[%s3 + $0xc] sm:$0xf]
  %v408 = vld [vmem:[%s3 + $0x10] sm:$0xf]
  %v409 = vld [vmem:[%s3 + $0x14] sm:$0xf]
  %v410 = vld [vmem:[%s3 + $0x18] sm:$0xf]
  %v411 = vld [vmem:[%s3 + $0x1c] sm:$0xf]
  %v412 = vld [vmem:[%s3 + $0x20] sm:$0xf]
  %v413 = vld [vmem:[%s3 + $0x24] sm:$0xf]
  %v414 = vld [vmem:[%s3 + $0x28] sm:$0xf]
  %v415 = vld [vmem:[%s3 + $0x2c] sm:$0xf]
  %v416 = vld [vmem:[%s3 + $0x30] sm:$0xf]
  %v417 = vld [vmem:[%s3 + $0x34] sm:$0xf]
  %v418 = vld [vmem:[%s3 + $0x38] sm:$0xf]
  %v419 = vld [vmem:[%s3 + $0x3c] sm:$0xf]
  %v420 = vld [vmem:[%s4] sm:$0x1]
  %v422 = vlaneseq
  %v423 = vshrl.u32 %v422, 7
  %v424 = vsub.s32 0, %v423
  %v425 = vrot.slane %v420, %v424
  %v443 = vunpack.c.l.b16 %v404
  %v444 = vunpack.c.l.b16 %v405
  %v445 = vunpack.c.l.b16 %v406
  %v446 = vunpack.c.l.b16 %v407
  %v447 = vunpack.c.l.b16 %v408
  %v448 = vunpack.c.l.b16 %v409
  %v449 = vunpack.c.l.b16 %v410
  %v450 = vunpack.c.l.b16 %v411
  %v451 = vunpack.c.l.b16 %v412
  %v452 = vunpack.c.l.b16 %v413
  %v453 = vunpack.c.l.b16 %v414
  %v454 = vunpack.c.l.b16 %v415
  %v455 = vunpack.c.l.b16 %v416
  %v456 = vunpack.c.l.b16 %v417
  %v457 = vunpack.c.l.b16 %v418
  %v458 = vunpack.c.l.b16 %v419
  %v459 = vpack.c.b16 %v444, %v443
  %v460 = vpack.c.b16 %v446, %v445
  %v461 = vpack.c.b16 %v448, %v447
  %v462 = vpack.c.b16 %v450, %v449
  %v463 = vpack.c.b16 %v452, %v451
  %v464 = vpack.c.b16 %v454, %v453
  %v465 = vpack.c.b16 %v456, %v455
  %v466 = vpack.c.b16 %v458, %v457
  %475 = vmatprep.subr.bf16.mxu0 0
  %476 = vmatpush1.bf16.msra.mxu0 %v459
  %477 = vmatprep.subr.bf16.mxu0 0
  %478 = vmatpush1.bf16.msra.mxu0 %v460
  %479 = vmatprep.subr.bf16.mxu0 0
  %480 = vmatpush1.bf16.msra.mxu0 %v461
  %481 = vmatprep.subr.bf16.mxu0 0
  %482 = vmatpush1.bf16.msra.mxu0 %v462
  %483 = vmatprep.subr.bf16.mxu0 0
  %484 = vmatpush1.bf16.msra.mxu0 %v463
  %485 = vmatprep.subr.bf16.mxu0 0
  %486 = vmatpush1.bf16.msra.mxu0 %v464
  %487 = vmatprep.subr.bf16.mxu0 0
  %488 = vmatpush1.bf16.msra.mxu0 %v465
  %489 = vmatprep.subr.bf16.mxu0 0
  %490 = vmatpush1.bf16.msra.mxu0 %v466
  %491 = vmatprep.subr.bf16.mxu0 0
  %492 = vmatpush1.bf16.msra.mxu0 0
  %493 = vmatprep.subr.bf16.mxu0 0
  %494 = vmatpush1.bf16.msra.mxu0 0
  %495 = vmatprep.subr.bf16.mxu0 0
  %496 = vmatpush1.bf16.msra.mxu0 0
  %497 = vmatprep.subr.bf16.mxu0 0
  %498 = vmatpush1.bf16.msra.mxu0 0
  %499 = vmatprep.subr.bf16.mxu0 0
  %500 = vmatpush1.bf16.msra.mxu0 0
  %501 = vmatprep.subr.bf16.mxu0 0
  %502 = vmatpush1.bf16.msra.mxu0 0
  %503 = vmatprep.subr.bf16.mxu0 0
  %504 = vmatpush1.bf16.msra.mxu0 0
  %505 = vmatprep.subr.bf16.mxu0 0
  %506 = vmatpush1.bf16.msra.mxu0 0
  %507 = vmatprep.mubr.bf16.mxu0 0
  %508 = vmatmul.mubr.bf16.gmra.mrb[0].mxu0 %v396
  %v509 = vpop.f32.mrb[0].mxu0
  %v510 = vadd.f32 %v425, %v509
  %v511 = vpop.f32.mrb[0].mxu0
  %v512 = vpop.f32.mrb[0].mxu0
  %v513 = vadd.f32 %v425, %v512
  %v514 = vpop.f32.mrb[0].mxu0
  %515 = vmatprep.mubr.bf16.mxu0 0
  %516 = vmatmul.mubr.bf16.gmra.mrb[0].mxu0 %v397
  %v517 = vpop.f32.mrb[0].mxu0
  %v518 = vadd.f32 %v425, %v517
  %v519 = vpop.f32.mrb[0].mxu0
  %v520 = vpop.f32.mrb[0].mxu0
  %v521 = vadd.f32 %v425, %v520
  %v522 = vpop.f32.mrb[0].mxu0
  %523 = vmatprep.mubr.bf16.mxu0 0
  %524 = vmatmul.mubr.bf16.gmra.mrb[0].mxu0 %v398
  %v525 = vpop.f32.mrb[0].mxu0
  %v526 = vadd.f32 %v425, %v525
  %v527 = vpop.f32.mrb[0].mxu0
  %v528 = vpop.f32.mrb[0].mxu0
  %v529 = vadd.f32 %v425, %v528
  %v530 = vpop.f32.mrb[0].mxu0
  %531 = vmatprep.mubr.bf16.mxu0 0
  %532 = vmatmul.mubr.bf16.gmra.mrb[0].mxu0 %v399
  %v533 = vpop.f32.mrb[0].mxu0
  %v534 = vadd.f32 %v425, %v533
  %v535 = vpop.f32.mrb[0].mxu0
  %v536 = vpop.f32.mrb[0].mxu0
  %v537 = vadd.f32 %v425, %v536
  %v538 = vpop.f32.mrb[0].mxu0
  %539 = vmatprep.mubr.bf16.mxu0 0
  %540 = vmatmul.mubr.bf16.gmra.mrb[0].mxu0 %v400
  %v541 = vpop.f32.mrb[0].mxu0
  %v542 = vadd.f32 %v425, %v541
  %v543 = vpop.f32.mrb[0].mxu0
  %v544 = vpop.f32.mrb[0].mxu0
  %v545 = vadd.f32 %v425, %v544
  %v546 = vpop.f32.mrb[0].mxu0
  %547 = vmatprep.mubr.bf16.mxu0 0
  %548 = vmatmul.mubr.bf16.gmra.mrb[0].mxu0 %v401
  %v549 = vpop.f32.mrb[0].mxu0
  %v550 = vadd.f32 %v425, %v549
  %v551 = vpop.f32.mrb[0].mxu0
  %v552 = vpop.f32.mrb[0].mxu0
  %v553 = vadd.f32 %v425, %v552
  %v554 = vpop.f32.mrb[0].mxu0
  %555 = vmatprep.mubr.bf16.mxu0 0
  %556 = vmatmul.mubr.bf16.gmra.mrb[0].mxu0 %v402
  %v557 = vpop.f32.mrb[0].mxu0
  %v558 = vadd.f32 %v425, %v557
  %v559 = vpop.f32.mrb[0].mxu0
  %v560 = vpop.f32.mrb[0].mxu0
  %v561 = vadd.f32 %v425, %v560
  %v562 = vpop.f32.mrb[0].mxu0
  %563 = vmatprep.mubr.bf16.mxu0 0
  %564 = vmatmul.mubr.bf16.gmra.mrb[0].mxu0 %v403
  %v565 = vpop.f32.mrb[0].mxu0
  %v566 = vadd.f32 %v425, %v565
  %v567 = vpop.f32.mrb[0].mxu0
  %v568 = vpop.f32.mrb[0].mxu0
  %v569 = vadd.f32 %v425, %v568
  %v570 = vpop.f32.mrb[0].mxu0
  %571 = vdwg.mxu0
  %v572 = vmul.f32 %v510, %v510
  %v573 = vmul.f32 %v513, %v513
  %v574 = vmul.f32 %v518, %v518
  %v575 = vmul.f32 %v521, %v521
  %v576 = vmul.f32 %v526, %v526
  %v577 = vmul.f32 %v529, %v529
  %v578 = vmul.f32 %v534, %v534
  %v579 = vmul.f32 %v537, %v537
  %v580 = vmul.f32 %v542, %v542
  %v581 = vmul.f32 %v545, %v545
  %v582 = vmul.f32 %v550, %v550
  %v583 = vmul.f32 %v553, %v553
  %v584 = vmul.f32 %v558, %v558
  %v585 = vmul.f32 %v561, %v561
  %v586 = vmul.f32 %v566, %v566
  %v587 = vmul.f32 %v569, %v569
  %v588 = vmul.f32 %v510, %v572
  %v589 = vmul.f32 %v513, %v573
  %v590 = vmul.f32 %v518, %v574
  %v591 = vmul.f32 %v521, %v575
  %v592 = vmul.f32 %v526, %v576
  %v593 = vmul.f32 %v529, %v577
  %v594 = vmul.f32 %v534, %v578
  %v595 = vmul.f32 %v537, %v579
  %v596 = vmul.f32 %v542, %v580
  %v597 = vmul.f32 %v545, %v581
  %v598 = vmul.f32 %v550, %v582
  %v599 = vmul.f32 %v553, %v583
  %v600 = vmul.f32 %v558, %v584
  %v601 = vmul.f32 %v561, %v585
  %v602 = vmul.f32 %v566, %v586
  %v603 = vmul.f32 %v569, %v587
  %v604 = vmul.f32 %v588, 0.044715
  %v605 = vmul.f32 %v589, 0.044715
  %v606 = vmul.f32 %v590, 0.044715
  %v607 = vmul.f32 %v591, 0.044715
  %v608 = vmul.f32 %v592, 0.044715
  %v609 = vmul.f32 %v593, 0.044715
  %v610 = vmul.f32 %v594, 0.044715
  %v611 = vmul.f32 %v595, 0.044715
  %v612 = vmul.f32 %v596, 0.044715
  %v613 = vmul.f32 %v597, 0.044715
  %v614 = vmul.f32 %v598, 0.044715
  %v615 = vmul.f32 %v599, 0.044715
  %v616 = vmul.f32 %v600, 0.044715
  %v617 = vmul.f32 %v601, 0.044715
  %v618 = vmul.f32 %v602, 0.044715
  %v619 = vmul.f32 %v603, 0.044715
  %v620 = vadd.f32 %v510, %v604
  %v621 = vadd.f32 %v513, %v605
  %v622 = vadd.f32 %v518, %v606
  %v623 = vadd.f32 %v521, %v607
  %v624 = vadd.f32 %v526, %v608
  %v625 = vadd.f32 %v529, %v609
  %v626 = vadd.f32 %v534, %v610
  %v627 = vadd.f32 %v537, %v611
  %v628 = vadd.f32 %v542, %v612
  %v629 = vadd.f32 %v545, %v613
  %v630 = vadd.f32 %v550, %v614
  %v631 = vadd.f32 %v553, %v615
  %v632 = vadd.f32 %v558, %v616
  %v633 = vadd.f32 %v561, %v617
  %v634 = vadd.f32 %v566, %v618
  %v635 = vadd.f32 %v569, %v619
  %v636 = vmul.f32 %v620, 0.7978846
  %v637 = vmul.f32 %v621, 0.7978846
  %v638 = vmul.f32 %v622, 0.7978846
  %v639 = vmul.f32 %v623, 0.7978846
  %v640 = vmul.f32 %v624, 0.7978846
  %v641 = vmul.f32 %v625, 0.7978846
  %v642 = vmul.f32 %v626, 0.7978846
  %v643 = vmul.f32 %v627, 0.7978846
  %v644 = vmul.f32 %v628, 0.7978846
  %v645 = vmul.f32 %v629, 0.7978846
  %v646 = vmul.f32 %v630, 0.7978846
  %v647 = vmul.f32 %v631, 0.7978846
  %v648 = vmul.f32 %v632, 0.7978846
  %v649 = vmul.f32 %v633, 0.7978846
  %v650 = vmul.f32 %v634, 0.7978846
  %v651 = vmul.f32 %v635, 0.7978846
  %v652 = vtanh.pop %v636
  %v653 = vtanh.pop %v637
  %v654 = vtanh.pop %v638
  %v655 = vtanh.pop %v639
  %v656 = vtanh.pop %v640
  %v657 = vtanh.pop %v641
  %v658 = vtanh.pop %v642
  %v659 = vtanh.pop %v643
  %v660 = vtanh.pop %v644
  %v661 = vtanh.pop %v645
  %v662 = vtanh.pop %v646
  %v663 = vtanh.pop %v647
  %v664 = vtanh.pop %v648
  %v665 = vtanh.pop %v649
  %v666 = vtanh.pop %v650
  %v667 = vtanh.pop %v651
  %v668 = vadd.f32 %v652, 1.0
  %v669 = vadd.f32 %v653, 1.0
  %v670 = vadd.f32 %v654, 1.0
  %v671 = vadd.f32 %v655, 1.0
  %v672 = vadd.f32 %v656, 1.0
  %v673 = vadd.f32 %v657, 1.0
  %v674 = vadd.f32 %v658, 1.0
  %v675 = vadd.f32 %v659, 1.0
  %v676 = vadd.f32 %v660, 1.0
  %v677 = vadd.f32 %v661, 1.0
  %v678 = vadd.f32 %v662, 1.0
  %v679 = vadd.f32 %v663, 1.0
  %v680 = vadd.f32 %v664, 1.0
  %v681 = vadd.f32 %v665, 1.0
  %v682 = vadd.f32 %v666, 1.0
  %v683 = vadd.f32 %v667, 1.0
  %v684 = vmul.f32 %v668, 0.5
  %v685 = vmul.f32 %v669, 0.5
  %v686 = vmul.f32 %v670, 0.5
  %v687 = vmul.f32 %v671, 0.5
  %v688 = vmul.f32 %v672, 0.5
  %v689 = vmul.f32 %v673, 0.5
  %v690 = vmul.f32 %v674, 0.5
  %v691 = vmul.f32 %v675, 0.5
  %v692 = vmul.f32 %v676, 0.5
  %v693 = vmul.f32 %v677, 0.5
  %v694 = vmul.f32 %v678, 0.5
  %v695 = vmul.f32 %v679, 0.5
  %v696 = vmul.f32 %v680, 0.5
  %v697 = vmul.f32 %v681, 0.5
  %v698 = vmul.f32 %v682, 0.5
  %v699 = vmul.f32 %v683, 0.5
  %v700 = vmul.f32 %v510, %v684
  %v701 = vmul.f32 %v513, %v685
  %v702 = vmul.f32 %v518, %v686
  %v703 = vmul.f32 %v521, %v687
  %v704 = vmul.f32 %v526, %v688
  %v705 = vmul.f32 %v529, %v689
  %v706 = vmul.f32 %v534, %v690
  %v707 = vmul.f32 %v537, %v691
  %v708 = vmul.f32 %v542, %v692
  %v709 = vmul.f32 %v545, %v693
  %v710 = vmul.f32 %v550, %v694
  %v711 = vmul.f32 %v553, %v695
  %v712 = vmul.f32 %v558, %v696
  %v713 = vmul.f32 %v561, %v697
  %v714 = vmul.f32 %v566, %v698
  %v715 = vmul.f32 %v569, %v699
  %v716 = vpack.c.bf16 %v701, %v700
  %v717 = vpack.c.bf16 %v703, %v702
  %v718 = vpack.c.bf16 %v705, %v704
  %v719 = vpack.c.bf16 %v707, %v706
  %v720 = vpack.c.bf16 %v709, %v708
  %v721 = vpack.c.bf16 %v711, %v710
  %v722 = vpack.c.bf16 %v713, %v712
  %v723 = vpack.c.bf16 %v715, %v714
  %v724 = vld [vmem:[%s5] sm:$0xf]
  %v725 = vld [vmem:[%s5 + $0x4] sm:$0xf]
  %v726 = vld [vmem:[%s5 + $0x8] sm:$0xf]
  %v727 = vld [vmem:[%s5 + $0xc] sm:$0xf]
  %v728 = vld [vmem:[%s5 + $0x10] sm:$0xf]
  %v729 = vld [vmem:[%s5 + $0x14] sm:$0xf]
  %v730 = vld [vmem:[%s5 + $0x18] sm:$0xf]
  %v731 = vld [vmem:[%s5 + $0x1c] sm:$0xf]
  %v732 = vld [vmem:[%s5 + $0x20] sm:$0xf]
  %v733 = vld [vmem:[%s5 + $0x24] sm:$0xf]
  %v734 = vld [vmem:[%s5 + $0x28] sm:$0xf]
  %v735 = vld [vmem:[%s5 + $0x2c] sm:$0xf]
  %v736 = vld [vmem:[%s5 + $0x30] sm:$0xf]
  %v737 = vld [vmem:[%s5 + $0x34] sm:$0xf]
  %v738 = vld [vmem:[%s5 + $0x38] sm:$0xf]
  %v739 = vld [vmem:[%s5 + $0x3c] sm:$0xf]
  %v740 = vld [vmem:[%s6] sm:$0x1]
  %v742 = vlaneseq
  %v743 = vshrl.u32 %v742, 7
  %v744 = vsub.s32 0, %v743
  %v745 = vrot.slane %v740, %v744
  %v763 = vunpack.c.l.b16 %v724
  %v764 = vunpack.c.l.b16 %v725
  %v765 = vunpack.c.l.b16 %v726
  %v766 = vunpack.c.l.b16 %v727
  %v767 = vunpack.c.l.b16 %v728
  %v768 = vunpack.c.l.b16 %v729
  %v769 = vunpack.c.l.b16 %v730
  %v770 = vunpack.c.l.b16 %v731
  %v771 = vunpack.c.l.b16 %v732
  %v772 = vunpack.c.l.b16 %v733
  %v773 = vunpack.c.l.b16 %v734
  %v774 = vunpack.c.l.b16 %v735
  %v775 = vunpack.c.l.b16 %v736
  %v776 = vunpack.c.l.b16 %v737
  %v777 = vunpack.c.l.b16 %v738
  %v778 = vunpack.c.l.b16 %v739
  %v779 = vpack.c.b16 %v764, %v763
  %v780 = vpack.c.b16 %v766, %v765
  %v781 = vpack.c.b16 %v768, %v767
  %v782 = vpack.c.b16 %v770, %v769
  %v783 = vpack.c.b16 %v772, %v771
  %v784 = vpack.c.b16 %v774, %v773
  %v785 = vpack.c.b16 %v776, %v775
  %v786 = vpack.c.b16 %v778, %v777
  %795 = vmatprep.subr.bf16.mxu0 0
  %796 = vmatpush1.bf16.msra.mxu0 %v779
  %797 = vmatprep.subr.bf16.mxu0 0
  %798 = vmatpush1.bf16.msra.mxu0 %v780
  %799 = vmatprep.subr.bf16.mxu0 0
  %800 = vmatpush1.bf16.msra.mxu0 %v781
  %801 = vmatprep.subr.bf16.mxu0 0
  %802 = vmatpush1.bf16.msra.mxu0 %v782
  %803 = vmatprep.subr.bf16.mxu0 0
  %804 = vmatpush1.bf16.msra.mxu0 %v783
  %805 = vmatprep.subr.bf16.mxu0 0
  %806 = vmatpush1.bf16.msra.mxu0 %v784
  %807 = vmatprep.subr.bf16.mxu0 0
  %808 = vmatpush1.bf16.msra.mxu0 %v785
  %809 = vmatprep.subr.bf16.mxu0 0
  %810 = vmatpush1.bf16.msra.mxu0 %v786
  %811 = vmatprep.subr.bf16.mxu0 0
  %812 = vmatpush1.bf16.msra.mxu0 0
  %813 = vmatprep.subr.bf16.mxu0 0
  %814 = vmatpush1.bf16.msra.mxu0 0
  %815 = vmatprep.subr.bf16.mxu0 0
  %816 = vmatpush1.bf16.msra.mxu0 0
  %817 = vmatprep.subr.bf16.mxu0 0
  %818 = vmatpush1.bf16.msra.mxu0 0
  %819 = vmatprep.subr.bf16.mxu0 0
  %820 = vmatpush1.bf16.msra.mxu0 0
  %821 = vmatprep.subr.bf16.mxu0 0
  %822 = vmatpush1.bf16.msra.mxu0 0
  %823 = vmatprep.subr.bf16.mxu0 0
  %824 = vmatpush1.bf16.msra.mxu0 0
  %825 = vmatprep.subr.bf16.mxu0 0
  %826 = vmatpush1.bf16.msra.mxu0 0
  %827 = vmatprep.mubr.bf16.mxu0 0
  %828 = vmatmul.mubr.bf16.gmra.mrb[0].mxu0 %v716
  %v829 = vpop.f32.mrb[0].mxu0
  %v830 = vadd.f32 %v745, %v829
  %v831 = vpop.f32.mrb[0].mxu0
  %v832 = vpop.f32.mrb[0].mxu0
  %v833 = vadd.f32 %v745, %v832
  %v834 = vpop.f32.mrb[0].mxu0
  %835 = vmatprep.mubr.bf16.mxu0 0
  %836 = vmatmul.mubr.bf16.gmra.mrb[0].mxu0 %v717
  %v837 = vpop.f32.mrb[0].mxu0
  %v838 = vadd.f32 %v745, %v837
  %v839 = vpop.f32.mrb[0].mxu0
  %v840 = vpop.f32.mrb[0].mxu0
  %v841 = vadd.f32 %v745, %v840
  %v842 = vpop.f32.mrb[0].mxu0
  %843 = vmatprep.mubr.bf16.mxu0 0
  %844 = vmatmul.mubr.bf16.gmra.mrb[0].mxu0 %v718
  %v845 = vpop.f32.mrb[0].mxu0
  %v846 = vadd.f32 %v745, %v845
  %v847 = vpop.f32.mrb[0].mxu0
  %v848 = vpop.f32.mrb[0].mxu0
  %v849 = vadd.f32 %v745, %v848
  %v850 = vpop.f32.mrb[0].mxu0
  %851 = vmatprep.mubr.bf16.mxu0 0
  %852 = vmatmul.mubr.bf16.gmra.mrb[0].mxu0 %v719
  %v853 = vpop.f32.mrb[0].mxu0
  %v854 = vadd.f32 %v745, %v853
  %v855 = vpop.f32.mrb[0].mxu0
  %v856 = vpop.f32.mrb[0].mxu0
  %v857 = vadd.f32 %v745, %v856
  %v858 = vpop.f32.mrb[0].mxu0
  %859 = vmatprep.mubr.bf16.mxu0 0
  %860 = vmatmul.mubr.bf16.gmra.mrb[0].mxu0 %v720
  %v861 = vpop.f32.mrb[0].mxu0
  %v862 = vadd.f32 %v745, %v861
  %v863 = vpop.f32.mrb[0].mxu0
  %v864 = vpop.f32.mrb[0].mxu0
  %v865 = vadd.f32 %v745, %v864
  %v866 = vpop.f32.mrb[0].mxu0
  %867 = vmatprep.mubr.bf16.mxu0 0
  %868 = vmatmul.mubr.bf16.gmra.mrb[0].mxu0 %v721
  %v869 = vpop.f32.mrb[0].mxu0
  %v870 = vadd.f32 %v745, %v869
  %v871 = vpop.f32.mrb[0].mxu0
  %v872 = vpop.f32.mrb[0].mxu0
  %v873 = vadd.f32 %v745, %v872
  %v874 = vpop.f32.mrb[0].mxu0
  %875 = vmatprep.mubr.bf16.mxu0 0
  %876 = vmatmul.mubr.bf16.gmra.mrb[0].mxu0 %v722
  %v877 = vpop.f32.mrb[0].mxu0
  %v878 = vadd.f32 %v745, %v877
  %v879 = vpop.f32.mrb[0].mxu0
  %v880 = vpop.f32.mrb[0].mxu0
  %v881 = vadd.f32 %v745, %v880
  %v882 = vpop.f32.mrb[0].mxu0
  %883 = vmatprep.mubr.bf16.mxu0 0
  %884 = vmatmul.mubr.bf16.gmra.mrb[0].mxu0 %v723
  %v885 = vpop.f32.mrb[0].mxu0
  %v886 = vadd.f32 %v745, %v885
  %v887 = vpop.f32.mrb[0].mxu0
  %v888 = vpop.f32.mrb[0].mxu0
  %v889 = vadd.f32 %v745, %v888
  %v890 = vpop.f32.mrb[0].mxu0
  %891 = vdwg.mxu0
  %v892 = vadd.f32 %v380, %v830
  %v893 = vadd.f32 %v381, %v833
  %v894 = vadd.f32 %v382, %v838
  %v895 = vadd.f32 %v383, %v841
  %v896 = vadd.f32 %v384, %v846
  %v897 = vadd.f32 %v385, %v849
  %v898 = vadd.f32 %v386, %v854
  %v899 = vadd.f32 %v387, %v857
  %v900 = vadd.f32 %v388, %v862
  %v901 = vadd.f32 %v389, %v865
  %v902 = vadd.f32 %v390, %v870
  %v903 = vadd.f32 %v391, %v873
  %v904 = vadd.f32 %v392, %v878
  %v905 = vadd.f32 %v393, %v881
  %v906 = vadd.f32 %v394, %v886
  %v907 = vadd.f32 %v395, %v889
  %v908 = vpack.c.bf16 %v893, %v892
  %v909 = vpack.c.bf16 %v895, %v894
  %v910 = vpack.c.bf16 %v897, %v896
  %v911 = vpack.c.bf16 %v899, %v898
  %v912 = vpack.c.bf16 %v901, %v900
  %v913 = vpack.c.bf16 %v903, %v902
  %v914 = vpack.c.bf16 %v905, %v904
  %v915 = vpack.c.bf16 %v907, %v906
  %v924 = vunpack.c.l.b16 %v908
  %v925 = vunpack.c.h.b16 %v908
  %v926 = vunpack.c.l.b16 %v909
  %v927 = vunpack.c.h.b16 %v909
  %v928 = vunpack.c.l.b16 %v910
  %v929 = vunpack.c.h.b16 %v910
  %v930 = vunpack.c.l.b16 %v911
  %v931 = vunpack.c.h.b16 %v911
  %v932 = vunpack.c.l.b16 %v912
  %v933 = vunpack.c.h.b16 %v912
  %v934 = vunpack.c.l.b16 %v913
  %v935 = vunpack.c.h.b16 %v913
  %v936 = vunpack.c.l.b16 %v914
  %v937 = vunpack.c.h.b16 %v914
  %v938 = vunpack.c.l.b16 %v915
  %v939 = vunpack.c.h.b16 %v915
  %v940 = vpack.c.b16 %v924, %v924
  %v941 = vpack.c.b16 %v925, %v925
  %v942 = vpack.c.b16 %v926, %v926
  %v943 = vpack.c.b16 %v927, %v927
  %v944 = vpack.c.b16 %v928, %v928
  %v945 = vpack.c.b16 %v929, %v929
  %v946 = vpack.c.b16 %v930, %v930
  %v947 = vpack.c.b16 %v931, %v931
  %v948 = vpack.c.b16 %v932, %v932
  %v949 = vpack.c.b16 %v933, %v933
  %v950 = vpack.c.b16 %v934, %v934
  %v951 = vpack.c.b16 %v935, %v935
  %v952 = vpack.c.b16 %v936, %v936
  %v953 = vpack.c.b16 %v937, %v937
  %v954 = vpack.c.b16 %v938, %v938
  %v955 = vpack.c.b16 %v939, %v939
  %vm972 = vcmask 257024
  %973 = vst.msk [vmem:[%s9] sm:$0xf] %vm972, %v940
  %974 = vst.msk [vmem:[%s9 + $0x4] sm:$0xf] %vm972, %v941
  %975 = vst.msk [vmem:[%s9 + $0x8] sm:$0xf] %vm972, %v942
  %976 = vst.msk [vmem:[%s9 + $0xc] sm:$0xf] %vm972, %v943
  %977 = vst.msk [vmem:[%s9 + $0x10] sm:$0xf] %vm972, %v944
  %978 = vst.msk [vmem:[%s9 + $0x14] sm:$0xf] %vm972, %v945
  %979 = vst.msk [vmem:[%s9 + $0x18] sm:$0xf] %vm972, %v946
  %980 = vst.msk [vmem:[%s9 + $0x1c] sm:$0xf] %vm972, %v947
  %981 = vst.msk [vmem:[%s9 + $0x20] sm:$0xf] %vm972, %v948
  %982 = vst.msk [vmem:[%s9 + $0x24] sm:$0xf] %vm972, %v949
  %983 = vst.msk [vmem:[%s9 + $0x28] sm:$0xf] %vm972, %v950
  %984 = vst.msk [vmem:[%s9 + $0x2c] sm:$0xf] %vm972, %v951
  %985 = vst.msk [vmem:[%s9 + $0x30] sm:$0xf] %vm972, %v952
  %986 = vst.msk [vmem:[%s9 + $0x34] sm:$0xf] %vm972, %v953
  %987 = vst.msk [vmem:[%s9 + $0x38] sm:$0xf] %vm972, %v954
  %988 = vst.msk [vmem:[%s9 + $0x3c] sm:$0xf] %vm972, %v955
  %v989 = vld [vmem:[%s7] sm:$0xf]
  %v990 = vld [vmem:[%s7 + $0x4] sm:$0xf]
  %v991 = vld [vmem:[%s7 + $0x8] sm:$0xf]
  %v992 = vld [vmem:[%s7 + $0xc] sm:$0xf]
  %v993 = vld [vmem:[%s7 + $0x10] sm:$0xf]
  %v994 = vld [vmem:[%s7 + $0x14] sm:$0xf]
  %v995 = vld [vmem:[%s7 + $0x18] sm:$0xf]
  %v996 = vld [vmem:[%s7 + $0x1c] sm:$0xf]
  %v997 = vld [vmem:[%s7 + $0x20] sm:$0xf]
  %v998 = vld [vmem:[%s7 + $0x24] sm:$0xf]
  %v999 = vld [vmem:[%s7 + $0x28] sm:$0xf]
  %v1000 = vld [vmem:[%s7 + $0x2c] sm:$0xf]
  %v1001 = vld [vmem:[%s7 + $0x30] sm:$0xf]
  %v1002 = vld [vmem:[%s7 + $0x34] sm:$0xf]
  %v1003 = vld [vmem:[%s7 + $0x38] sm:$0xf]
  %v1004 = vld [vmem:[%s7 + $0x3c] sm:$0xf]
  %v1005 = vld [vmem:[%s8] sm:$0x1]
  %v1007 = vlaneseq
  %v1008 = vshrl.u32 %v1007, 7
  %v1009 = vsub.s32 0, %v1008
  %v1010 = vrot.slane %v1005, %v1009
  %v1028 = vunpack.c.l.b16 %v989
  %v1029 = vunpack.c.l.b16 %v990
  %v1030 = vunpack.c.l.b16 %v991
  %v1031 = vunpack.c.l.b16 %v992
  %v1032 = vunpack.c.l.b16 %v993
  %v1033 = vunpack.c.l.b16 %v994
  %v1034 = vunpack.c.l.b16 %v995
  %v1035 = vunpack.c.l.b16 %v996
  %v1036 = vunpack.c.l.b16 %v997
  %v1037 = vunpack.c.l.b16 %v998
  %v1038 = vunpack.c.l.b16 %v999
  %v1039 = vunpack.c.l.b16 %v1000
  %v1040 = vunpack.c.l.b16 %v1001
  %v1041 = vunpack.c.l.b16 %v1002
  %v1042 = vunpack.c.l.b16 %v1003
  %v1043 = vunpack.c.l.b16 %v1004
  %v1044 = vpack.c.b16 %v1029, %v1028
  %v1045 = vpack.c.b16 %v1031, %v1030
  %v1046 = vpack.c.b16 %v1033, %v1032
  %v1047 = vpack.c.b16 %v1035, %v1034
  %v1048 = vpack.c.b16 %v1037, %v1036
  %v1049 = vpack.c.b16 %v1039, %v1038
  %v1050 = vpack.c.b16 %v1041, %v1040
  %v1051 = vpack.c.b16 %v1043, %v1042
  %1060 = vmatprep.subr.bf16.mxu0 0
  %1061 = vmatpush1.bf16.msra.mxu0 %v1044
  %1062 = vmatprep.subr.bf16.mxu0 0
  %1063 = vmatpush1.bf16.msra.mxu0 %v1045
  %1064 = vmatprep.subr.bf16.mxu0 0
  %1065 = vmatpush1.bf16.msra.mxu0 %v1046
  %1066 = vmatprep.subr.bf16.mxu0 0
  %1067 = vmatpush1.bf16.msra.mxu0 %v1047
  %1068 = vmatprep.subr.bf16.mxu0 0
  %1069 = vmatpush1.bf16.msra.mxu0 %v1048
  %1070 = vmatprep.subr.bf16.mxu0 0
  %1071 = vmatpush1.bf16.msra.mxu0 %v1049
  %1072 = vmatprep.subr.bf16.mxu0 0
  %1073 = vmatpush1.bf16.msra.mxu0 %v1050
  %1074 = vmatprep.subr.bf16.mxu0 0
  %1075 = vmatpush1.bf16.msra.mxu0 %v1051
  %1076 = vmatprep.subr.bf16.mxu0 0
  %1077 = vmatpush1.bf16.msra.mxu0 0
  %1078 = vmatprep.subr.bf16.mxu0 0
  %1079 = vmatpush1.bf16.msra.mxu0 0
  %1080 = vmatprep.subr.bf16.mxu0 0
  %1081 = vmatpush1.bf16.msra.mxu0 0
  %1082 = vmatprep.subr.bf16.mxu0 0
  %1083 = vmatpush1.bf16.msra.mxu0 0
  %1084 = vmatprep.subr.bf16.mxu0 0
  %1085 = vmatpush1.bf16.msra.mxu0 0
  %1086 = vmatprep.subr.bf16.mxu0 0
  %1087 = vmatpush1.bf16.msra.mxu0 0
  %1088 = vmatprep.subr.bf16.mxu0 0
  %1089 = vmatpush1.bf16.msra.mxu0 0
  %1090 = vmatprep.subr.bf16.mxu0 0
  %1091 = vmatpush1.bf16.msra.mxu0 0
  %1092 = vmatprep.mubr.bf16.mxu0 0
  %1093 = vmatmul.mubr.bf16.gmra.mrb[0].mxu0 %v908
  %v1094 = vpop.f32.mrb[0].mxu0
  %v1095 = vadd.f32 %v1010, %v1094
  %v1096 = vpop.f32.mrb[0].mxu0
  %v1097 = vpop.f32.mrb[0].mxu0
  %v1098 = vadd.f32 %v1010, %v1097
  %v1099 = vpop.f32.mrb[0].mxu0
  %1100 = vmatprep.mubr.bf16.mxu0 0
  %1101 = vmatmul.mubr.bf16.gmra.mrb[0].mxu0 %v909
  %v1102 = vpop.f32.mrb[0].mxu0
  %v1103 = vadd.f32 %v1010, %v1102
  %v1104 = vpop.f32.mrb[0].mxu0
  %v1105 = vpop.f32.mrb[0].mxu0
  %v1106 = vadd.f32 %v1010, %v1105
  %v1107 = vpop.f32.mrb[0].mxu0
  %1108 = vmatprep.mubr.bf16.mxu0 0
  %1109 = vmatmul.mubr.bf16.gmra.mrb[0].mxu0 %v910
  %v1110 = vpop.f32.mrb[0].mxu0
  %v1111 = vadd.f32 %v1010, %v1110
  %v1112 = vpop.f32.mrb[0].mxu0
  %v1113 = vpop.f32.mrb[0].mxu0
  %v1114 = vadd.f32 %v1010, %v1113
  %v1115 = vpop.f32.mrb[0].mxu0
  %1116 = vmatprep.mubr.bf16.mxu0 0
  %1117 = vmatmul.mubr.bf16.gmra.mrb[0].mxu0 %v911
  %v1118 = vpop.f32.mrb[0].mxu0
  %v1119 = vadd.f32 %v1010, %v1118
  %v1120 = vpop.f32.mrb[0].mxu0
  %v1121 = vpop.f32.mrb[0].mxu0
  %v1122 = vadd.f32 %v1010, %v1121
  %v1123 = vpop.f32.mrb[0].mxu0
  %1124 = vmatprep.mubr.bf16.mxu0 0
  %1125 = vmatmul.mubr.bf16.gmra.mrb[0].mxu0 %v912
  %v1126 = vpop.f32.mrb[0].mxu0
  %v1127 = vadd.f32 %v1010, %v1126
  %v1128 = vpop.f32.mrb[0].mxu0
  %v1129 = vpop.f32.mrb[0].mxu0
  %v1130 = vadd.f32 %v1010, %v1129
  %v1131 = vpop.f32.mrb[0].mxu0
  %1132 = vmatprep.mubr.bf16.mxu0 0
  %1133 = vmatmul.mubr.bf16.gmra.mrb[0].mxu0 %v913
  %v1134 = vpop.f32.mrb[0].mxu0
  %v1135 = vadd.f32 %v1010, %v1134
  %v1136 = vpop.f32.mrb[0].mxu0
  %v1137 = vpop.f32.mrb[0].mxu0
  %v1138 = vadd.f32 %v1010, %v1137
  %v1139 = vpop.f32.mrb[0].mxu0
  %1140 = vmatprep.mubr.bf16.mxu0 0
  %1141 = vmatmul.mubr.bf16.gmra.mrb[0].mxu0 %v914
  %v1142 = vpop.f32.mrb[0].mxu0
  %v1143 = vadd.f32 %v1010, %v1142
  %v1144 = vpop.f32.mrb[0].mxu0
  %v1145 = vpop.f32.mrb[0].mxu0
  %v1146 = vadd.f32 %v1010, %v1145
  %v1147 = vpop.f32.mrb[0].mxu0
  %1148 = vmatprep.mubr.bf16.mxu0 0
  %1149 = vmatmul.mubr.bf16.gmra.mrb[0].mxu0 %v915
  %v1150 = vpop.f32.mrb[0].mxu0
  %v1151 = vadd.f32 %v1010, %v1150
  %v1152 = vpop.f32.mrb[0].mxu0
  %v1153 = vpop.f32.mrb[0].mxu0
  %v1154 = vadd.f32 %v1010, %v1153
  %v1155 = vpop.f32.mrb[0].mxu0
  %1156 = vdwg.mxu0
  %v1157 = vpack.c.bf16 %v1098, %v1095
  %v1158 = vpack.c.bf16 %v1106, %v1103
  %v1159 = vpack.c.bf16 %v1114, %v1111
  %v1160 = vpack.c.bf16 %v1122, %v1119
  %v1161 = vpack.c.bf16 %v1130, %v1127
  %v1162 = vpack.c.bf16 %v1138, %v1135
  %v1163 = vpack.c.bf16 %v1146, %v1143
  %v1164 = vpack.c.bf16 %v1154, %v1151
  %v1173 = vunpack.c.l.b16 %v1157
  %v1174 = vunpack.c.h.b16 %v1157
  %v1175 = vunpack.c.l.b16 %v1158
  %v1176 = vunpack.c.h.b16 %v1158
  %v1177 = vunpack.c.l.b16 %v1159
  %v1178 = vunpack.c.h.b16 %v1159
  %v1179 = vunpack.c.l.b16 %v1160
  %v1180 = vunpack.c.h.b16 %v1160
  %v1181 = vunpack.c.l.b16 %v1161
  %v1182 = vunpack.c.h.b16 %v1161
  %v1183 = vunpack.c.l.b16 %v1162
  %v1184 = vunpack.c.h.b16 %v1162
  %v1185 = vunpack.c.l.b16 %v1163
  %v1186 = vunpack.c.h.b16 %v1163
  %v1187 = vunpack.c.l.b16 %v1164
  %v1188 = vunpack.c.h.b16 %v1164
  %v1189 = vpack.c.b16 %v1173, %v1173
  %v1190 = vpack.c.b16 %v1174, %v1174
  %v1191 = vpack.c.b16 %v1175, %v1175
  %v1192 = vpack.c.b16 %v1176, %v1176
  %v1193 = vpack.c.b16 %v1177, %v1177
  %v1194 = vpack.c.b16 %v1178, %v1178
  %v1195 = vpack.c.b16 %v1179, %v1179
  %v1196 = vpack.c.b16 %v1180, %v1180
  %v1197 = vpack.c.b16 %v1181, %v1181
  %v1198 = vpack.c.b16 %v1182, %v1182
  %v1199 = vpack.c.b16 %v1183, %v1183
  %v1200 = vpack.c.b16 %v1184, %v1184
  %v1201 = vpack.c.b16 %v1185, %v1185
  %v1202 = vpack.c.b16 %v1186, %v1186
  %v1203 = vpack.c.b16 %v1187, %v1187
  %v1204 = vpack.c.b16 %v1188, %v1188
  %vm1221 = vcmask 519168
  %1222 = vst.msk [vmem:[%s10] sm:$0xf] %vm1221, %v1189
  %1223 = vst.msk [vmem:[%s10 + $0x4] sm:$0xf] %vm1221, %v1190
  %1224 = vst.msk [vmem:[%s10 + $0x8] sm:$0xf] %vm1221, %v1191
  %1225 = vst.msk [vmem:[%s10 + $0xc] sm:$0xf] %vm1221, %v1192
  %1226 = vst.msk [vmem:[%s10 + $0x10] sm:$0xf] %vm1221, %v1193
  %1227 = vst.msk [vmem:[%s10 + $0x14] sm:$0xf] %vm1221, %v1194
  %1228 = vst.msk [vmem:[%s10 + $0x18] sm:$0xf] %vm1221, %v1195
  %1229 = vst.msk [vmem:[%s10 + $0x1c] sm:$0xf] %vm1221, %v1196
  %1230 = vst.msk [vmem:[%s10 + $0x20] sm:$0xf] %vm1221, %v1197
  %1231 = vst.msk [vmem:[%s10 + $0x24] sm:$0xf] %vm1221, %v1198
  %1232 = vst.msk [vmem:[%s10 + $0x28] sm:$0xf] %vm1221, %v1199
  %1233 = vst.msk [vmem:[%s10 + $0x2c] sm:$0xf] %vm1221, %v1200
  %1234 = vst.msk [vmem:[%s10 + $0x30] sm:$0xf] %vm1221, %v1201
  %1235 = vst.msk [vmem:[%s10 + $0x34] sm:$0xf] %vm1221, %v1202
  %1236 = vst.msk [vmem:[%s10 + $0x38] sm:$0xf] %vm1221, %v1203
  %1237 = vst.msk [vmem:[%s10 + $0x3c] sm:$0xf] %vm1221, %v1204
  // Predicated region
  $region38: #{trans4pass_forward.6} parent=0 // pred_check
    _
  $region39: #{trans4pass_forward.6} parent=0 // pred_check_branch
    %1239 = sbr.rel (0) target = $region41
  $region40: #{trans4pass_forward.6} parent=0 // pred_region
    _
  $region41: #{trans4pass_forward.6} parent=0 // pred_fallthru
    _
  // Predicated region
  $region42: #{trans4pass_forward.6} parent=0 // pred_check
    _
  $region43: #{trans4pass_forward.6} parent=0 // pred_check_branch
    %1241 = sbr.rel (0) target = $region45
  $region44: #{trans4pass_forward.6} parent=0 // pred_region
    _
  $region45: #{trans4pass_forward.6} parent=0 // pred_fallthru
    _
  // Predicated region
  $region46: #{trans4pass_forward.6} parent=0 // pred_check
    _
  $region47: #{trans4pass_forward.6} parent=0 // pred_check_branch
    %1243 = sbr.rel (0) target = $region49
  $region48: #{trans4pass_forward.6} parent=0 // pred_region
    _
  $region49: #{trans4pass_forward.6} parent=0 // pred_fallthru
    _
  // Predicated region
  $region50: #{trans4pass_forward.6} parent=0 // pred_check
    _
  $region51: #{trans4pass_forward.6} parent=0 // pred_check_branch
    %1245 = sbr.rel (0) target = $region53
  $region52: #{trans4pass_forward.6} parent=0 // pred_region
    _
  $region53: #{trans4pass_forward.6} parent=0 // pred_fallthru
    _

// kernel: trans4pass_forward.7
$region0: #{trans4pass_forward.7}
  #allocation0 [shape = 'u32[]', space=smem, size = 0x4, offset = 0x4, fixed_abs, tag = 'smem constant byte address 0x4 - core index']
  #allocation1 [shape = 'u32[144,128]{1,0:T(1,128)}', space=vmem, size = 0x12000, scoped, tag = 'internal scratch']
  %s0 = inlined_call_operand.vmem [shape: bf16[32,128], index: 0, kind: input, shape index: {}]
  %s1 = inlined_call_operand.vmem [shape: bf16[128,128], index: 1, kind: input, shape index: {}]
  %s2 = inlined_call_operand.vmem [shape: f32[1,128], index: 2, kind: input, shape index: {}, may-alias: {2,6}]
  %s3 = inlined_call_operand.vmem [shape: bf16[128,256], index: 3, kind: input, shape index: {}]
  %s4 = inlined_call_operand.vmem [shape: f32[1,256], index: 4, kind: input, shape index: {}]
  %s5 = inlined_call_operand.vmem [shape: bf16[256,128], index: 5, kind: input, shape index: {}]
  %s6 = inlined_call_operand.vmem [shape: f32[1,128], index: 6, kind: input, shape index: {}, may-alias: {2,6}]
  %s7 = inlined_call_operand.vmem [shape: bf16[128,64], index: 7, kind: input, shape index: {}]
  %s8 = inlined_call_operand.vmem [shape: f32[1,64], index: 8, kind: input, shape index: {}]
  %s9 = inlined_call_operand.vmem [shape: bf16[32,64], index: 9, kind: output, shape index: {0}]
  %s10 = inlined_call_operand.vmem [shape: bf16[32,64], index: 10, kind: output, shape index: {1}]
  %11 = xla_tuple %s9, %s10
  %s12 = sld [smem:[#allocation0]]
  $region54: #{trans4pass_forward.7} parent=0
    _
  %s14 = ssub.s32 1, %s12
  %s15 = scalar_select 0, %s14, %s12
  // Predicated region
  $region2: #{trans4pass_forward.7} parent=0 // pred_check
    _
  $region3: #{trans4pass_forward.7} parent=0 // pred_check_branch
    %17 = sbr.rel (0) target = $region5
  $region4: #{trans4pass_forward.7} parent=0 // pred_region
    _
  $region5: #{trans4pass_forward.7} parent=0 // pred_fallthru
    _
  // Predicated region
  $region6: #{trans4pass_forward.7} parent=0 // pred_check
    _
  $region7: #{trans4pass_forward.7} parent=0 // pred_check_branch
    %19 = sbr.rel (0) target = $region9
  $region8: #{trans4pass_forward.7} parent=0 // pred_region
    _
  $region9: #{trans4pass_forward.7} parent=0 // pred_fallthru
    _
  // Predicated region
  $region10: #{trans4pass_forward.7} parent=0 // pred_check
    _
  $region11: #{trans4pass_forward.7} parent=0 // pred_check_branch
    %21 = sbr.rel (0) target = $region13
  $region12: #{trans4pass_forward.7} parent=0 // pred_region
    _
  $region13: #{trans4pass_forward.7} parent=0 // pred_fallthru
    _
  // Predicated region
  $region14: #{trans4pass_forward.7} parent=0 // pred_check
    _
  $region15: #{trans4pass_forward.7} parent=0 // pred_check_branch
    %23 = sbr.rel (0) target = $region17
  $region16: #{trans4pass_forward.7} parent=0 // pred_region
    _
  $region17: #{trans4pass_forward.7} parent=0 // pred_fallthru
    _
  // Predicated region
  $region18: #{trans4pass_forward.7} parent=0 // pred_check
    _
  $region19: #{trans4pass_forward.7} parent=0 // pred_check_branch
    %25 = sbr.rel (0) target = $region21
  $region20: #{trans4pass_forward.7} parent=0 // pred_region
    _
  $region21: #{trans4pass_forward.7} parent=0 // pred_fallthru
    _
  // Predicated region
  $region22: #{trans4pass_forward.7} parent=0 // pred_check
    _
  $region23: #{trans4pass_forward.7} parent=0 // pred_check_branch
    %27 = sbr.rel (0) target = $region25
  $region24: #{trans4pass_forward.7} parent=0 // pred_region
    _
  $region25: #{trans4pass_forward.7} parent=0 // pred_fallthru
    _
  // Predicated region
  $region26: #{trans4pass_forward.7} parent=0 // pred_check
    _
  $region27: #{trans4pass_forward.7} parent=0 // pred_check_branch
    %29 = sbr.rel (0) target = $region29
  $region28: #{trans4pass_forward.7} parent=0 // pred_region
    _
  $region29: #{trans4pass_forward.7} parent=0 // pred_fallthru
    _
  // Predicated region
  $region30: #{trans4pass_forward.7} parent=0 // pred_check
    _
  $region31: #{trans4pass_forward.7} parent=0 // pred_check_branch
    %31 = sbr.rel (0) target = $region33
  $region32: #{trans4pass_forward.7} parent=0 // pred_region
    _
  $region33: #{trans4pass_forward.7} parent=0 // pred_fallthru
    _
  // Predicated region
  $region34: #{trans4pass_forward.7} parent=0 // pred_check
    _
  $region35: #{trans4pass_forward.7} parent=0 // pred_check_branch
    %33 = sbr.rel (0) target = $region37
  $region36: #{trans4pass_forward.7} parent=0 // pred_region
    _
  $region37: #{trans4pass_forward.7} parent=0 // pred_fallthru
    _
  %v35 = vld [vmem:[%s0] sm:$0xf]
  %v36 = vld [vmem:[%s0 + $0x4] sm:$0xf]
  %v37 = vld [vmem:[%s0 + $0x8] sm:$0xf]
  %v38 = vld [vmem:[%s0 + $0xc] sm:$0xf]
  %v39 = vld [vmem:[%s1] sm:$0xf]
  %v40 = vld [vmem:[%s1 + $0x4] sm:$0xf]
  %v41 = vld [vmem:[%s1 + $0x8] sm:$0xf]
  %v42 = vld [vmem:[%s1 + $0xc] sm:$0xf]
  %v43 = vld [vmem:[%s1 + $0x10] sm:$0xf]
  %v44 = vld [vmem:[%s1 + $0x14] sm:$0xf]
  %v45 = vld [vmem:[%s1 + $0x18] sm:$0xf]
  %v46 = vld [vmem:[%s1 + $0x1c] sm:$0xf]
  %v47 = vld [vmem:[%s1 + $0x20] sm:$0xf]
  %v48 = vld [vmem:[%s1 + $0x24] sm:$0xf]
  %v49 = vld [vmem:[%s1 + $0x28] sm:$0xf]
  %v50 = vld [vmem:[%s1 + $0x2c] sm:$0xf]
  %v51 = vld [vmem:[%s1 + $0x30] sm:$0xf]
  %v52 = vld [vmem:[%s1 + $0x34] sm:$0xf]
  %v53 = vld [vmem:[%s1 + $0x38] sm:$0xf]
  %v54 = vld [vmem:[%s1 + $0x3c] sm:$0xf]
  %v55 = vld [vmem:[%s2] sm:$0x1]
  %v57 = vlaneseq
  %v58 = vshrl.u32 %v57, 7
  %v59 = vsub.s32 0, %v58
  %v60 = vrot.slane %v55, %v59
  %v66 = vunpack.c.l.b16 %v35
  %v67 = vunpack.c.l.b16 %v36
  %v68 = vunpack.c.l.b16 %v37
  %v69 = vunpack.c.l.b16 %v38
  %v70 = vpack.c.b16 %v67, %v66
  %v71 = vpack.c.b16 %v69, %v68
  %v90 = vunpack.c.l.b16 %v39
  %v91 = vunpack.c.l.b16 %v40
  %v92 = vunpack.c.l.b16 %v41
  %v93 = vunpack.c.l.b16 %v42
  %v94 = vunpack.c.l.b16 %v43
  %v95 = vunpack.c.l.b16 %v44
  %v96 = vunpack.c.l.b16 %v45
  %v97 = vunpack.c.l.b16 %v46
  %v98 = vunpack.c.l.b16 %v47
  %v99 = vunpack.c.l.b16 %v48
  %v100 = vunpack.c.l.b16 %v49
  %v101 = vunpack.c.l.b16 %v50
  %v102 = vunpack.c.l.b16 %v51
  %v103 = vunpack.c.l.b16 %v52
  %v104 = vunpack.c.l.b16 %v53
  %v105 = vunpack.c.l.b16 %v54
  %v106 = vpack.c.b16 %v91, %v90
  %v107 = vpack.c.b16 %v93, %v92
  %v108 = vpack.c.b16 %v95, %v94
  %v109 = vpack.c.b16 %v97, %v96
  %v110 = vpack.c.b16 %v99, %v98
  %v111 = vpack.c.b16 %v101, %v100
  %v112 = vpack.c.b16 %v103, %v102
  %v113 = vpack.c.b16 %v105, %v104
  %122 = vmatprep.subr.bf16.mxu0 0
  %123 = vmatpush1.bf16.msra.mxu0 %v106
  %124 = vmatprep.subr.bf16.mxu0 0
  %125 = vmatpush1.bf16.msra.mxu0 %v107
  %126 = vmatprep.subr.bf16.mxu0 0
  %127 = vmatpush1.bf16.msra.mxu0 %v108
  %128 = vmatprep.subr.bf16.mxu0 0
  %129 = vmatpush1.bf16.msra.mxu0 %v109
  %130 = vmatprep.subr.bf16.mxu0 0
  %131 = vmatpush1.bf16.msra.mxu0 %v110
  %132 = vmatprep.subr.bf16.mxu0 0
  %133 = vmatpush1.bf16.msra.mxu0 %v111
  %134 = vmatprep.subr.bf16.mxu0 0
  %135 = vmatpush1.bf16.msra.mxu0 %v112
  %136 = vmatprep.subr.bf16.mxu0 0
  %137 = vmatpush1.bf16.msra.mxu0 %v113
  %138 = vmatprep.subr.bf16.mxu0 0
  %139 = vmatpush1.bf16.msra.mxu0 0
  %140 = vmatprep.subr.bf16.mxu0 0
  %141 = vmatpush1.bf16.msra.mxu0 0
  %142 = vmatprep.subr.bf16.mxu0 0
  %143 = vmatpush1.bf16.msra.mxu0 0
  %144 = vmatprep.subr.bf16.mxu0 0
  %145 = vmatpush1.bf16.msra.mxu0 0
  %146 = vmatprep.subr.bf16.mxu0 0
  %147 = vmatpush1.bf16.msra.mxu0 0
  %148 = vmatprep.subr.bf16.mxu0 0
  %149 = vmatpush1.bf16.msra.mxu0 0
  %150 = vmatprep.subr.bf16.mxu0 0
  %151 = vmatpush1.bf16.msra.mxu0 0
  %152 = vmatprep.subr.bf16.mxu0 0
  %153 = vmatpush1.bf16.msra.mxu0 0
  %154 = vmatprep.mubr.bf16.mxu0 0
  %155 = vmatmul.mubr.bf16.gmra.mrb[0].mxu0 %v70
  %v156 = vpop.f32.mrb[0].mxu0
  %v157 = vadd.f32 %v60, %v156
  %v158 = vpop.f32.mrb[0].mxu0
  %v159 = vpop.f32.mrb[0].mxu0
  %v160 = vadd.f32 %v60, %v159
  %v161 = vpop.f32.mrb[0].mxu0
  %162 = vmatprep.mubr.bf16.mxu0 0
  %163 = vmatmul.mubr.bf16.gmra.mrb[0].mxu0 %v71
  %v164 = vpop.f32.mrb[0].mxu0
  %v165 = vadd.f32 %v60, %v164
  %v166 = vpop.f32.mrb[0].mxu0
  %v167 = vpop.f32.mrb[0].mxu0
  %v168 = vadd.f32 %v60, %v167
  %v169 = vpop.f32.mrb[0].mxu0
  %170 = vdwg.mxu0
  %v171 = vmul.f32 %v157, %v157
  %v172 = vmul.f32 %v160, %v160
  %v173 = vmul.f32 %v165, %v165
  %v174 = vmul.f32 %v168, %v168
  %v175 = vmul.f32 %v157, %v171
  %v176 = vmul.f32 %v160, %v172
  %v177 = vmul.f32 %v165, %v173
  %v178 = vmul.f32 %v168, %v174
  %v179 = vmul.f32 %v175, 0.044715
  %v180 = vmul.f32 %v176, 0.044715
  %v181 = vmul.f32 %v177, 0.044715
  %v182 = vmul.f32 %v178, 0.044715
  %v183 = vadd.f32 %v157, %v179
  %v184 = vadd.f32 %v160, %v180
  %v185 = vadd.f32 %v165, %v181
  %v186 = vadd.f32 %v168, %v182
  %v187 = vmul.f32 %v183, 0.7978846
  %v188 = vmul.f32 %v184, 0.7978846
  %v189 = vmul.f32 %v185, 0.7978846
  %v190 = vmul.f32 %v186, 0.7978846
  %v191 = vtanh.pop %v187
  %v192 = vtanh.pop %v188
  %v193 = vtanh.pop %v189
  %v194 = vtanh.pop %v190
  %v195 = vadd.f32 %v191, 1.0
  %v196 = vadd.f32 %v192, 1.0
  %v197 = vadd.f32 %v193, 1.0
  %v198 = vadd.f32 %v194, 1.0
  %v199 = vmul.f32 %v195, 0.5
  %v200 = vmul.f32 %v196, 0.5
  %v201 = vmul.f32 %v197, 0.5
  %v202 = vmul.f32 %v198, 0.5
  %v203 = vmul.f32 %v157, %v199
  %v204 = vmul.f32 %v160, %v200
  %v205 = vmul.f32 %v165, %v201
  %v206 = vmul.f32 %v168, %v202
  %v207 = vpack.c.bf16 %v204, %v203
  %v208 = vpack.c.bf16 %v206, %v205
  %v209 = vld [vmem:[%s3] sm:$0xff]
  %v210 = vld [vmem:[%s3 + $0x8] sm:$0xff]
  %v211 = vld [vmem:[%s3 + $0x10] sm:$0xff]
  %v212 = vld [vmem:[%s3 + $0x18] sm:$0xff]
  %v213 = vld [vmem:[%s3 + $0x20] sm:$0xff]
  %v214 = vld [vmem:[%s3 + $0x28] sm:$0xff]
  %v215 = vld [vmem:[%s3 + $0x30] sm:$0xff]
  %v216 = vld [vmem:[%s3 + $0x38] sm:$0xff]
  %v217 = vld [vmem:[%s3 + $0x40] sm:$0xff]
  %v218 = vld [vmem:[%s3 + $0x48] sm:$0xff]
  %v219 = vld [vmem:[%s3 + $0x50] sm:$0xff]
  %v220 = vld [vmem:[%s3 + $0x58] sm:$0xff]
  %v221 = vld [vmem:[%s3 + $0x60] sm:$0xff]
  %v222 = vld [vmem:[%s3 + $0x68] sm:$0xff]
  %v223 = vld [vmem:[%s3 + $0x70] sm:$0xff]
  %v224 = vld [vmem:[%s3 + $0x78] sm:$0xff]
  %v225 = vld [vmem:[%s4] sm:$0x3]
  %v227 = vlaneseq
  %v228 = vshrl.u32 %v227, 7
  %v229 = vsub.s32 0, %v228
  %v230 = vrot.slane %v225, %v229
  %v231 = vlaneseq
  %v232 = vshrl.u32 %v231, 7
  %v233 = vsub.s32 1, %v232
  %v234 = vrot.slane %v225, %v233
  %v253 = vunpack.c.l.b16 %v209
  %v254 = vunpack.c.h.b16 %v209
  %v255 = vunpack.c.l.b16 %v210
  %v256 = vunpack.c.h.b16 %v210
  %v257 = vunpack.c.l.b16 %v211
  %v258 = vunpack.c.h.b16 %v211
  %v259 = vunpack.c.l.b16 %v212
  %v260 = vunpack.c.h.b16 %v212
  %v261 = vunpack.c.l.b16 %v213
  %v262 = vunpack.c.h.b16 %v213
  %v263 = vunpack.c.l.b16 %v214
  %v264 = vunpack.c.h.b16 %v214
  %v265 = vunpack.c.l.b16 %v215
  %v266 = vunpack.c.h.b16 %v215
  %v267 = vunpack.c.l.b16 %v216
  %v268 = vunpack.c.h.b16 %v216
  %v269 = vunpack.c.l.b16 %v217
  %v270 = vunpack.c.h.b16 %v217
  %v271 = vunpack.c.l.b16 %v218
  %v272 = vunpack.c.h.b16 %v218
  %v273 = vunpack.c.l.b16 %v219
  %v274 = vunpack.c.h.b16 %v219
  %v275 = vunpack.c.l.b16 %v220
  %v276 = vunpack.c.h.b16 %v220
  %v277 = vunpack.c.l.b16 %v221
  %v278 = vunpack.c.h.b16 %v221
  %v279 = vunpack.c.l.b16 %v222
  %v280 = vunpack.c.h.b16 %v222
  %v281 = vunpack.c.l.b16 %v223
  %v282 = vunpack.c.h.b16 %v223
  %v283 = vunpack.c.l.b16 %v224
  %v284 = vunpack.c.h.b16 %v224
  %v285 = vpack.c.b16 %v255, %v253
  %v286 = vpack.c.b16 %v256, %v254
  %v287 = vpack.c.b16 %v259, %v257
  %v288 = vpack.c.b16 %v260, %v258
  %v289 = vpack.c.b16 %v263, %v261
  %v290 = vpack.c.b16 %v264, %v262
  %v291 = vpack.c.b16 %v267, %v265
  %v292 = vpack.c.b16 %v268, %v266
  %v293 = vpack.c.b16 %v271, %v269
  %v294 = vpack.c.b16 %v272, %v270
  %v295 = vpack.c.b16 %v275, %v273
  %v296 = vpack.c.b16 %v276, %v274
  %v297 = vpack.c.b16 %v279, %v277
  %v298 = vpack.c.b16 %v280, %v278
  %v299 = vpack.c.b16 %v283, %v281
  %v300 = vpack.c.b16 %v284, %v282
  %317 = vmatprep.subr.bf16.mxu0 %v286
  %318 = vmatpush1.bf16.msra.mxu0 %v285
  %319 = vmatprep.subr.bf16.mxu0 %v288
  %320 = vmatpush1.bf16.msra.mxu0 %v287
  %321 = vmatprep.subr.bf16.mxu0 %v290
  %322 = vmatpush1.bf16.msra.mxu0 %v289
  %323 = vmatprep.subr.bf16.mxu0 %v292
  %324 = vmatpush1.bf16.msra.mxu0 %v291
  %325 = vmatprep.subr.bf16.mxu0 %v294
  %326 = vmatpush1.bf16.msra.mxu0 %v293
  %327 = vmatprep.subr.bf16.mxu0 %v296
  %328 = vmatpush1.bf16.msra.mxu0 %v295
  %329 = vmatprep.subr.bf16.mxu0 %v298
  %330 = vmatpush1.bf16.msra.mxu0 %v297
  %331 = vmatprep.subr.bf16.mxu0 %v300
  %332 = vmatpush1.bf16.msra.mxu0 %v299
  %333 = vmatprep.subr.bf16.mxu0 0
  %334 = vmatpush1.bf16.msra.mxu0 0
  %335 = vmatprep.subr.bf16.mxu0 0
  %336 = vmatpush1.bf16.msra.mxu0 0
  %337 = vmatprep.subr.bf16.mxu0 0
  %338 = vmatpush1.bf16.msra.mxu0 0
  %339 = vmatprep.subr.bf16.mxu0 0
  %340 = vmatpush1.bf16.msra.mxu0 0
  %341 = vmatprep.subr.bf16.mxu0 0
  %342 = vmatpush1.bf16.msra.mxu0 0
  %343 = vmatprep.subr.bf16.mxu0 0
  %344 = vmatpush1.bf16.msra.mxu0 0
  %345 = vmatprep.subr.bf16.mxu0 0
  %346 = vmatpush1.bf16.msra.mxu0 0
  %347 = vmatprep.subr.bf16.mxu0 0
  %348 = vmatpush1.bf16.msra.mxu0 0
  %349 = vmatprep.mubr.bf16.mxu0 0
  %350 = vmatmul.mubr.bf16.gmra.mrb[0].mxu0 %v207
  %v351 = vpop.f32.mrb[0].mxu0
  %v352 = vadd.f32 %v230, %v351
  %v353 = vpop.f32.mrb[0].mxu0
  %v354 = vadd.f32 %v234, %v353
  %v355 = vpop.f32.mrb[0].mxu0
  %v356 = vadd.f32 %v230, %v355
  %v357 = vpop.f32.mrb[0].mxu0
  %v358 = vadd.f32 %v234, %v357
  %359 = vmatprep.mubr.bf16.mxu0 0
  %360 = vmatmul.mubr.bf16.gmra.mrb[0].mxu0 %v208
  %v361 = vpop.f32.mrb[0].mxu0
  %v362 = vadd.f32 %v230, %v361
  %v363 = vpop.f32.mrb[0].mxu0
  %v364 = vadd.f32 %v234, %v363
  %v365 = vpop.f32.mrb[0].mxu0
  %v366 = vadd.f32 %v230, %v365
  %v367 = vpop.f32.mrb[0].mxu0
  %v368 = vadd.f32 %v234, %v367
  %369 = vdwg.mxu0
  %v370 = vmul.f32 %v352, %v352
  %v371 = vmul.f32 %v354, %v354
  %v372 = vmul.f32 %v356, %v356
  %v373 = vmul.f32 %v358, %v358
  %v374 = vmul.f32 %v362, %v362
  %v375 = vmul.f32 %v364, %v364
  %v376 = vmul.f32 %v366, %v366
  %v377 = vmul.f32 %v368, %v368
  %v378 = vmul.f32 %v352, %v370
  %v379 = vmul.f32 %v354, %v371
  %v380 = vmul.f32 %v356, %v372
  %v381 = vmul.f32 %v358, %v373
  %v382 = vmul.f32 %v362, %v374
  %v383 = vmul.f32 %v364, %v375
  %v384 = vmul.f32 %v366, %v376
  %v385 = vmul.f32 %v368, %v377
  %v386 = vmul.f32 %v378, 0.044715
  %v387 = vmul.f32 %v379, 0.044715
  %v388 = vmul.f32 %v380, 0.044715
  %v389 = vmul.f32 %v381, 0.044715
  %v390 = vmul.f32 %v382, 0.044715
  %v391 = vmul.f32 %v383, 0.044715
  %v392 = vmul.f32 %v384, 0.044715
  %v393 = vmul.f32 %v385, 0.044715
  %v394 = vadd.f32 %v352, %v386
  %v395 = vadd.f32 %v354, %v387
  %v396 = vadd.f32 %v356, %v388
  %v397 = vadd.f32 %v358, %v389
  %v398 = vadd.f32 %v362, %v390
  %v399 = vadd.f32 %v364, %v391
  %v400 = vadd.f32 %v366, %v392
  %v401 = vadd.f32 %v368, %v393
  %v402 = vmul.f32 %v394, 0.7978846
  %v403 = vmul.f32 %v395, 0.7978846
  %v404 = vmul.f32 %v396, 0.7978846
  %v405 = vmul.f32 %v397, 0.7978846
  %v406 = vmul.f32 %v398, 0.7978846
  %v407 = vmul.f32 %v399, 0.7978846
  %v408 = vmul.f32 %v400, 0.7978846
  %v409 = vmul.f32 %v401, 0.7978846
  %v410 = vtanh.pop %v402
  %v411 = vtanh.pop %v403
  %v412 = vtanh.pop %v404
  %v413 = vtanh.pop %v405
  %v414 = vtanh.pop %v406
  %v415 = vtanh.pop %v407
  %v416 = vtanh.pop %v408
  %v417 = vtanh.pop %v409
  %v418 = vadd.f32 %v410, 1.0
  %v419 = vadd.f32 %v411, 1.0
  %v420 = vadd.f32 %v412, 1.0
  %v421 = vadd.f32 %v413, 1.0
  %v422 = vadd.f32 %v414, 1.0
  %v423 = vadd.f32 %v415, 1.0
  %v424 = vadd.f32 %v416, 1.0
  %v425 = vadd.f32 %v417, 1.0
  %v426 = vmul.f32 %v418, 0.5
  %v427 = vmul.f32 %v419, 0.5
  %v428 = vmul.f32 %v420, 0.5
  %v429 = vmul.f32 %v421, 0.5
  %v430 = vmul.f32 %v422, 0.5
  %v431 = vmul.f32 %v423, 0.5
  %v432 = vmul.f32 %v424, 0.5
  %v433 = vmul.f32 %v425, 0.5
  %v434 = vmul.f32 %v352, %v426
  %v435 = vmul.f32 %v354, %v427
  %v436 = vmul.f32 %v356, %v428
  %v437 = vmul.f32 %v358, %v429
  %v438 = vmul.f32 %v362, %v430
  %v439 = vmul.f32 %v364, %v431
  %v440 = vmul.f32 %v366, %v432
  %v441 = vmul.f32 %v368, %v433
  %v442 = vpack.c.bf16 %v436, %v434
  %v443 = vpack.c.bf16 %v437, %v435
  %v444 = vpack.c.bf16 %v440, %v438
  %v445 = vpack.c.bf16 %v441, %v439
  %v446 = vld [vmem:[%s5] sm:$0xf]
  %v447 = vld [vmem:[%s5 + $0x4] sm:$0xf]
  %v448 = vld [vmem:[%s5 + $0x8] sm:$0xf]
  %v449 = vld [vmem:[%s5 + $0xc] sm:$0xf]
  %v450 = vld [vmem:[%s5 + $0x10] sm:$0xf]
  %v451 = vld [vmem:[%s5 + $0x14] sm:$0xf]
  %v452 = vld [vmem:[%s5 + $0x18] sm:$0xf]
  %v453 = vld [vmem:[%s5 + $0x1c] sm:$0xf]
  %v454 = vld [vmem:[%s5 + $0x20] sm:$0xf]
  %v455 = vld [vmem:[%s5 + $0x24] sm:$0xf]
  %v456 = vld [vmem:[%s5 + $0x28] sm:$0xf]
  %v457 = vld [vmem:[%s5 + $0x2c] sm:$0xf]
  %v458 = vld [vmem:[%s5 + $0x30] sm:$0xf]
  %v459 = vld [vmem:[%s5 + $0x34] sm:$0xf]
  %v460 = vld [vmem:[%s5 + $0x38] sm:$0xf]
  %v461 = vld [vmem:[%s5 + $0x3c] sm:$0xf]
  %v462 = vld [vmem:[%s5 + $0x40] sm:$0xf]
  %v463 = vld [vmem:[%s5 + $0x44] sm:$0xf]
  %v464 = vld [vmem:[%s5 + $0x48] sm:$0xf]
  %v465 = vld [vmem:[%s5 + $0x4c] sm:$0xf]
  %v466 = vld [vmem:[%s5 + $0x50] sm:$0xf]
  %v467 = vld [vmem:[%s5 + $0x54] sm:$0xf]
  %v468 = vld [vmem:[%s5 + $0x58] sm:$0xf]
  %v469 = vld [vmem:[%s5 + $0x5c] sm:$0xf]
  %v470 = vld [vmem:[%s5 + $0x60] sm:$0xf]
  %v471 = vld [vmem:[%s5 + $0x64] sm:$0xf]
  %v472 = vld [vmem:[%s5 + $0x68] sm:$0xf]
  %v473 = vld [vmem:[%s5 + $0x6c] sm:$0xf]
  %v474 = vld [vmem:[%s5 + $0x70] sm:$0xf]
  %v475 = vld [vmem:[%s5 + $0x74] sm:$0xf]
  %v476 = vld [vmem:[%s5 + $0x78] sm:$0xf]
  %v477 = vld [vmem:[%s5 + $0x7c] sm:$0xf]
  %v478 = vld [vmem:[%s6] sm:$0x1]
  %v480 = vlaneseq
  %v481 = vshrl.u32 %v480, 7
  %v482 = vsub.s32 0, %v481
  %v483 = vrot.slane %v478, %v482
  %v517 = vunpack.c.l.b16 %v446
  %v518 = vunpack.c.l.b16 %v447
  %v519 = vunpack.c.l.b16 %v448
  %v520 = vunpack.c.l.b16 %v449
  %v521 = vunpack.c.l.b16 %v450
  %v522 = vunpack.c.l.b16 %v451
  %v523 = vunpack.c.l.b16 %v452
  %v524 = vunpack.c.l.b16 %v453
  %v525 = vunpack.c.l.b16 %v454
  %v526 = vunpack.c.l.b16 %v455
  %v527 = vunpack.c.l.b16 %v456
  %v528 = vunpack.c.l.b16 %v457
  %v529 = vunpack.c.l.b16 %v458
  %v530 = vunpack.c.l.b16 %v459
  %v531 = vunpack.c.l.b16 %v460
  %v532 = vunpack.c.l.b16 %v461
  %v533 = vunpack.c.l.b16 %v462
  %v534 = vunpack.c.l.b16 %v463
  %v535 = vunpack.c.l.b16 %v464
  %v536 = vunpack.c.l.b16 %v465
  %v537 = vunpack.c.l.b16 %v466
  %v538 = vunpack.c.l.b16 %v467
  %v539 = vunpack.c.l.b16 %v468
  %v540 = vunpack.c.l.b16 %v469
  %v541 = vunpack.c.l.b16 %v470
  %v542 = vunpack.c.l.b16 %v471
  %v543 = vunpack.c.l.b16 %v472
  %v544 = vunpack.c.l.b16 %v473
  %v545 = vunpack.c.l.b16 %v474
  %v546 = vunpack.c.l.b16 %v475
  %v547 = vunpack.c.l.b16 %v476
  %v548 = vunpack.c.l.b16 %v477
  %v549 = vpack.c.b16 %v518, %v517
  %v550 = vpack.c.b16 %v520, %v519
  %v551 = vpack.c.b16 %v522, %v521
  %v552 = vpack.c.b16 %v524, %v523
  %v553 = vpack.c.b16 %v526, %v525
  %v554 = vpack.c.b16 %v528, %v527
  %v555 = vpack.c.b16 %v530, %v529
  %v556 = vpack.c.b16 %v532, %v531
  %v557 = vpack.c.b16 %v534, %v533
  %v558 = vpack.c.b16 %v536, %v535
  %v559 = vpack.c.b16 %v538, %v537
  %v560 = vpack.c.b16 %v540, %v539
  %v561 = vpack.c.b16 %v542, %v541
  %v562 = vpack.c.b16 %v544, %v543
  %v563 = vpack.c.b16 %v546, %v545
  %v564 = vpack.c.b16 %v548, %v547
  %581 = vmatprep.subr.bf16.mxu0 0
  %582 = vmatpush1.bf16.msra.mxu0 %v549
  %583 = vmatprep.subr.bf16.mxu0 0
  %584 = vmatpush1.bf16.msra.mxu0 %v550
  %585 = vmatprep.subr.bf16.mxu0 0
  %586 = vmatpush1.bf16.msra.mxu0 %v551
  %587 = vmatprep.subr.bf16.mxu0 0
  %588 = vmatpush1.bf16.msra.mxu0 %v552
  %589 = vmatprep.subr.bf16.mxu0 0
  %590 = vmatpush1.bf16.msra.mxu0 %v553
  %591 = vmatprep.subr.bf16.mxu0 0
  %592 = vmatpush1.bf16.msra.mxu0 %v554
  %593 = vmatprep.subr.bf16.mxu0 0
  %594 = vmatpush1.bf16.msra.mxu0 %v555
  %595 = vmatprep.subr.bf16.mxu0 0
  %596 = vmatpush1.bf16.msra.mxu0 %v556
  %597 = vmatprep.subr.bf16.mxu0 0
  %598 = vmatpush1.bf16.msra.mxu0 %v557
  %599 = vmatprep.subr.bf16.mxu0 0
  %600 = vmatpush1.bf16.msra.mxu0 %v558
  %601 = vmatprep.subr.bf16.mxu0 0
  %602 = vmatpush1.bf16.msra.mxu0 %v559
  %603 = vmatprep.subr.bf16.mxu0 0
  %604 = vmatpush1.bf16.msra.mxu0 %v560
  %605 = vmatprep.subr.bf16.mxu0 0
  %606 = vmatpush1.bf16.msra.mxu0 %v561
  %607 = vmatprep.subr.bf16.mxu0 0
  %608 = vmatpush1.bf16.msra.mxu0 %v562
  %609 = vmatprep.subr.bf16.mxu0 0
  %610 = vmatpush1.bf16.msra.mxu0 %v563
  %611 = vmatprep.subr.bf16.mxu0 0
  %612 = vmatpush1.bf16.msra.mxu0 %v564
  %613 = vmatprep.mubr.bf16.mxu0 %v443
  %614 = vmatmul.mubr.bf16.gmra.mrb[0].mxu0 %v442
  %v615 = vpop.f32.mrb[0].mxu0
  %v616 = vadd.f32 %v483, %v615
  %v617 = vpop.f32.mrb[0].mxu0
  %v618 = vpop.f32.mrb[0].mxu0
  %v619 = vadd.f32 %v483, %v618
  %v620 = vpop.f32.mrb[0].mxu0
  %621 = vmatprep.mubr.bf16.mxu0 %v445
  %622 = vmatmul.mubr.bf16.gmra.mrb[0].mxu0 %v444
  %v623 = vpop.f32.mrb[0].mxu0
  %v624 = vadd.f32 %v483, %v623
  %v625 = vpop.f32.mrb[0].mxu0
  %v626 = vpop.f32.mrb[0].mxu0
  %v627 = vadd.f32 %v483, %v626
  %v628 = vpop.f32.mrb[0].mxu0
  %629 = vdwg.mxu0
  %v630 = vadd.f32 %v203, %v616
  %v631 = vadd.f32 %v204, %v619
  %v632 = vadd.f32 %v205, %v624
  %v633 = vadd.f32 %v206, %v627
  %v634 = vpack.c.bf16 %v631, %v630
  %v635 = vpack.c.bf16 %v633, %v632
  %v638 = vunpack.c.l.b16 %v634
  %v639 = vunpack.c.h.b16 %v634
  %v640 = vunpack.c.l.b16 %v635
  %v641 = vunpack.c.h.b16 %v635
  %v642 = vpack.c.b16 %v638, %v638
  %v643 = vpack.c.b16 %v639, %v639
  %v644 = vpack.c.b16 %v640, %v640
  %v645 = vpack.c.b16 %v641, %v641
  %vm650 = vcmask 519168
  %651 = vst.msk [vmem:[%s9] sm:$0xf] %vm650, %v642
  %652 = vst.msk [vmem:[%s9 + $0x4] sm:$0xf] %vm650, %v643
  %653 = vst.msk [vmem:[%s9 + $0x8] sm:$0xf] %vm650, %v644
  %654 = vst.msk [vmem:[%s9 + $0xc] sm:$0xf] %vm650, %v645
  %v655 = vld [vmem:[%s7] sm:$0xf]
  %v656 = vld [vmem:[%s7 + $0x4] sm:$0xf]
  %v657 = vld [vmem:[%s7 + $0x8] sm:$0xf]
  %v658 = vld [vmem:[%s7 + $0xc] sm:$0xf]
  %v659 = vld [vmem:[%s7 + $0x10] sm:$0xf]
  %v660 = vld [vmem:[%s7 + $0x14] sm:$0xf]
  %v661 = vld [vmem:[%s7 + $0x18] sm:$0xf]
  %v662 = vld [vmem:[%s7 + $0x1c] sm:$0xf]
  %v663 = vld [vmem:[%s7 + $0x20] sm:$0xf]
  %v664 = vld [vmem:[%s7 + $0x24] sm:$0xf]
  %v665 = vld [vmem:[%s7 + $0x28] sm:$0xf]
  %v666 = vld [vmem:[%s7 + $0x2c] sm:$0xf]
  %v667 = vld [vmem:[%s7 + $0x30] sm:$0xf]
  %v668 = vld [vmem:[%s7 + $0x34] sm:$0xf]
  %v669 = vld [vmem:[%s7 + $0x38] sm:$0xf]
  %v670 = vld [vmem:[%s7 + $0x3c] sm:$0xf]
  %v671 = vld [vmem:[%s8] sm:$0x1]
  %v673 = vlaneseq
  %v674 = vshrl.u32 %v673, 7
  %v675 = vsub.s32 0, %v674
  %v676 = vrot.slane %v671, %v675
  %v694 = vunpack.c.l.b16 %v655
  %v695 = vunpack.c.l.b16 %v656
  %v696 = vunpack.c.l.b16 %v657
  %v697 = vunpack.c.l.b16 %v658
  %v698 = vunpack.c.l.b16 %v659
  %v699 = vunpack.c.l.b16 %v660
  %v700 = vunpack.c.l.b16 %v661
  %v701 = vunpack.c.l.b16 %v662
  %v702 = vunpack.c.l.b16 %v663
  %v703 = vunpack.c.l.b16 %v664
  %v704 = vunpack.c.l.b16 %v665
  %v705 = vunpack.c.l.b16 %v666
  %v706 = vunpack.c.l.b16 %v667
  %v707 = vunpack.c.l.b16 %v668
  %v708 = vunpack.c.l.b16 %v669
  %v709 = vunpack.c.l.b16 %v670
  %v710 = vpack.c.b16 %v695, %v694
  %v711 = vpack.c.b16 %v697, %v696
  %v712 = vpack.c.b16 %v699, %v698
  %v713 = vpack.c.b16 %v701, %v700
  %v714 = vpack.c.b16 %v703, %v702
  %v715 = vpack.c.b16 %v705, %v704
  %v716 = vpack.c.b16 %v707, %v706
  %v717 = vpack.c.b16 %v709, %v708
  %726 = vmatprep.subr.bf16.mxu0 0
  %727 = vmatpush1.bf16.msra.mxu0 %v710
  %728 = vmatprep.subr.bf16.mxu0 0
  %729 = vmatpush1.bf16.msra.mxu0 %v711
  %730 = vmatprep.subr.bf16.mxu0 0
  %731 = vmatpush1.bf16.msra.mxu0 %v712
  %732 = vmatprep.subr.bf16.mxu0 0
  %733 = vmatpush1.bf16.msra.mxu0 %v713
  %734 = vmatprep.subr.bf16.mxu0 0
  %735 = vmatpush1.bf16.msra.mxu0 %v714
  %736 = vmatprep.subr.bf16.mxu0 0
  %737 = vmatpush1.bf16.msra.mxu0 %v715
  %738 = vmatprep.subr.bf16.mxu0 0
  %739 = vmatpush1.bf16.msra.mxu0 %v716
  %740 = vmatprep.subr.bf16.mxu0 0
  %741 = vmatpush1.bf16.msra.mxu0 %v717
  %742 = vmatprep.subr.bf16.mxu0 0
  %743 = vmatpush1.bf16.msra.mxu0 0
  %744 = vmatprep.subr.bf16.mxu0 0
  %745 = vmatpush1.bf16.msra.mxu0 0
  %746 = vmatprep.subr.bf16.mxu0 0
  %747 = vmatpush1.bf16.msra.mxu0 0
  %748 = vmatprep.subr.bf16.mxu0 0
  %749 = vmatpush1.bf16.msra.mxu0 0
  %750 = vmatprep.subr.bf16.mxu0 0
  %751 = vmatpush1.bf16.msra.mxu0 0
  %752 = vmatprep.subr.bf16.mxu0 0
  %753 = vmatpush1.bf16.msra.mxu0 0
  %754 = vmatprep.subr.bf16.mxu0 0
  %755 = vmatpush1.bf16.msra.mxu0 0
  %756 = vmatprep.subr.bf16.mxu0 0
  %757 = vmatpush1.bf16.msra.mxu0 0
  %758 = vmatprep.mubr.bf16.mxu0 0
  %759 = vmatmul.mubr.bf16.gmra.mrb[0].mxu0 %v634
  %v760 = vpop.f32.mrb[0].mxu0
  %v761 = vadd.f32 %v676, %v760
  %v762 = vpop.f32.mrb[0].mxu0
  %v763 = vpop.f32.mrb[0].mxu0
  %v764 = vadd.f32 %v676, %v763
  %v765 = vpop.f32.mrb[0].mxu0
  %766 = vmatprep.mubr.bf16.mxu0 0
  %767 = vmatmul.mubr.bf16.gmra.mrb[0].mxu0 %v635
  %v768 = vpop.f32.mrb[0].mxu0
  %v769 = vadd.f32 %v676, %v768
  %v770 = vpop.f32.mrb[0].mxu0
  %v771 = vpop.f32.mrb[0].mxu0
  %v772 = vadd.f32 %v676, %v771
  %v773 = vpop.f32.mrb[0].mxu0
  %774 = vdwg.mxu0
  %v775 = vpack.c.bf16 %v764, %v761
  %v776 = vpack.c.bf16 %v772, %v769
  %v779 = vunpack.c.l.b16 %v775
  %v780 = vunpack.c.h.b16 %v775
  %v781 = vunpack.c.l.b16 %v776
  %v782 = vunpack.c.h.b16 %v776
  %v783 = vpack.c.b16 %v779, %v779
  %v784 = vpack.c.b16 %v780, %v780
  %v785 = vpack.c.b16 %v781, %v781
  %v786 = vpack.c.b16 %v782, %v782
  %791 = vst.msk [vmem:[%s10] sm:$0xf] %vm650, %v783
  %792 = vst.msk [vmem:[%s10 + $0x4] sm:$0xf] %vm650, %v784
  %793 = vst.msk [vmem:[%s10 + $0x8] sm:$0xf] %vm650, %v785
  %794 = vst.msk [vmem:[%s10 + $0xc] sm:$0xf] %vm650, %v786
  // Predicated region
  $region38: #{trans4pass_forward.7} parent=0 // pred_check
    _
  $region39: #{trans4pass_forward.7} parent=0 // pred_check_branch
    %796 = sbr.rel (0) target = $region41
  $region40: #{trans4pass_forward.7} parent=0 // pred_region
    _
  $region41: #{trans4pass_forward.7} parent=0 // pred_fallthru
    _
  // Predicated region
  $region42: #{trans4pass_forward.7} parent=0 // pred_check
    _
  $region43: #{trans4pass_forward.7} parent=0 // pred_check_branch
    %798 = sbr.rel (0) target = $region45
  $region44: #{trans4pass_forward.7} parent=0 // pred_region
    _
  $region45: #{trans4pass_forward.7} parent=0 // pred_fallthru
    _
  // Predicated region
  $region46: #{trans4pass_forward.7} parent=0 // pred_check
    _
  $region47: #{trans4pass_forward.7} parent=0 // pred_check_branch
    %800 = sbr.rel (0) target = $region49
  $region48: #{trans4pass_forward.7} parent=0 // pred_region
    _
  $region49: #{trans4pass_forward.7} parent=0 // pred_fallthru
    _
  // Predicated region
  $region50: #{trans4pass_forward.7} parent=0 // pred_check
    _
  $region51: #{trans4pass_forward.7} parent=0 // pred_check_branch
    %802 = sbr.rel (0) target = $region53
  $region52: #{trans4pass_forward.7} parent=0 // pred_region
    _
  $region53: #{trans4pass_forward.7} parent=0 // pred_fallthru
    _

// kernel: trans4pass_forward.8
$region0: #{trans4pass_forward.8}
  #allocation0 [shape = 'u32[]', space=smem, size = 0x4, offset = 0x4, fixed_abs, tag = 'smem constant byte address 0x4 - core index']
  #allocation1 [shape = 'u32[144,128]{1,0:T(1,128)}', space=vmem, size = 0x12000, scoped, tag = 'internal scratch']
  %s0 = inlined_call_operand.vmem [shape: bf16[8,256], index: 0, kind: input, shape index: {}]
  %s1 = inlined_call_operand.vmem [shape: bf16[256,128], index: 1, kind: input, shape index: {}]
  %s2 = inlined_call_operand.vmem [shape: f32[1,128], index: 2, kind: input, shape index: {}, may-alias: {2,6}]
  %s3 = inlined_call_operand.vmem [shape: bf16[128,384], index: 3, kind: input, shape index: {}]
  %s4 = inlined_call_operand.vmem [shape: f32[1,384], index: 4, kind: input, shape index: {}]
  %s5 = inlined_call_operand.vmem [shape: bf16[384,128], index: 5, kind: input, shape index: {}]
  %s6 = inlined_call_operand.vmem [shape: f32[1,128], index: 6, kind: input, shape index: {}, may-alias: {2,6}]
  %s7 = inlined_call_operand.vmem [shape: bf16[128,64], index: 7, kind: input, shape index: {}]
  %s8 = inlined_call_operand.vmem [shape: f32[1,64], index: 8, kind: input, shape index: {}]
  %s9 = inlined_call_operand.hbm [shape: bf16[8,128], index: 9, kind: output, shape index: {0}]
  %s10 = inlined_call_operand.vmem [shape: bf16[8,64], index: 10, kind: output, shape index: {1}]
  %11 = xla_tuple %s9, %s10
  %s12 = sld [smem:[#allocation0]]
  $region54: #{trans4pass_forward.8} parent=0
    _
  %s14 = ssub.s32 1, %s12
  %s15 = scalar_select 0, %s14, %s12
  $region1: #{trans4pass_forward.8} parent=0
    #allocation2 [shape = 'u8[2048]{0}', space=vmem, size = 0x800, scoped, tag = 'output window, operand 0, single buffered']
    #allocation3 [shape = 's32[1]{0}', space=sflag, size = 0x4, scoped, tag = 'scoped memory for trans4pass_forward.8']
    %16 = vsyncpa [#allocation3], 0
    // Predicated region
    $region2: #{trans4pass_forward.8} parent=1 // pred_check
      _
    $region3: #{trans4pass_forward.8} parent=1 // pred_check_branch
      %18 = sbr.rel (0) target = $region5
    $region4: #{trans4pass_forward.8} parent=1 // pred_region
      _
    $region5: #{trans4pass_forward.8} parent=1 // pred_fallthru
      _
    // Predicated region
    $region6: #{trans4pass_forward.8} parent=1 // pred_check
      _
    $region7: #{trans4pass_forward.8} parent=1 // pred_check_branch
      %20 = sbr.rel (0) target = $region9
    $region8: #{trans4pass_forward.8} parent=1 // pred_region
      _
    $region9: #{trans4pass_forward.8} parent=1 // pred_fallthru
      _
    // Predicated region
    $region10: #{trans4pass_forward.8} parent=1 // pred_check
      _
    $region11: #{trans4pass_forward.8} parent=1 // pred_check_branch
      %22 = sbr.rel (0) target = $region13
    $region12: #{trans4pass_forward.8} parent=1 // pred_region
      _
    $region13: #{trans4pass_forward.8} parent=1 // pred_fallthru
      _
    // Predicated region
    $region14: #{trans4pass_forward.8} parent=1 // pred_check
      _
    $region15: #{trans4pass_forward.8} parent=1 // pred_check_branch
      %24 = sbr.rel (0) target = $region17
    $region16: #{trans4pass_forward.8} parent=1 // pred_region
      _
    $region17: #{trans4pass_forward.8} parent=1 // pred_fallthru
      _
    // Predicated region
    $region18: #{trans4pass_forward.8} parent=1 // pred_check
      _
    $region19: #{trans4pass_forward.8} parent=1 // pred_check_branch
      %26 = sbr.rel (0) target = $region21
    $region20: #{trans4pass_forward.8} parent=1 // pred_region
      _
    $region21: #{trans4pass_forward.8} parent=1 // pred_fallthru
      _
    // Predicated region
    $region22: #{trans4pass_forward.8} parent=1 // pred_check
      _
    $region23: #{trans4pass_forward.8} parent=1 // pred_check_branch
      %28 = sbr.rel (0) target = $region25
    $region24: #{trans4pass_forward.8} parent=1 // pred_region
      _
    $region25: #{trans4pass_forward.8} parent=1 // pred_fallthru
      _
    // Predicated region
    $region26: #{trans4pass_forward.8} parent=1 // pred_check
      _
    $region27: #{trans4pass_forward.8} parent=1 // pred_check_branch
      %30 = sbr.rel (0) target = $region29
    $region28: #{trans4pass_forward.8} parent=1 // pred_region
      _
    $region29: #{trans4pass_forward.8} parent=1 // pred_fallthru
      _
    // Predicated region
    $region30: #{trans4pass_forward.8} parent=1 // pred_check
      _
    $region31: #{trans4pass_forward.8} parent=1 // pred_check_branch
      %32 = sbr.rel (0) target = $region33
    $region32: #{trans4pass_forward.8} parent=1 // pred_region
      _
    $region33: #{trans4pass_forward.8} parent=1 // pred_fallthru
      _
    // Predicated region
    $region34: #{trans4pass_forward.8} parent=1 // pred_check
      _
    $region35: #{trans4pass_forward.8} parent=1 // pred_check_branch
      %34 = sbr.rel (0) target = $region37
    $region36: #{trans4pass_forward.8} parent=1 // pred_region
      _
    $region37: #{trans4pass_forward.8} parent=1 // pred_fallthru
      _
    %v36 = vld [vmem:[%s0] sm:$0xff]
    %v37 = vld [vmem:[%s1] sm:$0xf]
    %v38 = vld [vmem:[%s1 + $0x4] sm:$0xf]
    %v39 = vld [vmem:[%s1 + $0x8] sm:$0xf]
    %v40 = vld [vmem:[%s1 + $0xc] sm:$0xf]
    %v41 = vld [vmem:[%s1 + $0x10] sm:$0xf]
    %v42 = vld [vmem:[%s1 + $0x14] sm:$0xf]
    %v43 = vld [vmem:[%s1 + $0x18] sm:$0xf]
    %v44 = vld [vmem:[%s1 + $0x1c] sm:$0xf]
    %v45 = vld [vmem:[%s1 + $0x20] sm:$0xf]
    %v46 = vld [vmem:[%s1 + $0x24] sm:$0xf]
    %v47 = vld [vmem:[%s1 + $0x28] sm:$0xf]
    %v48 = vld [vmem:[%s1 + $0x2c] sm:$0xf]
    %v49 = vld [vmem:[%s1 + $0x30] sm:$0xf]
    %v50 = vld [vmem:[%s1 + $0x34] sm:$0xf]
    %v51 = vld [vmem:[%s1 + $0x38] sm:$0xf]
    %v52 = vld [vmem:[%s1 + $0x3c] sm:$0xf]
    %v53 = vld [vmem:[%s1 + $0x40] sm:$0xf]
    %v54 = vld [vmem:[%s1 + $0x44] sm:$0xf]
    %v55 = vld [vmem:[%s1 + $0x48] sm:$0xf]
    %v56 = vld [vmem:[%s1 + $0x4c] sm:$0xf]
    %v57 = vld [vmem:[%s1 + $0x50] sm:$0xf]
    %v58 = vld [vmem:[%s1 + $0x54] sm:$0xf]
    %v59 = vld [vmem:[%s1 + $0x58] sm:$0xf]
    %v60 = vld [vmem:[%s1 + $0x5c] sm:$0xf]
    %v61 = vld [vmem:[%s1 + $0x60] sm:$0xf]
    %v62 = vld [vmem:[%s1 + $0x64] sm:$0xf]
    %v63 = vld [vmem:[%s1 + $0x68] sm:$0xf]
    %v64 = vld [vmem:[%s1 + $0x6c] sm:$0xf]
    %v65 = vld [vmem:[%s1 + $0x70] sm:$0xf]
    %v66 = vld [vmem:[%s1 + $0x74] sm:$0xf]
    %v67 = vld [vmem:[%s1 + $0x78] sm:$0xf]
    %v68 = vld [vmem:[%s1 + $0x7c] sm:$0xf]
    %v69 = vld [vmem:[%s2] sm:$0x1]
    %v71 = vlaneseq
    %v72 = vshrl.u32 %v71, 7
    %v73 = vsub.s32 0, %v72
    %v74 = vrot.slane %v69, %v73
    %v77 = vunpack.c.l.b16 %v36
    %v78 = vunpack.c.h.b16 %v36
    %v79 = vpack.c.b16 %v77, %v77
    %v80 = vpack.c.b16 %v78, %v78
    %v115 = vunpack.c.l.b16 %v37
    %v116 = vunpack.c.l.b16 %v38
    %v117 = vunpack.c.l.b16 %v39
    %v118 = vunpack.c.l.b16 %v40
    %v119 = vunpack.c.l.b16 %v41
    %v120 = vunpack.c.l.b16 %v42
    %v121 = vunpack.c.l.b16 %v43
    %v122 = vunpack.c.l.b16 %v44
    %v123 = vunpack.c.l.b16 %v45
    %v124 = vunpack.c.l.b16 %v46
    %v125 = vunpack.c.l.b16 %v47
    %v126 = vunpack.c.l.b16 %v48
    %v127 = vunpack.c.l.b16 %v49
    %v128 = vunpack.c.l.b16 %v50
    %v129 = vunpack.c.l.b16 %v51
    %v130 = vunpack.c.l.b16 %v52
    %v131 = vunpack.c.l.b16 %v53
    %v132 = vunpack.c.l.b16 %v54
    %v133 = vunpack.c.l.b16 %v55
    %v134 = vunpack.c.l.b16 %v56
    %v135 = vunpack.c.l.b16 %v57
    %v136 = vunpack.c.l.b16 %v58
    %v137 = vunpack.c.l.b16 %v59
    %v138 = vunpack.c.l.b16 %v60
    %v139 = vunpack.c.l.b16 %v61
    %v140 = vunpack.c.l.b16 %v62
    %v141 = vunpack.c.l.b16 %v63
    %v142 = vunpack.c.l.b16 %v64
    %v143 = vunpack.c.l.b16 %v65
    %v144 = vunpack.c.l.b16 %v66
    %v145 = vunpack.c.l.b16 %v67
    %v146 = vunpack.c.l.b16 %v68
    %v147 = vpack.c.b16 %v116, %v115
    %v148 = vpack.c.b16 %v118, %v117
    %v149 = vpack.c.b16 %v120, %v119
    %v150 = vpack.c.b16 %v122, %v121
    %v151 = vpack.c.b16 %v124, %v123
    %v152 = vpack.c.b16 %v126, %v125
    %v153 = vpack.c.b16 %v128, %v127
    %v154 = vpack.c.b16 %v130, %v129
    %v155 = vpack.c.b16 %v132, %v131
    %v156 = vpack.c.b16 %v134, %v133
    %v157 = vpack.c.b16 %v136, %v135
    %v158 = vpack.c.b16 %v138, %v137
    %v159 = vpack.c.b16 %v140, %v139
    %v160 = vpack.c.b16 %v142, %v141
    %v161 = vpack.c.b16 %v144, %v143
    %v162 = vpack.c.b16 %v146, %v145
    %179 = vmatprep.subr.bf16.mxu0 0
    %180 = vmatpush1.bf16.msra.mxu0 %v147
    %181 = vmatprep.subr.bf16.mxu0 0
    %182 = vmatpush1.bf16.msra.mxu0 %v148
    %183 = vmatprep.subr.bf16.mxu0 0
    %184 = vmatpush1.bf16.msra.mxu0 %v149
    %185 = vmatprep.subr.bf16.mxu0 0
    %186 = vmatpush1.bf16.msra.mxu0 %v150
    %187 = vmatprep.subr.bf16.mxu0 0
    %188 = vmatpush1.bf16.msra.mxu0 %v151
    %189 = vmatprep.subr.bf16.mxu0 0
    %190 = vmatpush1.bf16.msra.mxu0 %v152
    %191 = vmatprep.subr.bf16.mxu0 0
    %192 = vmatpush1.bf16.msra.mxu0 %v153
    %193 = vmatprep.subr.bf16.mxu0 0
    %194 = vmatpush1.bf16.msra.mxu0 %v154
    %195 = vmatprep.subr.bf16.mxu0 0
    %196 = vmatpush1.bf16.msra.mxu0 %v155
    %197 = vmatprep.subr.bf16.mxu0 0
    %198 = vmatpush1.bf16.msra.mxu0 %v156
    %199 = vmatprep.subr.bf16.mxu0 0
    %200 = vmatpush1.bf16.msra.mxu0 %v157
    %201 = vmatprep.subr.bf16.mxu0 0
    %202 = vmatpush1.bf16.msra.mxu0 %v158
    %203 = vmatprep.subr.bf16.mxu0 0
    %204 = vmatpush1.bf16.msra.mxu0 %v159
    %205 = vmatprep.subr.bf16.mxu0 0
    %206 = vmatpush1.bf16.msra.mxu0 %v160
    %207 = vmatprep.subr.bf16.mxu0 0
    %208 = vmatpush1.bf16.msra.mxu0 %v161
    %209 = vmatprep.subr.bf16.mxu0 0
    %210 = vmatpush1.bf16.msra.mxu0 %v162
    %211 = vmatprep.mubr.bf16.mxu0 %v80
    %212 = vmatmul.mubr.bf16.gmra.mrb[0].mxu0 %v79
    %v213 = vpop.f32.mrb[0].mxu0
    %v214 = vadd.f32 %v74, %v213
    %v215 = vpop.f32.mrb[0].mxu0
    %v216 = vpop.f32.mrb[0].mxu0
    %v217 = vpop.f32.mrb[0].mxu0
    %218 = vdwg.mxu0
    %v219 = vmul.f32 %v214, %v214
    %v220 = vmul.f32 %v214, %v219
    %v221 = vmul.f32 %v220, 0.044715
    %v222 = vadd.f32 %v214, %v221
    %v223 = vmul.f32 %v222, 0.7978846
    %v224 = vtanh.pop %v223
    %v225 = vadd.f32 %v224, 1.0
    %v226 = vmul.f32 %v225, 0.5
    %v227 = vmul.f32 %v214, %v226
    %v228 = vpack.c.bf16 %v227, %v227
    %v229 = vld [vmem:[%s3] sm:$0xff]
    %v230 = vld [vmem:[%s3 + $0x8] sm:$0xf]
    %v231 = vld [vmem:[%s3 + $0xc] sm:$0xff]
    %v232 = vld [vmem:[%s3 + $0x14] sm:$0xf]
    %v233 = vld [vmem:[%s3 + $0x18] sm:$0xff]
    %v234 = vld [vmem:[%s3 + $0x20] sm:$0xf]
    %v235 = vld [vmem:[%s3 + $0x24] sm:$0xff]
    %v236 = vld [vmem:[%s3 + $0x2c] sm:$0xf]
    %v237 = vld [vmem:[%s3 + $0x30] sm:$0xff]
    %v238 = vld [vmem:[%s3 + $0x38] sm:$0xf]
    %v239 = vld [vmem:[%s3 + $0x3c] sm:$0xff]
    %v240 = vld [vmem:[%s3 + $0x44] sm:$0xf]
    %v241 = vld [vmem:[%s3 + $0x48] sm:$0xff]
    %v242 = vld [vmem:[%s3 + $0x50] sm:$0xf]
    %v243 = vld [vmem:[%s3 + $0x54] sm:$0xff]
    %v244 = vld [vmem:[%s3 + $0x5c] sm:$0xf]
    %v245 = vld [vmem:[%s3 + $0x60] sm:$0xff]
    %v246 = vld [vmem:[%s3 + $0x68] sm:$0xf]
    %v247 = vld [vmem:[%s3 + $0x6c] sm:$0xff]
    %v248 = vld [vmem:[%s3 + $0x74] sm:$0xf]
    %v249 = vld [vmem:[%s3 + $0x78] sm:$0xff]
    %v250 = vld [vmem:[%s3 + $0x80] sm:$0xf]
    %v251 = vld [vmem:[%s3 + $0x84] sm:$0xff]
    %v252 = vld [vmem:[%s3 + $0x8c] sm:$0xf]
    %v253 = vld [vmem:[%s3 + $0x90] sm:$0xff]
    %v254 = vld [vmem:[%s3 + $0x98] sm:$0xf]
    %v255 = vld [vmem:[%s3 + $0x9c] sm:$0xff]
    %v256 = vld [vmem:[%s3 + $0xa4] sm:$0xf]
    %v257 = vld [vmem:[%s3 + $0xa8] sm:$0xff]
    %v258 = vld [vmem:[%s3 + $0xb0] sm:$0xf]
    %v259 = vld [vmem:[%s3 + $0xb4] sm:$0xff]
    %v260 = vld [vmem:[%s3 + $0xbc] sm:$0xf]
    %v261 = vld [vmem:[%s4] sm:$0x7]
    %v263 = vlaneseq
    %v264 = vshrl.u32 %v263, 7
    %v265 = vsub.s32 0, %v264
    %v266 = vrot.slane %v261, %v265
    %v267 = vlaneseq
    %v268 = vshrl.u32 %v267, 7
    %v269 = vsub.s32 1, %v268
    %v270 = vrot.slane %v261, %v269
    %v271 = vlaneseq
    %v272 = vshrl.u32 %v271, 7
    %v273 = vsub.s32 2, %v272
    %v274 = vrot.slane %v261, %v273
    %v310 = vunpack.c.l.b16 %v229
    %v311 = vunpack.c.h.b16 %v229
    %v312 = vunpack.c.l.b16 %v230
    %v313 = vunpack.c.l.b16 %v231
    %v314 = vunpack.c.h.b16 %v231
    %v315 = vunpack.c.l.b16 %v232
    %v316 = vunpack.c.l.b16 %v233
    %v317 = vunpack.c.h.b16 %v233
    %v318 = vunpack.c.l.b16 %v234
    %v319 = vunpack.c.l.b16 %v235
    %v320 = vunpack.c.h.b16 %v235
    %v321 = vunpack.c.l.b16 %v236
    %v322 = vunpack.c.l.b16 %v237
    %v323 = vunpack.c.h.b16 %v237
    %v324 = vunpack.c.l.b16 %v238
    %v325 = vunpack.c.l.b16 %v239
    %v326 = vunpack.c.h.b16 %v239
    %v327 = vunpack.c.l.b16 %v240
    %v328 = vunpack.c.l.b16 %v241
    %v329 = vunpack.c.h.b16 %v241
    %v330 = vunpack.c.l.b16 %v242
    %v331 = vunpack.c.l.b16 %v243
    %v332 = vunpack.c.h.b16 %v243
    %v333 = vunpack.c.l.b16 %v244
    %v334 = vunpack.c.l.b16 %v245
    %v335 = vunpack.c.h.b16 %v245
    %v336 = vunpack.c.l.b16 %v246
    %v337 = vunpack.c.l.b16 %v247
    %v338 = vunpack.c.h.b16 %v247
    %v339 = vunpack.c.l.b16 %v248
    %v340 = vunpack.c.l.b16 %v249
    %v341 = vunpack.c.h.b16 %v249
    %v342 = vunpack.c.l.b16 %v250
    %v343 = vunpack.c.l.b16 %v251
    %v344 = vunpack.c.h.b16 %v251
    %v345 = vunpack.c.l.b16 %v252
    %v346 = vunpack.c.l.b16 %v253
    %v347 = vunpack.c.h.b16 %v253
    %v348 = vunpack.c.l.b16 %v254
    %v349 = vunpack.c.l.b16 %v255
    %v350 = vunpack.c.h.b16 %v255
    %v351 = vunpack.c.l.b16 %v256
    %v352 = vunpack.c.l.b16 %v257
    %v353 = vunpack.c.h.b16 %v257
    %v354 = vunpack.c.l.b16 %v258
    %v355 = vunpack.c.l.b16 %v259
    %v356 = vunpack.c.h.b16 %v259
    %v357 = vunpack.c.l.b16 %v260
    %v358 = vpack.c.b16 %v313, %v310
    %v359 = vpack.c.b16 %v314, %v311
    %v360 = vpack.c.b16 %v315, %v312
    %v361 = vpack.c.b16 %v319, %v316
    %v362 = vpack.c.b16 %v320, %v317
    %v363 = vpack.c.b16 %v321, %v318
    %v364 = vpack.c.b16 %v325, %v322
    %v365 = vpack.c.b16 %v326, %v323
    %v366 = vpack.c.b16 %v327, %v324
    %v367 = vpack.c.b16 %v331, %v328
    %v368 = vpack.c.b16 %v332, %v329
    %v369 = vpack.c.b16 %v333, %v330
    %v370 = vpack.c.b16 %v337, %v334
    %v371 = vpack.c.b16 %v338, %v335
    %v372 = vpack.c.b16 %v339, %v336
    %v373 = vpack.c.b16 %v343, %v340
    %v374 = vpack.c.b16 %v344, %v341
    %v375 = vpack.c.b16 %v345, %v342
    %v376 = vpack.c.b16 %v349, %v346
    %v377 = vpack.c.b16 %v350, %v347
    %v378 = vpack.c.b16 %v351, %v348
    %v379 = vpack.c.b16 %v355, %v352
    %v380 = vpack.c.b16 %v356, %v353
    %v381 = vpack.c.b16 %v357, %v354
    %406 = vmatprep.subr.bf16.mxu0 %v359
    %407 = vmatpush1.bf16.msra.mxu0 %v358
    %408 = vmatprep.subr.bf16.mxu0 %v362
    %409 = vmatpush1.bf16.msra.mxu0 %v361
    %410 = vmatprep.subr.bf16.mxu0 %v365
    %411 = vmatpush1.bf16.msra.mxu0 %v364
    %412 = vmatprep.subr.bf16.mxu0 %v368
    %413 = vmatpush1.bf16.msra.mxu0 %v367
    %414 = vmatprep.subr.bf16.mxu0 %v371
    %415 = vmatpush1.bf16.msra.mxu0 %v370
    %416 = vmatprep.subr.bf16.mxu0 %v374
    %417 = vmatpush1.bf16.msra.mxu0 %v373
    %418 = vmatprep.subr.bf16.mxu0 %v377
    %419 = vmatpush1.bf16.msra.mxu0 %v376
    %420 = vmatprep.subr.bf16.mxu0 %v380
    %421 = vmatpush1.bf16.msra.mxu0 %v379
    %422 = vmatprep.subr.bf16.mxu0 0
    %423 = vmatpush1.bf16.msra.mxu0 0
    %424 = vmatprep.subr.bf16.mxu0 0
    %425 = vmatpush1.bf16.msra.mxu0 0
    %426 = vmatprep.subr.bf16.mxu0 0
    %427 = vmatpush1.bf16.msra.mxu0 0
    %428 = vmatprep.subr.bf16.mxu0 0
    %429 = vmatpush1.bf16.msra.mxu0 0
    %430 = vmatprep.subr.bf16.mxu0 0
    %431 = vmatpush1.bf16.msra.mxu0 0
    %432 = vmatprep.subr.bf16.mxu0 0
    %433 = vmatpush1.bf16.msra.mxu0 0
    %434 = vmatprep.subr.bf16.mxu0 0
    %435 = vmatpush1.bf16.msra.mxu0 0
    %436 = vmatprep.subr.bf16.mxu0 0
    %437 = vmatpush1.bf16.msra.mxu0 0
    %438 = vmatprep.mubr.bf16.mxu0 0
    %439 = vmatmul.mubr.bf16.gmra.mrb[0].mxu0 %v228
    %v440 = vpop.f32.mrb[0].mxu0
    %v441 = vadd.f32 %v266, %v440
    %v442 = vpop.f32.mrb[0].mxu0
    %v443 = vadd.f32 %v270, %v442
    %v444 = vpop.f32.mrb[0].mxu0
    %v445 = vpop.f32.mrb[0].mxu0
    %446 = vdwg.mxu0
    %447 = vmatprep.subr.bf16.mxu0 0
    %448 = vmatpush1.bf16.msra.mxu0 %v360
    %449 = vmatprep.subr.bf16.mxu0 0
    %450 = vmatpush1.bf16.msra.mxu0 %v363
    %451 = vmatprep.subr.bf16.mxu0 0
    %452 = vmatpush1.bf16.msra.mxu0 %v366
    %453 = vmatprep.subr.bf16.mxu0 0
    %454 = vmatpush1.bf16.msra.mxu0 %v369
    %455 = vmatprep.subr.bf16.mxu0 0
    %456 = vmatpush1.bf16.msra.mxu0 %v372
    %457 = vmatprep.subr.bf16.mxu0 0
    %458 = vmatpush1.bf16.msra.mxu0 %v375
    %459 = vmatprep.subr.bf16.mxu0 0
    %460 = vmatpush1.bf16.msra.mxu0 %v378
    %461 = vmatprep.subr.bf16.mxu0 0
    %462 = vmatpush1.bf16.msra.mxu0 %v381
    %463 = vmatprep.subr.bf16.mxu0 0
    %464 = vmatpush1.bf16.msra.mxu0 0
    %465 = vmatprep.subr.bf16.mxu0 0
    %466 = vmatpush1.bf16.msra.mxu0 0
    %467 = vmatprep.subr.bf16.mxu0 0
    %468 = vmatpush1.bf16.msra.mxu0 0
    %469 = vmatprep.subr.bf16.mxu0 0
    %470 = vmatpush1.bf16.msra.mxu0 0
    %471 = vmatprep.subr.bf16.mxu0 0
    %472 = vmatpush1.bf16.msra.mxu0 0
    %473 = vmatprep.subr.bf16.mxu0 0
    %474 = vmatpush1.bf16.msra.mxu0 0
    %475 = vmatprep.subr.bf16.mxu0 0
    %476 = vmatpush1.bf16.msra.mxu0 0
    %477 = vmatprep.subr.bf16.mxu0 0
    %478 = vmatpush1.bf16.msra.mxu0 0
    %479 = vmatprep.mubr.bf16.mxu0 0
    %480 = vmatmul.mubr.bf16.gmra.mrb[0].mxu0 %v228
    %v481 = vpop.f32.mrb[0].mxu0
    %v482 = vadd.f32 %v274, %v481
    %v483 = vpop.f32.mrb[0].mxu0
    %v484 = vpop.f32.mrb[0].mxu0
    %v485 = vpop.f32.mrb[0].mxu0
    %486 = vdwg.mxu0
    %v487 = vmul.f32 %v441, %v441
    %v488 = vmul.f32 %v443, %v443
    %v489 = vmul.f32 %v482, %v482
    %v490 = vmul.f32 %v441, %v487
    %v491 = vmul.f32 %v443, %v488
    %v492 = vmul.f32 %v482, %v489
    %v493 = vmul.f32 %v490, 0.044715
    %v494 = vmul.f32 %v491, 0.044715
    %v495 = vmul.f32 %v492, 0.044715
    %v496 = vadd.f32 %v441, %v493
    %v497 = vadd.f32 %v443, %v494
    %v498 = vadd.f32 %v482, %v495
    %v499 = vmul.f32 %v496, 0.7978846
    %v500 = vmul.f32 %v497, 0.7978846
    %v501 = vmul.f32 %v498, 0.7978846
    %v502 = vtanh.pop %v499
    %v503 = vtanh.pop %v500
    %v504 = vtanh.pop %v501
    %v505 = vadd.f32 %v502, 1.0
    %v506 = vadd.f32 %v503, 1.0
    %v507 = vadd.f32 %v504, 1.0
    %v508 = vmul.f32 %v505, 0.5
    %v509 = vmul.f32 %v506, 0.5
    %v510 = vmul.f32 %v507, 0.5
    %v511 = vmul.f32 %v441, %v508
    %v512 = vmul.f32 %v443, %v509
    %v513 = vmul.f32 %v482, %v510
    %v514 = vpack.c.bf16 %v511, %v511
    %v515 = vpack.c.bf16 %v512, %v512
    %v516 = vpack.c.bf16 %v513, %v513
    %v517 = vld [vmem:[%s5] sm:$0xf]
    %v518 = vld [vmem:[%s5 + $0x4] sm:$0xf]
    %v519 = vld [vmem:[%s5 + $0x8] sm:$0xf]
    %v520 = vld [vmem:[%s5 + $0xc] sm:$0xf]
    %v521 = vld [vmem:[%s5 + $0x10] sm:$0xf]
    %v522 = vld [vmem:[%s5 + $0x14] sm:$0xf]
    %v523 = vld [vmem:[%s5 + $0x18] sm:$0xf]
    %v524 = vld [vmem:[%s5 + $0x1c] sm:$0xf]
    %v525 = vld [vmem:[%s5 + $0x20] sm:$0xf]
    %v526 = vld [vmem:[%s5 + $0x24] sm:$0xf]
    %v527 = vld [vmem:[%s5 + $0x28] sm:$0xf]
    %v528 = vld [vmem:[%s5 + $0x2c] sm:$0xf]
    %v529 = vld [vmem:[%s5 + $0x30] sm:$0xf]
    %v530 = vld [vmem:[%s5 + $0x34] sm:$0xf]
    %v531 = vld [vmem:[%s5 + $0x38] sm:$0xf]
    %v532 = vld [vmem:[%s5 + $0x3c] sm:$0xf]
    %v533 = vld [vmem:[%s5 + $0x40] sm:$0xf]
    %v534 = vld [vmem:[%s5 + $0x44] sm:$0xf]
    %v535 = vld [vmem:[%s5 + $0x48] sm:$0xf]
    %v536 = vld [vmem:[%s5 + $0x4c] sm:$0xf]
    %v537 = vld [vmem:[%s5 + $0x50] sm:$0xf]
    %v538 = vld [vmem:[%s5 + $0x54] sm:$0xf]
    %v539 = vld [vmem:[%s5 + $0x58] sm:$0xf]
    %v540 = vld [vmem:[%s5 + $0x5c] sm:$0xf]
    %v541 = vld [vmem:[%s5 + $0x60] sm:$0xf]
    %v542 = vld [vmem:[%s5 + $0x64] sm:$0xf]
    %v543 = vld [vmem:[%s5 + $0x68] sm:$0xf]
    %v544 = vld [vmem:[%s5 + $0x6c] sm:$0xf]
    %v545 = vld [vmem:[%s5 + $0x70] sm:$0xf]
    %v546 = vld [vmem:[%s5 + $0x74] sm:$0xf]
    %v547 = vld [vmem:[%s5 + $0x78] sm:$0xf]
    %v548 = vld [vmem:[%s5 + $0x7c] sm:$0xf]
    %v549 = vld [vmem:[%s5 + $0x80] sm:$0xf]
    %v550 = vld [vmem:[%s5 + $0x84] sm:$0xf]
    %v551 = vld [vmem:[%s5 + $0x88] sm:$0xf]
    %v552 = vld [vmem:[%s5 + $0x8c] sm:$0xf]
    %v553 = vld [vmem:[%s5 + $0x90] sm:$0xf]
    %v554 = vld [vmem:[%s5 + $0x94] sm:$0xf]
    %v555 = vld [vmem:[%s5 + $0x98] sm:$0xf]
    %v556 = vld [vmem:[%s5 + $0x9c] sm:$0xf]
    %v557 = vld [vmem:[%s5 + $0xa0] sm:$0xf]
    %v558 = vld [vmem:[%s5 + $0xa4] sm:$0xf]
    %v559 = vld [vmem:[%s5 + $0xa8] sm:$0xf]
    %v560 = vld [vmem:[%s5 + $0xac] sm:$0xf]
    %v561 = vld [vmem:[%s5 + $0xb0] sm:$0xf]
    %v562 = vld [vmem:[%s5 + $0xb4] sm:$0xf]
    %v563 = vld [vmem:[%s5 + $0xb8] sm:$0xf]
    %v564 = vld [vmem:[%s5 + $0xbc] sm:$0xf]
    %v565 = vld [vmem:[%s6] sm:$0x1]
    %v567 = vlaneseq
    %v568 = vshrl.u32 %v567, 7
    %v569 = vsub.s32 0, %v568
    %v570 = vrot.slane %v565, %v569
    %v620 = vunpack.c.l.b16 %v517
    %v621 = vunpack.c.l.b16 %v518
    %v622 = vunpack.c.l.b16 %v519
    %v623 = vunpack.c.l.b16 %v520
    %v624 = vunpack.c.l.b16 %v521
    %v625 = vunpack.c.l.b16 %v522
    %v626 = vunpack.c.l.b16 %v523
    %v627 = vunpack.c.l.b16 %v524
    %v628 = vunpack.c.l.b16 %v525
    %v629 = vunpack.c.l.b16 %v526
    %v630 = vunpack.c.l.b16 %v527
    %v631 = vunpack.c.l.b16 %v528
    %v632 = vunpack.c.l.b16 %v529
    %v633 = vunpack.c.l.b16 %v530
    %v634 = vunpack.c.l.b16 %v531
    %v635 = vunpack.c.l.b16 %v532
    %v636 = vunpack.c.l.b16 %v533
    %v637 = vunpack.c.l.b16 %v534
    %v638 = vunpack.c.l.b16 %v535
    %v639 = vunpack.c.l.b16 %v536
    %v640 = vunpack.c.l.b16 %v537
    %v641 = vunpack.c.l.b16 %v538
    %v642 = vunpack.c.l.b16 %v539
    %v643 = vunpack.c.l.b16 %v540
    %v644 = vunpack.c.l.b16 %v541
    %v645 = vunpack.c.l.b16 %v542
    %v646 = vunpack.c.l.b16 %v543
    %v647 = vunpack.c.l.b16 %v544
    %v648 = vunpack.c.l.b16 %v545
    %v649 = vunpack.c.l.b16 %v546
    %v650 = vunpack.c.l.b16 %v547
    %v651 = vunpack.c.l.b16 %v548
    %v652 = vunpack.c.l.b16 %v549
    %v653 = vunpack.c.l.b16 %v550
    %v654 = vunpack.c.l.b16 %v551
    %v655 = vunpack.c.l.b16 %v552
    %v656 = vunpack.c.l.b16 %v553
    %v657 = vunpack.c.l.b16 %v554
    %v658 = vunpack.c.l.b16 %v555
    %v659 = vunpack.c.l.b16 %v556
    %v660 = vunpack.c.l.b16 %v557
    %v661 = vunpack.c.l.b16 %v558
    %v662 = vunpack.c.l.b16 %v559
    %v663 = vunpack.c.l.b16 %v560
    %v664 = vunpack.c.l.b16 %v561
    %v665 = vunpack.c.l.b16 %v562
    %v666 = vunpack.c.l.b16 %v563
    %v667 = vunpack.c.l.b16 %v564
    %v668 = vpack.c.b16 %v621, %v620
    %v669 = vpack.c.b16 %v623, %v622
    %v670 = vpack.c.b16 %v625, %v624
    %v671 = vpack.c.b16 %v627, %v626
    %v672 = vpack.c.b16 %v629, %v628
    %v673 = vpack.c.b16 %v631, %v630
    %v674 = vpack.c.b16 %v633, %v632
    %v675 = vpack.c.b16 %v635, %v634
    %v676 = vpack.c.b16 %v637, %v636
    %v677 = vpack.c.b16 %v639, %v638
    %v678 = vpack.c.b16 %v641, %v640
    %v679 = vpack.c.b16 %v643, %v642
    %v680 = vpack.c.b16 %v645, %v644
    %v681 = vpack.c.b16 %v647, %v646
    %v682 = vpack.c.b16 %v649, %v648
    %v683 = vpack.c.b16 %v651, %v650
    %v684 = vpack.c.b16 %v653, %v652
    %v685 = vpack.c.b16 %v655, %v654
    %v686 = vpack.c.b16 %v657, %v656
    %v687 = vpack.c.b16 %v659, %v658
    %v688 = vpack.c.b16 %v661, %v660
    %v689 = vpack.c.b16 %v663, %v662
    %v690 = vpack.c.b16 %v665, %v664
    %v691 = vpack.c.b16 %v667, %v666
    %716 = vmatprep.subr.bf16.mxu0 0
    %717 = vmatpush1.bf16.msra.mxu0 %v668
    %718 = vmatprep.subr.bf16.mxu0 0
    %719 = vmatpush1.bf16.msra.mxu0 %v669
    %720 = vmatprep.subr.bf16.mxu0 0
    %721 = vmatpush1.bf16.msra.mxu0 %v670
    %722 = vmatprep.subr.bf16.mxu0 0
    %723 = vmatpush1.bf16.msra.mxu0 %v671
    %724 = vmatprep.subr.bf16.mxu0 0
    %725 = vmatpush1.bf16.msra.mxu0 %v672
    %726 = vmatprep.subr.bf16.mxu0 0
    %727 = vmatpush1.bf16.msra.mxu0 %v673
    %728 = vmatprep.subr.bf16.mxu0 0
    %729 = vmatpush1.bf16.msra.mxu0 %v674
    %730 = vmatprep.subr.bf16.mxu0 0
    %731 = vmatpush1.bf16.msra.mxu0 %v675
    %732 = vmatprep.subr.bf16.mxu0 0
    %733 = vmatpush1.bf16.msra.mxu0 %v676
    %734 = vmatprep.subr.bf16.mxu0 0
    %735 = vmatpush1.bf16.msra.mxu0 %v677
    %736 = vmatprep.subr.bf16.mxu0 0
    %737 = vmatpush1.bf16.msra.mxu0 %v678
    %738 = vmatprep.subr.bf16.mxu0 0
    %739 = vmatpush1.bf16.msra.mxu0 %v679
    %740 = vmatprep.subr.bf16.mxu0 0
    %741 = vmatpush1.bf16.msra.mxu0 %v680
    %742 = vmatprep.subr.bf16.mxu0 0
    %743 = vmatpush1.bf16.msra.mxu0 %v681
    %744 = vmatprep.subr.bf16.mxu0 0
    %745 = vmatpush1.bf16.msra.mxu0 %v682
    %746 = vmatprep.subr.bf16.mxu0 0
    %747 = vmatpush1.bf16.msra.mxu0 %v683
    %748 = vmatprep.mubr.bf16.mxu0 %v515
    %749 = vmatmul.mubr.bf16.gmra.mrb[0].mxu0 %v514
    %v750 = vpop.f32.mrb[0].mxu0
    %v751 = vadd.f32 %v570, %v750
    %v752 = vpop.f32.mrb[0].mxu0
    %v753 = vpop.f32.mrb[0].mxu0
    %v754 = vpop.f32.mrb[0].mxu0
    %755 = vdwg.mxu0
    %756 = vmatprep.subr.bf16.mxu0 0
    %757 = vmatpush1.bf16.msra.mxu0 %v684
    %758 = vmatprep.subr.bf16.mxu0 0
    %759 = vmatpush1.bf16.msra.mxu0 %v685
    %760 = vmatprep.subr.bf16.mxu0 0
    %761 = vmatpush1.bf16.msra.mxu0 %v686
    %762 = vmatprep.subr.bf16.mxu0 0
    %763 = vmatpush1.bf16.msra.mxu0 %v687
    %764 = vmatprep.subr.bf16.mxu0 0
    %765 = vmatpush1.bf16.msra.mxu0 %v688
    %766 = vmatprep.subr.bf16.mxu0 0
    %767 = vmatpush1.bf16.msra.mxu0 %v689
    %768 = vmatprep.subr.bf16.mxu0 0
    %769 = vmatpush1.bf16.msra.mxu0 %v690
    %770 = vmatprep.subr.bf16.mxu0 0
    %771 = vmatpush1.bf16.msra.mxu0 %v691
    %772 = vmatprep.subr.bf16.mxu0 0
    %773 = vmatpush1.bf16.msra.mxu0 0
    %774 = vmatprep.subr.bf16.mxu0 0
    %775 = vmatpush1.bf16.msra.mxu0 0
    %776 = vmatprep.subr.bf16.mxu0 0
    %777 = vmatpush1.bf16.msra.mxu0 0
    %778 = vmatprep.subr.bf16.mxu0 0
    %779 = vmatpush1.bf16.msra.mxu0 0
    %780 = vmatprep.subr.bf16.mxu0 0
    %781 = vmatpush1.bf16.msra.mxu0 0
    %782 = vmatprep.subr.bf16.mxu0 0
    %783 = vmatpush1.bf16.msra.mxu0 0
    %784 = vmatprep.subr.bf16.mxu0 0
    %785 = vmatpush1.bf16.msra.mxu0 0
    %786 = vmatprep.subr.bf16.mxu0 0
    %787 = vmatpush1.bf16.msra.mxu0 0
    %788 = vmatprep.mubr.bf16.mxu0 0
    %789 = vmatmul.mubr.bf16.gmra.mrb[0].mxu0 %v516
    %v790 = vpop.f32.mrb[0].mxu0
    %v791 = vadd.f32 %v751, %v790
    %v792 = vpop.f32.mrb[0].mxu0
    %v793 = vpop.f32.mrb[0].mxu0
    %v794 = vpop.f32.mrb[0].mxu0
    %795 = vdwg.mxu0
    %v796 = vadd.f32 %v227, %v791
    %v797 = vpack.c.bf16 %v796, %v796
    %798 = vst [vmem:[#allocation2] sm:$0xf] %v797
    %v799 = vld [vmem:[%s7] sm:$0xf]
    %v800 = vld [vmem:[%s7 + $0x4] sm:$0xf]
    %v801 = vld [vmem:[%s7 + $0x8] sm:$0xf]
    %v802 = vld [vmem:[%s7 + $0xc] sm:$0xf]
    %v803 = vld [vmem:[%s7 + $0x10] sm:$0xf]
    %v804 = vld [vmem:[%s7 + $0x14] sm:$0xf]
    %v805 = vld [vmem:[%s7 + $0x18] sm:$0xf]
    %v806 = vld [vmem:[%s7 + $0x1c] sm:$0xf]
    %v807 = vld [vmem:[%s7 + $0x20] sm:$0xf]
    %v808 = vld [vmem:[%s7 + $0x24] sm:$0xf]
    %v809 = vld [vmem:[%s7 + $0x28] sm:$0xf]
    %v810 = vld [vmem:[%s7 + $0x2c] sm:$0xf]
    %v811 = vld [vmem:[%s7 + $0x30] sm:$0xf]
    %v812 = vld [vmem:[%s7 + $0x34] sm:$0xf]
    %v813 = vld [vmem:[%s7 + $0x38] sm:$0xf]
    %v814 = vld [vmem:[%s7 + $0x3c] sm:$0xf]
    %v815 = vld [vmem:[%s8] sm:$0x1]
    %v817 = vlaneseq
    %v818 = vshrl.u32 %v817, 7
    %v819 = vsub.s32 0, %v818
    %v820 = vrot.slane %v815, %v819
    %v838 = vunpack.c.l.b16 %v799
    %v839 = vunpack.c.l.b16 %v800
    %v840 = vunpack.c.l.b16 %v801
    %v841 = vunpack.c.l.b16 %v802
    %v842 = vunpack.c.l.b16 %v803
    %v843 = vunpack.c.l.b16 %v804
    %v844 = vunpack.c.l.b16 %v805
    %v845 = vunpack.c.l.b16 %v806
    %v846 = vunpack.c.l.b16 %v807
    %v847 = vunpack.c.l.b16 %v808
    %v848 = vunpack.c.l.b16 %v809
    %v849 = vunpack.c.l.b16 %v810
    %v850 = vunpack.c.l.b16 %v811
    %v851 = vunpack.c.l.b16 %v812
    %v852 = vunpack.c.l.b16 %v813
    %v853 = vunpack.c.l.b16 %v814
    %v854 = vpack.c.b16 %v839, %v838
    %v855 = vpack.c.b16 %v841, %v840
    %v856 = vpack.c.b16 %v843, %v842
    %v857 = vpack.c.b16 %v845, %v844
    %v858 = vpack.c.b16 %v847, %v846
    %v859 = vpack.c.b16 %v849, %v848
    %v860 = vpack.c.b16 %v851, %v850
    %v861 = vpack.c.b16 %v853, %v852
    %870 = vmatprep.subr.bf16.mxu0 0
    %871 = vmatpush1.bf16.msra.mxu0 %v854
    %872 = vmatprep.subr.bf16.mxu0 0
    %873 = vmatpush1.bf16.msra.mxu0 %v855
    %874 = vmatprep.subr.bf16.mxu0 0
    %875 = vmatpush1.bf16.msra.mxu0 %v856
    %876 = vmatprep.subr.bf16.mxu0 0
    %877 = vmatpush1.bf16.msra.mxu0 %v857
    %878 = vmatprep.subr.bf16.mxu0 0
    %879 = vmatpush1.bf16.msra.mxu0 %v858
    %880 = vmatprep.subr.bf16.mxu0 0
    %881 = vmatpush1.bf16.msra.mxu0 %v859
    %882 = vmatprep.subr.bf16.mxu0 0
    %883 = vmatpush1.bf16.msra.mxu0 %v860
    %884 = vmatprep.subr.bf16.mxu0 0
    %885 = vmatpush1.bf16.msra.mxu0 %v861
    %886 = vmatprep.subr.bf16.mxu0 0
    %887 = vmatpush1.bf16.msra.mxu0 0
    %888 = vmatprep.subr.bf16.mxu0 0
    %889 = vmatpush1.bf16.msra.mxu0 0
    %890 = vmatprep.subr.bf16.mxu0 0
    %891 = vmatpush1.bf16.msra.mxu0 0
    %892 = vmatprep.subr.bf16.mxu0 0
    %893 = vmatpush1.bf16.msra.mxu0 0
    %894 = vmatprep.subr.bf16.mxu0 0
    %895 = vmatpush1.bf16.msra.mxu0 0
    %896 = vmatprep.subr.bf16.mxu0 0
    %897 = vmatpush1.bf16.msra.mxu0 0
    %898 = vmatprep.subr.bf16.mxu0 0
    %899 = vmatpush1.bf16.msra.mxu0 0
    %900 = vmatprep.subr.bf16.mxu0 0
    %901 = vmatpush1.bf16.msra.mxu0 0
    %902 = vmatprep.mubr.bf16.mxu0 0
    %903 = vmatmul.mubr.bf16.gmra.mrb[0].mxu0 %v797
    %v904 = vpop.f32.mrb[0].mxu0
    %v905 = vadd.f32 %v820, %v904
    %v906 = vpop.f32.mrb[0].mxu0
    %v907 = vpop.f32.mrb[0].mxu0
    %v908 = vpop.f32.mrb[0].mxu0
    %909 = vdwg.mxu0
    %v910 = vpack.c.bf16 %v905, %v905
    %vm911 = vcmask 519168
    %912 = vst.msk [vmem:[%s10] sm:$0xf] %vm911, %v910
    // Predicated region
    $region38: #{trans4pass_forward.8} parent=1 // pred_check
      _
    $region39: #{trans4pass_forward.8} parent=1 // pred_check_branch
      %914 = sbr.rel (0) target = $region41
    $region40: #{trans4pass_forward.8} parent=1 // pred_region
      %s916 = ssub.s32 64, 64
      %917 = vsyncadd [#allocation3], %s916
      %s919 = sshll.u32 [#allocation2], 4
      %s920 = int_to_ptr.vmem [resolvable:$true] %s919
      %922 = dma.vmem_to_hbm [thread:$0]  %s920, 64, %s9, [#allocation3]
    $region41: #{trans4pass_forward.8} parent=1 // pred_fallthru
      _
    // Predicated region
    $region42: #{trans4pass_forward.8} parent=1 // pred_check
      _
    $region43: #{trans4pass_forward.8} parent=1 // pred_check_branch
      %924 = sbr.rel (0) target = $region45
    $region44: #{trans4pass_forward.8} parent=1 // pred_region
      _
    $region45: #{trans4pass_forward.8} parent=1 // pred_fallthru
      _
    // Predicated region
    $region46: #{trans4pass_forward.8} parent=1 // pred_check
      _
    $region47: #{trans4pass_forward.8} parent=1 // pred_check_branch
      %926 = sbr.rel (0) target = $region49
    $region48: #{trans4pass_forward.8} parent=1 // pred_region
      %927 = dma.done [#allocation3], 64
    $region49: #{trans4pass_forward.8} parent=1 // pred_fallthru
      _
    // Predicated region
    $region50: #{trans4pass_forward.8} parent=1 // pred_check
      _
    $region51: #{trans4pass_forward.8} parent=1 // pred_check_branch
      %929 = sbr.rel (0) target = $region53
    $region52: #{trans4pass_forward.8} parent=1 // pred_region
      _
    $region53: #{trans4pass_forward.8} parent=1 // pred_fallthru
      _
    %930 = vsyncpa [#allocation3], 1

// kernel: trans4pass_forward.9
$region0: #{trans4pass_forward.9}
  #allocation0 [shape = 'u32[]', space=smem, size = 0x4, offset = 0x4, fixed_abs, tag = 'smem constant byte address 0x4 - core index']
  #allocation1 [shape = 'u32[144,128]{1,0:T(1,128)}', space=vmem, size = 0x12000, scoped, tag = 'internal scratch']
  %s0 = inlined_call_operand.vmem [shape: bf16[512,256], index: 0, kind: input, shape index: {}]
  %s1 = inlined_call_operand.vmem [shape: bf16[256,128], index: 1, kind: input, shape index: {}]
  %s2 = inlined_call_operand.vmem [shape: f32[1,128], index: 2, kind: input, shape index: {}, may-alias: {2,4}]
  %s3 = inlined_call_operand.vmem [shape: bf16[128,128], index: 3, kind: input, shape index: {}]
  %s4 = inlined_call_operand.vmem [shape: f32[1,128], index: 4, kind: input, shape index: {}, may-alias: {2,4}]
  %s5 = inlined_call_operand.vmem [shape: bf16[512,128], index: 5, kind: output, shape index: {}]
  %s6 = sld [smem:[#allocation0]]
  $region30: #{trans4pass_forward.9} parent=0
    _
  %s8 = ssub.s32 1, %s6
  %s9 = scalar_select 0, %s8, %s6
  // Predicated region
  $region2: #{trans4pass_forward.9} parent=0 // pred_check
    _
  $region3: #{trans4pass_forward.9} parent=0 // pred_check_branch
    %11 = sbr.rel (0) target = $region5
  $region4: #{trans4pass_forward.9} parent=0 // pred_region
    _
  $region5: #{trans4pass_forward.9} parent=0 // pred_fallthru
    _
  // Predicated region
  $region6: #{trans4pass_forward.9} parent=0 // pred_check
    _
  $region7: #{trans4pass_forward.9} parent=0 // pred_check_branch
    %13 = sbr.rel (0) target = $region9
  $region8: #{trans4pass_forward.9} parent=0 // pred_region
    _
  $region9: #{trans4pass_forward.9} parent=0 // pred_fallthru
    _
  // Predicated region
  $region10: #{trans4pass_forward.9} parent=0 // pred_check
    _
  $region11: #{trans4pass_forward.9} parent=0 // pred_check_branch
    %15 = sbr.rel (0) target = $region13
  $region12: #{trans4pass_forward.9} parent=0 // pred_region
    _
  $region13: #{trans4pass_forward.9} parent=0 // pred_fallthru
    _
  // Predicated region
  $region14: #{trans4pass_forward.9} parent=0 // pred_check
    _
  $region15: #{trans4pass_forward.9} parent=0 // pred_check_branch
    %17 = sbr.rel (0) target = $region17
  $region16: #{trans4pass_forward.9} parent=0 // pred_region
    _
  $region17: #{trans4pass_forward.9} parent=0 // pred_fallthru
    _
  // Predicated region
  $region18: #{trans4pass_forward.9} parent=0 // pred_check
    _
  $region19: #{trans4pass_forward.9} parent=0 // pred_check_branch
    %19 = sbr.rel (0) target = $region21
  $region20: #{trans4pass_forward.9} parent=0 // pred_region
    _
  $region21: #{trans4pass_forward.9} parent=0 // pred_fallthru
    _
  %v21 = vld [vmem:[%s0] sm:$0xff]
  %v22 = vld [vmem:[%s0 + $0x8] sm:$0xff]
  %v23 = vld [vmem:[%s0 + $0x10] sm:$0xff]
  %v24 = vld [vmem:[%s0 + $0x18] sm:$0xff]
  %v25 = vld [vmem:[%s0 + $0x20] sm:$0xff]
  %v26 = vld [vmem:[%s0 + $0x28] sm:$0xff]
  %v27 = vld [vmem:[%s0 + $0x30] sm:$0xff]
  %v28 = vld [vmem:[%s0 + $0x38] sm:$0xff]
  %v29 = vld [vmem:[%s0 + $0x40] sm:$0xff]
  %v30 = vld [vmem:[%s0 + $0x48] sm:$0xff]
  %v31 = vld [vmem:[%s0 + $0x50] sm:$0xff]
  %v32 = vld [vmem:[%s0 + $0x58] sm:$0xff]
  %v33 = vld [vmem:[%s0 + $0x60] sm:$0xff]
  %v34 = vld [vmem:[%s0 + $0x68] sm:$0xff]
  %v35 = vld [vmem:[%s0 + $0x70] sm:$0xff]
  %v36 = vld [vmem:[%s0 + $0x78] sm:$0xff]
  %v37 = vld [vmem:[%s0 + $0x80] sm:$0xff]
  %v38 = vld [vmem:[%s0 + $0x88] sm:$0xff]
  %v39 = vld [vmem:[%s0 + $0x90] sm:$0xff]
  %v40 = vld [vmem:[%s0 + $0x98] sm:$0xff]
  %v41 = vld [vmem:[%s0 + $0xa0] sm:$0xff]
  %v42 = vld [vmem:[%s0 + $0xa8] sm:$0xff]
  %v43 = vld [vmem:[%s0 + $0xb0] sm:$0xff]
  %v44 = vld [vmem:[%s0 + $0xb8] sm:$0xff]
  %v45 = vld [vmem:[%s0 + $0xc0] sm:$0xff]
  %v46 = vld [vmem:[%s0 + $0xc8] sm:$0xff]
  %v47 = vld [vmem:[%s0 + $0xd0] sm:$0xff]
  %v48 = vld [vmem:[%s0 + $0xd8] sm:$0xff]
  %v49 = vld [vmem:[%s0 + $0xe0] sm:$0xff]
  %v50 = vld [vmem:[%s0 + $0xe8] sm:$0xff]
  %v51 = vld [vmem:[%s0 + $0xf0] sm:$0xff]
  %v52 = vld [vmem:[%s0 + $0xf8] sm:$0xff]
  %v53 = vld [vmem:[%s0 + $0x100] sm:$0xff]
  %v54 = vld [vmem:[%s0 + $0x108] sm:$0xff]
  %v55 = vld [vmem:[%s0 + $0x110] sm:$0xff]
  %v56 = vld [vmem:[%s0 + $0x118] sm:$0xff]
  %v57 = vld [vmem:[%s0 + $0x120] sm:$0xff]
  %v58 = vld [vmem:[%s0 + $0x128] sm:$0xff]
  %v59 = vld [vmem:[%s0 + $0x130] sm:$0xff]
  %v60 = vld [vmem:[%s0 + $0x138] sm:$0xff]
  %v61 = vld [vmem:[%s0 + $0x140] sm:$0xff]
  %v62 = vld [vmem:[%s0 + $0x148] sm:$0xff]
  %v63 = vld [vmem:[%s0 + $0x150] sm:$0xff]
  %v64 = vld [vmem:[%s0 + $0x158] sm:$0xff]
  %v65 = vld [vmem:[%s0 + $0x160] sm:$0xff]
  %v66 = vld [vmem:[%s0 + $0x168] sm:$0xff]
  %v67 = vld [vmem:[%s0 + $0x170] sm:$0xff]
  %v68 = vld [vmem:[%s0 + $0x178] sm:$0xff]
  %v69 = vld [vmem:[%s0 + $0x180] sm:$0xff]
  %v70 = vld [vmem:[%s0 + $0x188] sm:$0xff]
  %v71 = vld [vmem:[%s0 + $0x190] sm:$0xff]
  %v72 = vld [vmem:[%s0 + $0x198] sm:$0xff]
  %v73 = vld [vmem:[%s0 + $0x1a0] sm:$0xff]
  %v74 = vld [vmem:[%s0 + $0x1a8] sm:$0xff]
  %v75 = vld [vmem:[%s0 + $0x1b0] sm:$0xff]
  %v76 = vld [vmem:[%s0 + $0x1b8] sm:$0xff]
  %v77 = vld [vmem:[%s0 + $0x1c0] sm:$0xff]
  %v78 = vld [vmem:[%s0 + $0x1c8] sm:$0xff]
  %v79 = vld [vmem:[%s0 + $0x1d0] sm:$0xff]
  %v80 = vld [vmem:[%s0 + $0x1d8] sm:$0xff]
  %v81 = vld [vmem:[%s0 + $0x1e0] sm:$0xff]
  %v82 = vld [vmem:[%s0 + $0x1e8] sm:$0xff]
  %v83 = vld [vmem:[%s0 + $0x1f0] sm:$0xff]
  %v84 = vld [vmem:[%s0 + $0x1f8] sm:$0xff]
  %v85 = vld [vmem:[%s1] sm:$0xf]
  %v86 = vld [vmem:[%s1 + $0x4] sm:$0xf]
  %v87 = vld [vmem:[%s1 + $0x8] sm:$0xf]
  %v88 = vld [vmem:[%s1 + $0xc] sm:$0xf]
  %v89 = vld [vmem:[%s1 + $0x10] sm:$0xf]
  %v90 = vld [vmem:[%s1 + $0x14] sm:$0xf]
  %v91 = vld [vmem:[%s1 + $0x18] sm:$0xf]
  %v92 = vld [vmem:[%s1 + $0x1c] sm:$0xf]
  %v93 = vld [vmem:[%s1 + $0x20] sm:$0xf]
  %v94 = vld [vmem:[%s1 + $0x24] sm:$0xf]
  %v95 = vld [vmem:[%s1 + $0x28] sm:$0xf]
  %v96 = vld [vmem:[%s1 + $0x2c] sm:$0xf]
  %v97 = vld [vmem:[%s1 + $0x30] sm:$0xf]
  %v98 = vld [vmem:[%s1 + $0x34] sm:$0xf]
  %v99 = vld [vmem:[%s1 + $0x38] sm:$0xf]
  %v100 = vld [vmem:[%s1 + $0x3c] sm:$0xf]
  %v101 = vld [vmem:[%s1 + $0x40] sm:$0xf]
  %v102 = vld [vmem:[%s1 + $0x44] sm:$0xf]
  %v103 = vld [vmem:[%s1 + $0x48] sm:$0xf]
  %v104 = vld [vmem:[%s1 + $0x4c] sm:$0xf]
  %v105 = vld [vmem:[%s1 + $0x50] sm:$0xf]
  %v106 = vld [vmem:[%s1 + $0x54] sm:$0xf]
  %v107 = vld [vmem:[%s1 + $0x58] sm:$0xf]
  %v108 = vld [vmem:[%s1 + $0x5c] sm:$0xf]
  %v109 = vld [vmem:[%s1 + $0x60] sm:$0xf]
  %v110 = vld [vmem:[%s1 + $0x64] sm:$0xf]
  %v111 = vld [vmem:[%s1 + $0x68] sm:$0xf]
  %v112 = vld [vmem:[%s1 + $0x6c] sm:$0xf]
  %v113 = vld [vmem:[%s1 + $0x70] sm:$0xf]
  %v114 = vld [vmem:[%s1 + $0x74] sm:$0xf]
  %v115 = vld [vmem:[%s1 + $0x78] sm:$0xf]
  %v116 = vld [vmem:[%s1 + $0x7c] sm:$0xf]
  %v117 = vld [vmem:[%s2] sm:$0x1]
  %v119 = vlaneseq
  %v120 = vshrl.u32 %v119, 7
  %v121 = vsub.s32 0, %v120
  %v122 = vrot.slane %v117, %v121
  %v188 = vunpack.c.l.b16 %v21
  %v189 = vunpack.c.h.b16 %v21
  %v190 = vunpack.c.l.b16 %v22
  %v191 = vunpack.c.h.b16 %v22
  %v192 = vunpack.c.l.b16 %v23
  %v193 = vunpack.c.h.b16 %v23
  %v194 = vunpack.c.l.b16 %v24
  %v195 = vunpack.c.h.b16 %v24
  %v196 = vunpack.c.l.b16 %v25
  %v197 = vunpack.c.h.b16 %v25
  %v198 = vunpack.c.l.b16 %v26
  %v199 = vunpack.c.h.b16 %v26
  %v200 = vunpack.c.l.b16 %v27
  %v201 = vunpack.c.h.b16 %v27
  %v202 = vunpack.c.l.b16 %v28
  %v203 = vunpack.c.h.b16 %v28
  %v204 = vunpack.c.l.b16 %v29
  %v205 = vunpack.c.h.b16 %v29
  %v206 = vunpack.c.l.b16 %v30
  %v207 = vunpack.c.h.b16 %v30
  %v208 = vunpack.c.l.b16 %v31
  %v209 = vunpack.c.h.b16 %v31
  %v210 = vunpack.c.l.b16 %v32
  %v211 = vunpack.c.h.b16 %v32
  %v212 = vunpack.c.l.b16 %v33
  %v213 = vunpack.c.h.b16 %v33
  %v214 = vunpack.c.l.b16 %v34
  %v215 = vunpack.c.h.b16 %v34
  %v216 = vunpack.c.l.b16 %v35
  %v217 = vunpack.c.h.b16 %v35
  %v218 = vunpack.c.l.b16 %v36
  %v219 = vunpack.c.h.b16 %v36
  %v220 = vunpack.c.l.b16 %v37
  %v221 = vunpack.c.h.b16 %v37
  %v222 = vunpack.c.l.b16 %v38
  %v223 = vunpack.c.h.b16 %v38
  %v224 = vunpack.c.l.b16 %v39
  %v225 = vunpack.c.h.b16 %v39
  %v226 = vunpack.c.l.b16 %v40
  %v227 = vunpack.c.h.b16 %v40
  %v228 = vunpack.c.l.b16 %v41
  %v229 = vunpack.c.h.b16 %v41
  %v230 = vunpack.c.l.b16 %v42
  %v231 = vunpack.c.h.b16 %v42
  %v232 = vunpack.c.l.b16 %v43
  %v233 = vunpack.c.h.b16 %v43
  %v234 = vunpack.c.l.b16 %v44
  %v235 = vunpack.c.h.b16 %v44
  %v236 = vunpack.c.l.b16 %v45
  %v237 = vunpack.c.h.b16 %v45
  %v238 = vunpack.c.l.b16 %v46
  %v239 = vunpack.c.h.b16 %v46
  %v240 = vunpack.c.l.b16 %v47
  %v241 = vunpack.c.h.b16 %v47
  %v242 = vunpack.c.l.b16 %v48
  %v243 = vunpack.c.h.b16 %v48
  %v244 = vunpack.c.l.b16 %v49
  %v245 = vunpack.c.h.b16 %v49
  %v246 = vunpack.c.l.b16 %v50
  %v247 = vunpack.c.h.b16 %v50
  %v248 = vunpack.c.l.b16 %v51
  %v249 = vunpack.c.h.b16 %v51
  %v250 = vunpack.c.l.b16 %v52
  %v251 = vunpack.c.h.b16 %v52
  %v252 = vunpack.c.l.b16 %v53
  %v253 = vunpack.c.h.b16 %v53
  %v254 = vunpack.c.l.b16 %v54
  %v255 = vunpack.c.h.b16 %v54
  %v256 = vunpack.c.l.b16 %v55
  %v257 = vunpack.c.h.b16 %v55
  %v258 = vunpack.c.l.b16 %v56
  %v259 = vunpack.c.h.b16 %v56
  %v260 = vunpack.c.l.b16 %v57
  %v261 = vunpack.c.h.b16 %v57
  %v262 = vunpack.c.l.b16 %v58
  %v263 = vunpack.c.h.b16 %v58
  %v264 = vunpack.c.l.b16 %v59
  %v265 = vunpack.c.h.b16 %v59
  %v266 = vunpack.c.l.b16 %v60
  %v267 = vunpack.c.h.b16 %v60
  %v268 = vunpack.c.l.b16 %v61
  %v269 = vunpack.c.h.b16 %v61
  %v270 = vunpack.c.l.b16 %v62
  %v271 = vunpack.c.h.b16 %v62
  %v272 = vunpack.c.l.b16 %v63
  %v273 = vunpack.c.h.b16 %v63
  %v274 = vunpack.c.l.b16 %v64
  %v275 = vunpack.c.h.b16 %v64
  %v276 = vunpack.c.l.b16 %v65
  %v277 = vunpack.c.h.b16 %v65
  %v278 = vunpack.c.l.b16 %v66
  %v279 = vunpack.c.h.b16 %v66
  %v280 = vunpack.c.l.b16 %v67
  %v281 = vunpack.c.h.b16 %v67
  %v282 = vunpack.c.l.b16 %v68
  %v283 = vunpack.c.h.b16 %v68
  %v284 = vunpack.c.l.b16 %v69
  %v285 = vunpack.c.h.b16 %v69
  %v286 = vunpack.c.l.b16 %v70
  %v287 = vunpack.c.h.b16 %v70
  %v288 = vunpack.c.l.b16 %v71
  %v289 = vunpack.c.h.b16 %v71
  %v290 = vunpack.c.l.b16 %v72
  %v291 = vunpack.c.h.b16 %v72
  %v292 = vunpack.c.l.b16 %v73
  %v293 = vunpack.c.h.b16 %v73
  %v294 = vunpack.c.l.b16 %v74
  %v295 = vunpack.c.h.b16 %v74
  %v296 = vunpack.c.l.b16 %v75
  %v297 = vunpack.c.h.b16 %v75
  %v298 = vunpack.c.l.b16 %v76
  %v299 = vunpack.c.h.b16 %v76
  %v300 = vunpack.c.l.b16 %v77
  %v301 = vunpack.c.h.b16 %v77
  %v302 = vunpack.c.l.b16 %v78
  %v303 = vunpack.c.h.b16 %v78
  %v304 = vunpack.c.l.b16 %v79
  %v305 = vunpack.c.h.b16 %v79
  %v306 = vunpack.c.l.b16 %v80
  %v307 = vunpack.c.h.b16 %v80
  %v308 = vunpack.c.l.b16 %v81
  %v309 = vunpack.c.h.b16 %v81
  %v310 = vunpack.c.l.b16 %v82
  %v311 = vunpack.c.h.b16 %v82
  %v312 = vunpack.c.l.b16 %v83
  %v313 = vunpack.c.h.b16 %v83
  %v314 = vunpack.c.l.b16 %v84
  %v315 = vunpack.c.h.b16 %v84
  %v316 = vpack.c.b16 %v190, %v188
  %v317 = vpack.c.b16 %v191, %v189
  %v318 = vpack.c.b16 %v194, %v192
  %v319 = vpack.c.b16 %v195, %v193
  %v320 = vpack.c.b16 %v198, %v196
  %v321 = vpack.c.b16 %v199, %v197
  %v322 = vpack.c.b16 %v202, %v200
  %v323 = vpack.c.b16 %v203, %v201
  %v324 = vpack.c.b16 %v206, %v204
  %v325 = vpack.c.b16 %v207, %v205
  %v326 = vpack.c.b16 %v210, %v208
  %v327 = vpack.c.b16 %v211, %v209
  %v328 = vpack.c.b16 %v214, %v212
  %v329 = vpack.c.b16 %v215, %v213
  %v330 = vpack.c.b16 %v218, %v216
  %v331 = vpack.c.b16 %v219, %v217
  %v332 = vpack.c.b16 %v222, %v220
  %v333 = vpack.c.b16 %v223, %v221
  %v334 = vpack.c.b16 %v226, %v224
  %v335 = vpack.c.b16 %v227, %v225
  %v336 = vpack.c.b16 %v230, %v228
  %v337 = vpack.c.b16 %v231, %v229
  %v338 = vpack.c.b16 %v234, %v232
  %v339 = vpack.c.b16 %v235, %v233
  %v340 = vpack.c.b16 %v238, %v236
  %v341 = vpack.c.b16 %v239, %v237
  %v342 = vpack.c.b16 %v242, %v240
  %v343 = vpack.c.b16 %v243, %v241
  %v344 = vpack.c.b16 %v246, %v244
  %v345 = vpack.c.b16 %v247, %v245
  %v346 = vpack.c.b16 %v250, %v248
  %v347 = vpack.c.b16 %v251, %v249
  %v348 = vpack.c.b16 %v254, %v252
  %v349 = vpack.c.b16 %v255, %v253
  %v350 = vpack.c.b16 %v258, %v256
  %v351 = vpack.c.b16 %v259, %v257
  %v352 = vpack.c.b16 %v262, %v260
  %v353 = vpack.c.b16 %v263, %v261
  %v354 = vpack.c.b16 %v266, %v264
  %v355 = vpack.c.b16 %v267, %v265
  %v356 = vpack.c.b16 %v270, %v268
  %v357 = vpack.c.b16 %v271, %v269
  %v358 = vpack.c.b16 %v274, %v272
  %v359 = vpack.c.b16 %v275, %v273
  %v360 = vpack.c.b16 %v278, %v276
  %v361 = vpack.c.b16 %v279, %v277
  %v362 = vpack.c.b16 %v282, %v280
  %v363 = vpack.c.b16 %v283, %v281
  %v364 = vpack.c.b16 %v286, %v284
  %v365 = vpack.c.b16 %v287, %v285
  %v366 = vpack.c.b16 %v290, %v288
  %v367 = vpack.c.b16 %v291, %v289
  %v368 = vpack.c.b16 %v294, %v292
  %v369 = vpack.c.b16 %v295, %v293
  %v370 = vpack.c.b16 %v298, %v296
  %v371 = vpack.c.b16 %v299, %v297
  %v372 = vpack.c.b16 %v302, %v300
  %v373 = vpack.c.b16 %v303, %v301
  %v374 = vpack.c.b16 %v306, %v304
  %v375 = vpack.c.b16 %v307, %v305
  %v376 = vpack.c.b16 %v310, %v308
  %v377 = vpack.c.b16 %v311, %v309
  %v378 = vpack.c.b16 %v314, %v312
  %v379 = vpack.c.b16 %v315, %v313
  %v476 = vunpack.c.l.b16 %v85
  %v477 = vunpack.c.l.b16 %v86
  %v478 = vunpack.c.l.b16 %v87
  %v479 = vunpack.c.l.b16 %v88
  %v480 = vunpack.c.l.b16 %v89
  %v481 = vunpack.c.l.b16 %v90
  %v482 = vunpack.c.l.b16 %v91
  %v483 = vunpack.c.l.b16 %v92
  %v484 = vunpack.c.l.b16 %v93
  %v485 = vunpack.c.l.b16 %v94
  %v486 = vunpack.c.l.b16 %v95
  %v487 = vunpack.c.l.b16 %v96
  %v488 = vunpack.c.l.b16 %v97
  %v489 = vunpack.c.l.b16 %v98
  %v490 = vunpack.c.l.b16 %v99
  %v491 = vunpack.c.l.b16 %v100
  %v492 = vunpack.c.l.b16 %v101
  %v493 = vunpack.c.l.b16 %v102
  %v494 = vunpack.c.l.b16 %v103
  %v495 = vunpack.c.l.b16 %v104
  %v496 = vunpack.c.l.b16 %v105
  %v497 = vunpack.c.l.b16 %v106
  %v498 = vunpack.c.l.b16 %v107
  %v499 = vunpack.c.l.b16 %v108
  %v500 = vunpack.c.l.b16 %v109
  %v501 = vunpack.c.l.b16 %v110
  %v502 = vunpack.c.l.b16 %v111
  %v503 = vunpack.c.l.b16 %v112
  %v504 = vunpack.c.l.b16 %v113
  %v505 = vunpack.c.l.b16 %v114
  %v506 = vunpack.c.l.b16 %v115
  %v507 = vunpack.c.l.b16 %v116
  %v508 = vpack.c.b16 %v477, %v476
  %v509 = vpack.c.b16 %v479, %v478
  %v510 = vpack.c.b16 %v481, %v480
  %v511 = vpack.c.b16 %v483, %v482
  %v512 = vpack.c.b16 %v485, %v484
  %v513 = vpack.c.b16 %v487, %v486
  %v514 = vpack.c.b16 %v489, %v488
  %v515 = vpack.c.b16 %v491, %v490
  %v516 = vpack.c.b16 %v493, %v492
  %v517 = vpack.c.b16 %v495, %v494
  %v518 = vpack.c.b16 %v497, %v496
  %v519 = vpack.c.b16 %v499, %v498
  %v520 = vpack.c.b16 %v501, %v500
  %v521 = vpack.c.b16 %v503, %v502
  %v522 = vpack.c.b16 %v505, %v504
  %v523 = vpack.c.b16 %v507, %v506
  %540 = vmatprep.subr.bf16.mxu0 0
  %541 = vmatpush1.bf16.msra.mxu0 %v508
  %542 = vmatprep.subr.bf16.mxu0 0
  %543 = vmatpush1.bf16.msra.mxu0 %v509
  %544 = vmatprep.subr.bf16.mxu0 0
  %545 = vmatpush1.bf16.msra.mxu0 %v510
  %546 = vmatprep.subr.bf16.mxu0 0
  %547 = vmatpush1.bf16.msra.mxu0 %v511
  %548 = vmatprep.subr.bf16.mxu0 0
  %549 = vmatpush1.bf16.msra.mxu0 %v512
  %550 = vmatprep.subr.bf16.mxu0 0
  %551 = vmatpush1.bf16.msra.mxu0 %v513
  %552 = vmatprep.subr.bf16.mxu0 0
  %553 = vmatpush1.bf16.msra.mxu0 %v514
  %554 = vmatprep.subr.bf16.mxu0 0
  %555 = vmatpush1.bf16.msra.mxu0 %v515
  %556 = vmatprep.subr.bf16.mxu0 0
  %557 = vmatpush1.bf16.msra.mxu0 %v516
  %558 = vmatprep.subr.bf16.mxu0 0
  %559 = vmatpush1.bf16.msra.mxu0 %v517
  %560 = vmatprep.subr.bf16.mxu0 0
  %561 = vmatpush1.bf16.msra.mxu0 %v518
  %562 = vmatprep.subr.bf16.mxu0 0
  %563 = vmatpush1.bf16.msra.mxu0 %v519
  %564 = vmatprep.subr.bf16.mxu0 0
  %565 = vmatpush1.bf16.msra.mxu0 %v520
  %566 = vmatprep.subr.bf16.mxu0 0
  %567 = vmatpush1.bf16.msra.mxu0 %v521
  %568 = vmatprep.subr.bf16.mxu0 0
  %569 = vmatpush1.bf16.msra.mxu0 %v522
  %570 = vmatprep.subr.bf16.mxu0 0
  %571 = vmatpush1.bf16.msra.mxu0 %v523
  %572 = vmatprep.mubr.bf16.mxu0 %v317
  %573 = vmatmul.mubr.bf16.gmra.mrb[0].mxu0 %v316
  %v574 = vpop.f32.mrb[0].mxu0
  %v575 = vadd.f32 %v122, %v574
  %v576 = vpop.f32.mrb[0].mxu0
  %v577 = vpop.f32.mrb[0].mxu0
  %v578 = vadd.f32 %v122, %v577
  %v579 = vpop.f32.mrb[0].mxu0
  %580 = vmatprep.mubr.bf16.mxu0 %v319
  %581 = vmatmul.mubr.bf16.gmra.mrb[0].mxu0 %v318
  %v582 = vpop.f32.mrb[0].mxu0
  %v583 = vadd.f32 %v122, %v582
  %v584 = vpop.f32.mrb[0].mxu0
  %v585 = vpop.f32.mrb[0].mxu0
  %v586 = vadd.f32 %v122, %v585
  %v587 = vpop.f32.mrb[0].mxu0
  %588 = vmatprep.mubr.bf16.mxu0 %v321
  %589 = vmatmul.mubr.bf16.gmra.mrb[0].mxu0 %v320
  %v590 = vpop.f32.mrb[0].mxu0
  %v591 = vadd.f32 %v122, %v590
  %v592 = vpop.f32.mrb[0].mxu0
  %v593 = vpop.f32.mrb[0].mxu0
  %v594 = vadd.f32 %v122, %v593
  %v595 = vpop.f32.mrb[0].mxu0
  %596 = vmatprep.mubr.bf16.mxu0 %v323
  %597 = vmatmul.mubr.bf16.gmra.mrb[0].mxu0 %v322
  %v598 = vpop.f32.mrb[0].mxu0
  %v599 = vadd.f32 %v122, %v598
  %v600 = vpop.f32.mrb[0].mxu0
  %v601 = vpop.f32.mrb[0].mxu0
  %v602 = vadd.f32 %v122, %v601
  %v603 = vpop.f32.mrb[0].mxu0
  %604 = vmatprep.mubr.bf16.mxu0 %v325
  %605 = vmatmul.mubr.bf16.gmra.mrb[0].mxu0 %v324
  %v606 = vpop.f32.mrb[0].mxu0
  %v607 = vadd.f32 %v122, %v606
  %v608 = vpop.f32.mrb[0].mxu0
  %v609 = vpop.f32.mrb[0].mxu0
  %v610 = vadd.f32 %v122, %v609
  %v611 = vpop.f32.mrb[0].mxu0
  %612 = vmatprep.mubr.bf16.mxu0 %v327
  %613 = vmatmul.mubr.bf16.gmra.mrb[0].mxu0 %v326
  %v614 = vpop.f32.mrb[0].mxu0
  %v615 = vadd.f32 %v122, %v614
  %v616 = vpop.f32.mrb[0].mxu0
  %v617 = vpop.f32.mrb[0].mxu0
  %v618 = vadd.f32 %v122, %v617
  %v619 = vpop.f32.mrb[0].mxu0
  %620 = vmatprep.mubr.bf16.mxu0 %v329
  %621 = vmatmul.mubr.bf16.gmra.mrb[0].mxu0 %v328
  %v622 = vpop.f32.mrb[0].mxu0
  %v623 = vadd.f32 %v122, %v622
  %v624 = vpop.f32.mrb[0].mxu0
  %v625 = vpop.f32.mrb[0].mxu0
  %v626 = vadd.f32 %v122, %v625
  %v627 = vpop.f32.mrb[0].mxu0
  %628 = vmatprep.mubr.bf16.mxu0 %v331
  %629 = vmatmul.mubr.bf16.gmra.mrb[0].mxu0 %v330
  %v630 = vpop.f32.mrb[0].mxu0
  %v631 = vadd.f32 %v122, %v630
  %v632 = vpop.f32.mrb[0].mxu0
  %v633 = vpop.f32.mrb[0].mxu0
  %v634 = vadd.f32 %v122, %v633
  %v635 = vpop.f32.mrb[0].mxu0
  %636 = vmatprep.mubr.bf16.mxu0 %v333
  %637 = vmatmul.mubr.bf16.gmra.mrb[0].mxu0 %v332
  %v638 = vpop.f32.mrb[0].mxu0
  %v639 = vadd.f32 %v122, %v638
  %v640 = vpop.f32.mrb[0].mxu0
  %v641 = vpop.f32.mrb[0].mxu0
  %v642 = vadd.f32 %v122, %v641
  %v643 = vpop.f32.mrb[0].mxu0
  %644 = vmatprep.mubr.bf16.mxu0 %v335
  %645 = vmatmul.mubr.bf16.gmra.mrb[0].mxu0 %v334
  %v646 = vpop.f32.mrb[0].mxu0
  %v647 = vadd.f32 %v122, %v646
  %v648 = vpop.f32.mrb[0].mxu0
  %v649 = vpop.f32.mrb[0].mxu0
  %v650 = vadd.f32 %v122, %v649
  %v651 = vpop.f32.mrb[0].mxu0
  %652 = vmatprep.mubr.bf16.mxu0 %v337
  %653 = vmatmul.mubr.bf16.gmra.mrb[0].mxu0 %v336
  %v654 = vpop.f32.mrb[0].mxu0
  %v655 = vadd.f32 %v122, %v654
  %v656 = vpop.f32.mrb[0].mxu0
  %v657 = vpop.f32.mrb[0].mxu0
  %v658 = vadd.f32 %v122, %v657
  %v659 = vpop.f32.mrb[0].mxu0
  %660 = vmatprep.mubr.bf16.mxu0 %v339
  %661 = vmatmul.mubr.bf16.gmra.mrb[0].mxu0 %v338
  %v662 = vpop.f32.mrb[0].mxu0
  %v663 = vadd.f32 %v122, %v662
  %v664 = vpop.f32.mrb[0].mxu0
  %v665 = vpop.f32.mrb[0].mxu0
  %v666 = vadd.f32 %v122, %v665
  %v667 = vpop.f32.mrb[0].mxu0
  %668 = vmatprep.mubr.bf16.mxu0 %v341
  %669 = vmatmul.mubr.bf16.gmra.mrb[0].mxu0 %v340
  %v670 = vpop.f32.mrb[0].mxu0
  %v671 = vadd.f32 %v122, %v670
  %v672 = vpop.f32.mrb[0].mxu0
  %v673 = vpop.f32.mrb[0].mxu0
  %v674 = vadd.f32 %v122, %v673
  %v675 = vpop.f32.mrb[0].mxu0
  %676 = vmatprep.mubr.bf16.mxu0 %v343
  %677 = vmatmul.mubr.bf16.gmra.mrb[0].mxu0 %v342
  %v678 = vpop.f32.mrb[0].mxu0
  %v679 = vadd.f32 %v122, %v678
  %v680 = vpop.f32.mrb[0].mxu0
  %v681 = vpop.f32.mrb[0].mxu0
  %v682 = vadd.f32 %v122, %v681
  %v683 = vpop.f32.mrb[0].mxu0
  %684 = vmatprep.mubr.bf16.mxu0 %v345
  %685 = vmatmul.mubr.bf16.gmra.mrb[0].mxu0 %v344
  %v686 = vpop.f32.mrb[0].mxu0
  %v687 = vadd.f32 %v122, %v686
  %v688 = vpop.f32.mrb[0].mxu0
  %v689 = vpop.f32.mrb[0].mxu0
  %v690 = vadd.f32 %v122, %v689
  %v691 = vpop.f32.mrb[0].mxu0
  %692 = vmatprep.mubr.bf16.mxu0 %v347
  %693 = vmatmul.mubr.bf16.gmra.mrb[0].mxu0 %v346
  %v694 = vpop.f32.mrb[0].mxu0
  %v695 = vadd.f32 %v122, %v694
  %v696 = vpop.f32.mrb[0].mxu0
  %v697 = vpop.f32.mrb[0].mxu0
  %v698 = vadd.f32 %v122, %v697
  %v699 = vpop.f32.mrb[0].mxu0
  %700 = vmatprep.mubr.bf16.mxu0 %v349
  %701 = vmatmul.mubr.bf16.gmra.mrb[0].mxu0 %v348
  %v702 = vpop.f32.mrb[0].mxu0
  %v703 = vadd.f32 %v122, %v702
  %v704 = vpop.f32.mrb[0].mxu0
  %v705 = vpop.f32.mrb[0].mxu0
  %v706 = vadd.f32 %v122, %v705
  %v707 = vpop.f32.mrb[0].mxu0
  %708 = vmatprep.mubr.bf16.mxu0 %v351
  %709 = vmatmul.mubr.bf16.gmra.mrb[0].mxu0 %v350
  %v710 = vpop.f32.mrb[0].mxu0
  %v711 = vadd.f32 %v122, %v710
  %v712 = vpop.f32.mrb[0].mxu0
  %v713 = vpop.f32.mrb[0].mxu0
  %v714 = vadd.f32 %v122, %v713
  %v715 = vpop.f32.mrb[0].mxu0
  %716 = vmatprep.mubr.bf16.mxu0 %v353
  %717 = vmatmul.mubr.bf16.gmra.mrb[0].mxu0 %v352
  %v718 = vpop.f32.mrb[0].mxu0
  %v719 = vadd.f32 %v122, %v718
  %v720 = vpop.f32.mrb[0].mxu0
  %v721 = vpop.f32.mrb[0].mxu0
  %v722 = vadd.f32 %v122, %v721
  %v723 = vpop.f32.mrb[0].mxu0
  %724 = vmatprep.mubr.bf16.mxu0 %v355
  %725 = vmatmul.mubr.bf16.gmra.mrb[0].mxu0 %v354
  %v726 = vpop.f32.mrb[0].mxu0
  %v727 = vadd.f32 %v122, %v726
  %v728 = vpop.f32.mrb[0].mxu0
  %v729 = vpop.f32.mrb[0].mxu0
  %v730 = vadd.f32 %v122, %v729
  %v731 = vpop.f32.mrb[0].mxu0
  %732 = vmatprep.mubr.bf16.mxu0 %v357
  %733 = vmatmul.mubr.bf16.gmra.mrb[0].mxu0 %v356
  %v734 = vpop.f32.mrb[0].mxu0
  %v735 = vadd.f32 %v122, %v734
  %v736 = vpop.f32.mrb[0].mxu0
  %v737 = vpop.f32.mrb[0].mxu0
  %v738 = vadd.f32 %v122, %v737
  %v739 = vpop.f32.mrb[0].mxu0
  %740 = vmatprep.mubr.bf16.mxu0 %v359
  %741 = vmatmul.mubr.bf16.gmra.mrb[0].mxu0 %v358
  %v742 = vpop.f32.mrb[0].mxu0
  %v743 = vadd.f32 %v122, %v742
  %v744 = vpop.f32.mrb[0].mxu0
  %v745 = vpop.f32.mrb[0].mxu0
  %v746 = vadd.f32 %v122, %v745
  %v747 = vpop.f32.mrb[0].mxu0
  %748 = vmatprep.mubr.bf16.mxu0 %v361
  %749 = vmatmul.mubr.bf16.gmra.mrb[0].mxu0 %v360
  %v750 = vpop.f32.mrb[0].mxu0
  %v751 = vadd.f32 %v122, %v750
  %v752 = vpop.f32.mrb[0].mxu0
  %v753 = vpop.f32.mrb[0].mxu0
  %v754 = vadd.f32 %v122, %v753
  %v755 = vpop.f32.mrb[0].mxu0
  %756 = vmatprep.mubr.bf16.mxu0 %v363
  %757 = vmatmul.mubr.bf16.gmra.mrb[0].mxu0 %v362
  %v758 = vpop.f32.mrb[0].mxu0
  %v759 = vadd.f32 %v122, %v758
  %v760 = vpop.f32.mrb[0].mxu0
  %v761 = vpop.f32.mrb[0].mxu0
  %v762 = vadd.f32 %v122, %v761
  %v763 = vpop.f32.mrb[0].mxu0
  %764 = vmatprep.mubr.bf16.mxu0 %v365
  %765 = vmatmul.mubr.bf16.gmra.mrb[0].mxu0 %v364
  %v766 = vpop.f32.mrb[0].mxu0
  %v767 = vadd.f32 %v122, %v766
  %v768 = vpop.f32.mrb[0].mxu0
  %v769 = vpop.f32.mrb[0].mxu0
  %v770 = vadd.f32 %v122, %v769
  %v771 = vpop.f32.mrb[0].mxu0
  %772 = vmatprep.mubr.bf16.mxu0 %v367
  %773 = vmatmul.mubr.bf16.gmra.mrb[0].mxu0 %v366
  %v774 = vpop.f32.mrb[0].mxu0
  %v775 = vadd.f32 %v122, %v774
  %v776 = vpop.f32.mrb[0].mxu0
  %v777 = vpop.f32.mrb[0].mxu0
  %v778 = vadd.f32 %v122, %v777
  %v779 = vpop.f32.mrb[0].mxu0
  %780 = vmatprep.mubr.bf16.mxu0 %v369
  %781 = vmatmul.mubr.bf16.gmra.mrb[0].mxu0 %v368
  %v782 = vpop.f32.mrb[0].mxu0
  %v783 = vadd.f32 %v122, %v782
  %v784 = vpop.f32.mrb[0].mxu0
  %v785 = vpop.f32.mrb[0].mxu0
  %v786 = vadd.f32 %v122, %v785
  %v787 = vpop.f32.mrb[0].mxu0
  %788 = vmatprep.mubr.bf16.mxu0 %v371
  %789 = vmatmul.mubr.bf16.gmra.mrb[0].mxu0 %v370
  %v790 = vpop.f32.mrb[0].mxu0
  %v791 = vadd.f32 %v122, %v790
  %v792 = vpop.f32.mrb[0].mxu0
  %v793 = vpop.f32.mrb[0].mxu0
  %v794 = vadd.f32 %v122, %v793
  %v795 = vpop.f32.mrb[0].mxu0
  %796 = vmatprep.mubr.bf16.mxu0 %v373
  %797 = vmatmul.mubr.bf16.gmra.mrb[0].mxu0 %v372
  %v798 = vpop.f32.mrb[0].mxu0
  %v799 = vadd.f32 %v122, %v798
  %v800 = vpop.f32.mrb[0].mxu0
  %v801 = vpop.f32.mrb[0].mxu0
  %v802 = vadd.f32 %v122, %v801
  %v803 = vpop.f32.mrb[0].mxu0
  %804 = vmatprep.mubr.bf16.mxu0 %v375
  %805 = vmatmul.mubr.bf16.gmra.mrb[0].mxu0 %v374
  %v806 = vpop.f32.mrb[0].mxu0
  %v807 = vadd.f32 %v122, %v806
  %v808 = vpop.f32.mrb[0].mxu0
  %v809 = vpop.f32.mrb[0].mxu0
  %v810 = vadd.f32 %v122, %v809
  %v811 = vpop.f32.mrb[0].mxu0
  %812 = vmatprep.mubr.bf16.mxu0 %v377
  %813 = vmatmul.mubr.bf16.gmra.mrb[0].mxu0 %v376
  %v814 = vpop.f32.mrb[0].mxu0
  %v815 = vadd.f32 %v122, %v814
  %v816 = vpop.f32.mrb[0].mxu0
  %v817 = vpop.f32.mrb[0].mxu0
  %v818 = vadd.f32 %v122, %v817
  %v819 = vpop.f32.mrb[0].mxu0
  %820 = vmatprep.mubr.bf16.mxu0 %v379
  %821 = vmatmul.mubr.bf16.gmra.mrb[0].mxu0 %v378
  %v822 = vpop.f32.mrb[0].mxu0
  %v823 = vadd.f32 %v122, %v822
  %v824 = vpop.f32.mrb[0].mxu0
  %v825 = vpop.f32.mrb[0].mxu0
  %v826 = vadd.f32 %v122, %v825
  %v827 = vpop.f32.mrb[0].mxu0
  %828 = vdwg.mxu0
  %v829 = vmul.f32 %v575, %v575
  %v830 = vmul.f32 %v578, %v578
  %v831 = vmul.f32 %v583, %v583
  %v832 = vmul.f32 %v586, %v586
  %v833 = vmul.f32 %v591, %v591
  %v834 = vmul.f32 %v594, %v594
  %v835 = vmul.f32 %v599, %v599
  %v836 = vmul.f32 %v602, %v602
  %v837 = vmul.f32 %v607, %v607
  %v838 = vmul.f32 %v610, %v610
  %v839 = vmul.f32 %v615, %v615
  %v840 = vmul.f32 %v618, %v618
  %v841 = vmul.f32 %v623, %v623
  %v842 = vmul.f32 %v626, %v626
  %v843 = vmul.f32 %v631, %v631
  %v844 = vmul.f32 %v634, %v634
  %v845 = vmul.f32 %v639, %v639
  %v846 = vmul.f32 %v642, %v642
  %v847 = vmul.f32 %v647, %v647
  %v848 = vmul.f32 %v650, %v650
  %v849 = vmul.f32 %v655, %v655
  %v850 = vmul.f32 %v658, %v658
  %v851 = vmul.f32 %v663, %v663
  %v852 = vmul.f32 %v666, %v666
  %v853 = vmul.f32 %v671, %v671
  %v854 = vmul.f32 %v674, %v674
  %v855 = vmul.f32 %v679, %v679
  %v856 = vmul.f32 %v682, %v682
  %v857 = vmul.f32 %v687, %v687
  %v858 = vmul.f32 %v690, %v690
  %v859 = vmul.f32 %v695, %v695
  %v860 = vmul.f32 %v698, %v698
  %v861 = vmul.f32 %v703, %v703
  %v862 = vmul.f32 %v706, %v706
  %v863 = vmul.f32 %v711, %v711
  %v864 = vmul.f32 %v714, %v714
  %v865 = vmul.f32 %v719, %v719
  %v866 = vmul.f32 %v722, %v722
  %v867 = vmul.f32 %v727, %v727
  %v868 = vmul.f32 %v730, %v730
  %v869 = vmul.f32 %v735, %v735
  %v870 = vmul.f32 %v738, %v738
  %v871 = vmul.f32 %v743, %v743
  %v872 = vmul.f32 %v746, %v746
  %v873 = vmul.f32 %v751, %v751
  %v874 = vmul.f32 %v754, %v754
  %v875 = vmul.f32 %v759, %v759
  %v876 = vmul.f32 %v762, %v762
  %v877 = vmul.f32 %v767, %v767
  %v878 = vmul.f32 %v770, %v770
  %v879 = vmul.f32 %v775, %v775
  %v880 = vmul.f32 %v778, %v778
  %v881 = vmul.f32 %v783, %v783
  %v882 = vmul.f32 %v786, %v786
  %v883 = vmul.f32 %v791, %v791
  %v884 = vmul.f32 %v794, %v794
  %v885 = vmul.f32 %v799, %v799
  %v886 = vmul.f32 %v802, %v802
  %v887 = vmul.f32 %v807, %v807
  %v888 = vmul.f32 %v810, %v810
  %v889 = vmul.f32 %v815, %v815
  %v890 = vmul.f32 %v818, %v818
  %v891 = vmul.f32 %v823, %v823
  %v892 = vmul.f32 %v826, %v826
  %v893 = vmul.f32 %v575, %v829
  %v894 = vmul.f32 %v578, %v830
  %v895 = vmul.f32 %v583, %v831
  %v896 = vmul.f32 %v586, %v832
  %v897 = vmul.f32 %v591, %v833
  %v898 = vmul.f32 %v594, %v834
  %v899 = vmul.f32 %v599, %v835
  %v900 = vmul.f32 %v602, %v836
  %v901 = vmul.f32 %v607, %v837
  %v902 = vmul.f32 %v610, %v838
  %v903 = vmul.f32 %v615, %v839
  %v904 = vmul.f32 %v618, %v840
  %v905 = vmul.f32 %v623, %v841
  %v906 = vmul.f32 %v626, %v842
  %v907 = vmul.f32 %v631, %v843
  %v908 = vmul.f32 %v634, %v844
  %v909 = vmul.f32 %v639, %v845
  %v910 = vmul.f32 %v642, %v846
  %v911 = vmul.f32 %v647, %v847
  %v912 = vmul.f32 %v650, %v848
  %v913 = vmul.f32 %v655, %v849
  %v914 = vmul.f32 %v658, %v850
  %v915 = vmul.f32 %v663, %v851
  %v916 = vmul.f32 %v666, %v852
  %v917 = vmul.f32 %v671, %v853
  %v918 = vmul.f32 %v674, %v854
  %v919 = vmul.f32 %v679, %v855
  %v920 = vmul.f32 %v682, %v856
  %v921 = vmul.f32 %v687, %v857
  %v922 = vmul.f32 %v690, %v858
  %v923 = vmul.f32 %v695, %v859
  %v924 = vmul.f32 %v698, %v860
  %v925 = vmul.f32 %v703, %v861
  %v926 = vmul.f32 %v706, %v862
  %v927 = vmul.f32 %v711, %v863
  %v928 = vmul.f32 %v714, %v864
  %v929 = vmul.f32 %v719, %v865
  %v930 = vmul.f32 %v722, %v866
  %v931 = vmul.f32 %v727, %v867
  %v932 = vmul.f32 %v730, %v868
  %v933 = vmul.f32 %v735, %v869
  %v934 = vmul.f32 %v738, %v870
  %v935 = vmul.f32 %v743, %v871
  %v936 = vmul.f32 %v746, %v872
  %v937 = vmul.f32 %v751, %v873
  %v938 = vmul.f32 %v754, %v874
  %v939 = vmul.f32 %v759, %v875
  %v940 = vmul.f32 %v762, %v876
  %v941 = vmul.f32 %v767, %v877
  %v942 = vmul.f32 %v770, %v878
  %v943 = vmul.f32 %v775, %v879
  %v944 = vmul.f32 %v778, %v880
  %v945 = vmul.f32 %v783, %v881
  %v946 = vmul.f32 %v786, %v882
  %v947 = vmul.f32 %v791, %v883
  %v948 = vmul.f32 %v794, %v884
  %v949 = vmul.f32 %v799, %v885
  %v950 = vmul.f32 %v802, %v886
  %v951 = vmul.f32 %v807, %v887
  %v952 = vmul.f32 %v810, %v888
  %v953 = vmul.f32 %v815, %v889
  %v954 = vmul.f32 %v818, %v890
  %v955 = vmul.f32 %v823, %v891
  %v956 = vmul.f32 %v826, %v892
  %v957 = vmul.f32 %v893, 0.044715
  %v958 = vmul.f32 %v894, 0.044715
  %v959 = vmul.f32 %v895, 0.044715
  %v960 = vmul.f32 %v896, 0.044715
  %v961 = vmul.f32 %v897, 0.044715
  %v962 = vmul.f32 %v898, 0.044715
  %v963 = vmul.f32 %v899, 0.044715
  %v964 = vmul.f32 %v900, 0.044715
  %v965 = vmul.f32 %v901, 0.044715
  %v966 = vmul.f32 %v902, 0.044715
  %v967 = vmul.f32 %v903, 0.044715
  %v968 = vmul.f32 %v904, 0.044715
  %v969 = vmul.f32 %v905, 0.044715
  %v970 = vmul.f32 %v906, 0.044715
  %v971 = vmul.f32 %v907, 0.044715
  %v972 = vmul.f32 %v908, 0.044715
  %v973 = vmul.f32 %v909, 0.044715
  %v974 = vmul.f32 %v910, 0.044715
  %v975 = vmul.f32 %v911, 0.044715
  %v976 = vmul.f32 %v912, 0.044715
  %v977 = vmul.f32 %v913, 0.044715
  %v978 = vmul.f32 %v914, 0.044715
  %v979 = vmul.f32 %v915, 0.044715
  %v980 = vmul.f32 %v916, 0.044715
  %v981 = vmul.f32 %v917, 0.044715
  %v982 = vmul.f32 %v918, 0.044715
  %v983 = vmul.f32 %v919, 0.044715
  %v984 = vmul.f32 %v920, 0.044715
  %v985 = vmul.f32 %v921, 0.044715
  %v986 = vmul.f32 %v922, 0.044715
  %v987 = vmul.f32 %v923, 0.044715
  %v988 = vmul.f32 %v924, 0.044715
  %v989 = vmul.f32 %v925, 0.044715
  %v990 = vmul.f32 %v926, 0.044715
  %v991 = vmul.f32 %v927, 0.044715
  %v992 = vmul.f32 %v928, 0.044715
  %v993 = vmul.f32 %v929, 0.044715
  %v994 = vmul.f32 %v930, 0.044715
  %v995 = vmul.f32 %v931, 0.044715
  %v996 = vmul.f32 %v932, 0.044715
  %v997 = vmul.f32 %v933, 0.044715
  %v998 = vmul.f32 %v934, 0.044715
  %v999 = vmul.f32 %v935, 0.044715
  %v1000 = vmul.f32 %v936, 0.044715
  %v1001 = vmul.f32 %v937, 0.044715
  %v1002 = vmul.f32 %v938, 0.044715
  %v1003 = vmul.f32 %v939, 0.044715
  %v1004 = vmul.f32 %v940, 0.044715
  %v1005 = vmul.f32 %v941, 0.044715
  %v1006 = vmul.f32 %v942, 0.044715
  %v1007 = vmul.f32 %v943, 0.044715
  %v1008 = vmul.f32 %v944, 0.044715
  %v1009 = vmul.f32 %v945, 0.044715
  %v1010 = vmul.f32 %v946, 0.044715
  %v1011 = vmul.f32 %v947, 0.044715
  %v1012 = vmul.f32 %v948, 0.044715
  %v1013 = vmul.f32 %v949, 0.044715
  %v1014 = vmul.f32 %v950, 0.044715
  %v1015 = vmul.f32 %v951, 0.044715
  %v1016 = vmul.f32 %v952, 0.044715
  %v1017 = vmul.f32 %v953, 0.044715
  %v1018 = vmul.f32 %v954, 0.044715
  %v1019 = vmul.f32 %v955, 0.044715
  %v1020 = vmul.f32 %v956, 0.044715
  %v1021 = vadd.f32 %v575, %v957
  %v1022 = vadd.f32 %v578, %v958
  %v1023 = vadd.f32 %v583, %v959
  %v1024 = vadd.f32 %v586, %v960
  %v1025 = vadd.f32 %v591, %v961
  %v1026 = vadd.f32 %v594, %v962
  %v1027 = vadd.f32 %v599, %v963
  %v1028 = vadd.f32 %v602, %v964
  %v1029 = vadd.f32 %v607, %v965
  %v1030 = vadd.f32 %v610, %v966
  %v1031 = vadd.f32 %v615, %v967
  %v1032 = vadd.f32 %v618, %v968
  %v1033 = vadd.f32 %v623, %v969
  %v1034 = vadd.f32 %v626, %v970
  %v1035 = vadd.f32 %v631, %v971
  %v1036 = vadd.f32 %v634, %v972
  %v1037 = vadd.f32 %v639, %v973
  %v1038 = vadd.f32 %v642, %v974
  %v1039 = vadd.f32 %v647, %v975
  %v1040 = vadd.f32 %v650, %v976
  %v1041 = vadd.f32 %v655, %v977
  %v1042 = vadd.f32 %v658, %v978
  %v1043 = vadd.f32 %v663, %v979
  %v1044 = vadd.f32 %v666, %v980
  %v1045 = vadd.f32 %v671, %v981
  %v1046 = vadd.f32 %v674, %v982
  %v1047 = vadd.f32 %v679, %v983
  %v1048 = vadd.f32 %v682, %v984
  %v1049 = vadd.f32 %v687, %v985
  %v1050 = vadd.f32 %v690, %v986
  %v1051 = vadd.f32 %v695, %v987
  %v1052 = vadd.f32 %v698, %v988
  %v1053 = vadd.f32 %v703, %v989
  %v1054 = vadd.f32 %v706, %v990
  %v1055 = vadd.f32 %v711, %v991
  %v1056 = vadd.f32 %v714, %v992
  %v1057 = vadd.f32 %v719, %v993
  %v1058 = vadd.f32 %v722, %v994
  %v1059 = vadd.f32 %v727, %v995
  %v1060 = vadd.f32 %v730, %v996
  %v1061 = vadd.f32 %v735, %v997
  %v1062 = vadd.f32 %v738, %v998
  %v1063 = vadd.f32 %v743, %v999
  %v1064 = vadd.f32 %v746, %v1000
  %v1065 = vadd.f32 %v751, %v1001
  %v1066 = vadd.f32 %v754, %v1002
  %v1067 = vadd.f32 %v759, %v1003
  %v1068 = vadd.f32 %v762, %v1004
  %v1069 = vadd.f32 %v767, %v1005
  %v1070 = vadd.f32 %v770, %v1006
  %v1071 = vadd.f32 %v775, %v1007
  %v1072 = vadd.f32 %v778, %v1008
  %v1073 = vadd.f32 %v783, %v1009
  %v1074 = vadd.f32 %v786, %v1010
  %v1075 = vadd.f32 %v791, %v1011
  %v1076 = vadd.f32 %v794, %v1012
  %v1077 = vadd.f32 %v799, %v1013
  %v1078 = vadd.f32 %v802, %v1014
  %v1079 = vadd.f32 %v807, %v1015
  %v1080 = vadd.f32 %v810, %v1016
  %v1081 = vadd.f32 %v815, %v1017
  %v1082 = vadd.f32 %v818, %v1018
  %v1083 = vadd.f32 %v823, %v1019
  %v1084 = vadd.f32 %v826, %v1020
  %v1085 = vmul.f32 %v1021, 0.7978846
  %v1086 = vmul.f32 %v1022, 0.7978846
  %v1087 = vmul.f32 %v1023, 0.7978846
  %v1088 = vmul.f32 %v1024, 0.7978846
  %v1089 = vmul.f32 %v1025, 0.7978846
  %v1090 = vmul.f32 %v1026, 0.7978846
  %v1091 = vmul.f32 %v1027, 0.7978846
  %v1092 = vmul.f32 %v1028, 0.7978846
  %v1093 = vmul.f32 %v1029, 0.7978846
  %v1094 = vmul.f32 %v1030, 0.7978846
  %v1095 = vmul.f32 %v1031, 0.7978846
  %v1096 = vmul.f32 %v1032, 0.7978846
  %v1097 = vmul.f32 %v1033, 0.7978846
  %v1098 = vmul.f32 %v1034, 0.7978846
  %v1099 = vmul.f32 %v1035, 0.7978846
  %v1100 = vmul.f32 %v1036, 0.7978846
  %v1101 = vmul.f32 %v1037, 0.7978846
  %v1102 = vmul.f32 %v1038, 0.7978846
  %v1103 = vmul.f32 %v1039, 0.7978846
  %v1104 = vmul.f32 %v1040, 0.7978846
  %v1105 = vmul.f32 %v1041, 0.7978846
  %v1106 = vmul.f32 %v1042, 0.7978846
  %v1107 = vmul.f32 %v1043, 0.7978846
  %v1108 = vmul.f32 %v1044, 0.7978846
  %v1109 = vmul.f32 %v1045, 0.7978846
  %v1110 = vmul.f32 %v1046, 0.7978846
  %v1111 = vmul.f32 %v1047, 0.7978846
  %v1112 = vmul.f32 %v1048, 0.7978846
  %v1113 = vmul.f32 %v1049, 0.7978846
  %v1114 = vmul.f32 %v1050, 0.7978846
  %v1115 = vmul.f32 %v1051, 0.7978846
  %v1116 = vmul.f32 %v1052, 0.7978846
  %v1117 = vmul.f32 %v1053, 0.7978846
  %v1118 = vmul.f32 %v1054, 0.7978846
  %v1119 = vmul.f32 %v1055, 0.7978846
  %v1120 = vmul.f32 %v1056, 0.7978846
  %v1121 = vmul.f32 %v1057, 0.7978846
  %v1122 = vmul.f32 %v1058, 0.7978846
  %v1123 = vmul.f32 %v1059, 0.7978846
  %v1124 = vmul.f32 %v1060, 0.7978846
  %v1125 = vmul.f32 %v1061, 0.7978846
  %v1126 = vmul.f32 %v1062, 0.7978846
  %v1127 = vmul.f32 %v1063, 0.7978846
  %v1128 = vmul.f32 %v1064, 0.7978846
  %v1129 = vmul.f32 %v1065, 0.7978846
  %v1130 = vmul.f32 %v1066, 0.7978846
  %v1131 = vmul.f32 %v1067, 0.7978846
  %v1132 = vmul.f32 %v1068, 0.7978846
  %v1133 = vmul.f32 %v1069, 0.7978846
  %v1134 = vmul.f32 %v1070, 0.7978846
  %v1135 = vmul.f32 %v1071, 0.7978846
  %v1136 = vmul.f32 %v1072, 0.7978846
  %v1137 = vmul.f32 %v1073, 0.7978846
  %v1138 = vmul.f32 %v1074, 0.7978846
  %v1139 = vmul.f32 %v1075, 0.7978846
  %v1140 = vmul.f32 %v1076, 0.7978846
  %v1141 = vmul.f32 %v1077, 0.7978846
  %v1142 = vmul.f32 %v1078, 0.7978846
  %v1143 = vmul.f32 %v1079, 0.7978846
  %v1144 = vmul.f32 %v1080, 0.7978846
  %v1145 = vmul.f32 %v1081, 0.7978846
  %v1146 = vmul.f32 %v1082, 0.7978846
  %v1147 = vmul.f32 %v1083, 0.7978846
  %v1148 = vmul.f32 %v1084, 0.7978846
  %v1149 = vtanh.pop %v1085
  %v1150 = vtanh.pop %v1086
  %v1151 = vtanh.pop %v1087
  %v1152 = vtanh.pop %v1088
  %v1153 = vtanh.pop %v1089
  %v1154 = vtanh.pop %v1090
  %v1155 = vtanh.pop %v1091
  %v1156 = vtanh.pop %v1092
  %v1157 = vtanh.pop %v1093
  %v1158 = vtanh.pop %v1094
  %v1159 = vtanh.pop %v1095
  %v1160 = vtanh.pop %v1096
  %v1161 = vtanh.pop %v1097
  %v1162 = vtanh.pop %v1098
  %v1163 = vtanh.pop %v1099
  %v1164 = vtanh.pop %v1100
  %v1165 = vtanh.pop %v1101
  %v1166 = vtanh.pop %v1102
  %v1167 = vtanh.pop %v1103
  %v1168 = vtanh.pop %v1104
  %v1169 = vtanh.pop %v1105
  %v1170 = vtanh.pop %v1106
  %v1171 = vtanh.pop %v1107
  %v1172 = vtanh.pop %v1108
  %v1173 = vtanh.pop %v1109
  %v1174 = vtanh.pop %v1110
  %v1175 = vtanh.pop %v1111
  %v1176 = vtanh.pop %v1112
  %v1177 = vtanh.pop %v1113
  %v1178 = vtanh.pop %v1114
  %v1179 = vtanh.pop %v1115
  %v1180 = vtanh.pop %v1116
  %v1181 = vtanh.pop %v1117
  %v1182 = vtanh.pop %v1118
  %v1183 = vtanh.pop %v1119
  %v1184 = vtanh.pop %v1120
  %v1185 = vtanh.pop %v1121
  %v1186 = vtanh.pop %v1122
  %v1187 = vtanh.pop %v1123
  %v1188 = vtanh.pop %v1124
  %v1189 = vtanh.pop %v1125
  %v1190 = vtanh.pop %v1126
  %v1191 = vtanh.pop %v1127
  %v1192 = vtanh.pop %v1128
  %v1193 = vtanh.pop %v1129
  %v1194 = vtanh.pop %v1130
  %v1195 = vtanh.pop %v1131
  %v1196 = vtanh.pop %v1132
  %v1197 = vtanh.pop %v1133
  %v1198 = vtanh.pop %v1134
  %v1199 = vtanh.pop %v1135
  %v1200 = vtanh.pop %v1136
  %v1201 = vtanh.pop %v1137
  %v1202 = vtanh.pop %v1138
  %v1203 = vtanh.pop %v1139
  %v1204 = vtanh.pop %v1140
  %v1205 = vtanh.pop %v1141
  %v1206 = vtanh.pop %v1142
  %v1207 = vtanh.pop %v1143
  %v1208 = vtanh.pop %v1144
  %v1209 = vtanh.pop %v1145
  %v1210 = vtanh.pop %v1146
  %v1211 = vtanh.pop %v1147
  %v1212 = vtanh.pop %v1148
  %v1213 = vadd.f32 %v1149, 1.0
  %v1214 = vadd.f32 %v1150, 1.0
  %v1215 = vadd.f32 %v1151, 1.0
  %v1216 = vadd.f32 %v1152, 1.0
  %v1217 = vadd.f32 %v1153, 1.0
  %v1218 = vadd.f32 %v1154, 1.0
  %v1219 = vadd.f32 %v1155, 1.0
  %v1220 = vadd.f32 %v1156, 1.0
  %v1221 = vadd.f32 %v1157, 1.0
  %v1222 = vadd.f32 %v1158, 1.0
  %v1223 = vadd.f32 %v1159, 1.0
  %v1224 = vadd.f32 %v1160, 1.0
  %v1225 = vadd.f32 %v1161, 1.0
  %v1226 = vadd.f32 %v1162, 1.0
  %v1227 = vadd.f32 %v1163, 1.0
  %v1228 = vadd.f32 %v1164, 1.0
  %v1229 = vadd.f32 %v1165, 1.0
  %v1230 = vadd.f32 %v1166, 1.0
  %v1231 = vadd.f32 %v1167, 1.0
  %v1232 = vadd.f32 %v1168, 1.0
  %v1233 = vadd.f32 %v1169, 1.0
  %v1234 = vadd.f32 %v1170, 1.0
  %v1235 = vadd.f32 %v1171, 1.0
  %v1236 = vadd.f32 %v1172, 1.0
  %v1237 = vadd.f32 %v1173, 1.0
  %v1238 = vadd.f32 %v1174, 1.0
  %v1239 = vadd.f32 %v1175, 1.0
  %v1240 = vadd.f32 %v1176, 1.0
  %v1241 = vadd.f32 %v1177, 1.0
  %v1242 = vadd.f32 %v1178, 1.0
  %v1243 = vadd.f32 %v1179, 1.0
  %v1244 = vadd.f32 %v1180, 1.0
  %v1245 = vadd.f32 %v1181, 1.0
  %v1246 = vadd.f32 %v1182, 1.0
  %v1247 = vadd.f32 %v1183, 1.0
  %v1248 = vadd.f32 %v1184, 1.0
  %v1249 = vadd.f32 %v1185, 1.0
  %v1250 = vadd.f32 %v1186, 1.0
  %v1251 = vadd.f32 %v1187, 1.0
  %v1252 = vadd.f32 %v1188, 1.0
  %v1253 = vadd.f32 %v1189, 1.0
  %v1254 = vadd.f32 %v1190, 1.0
  %v1255 = vadd.f32 %v1191, 1.0
  %v1256 = vadd.f32 %v1192, 1.0
  %v1257 = vadd.f32 %v1193, 1.0
  %v1258 = vadd.f32 %v1194, 1.0
  %v1259 = vadd.f32 %v1195, 1.0
  %v1260 = vadd.f32 %v1196, 1.0
  %v1261 = vadd.f32 %v1197, 1.0
  %v1262 = vadd.f32 %v1198, 1.0
  %v1263 = vadd.f32 %v1199, 1.0
  %v1264 = vadd.f32 %v1200, 1.0
  %v1265 = vadd.f32 %v1201, 1.0
  %v1266 = vadd.f32 %v1202, 1.0
  %v1267 = vadd.f32 %v1203, 1.0
  %v1268 = vadd.f32 %v1204, 1.0
  %v1269 = vadd.f32 %v1205, 1.0
  %v1270 = vadd.f32 %v1206, 1.0
  %v1271 = vadd.f32 %v1207, 1.0
  %v1272 = vadd.f32 %v1208, 1.0
  %v1273 = vadd.f32 %v1209, 1.0
  %v1274 = vadd.f32 %v1210, 1.0
  %v1275 = vadd.f32 %v1211, 1.0
  %v1276 = vadd.f32 %v1212, 1.0
  %v1277 = vmul.f32 %v1213, 0.5
  %v1278 = vmul.f32 %v1214, 0.5
  %v1279 = vmul.f32 %v1215, 0.5
  %v1280 = vmul.f32 %v1216, 0.5
  %v1281 = vmul.f32 %v1217, 0.5
  %v1282 = vmul.f32 %v1218, 0.5
  %v1283 = vmul.f32 %v1219, 0.5
  %v1284 = vmul.f32 %v1220, 0.5
  %v1285 = vmul.f32 %v1221, 0.5
  %v1286 = vmul.f32 %v1222, 0.5
  %v1287 = vmul.f32 %v1223, 0.5
  %v1288 = vmul.f32 %v1224, 0.5
  %v1289 = vmul.f32 %v1225, 0.5
  %v1290 = vmul.f32 %v1226, 0.5
  %v1291 = vmul.f32 %v1227, 0.5
  %v1292 = vmul.f32 %v1228, 0.5
  %v1293 = vmul.f32 %v1229, 0.5
  %v1294 = vmul.f32 %v1230, 0.5
  %v1295 = vmul.f32 %v1231, 0.5
  %v1296 = vmul.f32 %v1232, 0.5
  %v1297 = vmul.f32 %v1233, 0.5
  %v1298 = vmul.f32 %v1234, 0.5
  %v1299 = vmul.f32 %v1235, 0.5
  %v1300 = vmul.f32 %v1236, 0.5
  %v1301 = vmul.f32 %v1237, 0.5
  %v1302 = vmul.f32 %v1238, 0.5
  %v1303 = vmul.f32 %v1239, 0.5
  %v1304 = vmul.f32 %v1240, 0.5
  %v1305 = vmul.f32 %v1241, 0.5
  %v1306 = vmul.f32 %v1242, 0.5
  %v1307 = vmul.f32 %v1243, 0.5
  %v1308 = vmul.f32 %v1244, 0.5
  %v1309 = vmul.f32 %v1245, 0.5
  %v1310 = vmul.f32 %v1246, 0.5
  %v1311 = vmul.f32 %v1247, 0.5
  %v1312 = vmul.f32 %v1248, 0.5
  %v1313 = vmul.f32 %v1249, 0.5
  %v1314 = vmul.f32 %v1250, 0.5
  %v1315 = vmul.f32 %v1251, 0.5
  %v1316 = vmul.f32 %v1252, 0.5
  %v1317 = vmul.f32 %v1253, 0.5
  %v1318 = vmul.f32 %v1254, 0.5
  %v1319 = vmul.f32 %v1255, 0.5
  %v1320 = vmul.f32 %v1256, 0.5
  %v1321 = vmul.f32 %v1257, 0.5
  %v1322 = vmul.f32 %v1258, 0.5
  %v1323 = vmul.f32 %v1259, 0.5
  %v1324 = vmul.f32 %v1260, 0.5
  %v1325 = vmul.f32 %v1261, 0.5
  %v1326 = vmul.f32 %v1262, 0.5
  %v1327 = vmul.f32 %v1263, 0.5
  %v1328 = vmul.f32 %v1264, 0.5
  %v1329 = vmul.f32 %v1265, 0.5
  %v1330 = vmul.f32 %v1266, 0.5
  %v1331 = vmul.f32 %v1267, 0.5
  %v1332 = vmul.f32 %v1268, 0.5
  %v1333 = vmul.f32 %v1269, 0.5
  %v1334 = vmul.f32 %v1270, 0.5
  %v1335 = vmul.f32 %v1271, 0.5
  %v1336 = vmul.f32 %v1272, 0.5
  %v1337 = vmul.f32 %v1273, 0.5
  %v1338 = vmul.f32 %v1274, 0.5
  %v1339 = vmul.f32 %v1275, 0.5
  %v1340 = vmul.f32 %v1276, 0.5
  %v1341 = vmul.f32 %v575, %v1277
  %v1342 = vmul.f32 %v578, %v1278
  %v1343 = vmul.f32 %v583, %v1279
  %v1344 = vmul.f32 %v586, %v1280
  %v1345 = vmul.f32 %v591, %v1281
  %v1346 = vmul.f32 %v594, %v1282
  %v1347 = vmul.f32 %v599, %v1283
  %v1348 = vmul.f32 %v602, %v1284
  %v1349 = vmul.f32 %v607, %v1285
  %v1350 = vmul.f32 %v610, %v1286
  %v1351 = vmul.f32 %v615, %v1287
  %v1352 = vmul.f32 %v618, %v1288
  %v1353 = vmul.f32 %v623, %v1289
  %v1354 = vmul.f32 %v626, %v1290
  %v1355 = vmul.f32 %v631, %v1291
  %v1356 = vmul.f32 %v634, %v1292
  %v1357 = vmul.f32 %v639, %v1293
  %v1358 = vmul.f32 %v642, %v1294
  %v1359 = vmul.f32 %v647, %v1295
  %v1360 = vmul.f32 %v650, %v1296
  %v1361 = vmul.f32 %v655, %v1297
  %v1362 = vmul.f32 %v658, %v1298
  %v1363 = vmul.f32 %v663, %v1299
  %v1364 = vmul.f32 %v666, %v1300
  %v1365 = vmul.f32 %v671, %v1301
  %v1366 = vmul.f32 %v674, %v1302
  %v1367 = vmul.f32 %v679, %v1303
  %v1368 = vmul.f32 %v682, %v1304
  %v1369 = vmul.f32 %v687, %v1305
  %v1370 = vmul.f32 %v690, %v1306
  %v1371 = vmul.f32 %v695, %v1307
  %v1372 = vmul.f32 %v698, %v1308
  %v1373 = vmul.f32 %v703, %v1309
  %v1374 = vmul.f32 %v706, %v1310
  %v1375 = vmul.f32 %v711, %v1311
  %v1376 = vmul.f32 %v714, %v1312
  %v1377 = vmul.f32 %v719, %v1313
  %v1378 = vmul.f32 %v722, %v1314
  %v1379 = vmul.f32 %v727, %v1315
  %v1380 = vmul.f32 %v730, %v1316
  %v1381 = vmul.f32 %v735, %v1317
  %v1382 = vmul.f32 %v738, %v1318
  %v1383 = vmul.f32 %v743, %v1319
  %v1384 = vmul.f32 %v746, %v1320
  %v1385 = vmul.f32 %v751, %v1321
  %v1386 = vmul.f32 %v754, %v1322
  %v1387 = vmul.f32 %v759, %v1323
  %v1388 = vmul.f32 %v762, %v1324
  %v1389 = vmul.f32 %v767, %v1325
  %v1390 = vmul.f32 %v770, %v1326
  %v1391 = vmul.f32 %v775, %v1327
  %v1392 = vmul.f32 %v778, %v1328
  %v1393 = vmul.f32 %v783, %v1329
  %v1394 = vmul.f32 %v786, %v1330
  %v1395 = vmul.f32 %v791, %v1331
  %v1396 = vmul.f32 %v794, %v1332
  %v1397 = vmul.f32 %v799, %v1333
  %v1398 = vmul.f32 %v802, %v1334
  %v1399 = vmul.f32 %v807, %v1335
  %v1400 = vmul.f32 %v810, %v1336
  %v1401 = vmul.f32 %v815, %v1337
  %v1402 = vmul.f32 %v818, %v1338
  %v1403 = vmul.f32 %v823, %v1339
  %v1404 = vmul.f32 %v826, %v1340
  %v1405 = vpack.c.bf16 %v1342, %v1341
  %v1406 = vpack.c.bf16 %v1344, %v1343
  %v1407 = vpack.c.bf16 %v1346, %v1345
  %v1408 = vpack.c.bf16 %v1348, %v1347
  %v1409 = vpack.c.bf16 %v1350, %v1349
  %v1410 = vpack.c.bf16 %v1352, %v1351
  %v1411 = vpack.c.bf16 %v1354, %v1353
  %v1412 = vpack.c.bf16 %v1356, %v1355
  %v1413 = vpack.c.bf16 %v1358, %v1357
  %v1414 = vpack.c.bf16 %v1360, %v1359
  %v1415 = vpack.c.bf16 %v1362, %v1361
  %v1416 = vpack.c.bf16 %v1364, %v1363
  %v1417 = vpack.c.bf16 %v1366, %v1365
  %v1418 = vpack.c.bf16 %v1368, %v1367
  %v1419 = vpack.c.bf16 %v1370, %v1369
  %v1420 = vpack.c.bf16 %v1372, %v1371
  %v1421 = vpack.c.bf16 %v1374, %v1373
  %v1422 = vpack.c.bf16 %v1376, %v1375
  %v1423 = vpack.c.bf16 %v1378, %v1377
  %v1424 = vpack.c.bf16 %v1380, %v1379
  %v1425 = vpack.c.bf16 %v1382, %v1381
  %v1426 = vpack.c.bf16 %v1384, %v1383
  %v1427 = vpack.c.bf16 %v1386, %v1385
  %v1428 = vpack.c.bf16 %v1388, %v1387
  %v1429 = vpack.c.bf16 %v1390, %v1389
  %v1430 = vpack.c.bf16 %v1392, %v1391
  %v1431 = vpack.c.bf16 %v1394, %v1393
  %v1432 = vpack.c.bf16 %v1396, %v1395
  %v1433 = vpack.c.bf16 %v1398, %v1397
  %v1434 = vpack.c.bf16 %v1400, %v1399
  %v1435 = vpack.c.bf16 %v1402, %v1401
  %v1436 = vpack.c.bf16 %v1404, %v1403
  %v1437 = vld [vmem:[%s3] sm:$0xf]
  %v1438 = vld [vmem:[%s3 + $0x4] sm:$0xf]
  %v1439 = vld [vmem:[%s3 + $0x8] sm:$0xf]
  %v1440 = vld [vmem:[%s3 + $0xc] sm:$0xf]
  %v1441 = vld [vmem:[%s3 + $0x10] sm:$0xf]
  %v1442 = vld [vmem:[%s3 + $0x14] sm:$0xf]
  %v1443 = vld [vmem:[%s3 + $0x18] sm:$0xf]
  %v1444 = vld [vmem:[%s3 + $0x1c] sm:$0xf]
  %v1445 = vld [vmem:[%s3 + $0x20] sm:$0xf]
  %v1446 = vld [vmem:[%s3 + $0x24] sm:$0xf]
  %v1447 = vld [vmem:[%s3 + $0x28] sm:$0xf]
  %v1448 = vld [vmem:[%s3 + $0x2c] sm:$0xf]
  %v1449 = vld [vmem:[%s3 + $0x30] sm:$0xf]
  %v1450 = vld [vmem:[%s3 + $0x34] sm:$0xf]
  %v1451 = vld [vmem:[%s3 + $0x38] sm:$0xf]
  %v1452 = vld [vmem:[%s3 + $0x3c] sm:$0xf]
  %v1453 = vld [vmem:[%s4] sm:$0x1]
  %v1455 = vlaneseq
  %v1456 = vshrl.u32 %v1455, 7
  %v1457 = vsub.s32 0, %v1456
  %v1458 = vrot.slane %v1453, %v1457
  %v1476 = vunpack.c.l.b16 %v1437
  %v1477 = vunpack.c.l.b16 %v1438
  %v1478 = vunpack.c.l.b16 %v1439
  %v1479 = vunpack.c.l.b16 %v1440
  %v1480 = vunpack.c.l.b16 %v1441
  %v1481 = vunpack.c.l.b16 %v1442
  %v1482 = vunpack.c.l.b16 %v1443
  %v1483 = vunpack.c.l.b16 %v1444
  %v1484 = vunpack.c.l.b16 %v1445
  %v1485 = vunpack.c.l.b16 %v1446
  %v1486 = vunpack.c.l.b16 %v1447
  %v1487 = vunpack.c.l.b16 %v1448
  %v1488 = vunpack.c.l.b16 %v1449
  %v1489 = vunpack.c.l.b16 %v1450
  %v1490 = vunpack.c.l.b16 %v1451
  %v1491 = vunpack.c.l.b16 %v1452
  %v1492 = vpack.c.b16 %v1477, %v1476
  %v1493 = vpack.c.b16 %v1479, %v1478
  %v1494 = vpack.c.b16 %v1481, %v1480
  %v1495 = vpack.c.b16 %v1483, %v1482
  %v1496 = vpack.c.b16 %v1485, %v1484
  %v1497 = vpack.c.b16 %v1487, %v1486
  %v1498 = vpack.c.b16 %v1489, %v1488
  %v1499 = vpack.c.b16 %v1491, %v1490
  %1508 = vmatprep.subr.bf16.mxu0 0
  %1509 = vmatpush1.bf16.msra.mxu0 %v1492
  %1510 = vmatprep.subr.bf16.mxu0 0
  %1511 = vmatpush1.bf16.msra.mxu0 %v1493
  %1512 = vmatprep.subr.bf16.mxu0 0
  %1513 = vmatpush1.bf16.msra.mxu0 %v1494
  %1514 = vmatprep.subr.bf16.mxu0 0
  %1515 = vmatpush1.bf16.msra.mxu0 %v1495
  %1516 = vmatprep.subr.bf16.mxu0 0
  %1517 = vmatpush1.bf16.msra.mxu0 %v1496
  %1518 = vmatprep.subr.bf16.mxu0 0
  %1519 = vmatpush1.bf16.msra.mxu0 %v1497
  %1520 = vmatprep.subr.bf16.mxu0 0
  %1521 = vmatpush1.bf16.msra.mxu0 %v1498
  %1522 = vmatprep.subr.bf16.mxu0 0
  %1523 = vmatpush1.bf16.msra.mxu0 %v1499
  %1524 = vmatprep.subr.bf16.mxu0 0
  %1525 = vmatpush1.bf16.msra.mxu0 0
  %1526 = vmatprep.subr.bf16.mxu0 0
  %1527 = vmatpush1.bf16.msra.mxu0 0
  %1528 = vmatprep.subr.bf16.mxu0 0
  %1529 = vmatpush1.bf16.msra.mxu0 0
  %1530 = vmatprep.subr.bf16.mxu0 0
  %1531 = vmatpush1.bf16.msra.mxu0 0
  %1532 = vmatprep.subr.bf16.mxu0 0
  %1533 = vmatpush1.bf16.msra.mxu0 0
  %1534 = vmatprep.subr.bf16.mxu0 0
  %1535 = vmatpush1.bf16.msra.mxu0 0
  %1536 = vmatprep.subr.bf16.mxu0 0
  %1537 = vmatpush1.bf16.msra.mxu0 0
  %1538 = vmatprep.subr.bf16.mxu0 0
  %1539 = vmatpush1.bf16.msra.mxu0 0
  %1540 = vmatprep.mubr.bf16.mxu0 0
  %1541 = vmatmul.mubr.bf16.gmra.mrb[0].mxu0 %v1405
  %v1542 = vpop.f32.mrb[0].mxu0
  %v1543 = vadd.f32 %v1458, %v1542
  %v1544 = vpop.f32.mrb[0].mxu0
  %v1545 = vpop.f32.mrb[0].mxu0
  %v1546 = vadd.f32 %v1458, %v1545
  %v1547 = vpop.f32.mrb[0].mxu0
  %1548 = vmatprep.mubr.bf16.mxu0 0
  %1549 = vmatmul.mubr.bf16.gmra.mrb[0].mxu0 %v1406
  %v1550 = vpop.f32.mrb[0].mxu0
  %v1551 = vadd.f32 %v1458, %v1550
  %v1552 = vpop.f32.mrb[0].mxu0
  %v1553 = vpop.f32.mrb[0].mxu0
  %v1554 = vadd.f32 %v1458, %v1553
  %v1555 = vpop.f32.mrb[0].mxu0
  %1556 = vmatprep.mubr.bf16.mxu0 0
  %1557 = vmatmul.mubr.bf16.gmra.mrb[0].mxu0 %v1407
  %v1558 = vpop.f32.mrb[0].mxu0
  %v1559 = vadd.f32 %v1458, %v1558
  %v1560 = vpop.f32.mrb[0].mxu0
  %v1561 = vpop.f32.mrb[0].mxu0
  %v1562 = vadd.f32 %v1458, %v1561
  %v1563 = vpop.f32.mrb[0].mxu0
  %1564 = vmatprep.mubr.bf16.mxu0 0
  %1565 = vmatmul.mubr.bf16.gmra.mrb[0].mxu0 %v1408
  %v1566 = vpop.f32.mrb[0].mxu0
  %v1567 = vadd.f32 %v1458, %v1566
  %v1568 = vpop.f32.mrb[0].mxu0
  %v1569 = vpop.f32.mrb[0].mxu0
  %v1570 = vadd.f32 %v1458, %v1569
  %v1571 = vpop.f32.mrb[0].mxu0
  %1572 = vmatprep.mubr.bf16.mxu0 0
  %1573 = vmatmul.mubr.bf16.gmra.mrb[0].mxu0 %v1409
  %v1574 = vpop.f32.mrb[0].mxu0
  %v1575 = vadd.f32 %v1458, %v1574
  %v1576 = vpop.f32.mrb[0].mxu0
  %v1577 = vpop.f32.mrb[0].mxu0
  %v1578 = vadd.f32 %v1458, %v1577
  %v1579 = vpop.f32.mrb[0].mxu0
  %1580 = vmatprep.mubr.bf16.mxu0 0
  %1581 = vmatmul.mubr.bf16.gmra.mrb[0].mxu0 %v1410
  %v1582 = vpop.f32.mrb[0].mxu0
  %v1583 = vadd.f32 %v1458, %v1582
  %v1584 = vpop.f32.mrb[0].mxu0
  %v1585 = vpop.f32.mrb[0].mxu0
  %v1586 = vadd.f32 %v1458, %v1585
  %v1587 = vpop.f32.mrb[0].mxu0
  %1588 = vmatprep.mubr.bf16.mxu0 0
  %1589 = vmatmul.mubr.bf16.gmra.mrb[0].mxu0 %v1411
  %v1590 = vpop.f32.mrb[0].mxu0
  %v1591 = vadd.f32 %v1458, %v1590
  %v1592 = vpop.f32.mrb[0].mxu0
  %v1593 = vpop.f32.mrb[0].mxu0
  %v1594 = vadd.f32 %v1458, %v1593
  %v1595 = vpop.f32.mrb[0].mxu0
  %1596 = vmatprep.mubr.bf16.mxu0 0
  %1597 = vmatmul.mubr.bf16.gmra.mrb[0].mxu0 %v1412
  %v1598 = vpop.f32.mrb[0].mxu0
  %v1599 = vadd.f32 %v1458, %v1598
  %v1600 = vpop.f32.mrb[0].mxu0
  %v1601 = vpop.f32.mrb[0].mxu0
  %v1602 = vadd.f32 %v1458, %v1601
  %v1603 = vpop.f32.mrb[0].mxu0
  %1604 = vmatprep.mubr.bf16.mxu0 0
  %1605 = vmatmul.mubr.bf16.gmra.mrb[0].mxu0 %v1413
  %v1606 = vpop.f32.mrb[0].mxu0
  %v1607 = vadd.f32 %v1458, %v1606
  %v1608 = vpop.f32.mrb[0].mxu0
  %v1609 = vpop.f32.mrb[0].mxu0
  %v1610 = vadd.f32 %v1458, %v1609
  %v1611 = vpop.f32.mrb[0].mxu0
  %1612 = vmatprep.mubr.bf16.mxu0 0
  %1613 = vmatmul.mubr.bf16.gmra.mrb[0].mxu0 %v1414
  %v1614 = vpop.f32.mrb[0].mxu0
  %v1615 = vadd.f32 %v1458, %v1614
  %v1616 = vpop.f32.mrb[0].mxu0
  %v1617 = vpop.f32.mrb[0].mxu0
  %v1618 = vadd.f32 %v1458, %v1617
  %v1619 = vpop.f32.mrb[0].mxu0
  %1620 = vmatprep.mubr.bf16.mxu0 0
  %1621 = vmatmul.mubr.bf16.gmra.mrb[0].mxu0 %v1415
  %v1622 = vpop.f32.mrb[0].mxu0
  %v1623 = vadd.f32 %v1458, %v1622
  %v1624 = vpop.f32.mrb[0].mxu0
  %v1625 = vpop.f32.mrb[0].mxu0
  %v1626 = vadd.f32 %v1458, %v1625
  %v1627 = vpop.f32.mrb[0].mxu0
  %1628 = vmatprep.mubr.bf16.mxu0 0
  %1629 = vmatmul.mubr.bf16.gmra.mrb[0].mxu0 %v1416
  %v1630 = vpop.f32.mrb[0].mxu0
  %v1631 = vadd.f32 %v1458, %v1630
  %v1632 = vpop.f32.mrb[0].mxu0
  %v1633 = vpop.f32.mrb[0].mxu0
  %v1634 = vadd.f32 %v1458, %v1633
  %v1635 = vpop.f32.mrb[0].mxu0
  %1636 = vmatprep.mubr.bf16.mxu0 0
  %1637 = vmatmul.mubr.bf16.gmra.mrb[0].mxu0 %v1417
  %v1638 = vpop.f32.mrb[0].mxu0
  %v1639 = vadd.f32 %v1458, %v1638
  %v1640 = vpop.f32.mrb[0].mxu0
  %v1641 = vpop.f32.mrb[0].mxu0
  %v1642 = vadd.f32 %v1458, %v1641
  %v1643 = vpop.f32.mrb[0].mxu0
  %1644 = vmatprep.mubr.bf16.mxu0 0
  %1645 = vmatmul.mubr.bf16.gmra.mrb[0].mxu0 %v1418
  %v1646 = vpop.f32.mrb[0].mxu0
  %v1647 = vadd.f32 %v1458, %v1646
  %v1648 = vpop.f32.mrb[0].mxu0
  %v1649 = vpop.f32.mrb[0].mxu0
  %v1650 = vadd.f32 %v1458, %v1649
  %v1651 = vpop.f32.mrb[0].mxu0
  %1652 = vmatprep.mubr.bf16.mxu0 0
  %1653 = vmatmul.mubr.bf16.gmra.mrb[0].mxu0 %v1419
  %v1654 = vpop.f32.mrb[0].mxu0
  %v1655 = vadd.f32 %v1458, %v1654
  %v1656 = vpop.f32.mrb[0].mxu0
  %v1657 = vpop.f32.mrb[0].mxu0
  %v1658 = vadd.f32 %v1458, %v1657
  %v1659 = vpop.f32.mrb[0].mxu0
  %1660 = vmatprep.mubr.bf16.mxu0 0
  %1661 = vmatmul.mubr.bf16.gmra.mrb[0].mxu0 %v1420
  %v1662 = vpop.f32.mrb[0].mxu0
  %v1663 = vadd.f32 %v1458, %v1662
  %v1664 = vpop.f32.mrb[0].mxu0
  %v1665 = vpop.f32.mrb[0].mxu0
  %v1666 = vadd.f32 %v1458, %v1665
  %v1667 = vpop.f32.mrb[0].mxu0
  %1668 = vmatprep.mubr.bf16.mxu0 0
  %1669 = vmatmul.mubr.bf16.gmra.mrb[0].mxu0 %v1421
  %v1670 = vpop.f32.mrb[0].mxu0
  %v1671 = vadd.f32 %v1458, %v1670
  %v1672 = vpop.f32.mrb[0].mxu0
  %v1673 = vpop.f32.mrb[0].mxu0
  %v1674 = vadd.f32 %v1458, %v1673
  %v1675 = vpop.f32.mrb[0].mxu0
  %1676 = vmatprep.mubr.bf16.mxu0 0
  %1677 = vmatmul.mubr.bf16.gmra.mrb[0].mxu0 %v1422
  %v1678 = vpop.f32.mrb[0].mxu0
  %v1679 = vadd.f32 %v1458, %v1678
  %v1680 = vpop.f32.mrb[0].mxu0
  %v1681 = vpop.f32.mrb[0].mxu0
  %v1682 = vadd.f32 %v1458, %v1681
  %v1683 = vpop.f32.mrb[0].mxu0
  %1684 = vmatprep.mubr.bf16.mxu0 0
  %1685 = vmatmul.mubr.bf16.gmra.mrb[0].mxu0 %v1423
  %v1686 = vpop.f32.mrb[0].mxu0
  %v1687 = vadd.f32 %v1458, %v1686
  %v1688 = vpop.f32.mrb[0].mxu0
  %v1689 = vpop.f32.mrb[0].mxu0
  %v1690 = vadd.f32 %v1458, %v1689
  %v1691 = vpop.f32.mrb[0].mxu0
  %1692 = vmatprep.mubr.bf16.mxu0 0
  %1693 = vmatmul.mubr.bf16.gmra.mrb[0].mxu0 %v1424
  %v1694 = vpop.f32.mrb[0].mxu0
  %v1695 = vadd.f32 %v1458, %v1694
  %v1696 = vpop.f32.mrb[0].mxu0
  %v1697 = vpop.f32.mrb[0].mxu0
  %v1698 = vadd.f32 %v1458, %v1697
  %v1699 = vpop.f32.mrb[0].mxu0
  %1700 = vmatprep.mubr.bf16.mxu0 0
  %1701 = vmatmul.mubr.bf16.gmra.mrb[0].mxu0 %v1425
  %v1702 = vpop.f32.mrb[0].mxu0
  %v1703 = vadd.f32 %v1458, %v1702
  %v1704 = vpop.f32.mrb[0].mxu0
  %v1705 = vpop.f32.mrb[0].mxu0
  %v1706 = vadd.f32 %v1458, %v1705
  %v1707 = vpop.f32.mrb[0].mxu0
  %1708 = vmatprep.mubr.bf16.mxu0 0
  %1709 = vmatmul.mubr.bf16.gmra.mrb[0].mxu0 %v1426
  %v1710 = vpop.f32.mrb[0].mxu0
  %v1711 = vadd.f32 %v1458, %v1710
  %v1712 = vpop.f32.mrb[0].mxu0
  %v1713 = vpop.f32.mrb[0].mxu0
  %v1714 = vadd.f32 %v1458, %v1713
  %v1715 = vpop.f32.mrb[0].mxu0
  %1716 = vmatprep.mubr.bf16.mxu0 0
  %1717 = vmatmul.mubr.bf16.gmra.mrb[0].mxu0 %v1427
  %v1718 = vpop.f32.mrb[0].mxu0
  %v1719 = vadd.f32 %v1458, %v1718
  %v1720 = vpop.f32.mrb[0].mxu0
  %v1721 = vpop.f32.mrb[0].mxu0
  %v1722 = vadd.f32 %v1458, %v1721
  %v1723 = vpop.f32.mrb[0].mxu0
  %1724 = vmatprep.mubr.bf16.mxu0 0
  %1725 = vmatmul.mubr.bf16.gmra.mrb[0].mxu0 %v1428
  %v1726 = vpop.f32.mrb[0].mxu0
  %v1727 = vadd.f32 %v1458, %v1726
  %v1728 = vpop.f32.mrb[0].mxu0
  %v1729 = vpop.f32.mrb[0].mxu0
  %v1730 = vadd.f32 %v1458, %v1729
  %v1731 = vpop.f32.mrb[0].mxu0
  %1732 = vmatprep.mubr.bf16.mxu0 0
  %1733 = vmatmul.mubr.bf16.gmra.mrb[0].mxu0 %v1429
  %v1734 = vpop.f32.mrb[0].mxu0
  %v1735 = vadd.f32 %v1458, %v1734
  %v1736 = vpop.f32.mrb[0].mxu0
  %v1737 = vpop.f32.mrb[0].mxu0
  %v1738 = vadd.f32 %v1458, %v1737
  %v1739 = vpop.f32.mrb[0].mxu0
  %1740 = vmatprep.mubr.bf16.mxu0 0
  %1741 = vmatmul.mubr.bf16.gmra.mrb[0].mxu0 %v1430
  %v1742 = vpop.f32.mrb[0].mxu0
  %v1743 = vadd.f32 %v1458, %v1742
  %v1744 = vpop.f32.mrb[0].mxu0
  %v1745 = vpop.f32.mrb[0].mxu0
  %v1746 = vadd.f32 %v1458, %v1745
  %v1747 = vpop.f32.mrb[0].mxu0
  %1748 = vmatprep.mubr.bf16.mxu0 0
  %1749 = vmatmul.mubr.bf16.gmra.mrb[0].mxu0 %v1431
  %v1750 = vpop.f32.mrb[0].mxu0
  %v1751 = vadd.f32 %v1458, %v1750
  %v1752 = vpop.f32.mrb[0].mxu0
  %v1753 = vpop.f32.mrb[0].mxu0
  %v1754 = vadd.f32 %v1458, %v1753
  %v1755 = vpop.f32.mrb[0].mxu0
  %1756 = vmatprep.mubr.bf16.mxu0 0
  %1757 = vmatmul.mubr.bf16.gmra.mrb[0].mxu0 %v1432
  %v1758 = vpop.f32.mrb[0].mxu0
  %v1759 = vadd.f32 %v1458, %v1758
  %v1760 = vpop.f32.mrb[0].mxu0
  %v1761 = vpop.f32.mrb[0].mxu0
  %v1762 = vadd.f32 %v1458, %v1761
  %v1763 = vpop.f32.mrb[0].mxu0
  %1764 = vmatprep.mubr.bf16.mxu0 0
  %1765 = vmatmul.mubr.bf16.gmra.mrb[0].mxu0 %v1433
  %v1766 = vpop.f32.mrb[0].mxu0
  %v1767 = vadd.f32 %v1458, %v1766
  %v1768 = vpop.f32.mrb[0].mxu0
  %v1769 = vpop.f32.mrb[0].mxu0
  %v1770 = vadd.f32 %v1458, %v1769
  %v1771 = vpop.f32.mrb[0].mxu0
  %1772 = vmatprep.mubr.bf16.mxu0 0
  %1773 = vmatmul.mubr.bf16.gmra.mrb[0].mxu0 %v1434
  %v1774 = vpop.f32.mrb[0].mxu0
  %v1775 = vadd.f32 %v1458, %v1774
  %v1776 = vpop.f32.mrb[0].mxu0
  %v1777 = vpop.f32.mrb[0].mxu0
  %v1778 = vadd.f32 %v1458, %v1777
  %v1779 = vpop.f32.mrb[0].mxu0
  %1780 = vmatprep.mubr.bf16.mxu0 0
  %1781 = vmatmul.mubr.bf16.gmra.mrb[0].mxu0 %v1435
  %v1782 = vpop.f32.mrb[0].mxu0
  %v1783 = vadd.f32 %v1458, %v1782
  %v1784 = vpop.f32.mrb[0].mxu0
  %v1785 = vpop.f32.mrb[0].mxu0
  %v1786 = vadd.f32 %v1458, %v1785
  %v1787 = vpop.f32.mrb[0].mxu0
  %1788 = vmatprep.mubr.bf16.mxu0 0
  %1789 = vmatmul.mubr.bf16.gmra.mrb[0].mxu0 %v1436
  %v1790 = vpop.f32.mrb[0].mxu0
  %v1791 = vadd.f32 %v1458, %v1790
  %v1792 = vpop.f32.mrb[0].mxu0
  %v1793 = vpop.f32.mrb[0].mxu0
  %v1794 = vadd.f32 %v1458, %v1793
  %v1795 = vpop.f32.mrb[0].mxu0
  %1796 = vdwg.mxu0
  %v1797 = vpack.c.bf16 %v1546, %v1543
  %v1798 = vpack.c.bf16 %v1554, %v1551
  %v1799 = vpack.c.bf16 %v1562, %v1559
  %v1800 = vpack.c.bf16 %v1570, %v1567
  %v1801 = vpack.c.bf16 %v1578, %v1575
  %v1802 = vpack.c.bf16 %v1586, %v1583
  %v1803 = vpack.c.bf16 %v1594, %v1591
  %v1804 = vpack.c.bf16 %v1602, %v1599
  %v1805 = vpack.c.bf16 %v1610, %v1607
  %v1806 = vpack.c.bf16 %v1618, %v1615
  %v1807 = vpack.c.bf16 %v1626, %v1623
  %v1808 = vpack.c.bf16 %v1634, %v1631
  %v1809 = vpack.c.bf16 %v1642, %v1639
  %v1810 = vpack.c.bf16 %v1650, %v1647
  %v1811 = vpack.c.bf16 %v1658, %v1655
  %v1812 = vpack.c.bf16 %v1666, %v1663
  %v1813 = vpack.c.bf16 %v1674, %v1671
  %v1814 = vpack.c.bf16 %v1682, %v1679
  %v1815 = vpack.c.bf16 %v1690, %v1687
  %v1816 = vpack.c.bf16 %v1698, %v1695
  %v1817 = vpack.c.bf16 %v1706, %v1703
  %v1818 = vpack.c.bf16 %v1714, %v1711
  %v1819 = vpack.c.bf16 %v1722, %v1719
  %v1820 = vpack.c.bf16 %v1730, %v1727
  %v1821 = vpack.c.bf16 %v1738, %v1735
  %v1822 = vpack.c.bf16 %v1746, %v1743
  %v1823 = vpack.c.bf16 %v1754, %v1751
  %v1824 = vpack.c.bf16 %v1762, %v1759
  %v1825 = vpack.c.bf16 %v1770, %v1767
  %v1826 = vpack.c.bf16 %v1778, %v1775
  %v1827 = vpack.c.bf16 %v1786, %v1783
  %v1828 = vpack.c.bf16 %v1794, %v1791
  %v1861 = vunpack.c.l.b16 %v1797
  %v1862 = vunpack.c.h.b16 %v1797
  %v1863 = vunpack.c.l.b16 %v1798
  %v1864 = vunpack.c.h.b16 %v1798
  %v1865 = vunpack.c.l.b16 %v1799
  %v1866 = vunpack.c.h.b16 %v1799
  %v1867 = vunpack.c.l.b16 %v1800
  %v1868 = vunpack.c.h.b16 %v1800
  %v1869 = vunpack.c.l.b16 %v1801
  %v1870 = vunpack.c.h.b16 %v1801
  %v1871 = vunpack.c.l.b16 %v1802
  %v1872 = vunpack.c.h.b16 %v1802
  %v1873 = vunpack.c.l.b16 %v1803
  %v1874 = vunpack.c.h.b16 %v1803
  %v1875 = vunpack.c.l.b16 %v1804
  %v1876 = vunpack.c.h.b16 %v1804
  %v1877 = vunpack.c.l.b16 %v1805
  %v1878 = vunpack.c.h.b16 %v1805
  %v1879 = vunpack.c.l.b16 %v1806
  %v1880 = vunpack.c.h.b16 %v1806
  %v1881 = vunpack.c.l.b16 %v1807
  %v1882 = vunpack.c.h.b16 %v1807
  %v1883 = vunpack.c.l.b16 %v1808
  %v1884 = vunpack.c.h.b16 %v1808
  %v1885 = vunpack.c.l.b16 %v1809
  %v1886 = vunpack.c.h.b16 %v1809
  %v1887 = vunpack.c.l.b16 %v1810
  %v1888 = vunpack.c.h.b16 %v1810
  %v1889 = vunpack.c.l.b16 %v1811
  %v1890 = vunpack.c.h.b16 %v1811
  %v1891 = vunpack.c.l.b16 %v1812
  %v1892 = vunpack.c.h.b16 %v1812
  %v1893 = vunpack.c.l.b16 %v1813
  %v1894 = vunpack.c.h.b16 %v1813
  %v1895 = vunpack.c.l.b16 %v1814
  %v1896 = vunpack.c.h.b16 %v1814
  %v1897 = vunpack.c.l.b16 %v1815
  %v1898 = vunpack.c.h.b16 %v1815
  %v1899 = vunpack.c.l.b16 %v1816
  %v1900 = vunpack.c.h.b16 %v1816
  %v1901 = vunpack.c.l.b16 %v1817
  %v1902 = vunpack.c.h.b16 %v1817
  %v1903 = vunpack.c.l.b16 %v1818
  %v1904 = vunpack.c.h.b16 %v1818
  %v1905 = vunpack.c.l.b16 %v1819
  %v1906 = vunpack.c.h.b16 %v1819
  %v1907 = vunpack.c.l.b16 %v1820
  %v1908 = vunpack.c.h.b16 %v1820
  %v1909 = vunpack.c.l.b16 %v1821
  %v1910 = vunpack.c.h.b16 %v1821
  %v1911 = vunpack.c.l.b16 %v1822
  %v1912 = vunpack.c.h.b16 %v1822
  %v1913 = vunpack.c.l.b16 %v1823
  %v1914 = vunpack.c.h.b16 %v1823
  %v1915 = vunpack.c.l.b16 %v1824
  %v1916 = vunpack.c.h.b16 %v1824
  %v1917 = vunpack.c.l.b16 %v1825
  %v1918 = vunpack.c.h.b16 %v1825
  %v1919 = vunpack.c.l.b16 %v1826
  %v1920 = vunpack.c.h.b16 %v1826
  %v1921 = vunpack.c.l.b16 %v1827
  %v1922 = vunpack.c.h.b16 %v1827
  %v1923 = vunpack.c.l.b16 %v1828
  %v1924 = vunpack.c.h.b16 %v1828
  %v1925 = vpack.c.b16 %v1861, %v1861
  %v1926 = vpack.c.b16 %v1862, %v1862
  %v1927 = vpack.c.b16 %v1863, %v1863
  %v1928 = vpack.c.b16 %v1864, %v1864
  %v1929 = vpack.c.b16 %v1865, %v1865
  %v1930 = vpack.c.b16 %v1866, %v1866
  %v1931 = vpack.c.b16 %v1867, %v1867
  %v1932 = vpack.c.b16 %v1868, %v1868
  %v1933 = vpack.c.b16 %v1869, %v1869
  %v1934 = vpack.c.b16 %v1870, %v1870
  %v1935 = vpack.c.b16 %v1871, %v1871
  %v1936 = vpack.c.b16 %v1872, %v1872
  %v1937 = vpack.c.b16 %v1873, %v1873
  %v1938 = vpack.c.b16 %v1874, %v1874
  %v1939 = vpack.c.b16 %v1875, %v1875
  %v1940 = vpack.c.b16 %v1876, %v1876
  %v1941 = vpack.c.b16 %v1877, %v1877
  %v1942 = vpack.c.b16 %v1878, %v1878
  %v1943 = vpack.c.b16 %v1879, %v1879
  %v1944 = vpack.c.b16 %v1880, %v1880
  %v1945 = vpack.c.b16 %v1881, %v1881
  %v1946 = vpack.c.b16 %v1882, %v1882
  %v1947 = vpack.c.b16 %v1883, %v1883
  %v1948 = vpack.c.b16 %v1884, %v1884
  %v1949 = vpack.c.b16 %v1885, %v1885
  %v1950 = vpack.c.b16 %v1886, %v1886
  %v1951 = vpack.c.b16 %v1887, %v1887
  %v1952 = vpack.c.b16 %v1888, %v1888
  %v1953 = vpack.c.b16 %v1889, %v1889
  %v1954 = vpack.c.b16 %v1890, %v1890
  %v1955 = vpack.c.b16 %v1891, %v1891
  %v1956 = vpack.c.b16 %v1892, %v1892
  %v1957 = vpack.c.b16 %v1893, %v1893
  %v1958 = vpack.c.b16 %v1894, %v1894
  %v1959 = vpack.c.b16 %v1895, %v1895
  %v1960 = vpack.c.b16 %v1896, %v1896
  %v1961 = vpack.c.b16 %v1897, %v1897
  %v1962 = vpack.c.b16 %v1898, %v1898
  %v1963 = vpack.c.b16 %v1899, %v1899
  %v1964 = vpack.c.b16 %v1900, %v1900
  %v1965 = vpack.c.b16 %v1901, %v1901
  %v1966 = vpack.c.b16 %v1902, %v1902
  %v1967 = vpack.c.b16 %v1903, %v1903
  %v1968 = vpack.c.b16 %v1904, %v1904
  %v1969 = vpack.c.b16 %v1905, %v1905
  %v1970 = vpack.c.b16 %v1906, %v1906
  %v1971 = vpack.c.b16 %v1907, %v1907
  %v1972 = vpack.c.b16 %v1908, %v1908
  %v1973 = vpack.c.b16 %v1909, %v1909
  %v1974 = vpack.c.b16 %v1910, %v1910
  %v1975 = vpack.c.b16 %v1911, %v1911
  %v1976 = vpack.c.b16 %v1912, %v1912
  %v1977 = vpack.c.b16 %v1913, %v1913
  %v1978 = vpack.c.b16 %v1914, %v1914
  %v1979 = vpack.c.b16 %v1915, %v1915
  %v1980 = vpack.c.b16 %v1916, %v1916
  %v1981 = vpack.c.b16 %v1917, %v1917
  %v1982 = vpack.c.b16 %v1918, %v1918
  %v1983 = vpack.c.b16 %v1919, %v1919
  %v1984 = vpack.c.b16 %v1920, %v1920
  %v1985 = vpack.c.b16 %v1921, %v1921
  %v1986 = vpack.c.b16 %v1922, %v1922
  %v1987 = vpack.c.b16 %v1923, %v1923
  %v1988 = vpack.c.b16 %v1924, %v1924
  %2053 = vst [vmem:[%s5] sm:$0xf] %v1925
  %2054 = vst [vmem:[%s5 + $0x4] sm:$0xf] %v1926
  %2055 = vst [vmem:[%s5 + $0x8] sm:$0xf] %v1927
  %2056 = vst [vmem:[%s5 + $0xc] sm:$0xf] %v1928
  %2057 = vst [vmem:[%s5 + $0x10] sm:$0xf] %v1929
  %2058 = vst [vmem:[%s5 + $0x14] sm:$0xf] %v1930
  %2059 = vst [vmem:[%s5 + $0x18] sm:$0xf] %v1931
  %2060 = vst [vmem:[%s5 + $0x1c] sm:$0xf] %v1932
  %2061 = vst [vmem:[%s5 + $0x20] sm:$0xf] %v1933
  %2062 = vst [vmem:[%s5 + $0x24] sm:$0xf] %v1934
  %2063 = vst [vmem:[%s5 + $0x28] sm:$0xf] %v1935
  %2064 = vst [vmem:[%s5 + $0x2c] sm:$0xf] %v1936
  %2065 = vst [vmem:[%s5 + $0x30] sm:$0xf] %v1937
  %2066 = vst [vmem:[%s5 + $0x34] sm:$0xf] %v1938
  %2067 = vst [vmem:[%s5 + $0x38] sm:$0xf] %v1939
  %2068 = vst [vmem:[%s5 + $0x3c] sm:$0xf] %v1940
  %2069 = vst [vmem:[%s5 + $0x40] sm:$0xf] %v1941
  %2070 = vst [vmem:[%s5 + $0x44] sm:$0xf] %v1942
  %2071 = vst [vmem:[%s5 + $0x48] sm:$0xf] %v1943
  %2072 = vst [vmem:[%s5 + $0x4c] sm:$0xf] %v1944
  %2073 = vst [vmem:[%s5 + $0x50] sm:$0xf] %v1945
  %2074 = vst [vmem:[%s5 + $0x54] sm:$0xf] %v1946
  %2075 = vst [vmem:[%s5 + $0x58] sm:$0xf] %v1947
  %2076 = vst [vmem:[%s5 + $0x5c] sm:$0xf] %v1948
  %2077 = vst [vmem:[%s5 + $0x60] sm:$0xf] %v1949
  %2078 = vst [vmem:[%s5 + $0x64] sm:$0xf] %v1950
  %2079 = vst [vmem:[%s5 + $0x68] sm:$0xf] %v1951
  %2080 = vst [vmem:[%s5 + $0x6c] sm:$0xf] %v1952
  %2081 = vst [vmem:[%s5 + $0x70] sm:$0xf] %v1953
  %2082 = vst [vmem:[%s5 + $0x74] sm:$0xf] %v1954
  %2083 = vst [vmem:[%s5 + $0x78] sm:$0xf] %v1955
  %2084 = vst [vmem:[%s5 + $0x7c] sm:$0xf] %v1956
  %2085 = vst [vmem:[%s5 + $0x80] sm:$0xf] %v1957
  %2086 = vst [vmem:[%s5 + $0x84] sm:$0xf] %v1958
  %2087 = vst [vmem:[%s5 + $0x88] sm:$0xf] %v1959
  %2088 = vst [vmem:[%s5 + $0x8c] sm:$0xf] %v1960
  %2089 = vst [vmem:[%s5 + $0x90] sm:$0xf] %v1961
  %2090 = vst [vmem:[%s5 + $0x94] sm:$0xf] %v1962
  %2091 = vst [vmem:[%s5 + $0x98] sm:$0xf] %v1963
  %2092 = vst [vmem:[%s5 + $0x9c] sm:$0xf] %v1964
  %2093 = vst [vmem:[%s5 + $0xa0] sm:$0xf] %v1965
  %2094 = vst [vmem:[%s5 + $0xa4] sm:$0xf] %v1966
  %2095 = vst [vmem:[%s5 + $0xa8] sm:$0xf] %v1967
  %2096 = vst [vmem:[%s5 + $0xac] sm:$0xf] %v1968
  %2097 = vst [vmem:[%s5 + $0xb0] sm:$0xf] %v1969
  %2098 = vst [vmem:[%s5 + $0xb4] sm:$0xf] %v1970
  %2099 = vst [vmem:[%s5 + $0xb8] sm:$0xf] %v1971
  %2100 = vst [vmem:[%s5 + $0xbc] sm:$0xf] %v1972
  %2101 = vst [vmem:[%s5 + $0xc0] sm:$0xf] %v1973
  %2102 = vst [vmem:[%s5 + $0xc4] sm:$0xf] %v1974
  %2103 = vst [vmem:[%s5 + $0xc8] sm:$0xf] %v1975
  %2104 = vst [vmem:[%s5 + $0xcc] sm:$0xf] %v1976
  %2105 = vst [vmem:[%s5 + $0xd0] sm:$0xf] %v1977
  %2106 = vst [vmem:[%s5 + $0xd4] sm:$0xf] %v1978
  %2107 = vst [vmem:[%s5 + $0xd8] sm:$0xf] %v1979
  %2108 = vst [vmem:[%s5 + $0xdc] sm:$0xf] %v1980
  %2109 = vst [vmem:[%s5 + $0xe0] sm:$0xf] %v1981
  %2110 = vst [vmem:[%s5 + $0xe4] sm:$0xf] %v1982
  %2111 = vst [vmem:[%s5 + $0xe8] sm:$0xf] %v1983
  %2112 = vst [vmem:[%s5 + $0xec] sm:$0xf] %v1984
  %2113 = vst [vmem:[%s5 + $0xf0] sm:$0xf] %v1985
  %2114 = vst [vmem:[%s5 + $0xf4] sm:$0xf] %v1986
  %2115 = vst [vmem:[%s5 + $0xf8] sm:$0xf] %v1987
  %2116 = vst [vmem:[%s5 + $0xfc] sm:$0xf] %v1988
  // Predicated region
  $region22: #{trans4pass_forward.9} parent=0 // pred_check
    _
  $region23: #{trans4pass_forward.9} parent=0 // pred_check_branch
    %2118 = sbr.rel (0) target = $region25
  $region24: #{trans4pass_forward.9} parent=0 // pred_region
    _
  $region25: #{trans4pass_forward.9} parent=0 // pred_fallthru
    _
  // Predicated region
  $region26: #{trans4pass_forward.9} parent=0 // pred_check
    _
  $region27: #{trans4pass_forward.9} parent=0 // pred_check_branch
    %2120 = sbr.rel (0) target = $region29
  $region28: #{trans4pass_forward.9} parent=0 // pred_region
    _
  $region29: #{trans4pass_forward.9} parent=0 // pred_fallthru
    _

</llo_original>
